<compile_context>
chip_gen: v7x
topology: tpu7x:2x2x1
jax: 0.10.0
libtpu: 0.0.40
codegen_flags: <defaults>
</compile_context>

<pallas_src>
import jax
import jax.numpy as jnp
from jax.experimental import pallas as pl
from jax.experimental.pallas import tpu as pltpu


# ----------------------------------------------------------------------------
# Geometry (fixed by the module: fc1 expects 9216 = 64 * 12 * 12 features,
# which pins the input to 1x28x28).
# ----------------------------------------------------------------------------
H_IN = 28                      # input spatial
K = 3                          # conv kernel size
KW = 2 * K - 1                 # 5 : widened im2col window (covers conv2 taps)
C1, C2 = 32, 64                # conv1 / conv2 output channels
H1 = H_IN - K + 1              # 26 : conv1 output spatial
P1 = H1 * H1                   # 676: flattened rows per image (p = h1*26 + w1)
RPAD = 688                     # 676 padded to a multiple of 16 (bf16 row tile)
HP = 12                        # pooled spatial
NPOOL = HP * HP                # 144
NTAP = K * K                   # 9
NPATCH = KW * KW               # 25 : widened im2col taps
ZW = NTAP * C1                 # 288: nine shifted conv1 copies, concatenated
NFLAT = NPOOL * C2             # 9216
NHIDDEN = 128
NCLASS = 10
POOL_OFFS = (0, 1, H1, H1 + 1)  # the four 2x2 pool candidates of a pooled row

TB_MAX = 8                     # images per grid step in kernel 1 (VMEM-safe on v7x)
TBF_MAX = 256                  # fc rows per grid step in kernel 2
_VMEM_LIMIT = 48 * 1024 * 1024  # stay under v7x's 64 MiB physical VMEM


def _round_up(x, m):
    return ((x + m - 1) // m) * m


# ----------------------------------------------------------------------------
# Kernel 1: conv1 + ReLU + conv2 + ReLU + 2x2 max-pool  (TB images per step)
# ----------------------------------------------------------------------------
def _conv_pool_kernel(p1_ref, w1_ref, b1_ref, w2_ref, b2_ref, sel_ref, out_ref):
    tb = out_ref.shape[0]
    n = tb * RPAD

    # (tb, 688, 25) -> (tb*688, 25): 688 % 16 == 0, so this merge is tile-aligned.
    patches = p1_ref[...].reshape(n, NPATCH)                        # bf16

    # Nine row-shifted copies of relu(conv1) in one GEMM: (n,25) @ (25,288).
    z = jnp.dot(patches, w1_ref[...], preferred_element_type=jnp.float32)
    z = jnp.maximum(z + b1_ref[...], 0.0).astype(jnp.bfloat16)      # (n, 288)

    # conv2 as a single K=288 implicit GEMM (was 9 shifted K=32 matmuls).
    y2 = jnp.dot(z, w2_ref[...], preferred_element_type=jnp.float32)
    y2 = jnp.maximum(y2 + b2_ref[...], 0.0).astype(jnp.bfloat16)    # (n, 64)

    # Fused 2x2 max-pool + compaction.  sel_ref (576, 688) bf16 is precomputed:
    # rows [d*144 + q] pick y2 row 52*(q//12) + 2*(q%12) + POOL_OFFS[d].
    # Rows of y2 with h or w >= 24 (and the 676..687 pad rows) are never picked.
    sel4 = sel_ref[...]
    for b in range(tb):                                             # static unroll
        y2b = y2[b * RPAD:(b + 1) * RPAD, :]                        # aligned slice
        cand = jnp.dot(sel4, y2b, preferred_element_type=jnp.float32)  # (576, 64)
        pooled = jnp.maximum(
            jnp.maximum(cand[0:NPOOL], cand[NPOOL:2 * NPOOL]),
            jnp.maximum(cand[2 * NPOOL:3 * NPOOL], cand[3 * NPOOL:4 * NPOOL]))
        out_ref[b] = pooled.astype(out_ref.dtype)
        # TODO(synk): store lane-dense (72,128) instead of (144,64) if the
        # masked vst epilogue ever shows up in a bundle dump (minor).


def conv_pool(p1, w1z, b1z, w2z, b2, sel4):
    B = p1.shape[0]
    # >= 2 grid steps whenever possible (v7x has 2 TensorCores), capped so the
    # f32 intermediates (~3 MB/image) stay well inside VMEM.
    tb = max(1, min(TB_MAX, B // 2))
    Bp = _round_up(B, tb)
    if Bp != B:
        p1 = jnp.pad(p1, ((0, Bp - B), (0, 0), (0, 0)))
    out = pl.pallas_call(
        _conv_pool_kernel,
        out_shape=jax.ShapeDtypeStruct((Bp, NPOOL, C2), jnp.bfloat16),
        grid=(Bp // tb,),
        in_specs=[
            pl.BlockSpec((tb, RPAD, NPATCH), lambda g: (g, 0, 0)),
            pl.BlockSpec((NPATCH, ZW), lambda g: (0, 0)),
            pl.BlockSpec((1, ZW), lambda g: (0, 0)),
            pl.BlockSpec((ZW, C2), lambda g: (0, 0)),
            pl.BlockSpec((1, C2), lambda g: (0, 0)),
            pl.BlockSpec((4 * NPOOL, RPAD), lambda g: (0, 0)),      # resident
        ],
        out_specs=pl.BlockSpec((tb, NPOOL, C2), lambda g: (g, 0, 0)),
        compiler_params=pltpu.CompilerParams(
            dimension_semantics=("parallel",),
            vmem_limit_bytes=_VMEM_LIMIT),
    )(p1, w1z, b1z, w2z, b2, sel4)
    return out[:B]


# ----------------------------------------------------------------------------
# Kernel 2: fc1 + bias + ReLU + fc2 + bias + log_softmax (fused head)
# ----------------------------------------------------------------------------
def _fc_head_kernel(x_ref, w1_ref, b1_ref, w2_ref, b2_ref, o_ref):
    h = jnp.dot(x_ref[...], w1_ref[...], preferred_element_type=jnp.float32)
    h = jnp.maximum(h + b1_ref[...], 0.0)                           # (tbf, 128) f32
    logits = jnp.dot(h, w2_ref[...], preferred_element_type=jnp.float32)
    logits = logits + b2_ref[...]                                   # (tbf, 10) f32
    m = jnp.max(logits, axis=-1, keepdims=True)
    s = logits - m
    lse = jnp.log(jnp.sum(jnp.exp(s), axis=-1, keepdims=True))
    o_ref[...] = (s - lse).astype(o_ref.dtype)


def fc_head(flat, w1, b1, w2, b2):
    B = flat.shape[0]
    # Big fc row tile (up to 256) to fill the MXU and amortize the resident
    # 2.4 MB fc1 weight, but keep >= 2 grid steps when the batch allows it.
    tbf = min(TBF_MAX, max(8, _round_up(_round_up(B, 8) // 2, 8)))
    Bp = _round_up(B, tbf)
    if Bp != B:
        flat = jnp.pad(flat, ((0, Bp - B), (0, 0)))
    out = pl.pallas_call(
        _fc_head_kernel,
        out_shape=jax.ShapeDtypeStruct((Bp, NCLASS), jnp.float32),
        grid=(Bp // tbf,),
        in_specs=[
            pl.BlockSpec((tbf, NFLAT), lambda m: (m, 0)),
            pl.BlockSpec((NFLAT, NHIDDEN), lambda m: (0, 0)),       # resident
            pl.BlockSpec((1, NHIDDEN), lambda m: (0, 0)),
            pl.BlockSpec((NHIDDEN, NCLASS), lambda m: (0, 0)),
            pl.BlockSpec((1, NCLASS), lambda m: (0, 0)),
        ],
        out_specs=pl.BlockSpec((tbf, NCLASS), lambda m: (m, 0)),
        compiler_params=pltpu.CompilerParams(
            dimension_semantics=("parallel",),
            vmem_limit_bytes=_VMEM_LIMIT),
    )(flat, w1, b1, w2, b2)
    return out[:B]


# ----------------------------------------------------------------------------
# One-time parameter prep: widened conv1 weights, conv2 GEMM weights, pooling
# selection matrix, flatten-permutation fold, bf16 casts.
# ----------------------------------------------------------------------------
def init_params(key):
    ks = jax.random.split(key, 8)

    def w(k, shape, fan_in):
        return (jax.random.normal(k, shape, jnp.float32) /
                jnp.sqrt(jnp.float32(fan_in)))

    return {
        "conv1_w": w(ks[0], (C1, 1, K, K), 1 * K * K),
        "conv1_b": w(ks[1], (C1,), 1 * K * K),
        "conv2_w": w(ks[2], (C2, C1, K, K), C1 * K * K),
        "conv2_b": w(ks[3], (C2,), C1 * K * K),
        "fc1_w": w(ks[4], (NHIDDEN, NFLAT), NFLAT),    # torch Linear: (out, in)
        "fc1_b": w(ks[5], (NHIDDEN,), NFLAT),
        "fc2_w": w(ks[6], (NCLASS, NHIDDEN), NHIDDEN),
        "fc2_b": w(ks[7], (NCLASS,), NHIDDEN),
    }


def prepare_params(p):
    f32, bf16 = jnp.float32, jnp.bfloat16

    # conv1 widened to the 5x5 window: column block (i,j) of w1z reproduces the
    # conv1 output shifted by (i, j), so one GEMM yields all nine copies that
    # the conv2 implicit GEMM needs.
    k1 = jnp.transpose(p["conv1_w"], (2, 3, 1, 0)).reshape(K, K, C1)   # [a,b,c]
    w1z = jnp.zeros((KW, KW, NTAP, C1), f32)
    for i in range(K):
        for j in range(K):
            w1z = w1z.at[i:i + K, j:j + K, i * K + j, :].set(k1)
    w1z = w1z.reshape(NPATCH, ZW).astype(bf16)
    b1z = jnp.tile(p["conv1_b"], NTAP).reshape(1, ZW).astype(f32)

    # conv2 as one K=288 GEMM: row (i*3+j)*32 + cin  ->  cout.
    w2z = jnp.transpose(p["conv2_w"], (2, 3, 1, 0)).reshape(ZW, C2).astype(bf16)
    b2 = p["conv2_b"].reshape(1, C2).astype(f32)

    # Pooling selection: rows [d*144 + q] pick y2 row 52*(q//12)+2*(q%12)+off_d.
    q = jnp.arange(NPOOL)
    base = 2 * H1 * (q // HP) + 2 * (q % HP)
    sel4 = jnp.zeros((4 * NPOOL, RPAD), f32)
    for d, off in enumerate(POOL_OFFS):
        sel4 = sel4.at[d * NPOOL + q, base + off].set(1.0)
    sel4 = sel4.astype(bf16)

    # Fold torch's NCHW flatten (index c*144 + s) into the fc1 weight row order
    # (our flat layout is s*64 + c with s = ph*12 + pw).
    wf1 = (p["fc1_w"].reshape(NHIDDEN, C2, NPOOL)
           .transpose(2, 1, 0).reshape(NFLAT, NHIDDEN).astype(bf16))
    return {
        "w1z": w1z, "b1z": b1z, "w2z": w2z, "b2": b2, "sel4": sel4,
        "wf1": wf1, "bf1": p["fc1_b"].reshape(1, NHIDDEN).astype(f32),
        "wf2": p["fc2_w"].T.astype(f32),
        "bf2": p["fc2_b"].reshape(1, NCLASS).astype(f32),
    }


# ----------------------------------------------------------------------------
# Forward
# ----------------------------------------------------------------------------
def _im2col5(x_nchw):
    # Widened 5x5 im2col (25 taps) on the single input channel; ~34 KB/image in
    # bf16, which buys a single-GEMM conv1->Z with no in-kernel shifted slices.
    B = x_nchw.shape[0]
    xs = x_nchw[:, 0, :, :]                                         # (B, 28, 28)
    xs = jnp.pad(xs, ((0, 0), (0, KW - K), (0, KW - K)))            # (B, 30, 30)
    cols = [xs[:, r:r + H1, s:s + H1].reshape(B, P1)
            for r in range(KW) for s in range(KW)]                  # 25 x (B,676)
    p1 = jnp.stack(cols, axis=-1)                                   # (B, 676, 25)
    p1 = jnp.pad(p1, ((0, 0), (0, RPAD - P1), (0, 0)))              # (B, 688, 25)
    return p1.astype(jnp.bfloat16)


def forward(kp, x_nchw):
    # quant stub: identity (fp32, un-converted module)
    B = x_nchw.shape[0]
    p1 = _im2col5(x_nchw)
    pooled = conv_pool(p1, kp["w1z"], kp["b1z"], kp["w2z"], kp["b2"],
                       kp["sel4"])                                  # (B, 144, 64)
    flat = pooled.reshape(B, NFLAT)                                 # free (h,w,c) flatten
    return fc_head(flat, kp["wf1"], kp["bf1"], kp["wf2"], kp["bf2"])  # (B, 10)


# ----------------------------------------------------------------------------
# Pure-JAX f32 reference (matches the PyTorch module semantics)
# ----------------------------------------------------------------------------
def reference_forward(params, x_nchw):
    dn = ("NCHW", "OIHW", "NCHW")
    y = jax.lax.conv_general_dilated(x_nchw, params["conv1_w"], (1, 1), "VALID",
                                     dimension_numbers=dn)
    y = jnp.maximum(y + params["conv1_b"][None, :, None, None], 0.0)
    y = jax.lax.conv_general_dilated(y, params["conv2_w"], (1, 1), "VALID",
                                     dimension_numbers=dn)
    y = jnp.maximum(y + params["conv2_b"][None, :, None, None], 0.0)
    B, C, H, W = y.shape
    y = y.reshape(B, C, H // 2, 2, W // 2, 2).max(axis=(3, 5))
    y = y.reshape(B, -1)
    y = jnp.maximum(y @ params["fc1_w"].T + params["fc1_b"], 0.0)
    y = y @ params["fc2_w"].T + params["fc2_b"]
    return jax.nn.log_softmax(y, axis=1)


if __name__ == "__main__":
    key = jax.random.PRNGKey(0)
    kx, kparam = jax.random.split(key)
    # fc1 expects 9216 = 64*12*12 features, which fixes the input to 1x28x28.
    x = jax.random.normal(kx, (2, 1, 28, 28), jnp.float32)
    params = init_params(kparam)
    kparams = prepare_params(params)     # one-time layout/bf16 prep

    out = jax.jit(forward)(kparams, x)
    out = jax.block_until_ready(out)
    assert out.shape == (2, 10) and out.dtype == jnp.float32

    ref = reference_forward(params, x)
    err = float(jnp.max(jnp.abs(out - ref)))
    # bf16 MXU operands with f32 accumulation => loose-but-meaningful tolerance
    assert jnp.allclose(out, ref, atol=5e-2, rtol=5e-2), f"max abs err = {err}"

    print("KERNEL_OK")
</pallas_src>

<mosaic_0001>
module attributes {stable_mosaic.version = 11 : i64} {
  func.func @_conv_pool_kernel(%arg0: i32, %arg1: memref<1x688x25xbf16, #tpu.memory_space<vmem>>, %arg2: memref<25x288xbf16, #tpu.memory_space<vmem>>, %arg3: memref<1x288xf32, #tpu.memory_space<vmem>>, %arg4: memref<288x64xbf16, #tpu.memory_space<vmem>>, %arg5: memref<1x64xf32, #tpu.memory_space<vmem>>, %arg6: memref<576x688xbf16, #tpu.memory_space<vmem>>, %arg7: memref<1x144x64xbf16, #tpu.memory_space<vmem>>) attributes {dimension_semantics = [#tpu.dimension_semantics<parallel>], iteration_bounds = array<i64: 2>, scalar_prefetch = 0 : i64, scratch_operands = 0 : i64, tpu.core_type = #tpu.core_type<tc>, window_params = [{transform_indices = @transform_0, window_bounds = array<i64: 1, 688, 25>}, {pipeline_mode = #tpu.pipeline_mode<synchronous>, transform_indices = @transform_1, window_bounds = array<i64: 25, 288>}, {pipeline_mode = #tpu.pipeline_mode<synchronous>, transform_indices = @transform_2, window_bounds = array<i64: 1, 288>}, {pipeline_mode = #tpu.pipeline_mode<synchronous>, transform_indices = @transform_3, window_bounds = array<i64: 288, 64>}, {pipeline_mode = #tpu.pipeline_mode<synchronous>, transform_indices = @transform_4, window_bounds = array<i64: 1, 64>}, {pipeline_mode = #tpu.pipeline_mode<synchronous>, transform_indices = @transform_5, window_bounds = array<i64: 576, 688>}, {transform_indices = @transform_6, window_bounds = array<i64: 1, 144, 64>}]} {
    %c0 = arith.constant 0 : index
    %c0_0 = arith.constant 0 : index
    %c0_1 = arith.constant 0 : index
    %0 = vector.load %arg1[%c0, %c0_0, %c0_1] : memref<1x688x25xbf16, #tpu.memory_space<vmem>>, vector<1x688x25xbf16>
    %1 = vector.shape_cast %0 : vector<1x688x25xbf16> to vector<688x25xbf16>
    %c0_2 = arith.constant 0 : index
    %c0_3 = arith.constant 0 : index
    %2 = vector.load %arg2[%c0_2, %c0_3] : memref<25x288xbf16, #tpu.memory_space<vmem>>, vector<25x288xbf16>
    %cst = arith.constant dense<0.000000e+00> : vector<688x288xf32>
    %3 = tpu.matmul %1, %2, %cst {dimension_numbers = #tpu.dot_dimension_numbers<[1], [0], [0], [1], [0, 0, 1, 1], [], []>} : vector<688x25xbf16>, vector<25x288xbf16>, vector<688x288xf32> -> vector<688x288xf32>
    %c0_4 = arith.constant 0 : index
    %c0_5 = arith.constant 0 : index
    %4 = vector.load %arg3[%c0_4, %c0_5] : memref<1x288xf32, #tpu.memory_space<vmem>>, vector<1x288xf32>
    %5 = vector.broadcast %4 : vector<1x288xf32> to vector<688x288xf32>
    %6 = arith.addf %3, %5 : vector<688x288xf32>
    %cst_6 = arith.constant 0.000000e+00 : f32
    %7 = vector.broadcast %cst_6 : f32 to vector<688x288xf32>
    %8 = arith.maximumf %6, %7 : vector<688x288xf32>
    %9 = arith.truncf %8 : vector<688x288xf32> to vector<688x288xbf16>
    %c0_7 = arith.constant 0 : index
    %c0_8 = arith.constant 0 : index
    %10 = vector.load %arg4[%c0_7, %c0_8] : memref<288x64xbf16, #tpu.memory_space<vmem>>, vector<288x64xbf16>
    %cst_9 = arith.constant dense<0.000000e+00> : vector<688x64xf32>
    %11 = tpu.matmul %9, %10, %cst_9 {dimension_numbers = #tpu.dot_dimension_numbers<[1], [0], [0], [1], [0, 0, 1, 1], [], []>} : vector<688x288xbf16>, vector<288x64xbf16>, vector<688x64xf32> -> vector<688x64xf32>
    %c0_10 = arith.constant 0 : index
    %c0_11 = arith.constant 0 : index
    %12 = vector.load %arg5[%c0_10, %c0_11] : memref<1x64xf32, #tpu.memory_space<vmem>>, vector<1x64xf32>
    %13 = vector.broadcast %12 : vector<1x64xf32> to vector<688x64xf32>
    %14 = arith.addf %11, %13 : vector<688x64xf32>
    %cst_12 = arith.constant 0.000000e+00 : f32
    %15 = vector.broadcast %cst_12 : f32 to vector<688x64xf32>
    %16 = arith.maximumf %14, %15 : vector<688x64xf32>
    %17 = arith.truncf %16 : vector<688x64xf32> to vector<688x64xbf16>
    %c0_13 = arith.constant 0 : index
    %c0_14 = arith.constant 0 : index
    %18 = vector.load %arg6[%c0_13, %c0_14] : memref<576x688xbf16, #tpu.memory_space<vmem>>, vector<576x688xbf16>
    %cst_15 = arith.constant dense<0.000000e+00> : vector<576x64xf32>
    %19 = tpu.matmul %18, %17, %cst_15 {dimension_numbers = #tpu.dot_dimension_numbers<[1], [0], [0], [1], [0, 0, 1, 1], [], []>} : vector<576x688xbf16>, vector<688x64xbf16>, vector<576x64xf32> -> vector<576x64xf32>
    %20 = vector.extract_strided_slice %19 {offsets = [0, 0], sizes = [144, 64], strides = [1, 1]} : vector<576x64xf32> to vector<144x64xf32>
    %21 = vector.extract_strided_slice %19 {offsets = [144, 0], sizes = [144, 64], strides = [1, 1]} : vector<576x64xf32> to vector<144x64xf32>
    %22 = arith.maximumf %20, %21 : vector<144x64xf32>
    %23 = vector.extract_strided_slice %19 {offsets = [288, 0], sizes = [144, 64], strides = [1, 1]} : vector<576x64xf32> to vector<144x64xf32>
    %24 = vector.extract_strided_slice %19 {offsets = [432, 0], sizes = [144, 64], strides = [1, 1]} : vector<576x64xf32> to vector<144x64xf32>
    %25 = arith.maximumf %23, %24 : vector<144x64xf32>
    %26 = arith.maximumf %22, %25 : vector<144x64xf32>
    %27 = arith.truncf %26 : vector<144x64xf32> to vector<144x64xbf16>
    %c0_16 = arith.constant 0 : index
    %c0_17 = arith.constant 0 : index
    %c0_18 = arith.constant 0 : index
    %28 = vector.load %arg7[%c0_16, %c0_17, %c0_18] : memref<1x144x64xbf16, #tpu.memory_space<vmem>>, vector<1x144x64xbf16>
    %29 = vector.shape_cast %28 : vector<1x144x64xbf16> to vector<144x64xbf16>
    %30 = vector.shape_cast %27 : vector<144x64xbf16> to vector<1x144x64xbf16>
    tpu.vector_store %arg7[%c0_16, %c0_17, %c0_18], %30 {strides = array<i32>} : memref<1x144x64xbf16, #tpu.memory_space<vmem>>, vector<1x144x64xbf16>,
    return
  }
  func.func @transform_0(%arg0: i32) -> (i32, i32, i32) {
    %c0_i32 = arith.constant 0 : i32
    %c0_i32_0 = arith.constant 0 : i32
    %c0_i32_1 = arith.constant 0 : i32
    return %arg0, %c0_i32, %c0_i32_0 : i32, i32, i32
  }
  func.func @transform_1(%arg0: i32) -> (i32, i32) {
    %c0_i32 = arith.constant 0 : i32
    %c0_i32_0 = arith.constant 0 : i32
    %c0_i32_1 = arith.constant 0 : i32
    return %c0_i32, %c0_i32_0 : i32, i32
  }
  func.func @transform_2(%arg0: i32) -> (i32, i32) {
    %c0_i32 = arith.constant 0 : i32
    %c0_i32_0 = arith.constant 0 : i32
    %c0_i32_1 = arith.constant 0 : i32
    return %c0_i32, %c0_i32_0 : i32, i32
  }
  func.func @transform_3(%arg0: i32) -> (i32, i32) {
    %c0_i32 = arith.constant 0 : i32
    %c0_i32_0 = arith.constant 0 : i32
    %c0_i32_1 = arith.constant 0 : i32
    return %c0_i32, %c0_i32_0 : i32, i32
  }
  func.func @transform_4(%arg0: i32) -> (i32, i32) {
    %c0_i32 = arith.constant 0 : i32
    %c0_i32_0 = arith.constant 0 : i32
    %c0_i32_1 = arith.constant 0 : i32
    return %c0_i32, %c0_i32_0 : i32, i32
  }
  func.func @transform_5(%arg0: i32) -> (i32, i32) {
    %c0_i32 = arith.constant 0 : i32
    %c0_i32_0 = arith.constant 0 : i32
    %c0_i32_1 = arith.constant 0 : i32
    return %c0_i32, %c0_i32_0 : i32, i32
  }
  func.func @transform_6(%arg0: i32) -> (i32, i32, i32) {
    %c0_i32 = arith.constant 0 : i32
    %c0_i32_0 = arith.constant 0 : i32
    %c0_i32_1 = arith.constant 0 : i32
    return %arg0, %c0_i32, %c0_i32_0 : i32, i32, i32
  }
}

module attributes {stable_mosaic.version = 11 : i64} {
  func.func @_fc_head_kernel(%arg0: i32, %arg1: memref<8x9216xbf16, #tpu.memory_space<vmem>>, %arg2: memref<9216x128xbf16, #tpu.memory_space<vmem>>, %arg3: memref<1x128xf32, #tpu.memory_space<vmem>>, %arg4: memref<128x10xf32, #tpu.memory_space<vmem>>, %arg5: memref<1x10xf32, #tpu.memory_space<vmem>>, %arg6: memref<8x10xf32, #tpu.memory_space<vmem>>) attributes {dimension_semantics = [#tpu.dimension_semantics<parallel>], iteration_bounds = array<i64: 1>, scalar_prefetch = 0 : i64, scratch_operands = 0 : i64, tpu.core_type = #tpu.core_type<tc>, window_params = [{transform_indices = @transform_0, window_bounds = array<i64: 8, 9216>}, {pipeline_mode = #tpu.pipeline_mode<synchronous>, transform_indices = @transform_1, window_bounds = array<i64: 9216, 128>}, {pipeline_mode = #tpu.pipeline_mode<synchronous>, transform_indices = @transform_2, window_bounds = array<i64: 1, 128>}, {pipeline_mode = #tpu.pipeline_mode<synchronous>, transform_indices = @transform_3, window_bounds = array<i64: 128, 10>}, {pipeline_mode = #tpu.pipeline_mode<synchronous>, transform_indices = @transform_4, window_bounds = array<i64: 1, 10>}, {transform_indices = @transform_5, window_bounds = array<i64: 8, 10>}]} {
    %c0 = arith.constant 0 : index
    %c0_0 = arith.constant 0 : index
    %0 = vector.load %arg1[%c0, %c0_0] : memref<8x9216xbf16, #tpu.memory_space<vmem>>, vector<8x9216xbf16>
    %c0_1 = arith.constant 0 : index
    %c0_2 = arith.constant 0 : index
    %1 = vector.load %arg2[%c0_1, %c0_2] : memref<9216x128xbf16, #tpu.memory_space<vmem>>, vector<9216x128xbf16>
    %cst = arith.constant dense<0.000000e+00> : vector<8x128xf32>
    %2 = tpu.matmul %0, %1, %cst {dimension_numbers = #tpu.dot_dimension_numbers<[1], [0], [0], [1], [0, 0, 1, 1], [], []>} : vector<8x9216xbf16>, vector<9216x128xbf16>, vector<8x128xf32> -> vector<8x128xf32>
    %c0_3 = arith.constant 0 : index
    %c0_4 = arith.constant 0 : index
    %3 = vector.load %arg3[%c0_3, %c0_4] : memref<1x128xf32, #tpu.memory_space<vmem>>, vector<1x128xf32>
    %4 = vector.broadcast %3 : vector<1x128xf32> to vector<8x128xf32>
    %5 = arith.addf %2, %4 : vector<8x128xf32>
    %cst_5 = arith.constant 0.000000e+00 : f32
    %6 = vector.broadcast %cst_5 : f32 to vector<8x128xf32>
    %7 = arith.maximumf %5, %6 : vector<8x128xf32>
    %c0_6 = arith.constant 0 : index
    %c0_7 = arith.constant 0 : index
    %8 = vector.load %arg4[%c0_6, %c0_7] : memref<128x10xf32, #tpu.memory_space<vmem>>, vector<128x10xf32>
    %cst_8 = arith.constant dense<0.000000e+00> : vector<8x10xf32>
    %9 = tpu.matmul %7, %8, %cst_8 {dimension_numbers = #tpu.dot_dimension_numbers<[1], [0], [0], [1], [0, 0, 1, 1], [], []>} : vector<8x128xf32>, vector<128x10xf32>, vector<8x10xf32> -> vector<8x10xf32>
    %c0_9 = arith.constant 0 : index
    %c0_10 = arith.constant 0 : index
    %10 = vector.load %arg5[%c0_9, %c0_10] : memref<1x10xf32, #tpu.memory_space<vmem>>, vector<1x10xf32>
    %11 = vector.broadcast %10 : vector<1x10xf32> to vector<8x10xf32>
    %12 = arith.addf %9, %11 : vector<8x10xf32>
    %cst_11 = arith.constant dense<0xFF800000> : vector<8xf32>
    %13 = vector.multi_reduction <maximumf>, %12, %cst_11 [1] : vector<8x10xf32> to vector<8xf32>
    %14 = vector.shape_cast %13 : vector<8xf32> to vector<8x1xf32>
    %15 = vector.broadcast %14 : vector<8x1xf32> to vector<8x10xf32>
    %16 = arith.subf %12, %15 : vector<8x10xf32>
    %17 = math.exp %16 : vector<8x10xf32>
    %cst_12 = arith.constant dense<0.000000e+00> : vector<8xf32>
    %18 = vector.multi_reduction <add>, %17, %cst_12 [1] : vector<8x10xf32> to vector<8xf32>
    %19 = vector.shape_cast %18 : vector<8xf32> to vector<8x1xf32>
    %20 = math.log %19 : vector<8x1xf32>
    %21 = vector.broadcast %20 : vector<8x1xf32> to vector<8x10xf32>
    %22 = arith.subf %16, %21 : vector<8x10xf32>
    %c0_13 = arith.constant 0 : index
    %c0_14 = arith.constant 0 : index
    %23 = vector.load %arg6[%c0_13, %c0_14] : memref<8x10xf32, #tpu.memory_space<vmem>>, vector<8x10xf32>
    tpu.vector_store %arg6[%c0_13, %c0_14], %22 {strides = array<i32>} : memref<8x10xf32, #tpu.memory_space<vmem>>, vector<8x10xf32>,
    return
  }
  func.func @transform_0(%arg0: i32) -> (i32, i32) {
    %c0_i32 = arith.constant 0 : i32
    %c0_i32_0 = arith.constant 0 : i32
    return %arg0, %c0_i32 : i32, i32
  }
  func.func @transform_1(%arg0: i32) -> (i32, i32) {
    %c0_i32 = arith.constant 0 : i32
    %c0_i32_0 = arith.constant 0 : i32
    %c0_i32_1 = arith.constant 0 : i32
    return %c0_i32, %c0_i32_0 : i32, i32
  }
  func.func @transform_2(%arg0: i32) -> (i32, i32) {
    %c0_i32 = arith.constant 0 : i32
    %c0_i32_0 = arith.constant 0 : i32
    %c0_i32_1 = arith.constant 0 : i32
    return %c0_i32, %c0_i32_0 : i32, i32
  }
  func.func @transform_3(%arg0: i32) -> (i32, i32) {
    %c0_i32 = arith.constant 0 : i32
    %c0_i32_0 = arith.constant 0 : i32
    %c0_i32_1 = arith.constant 0 : i32
    return %c0_i32, %c0_i32_0 : i32, i32
  }
  func.func @transform_4(%arg0: i32) -> (i32, i32) {
    %c0_i32 = arith.constant 0 : i32
    %c0_i32_0 = arith.constant 0 : i32
    %c0_i32_1 = arith.constant 0 : i32
    return %c0_i32, %c0_i32_0 : i32, i32
  }
  func.func @transform_5(%arg0: i32) -> (i32, i32) {
    %c0_i32 = arith.constant 0 : i32
    %c0_i32_0 = arith.constant 0 : i32
    return %arg0, %c0_i32 : i32, i32
  }
}

</mosaic_0001>

<llo_original>
// kernel: forward.2
$region0: #{forward.2}
  #allocation0 [shape = 'u32[]', space=smem, size = 0x4, offset = 0x4, fixed_abs, tag = 'smem constant byte address 0x4 - core index']
  #allocation1 [shape = 'u32[144,128]{1,0:T(1,128)}', space=vmem, size = 0x12000, scoped, tag = 'internal scratch']
  %s0 = inlined_call_operand.vmem [shape: bf16[2,688,25], index: 0, kind: input, shape index: {}]
  %s1 = inlined_call_operand.vmem [shape: bf16[25,288], index: 1, kind: input, shape index: {}]
  %s2 = inlined_call_operand.vmem [shape: f32[1,288], index: 2, kind: input, shape index: {}]
  %s3 = inlined_call_operand.vmem [shape: bf16[288,64], index: 3, kind: input, shape index: {}]
  %s4 = inlined_call_operand.vmem [shape: f32[1,64], index: 4, kind: input, shape index: {}]
  %s5 = inlined_call_operand.vmem [shape: bf16[576,688], index: 5, kind: input, shape index: {}]
  %s6 = inlined_call_operand.vmem [shape: bf16[2,144,64], index: 6, kind: output, shape index: {}]
  %s7 = sld [smem:[#allocation0]]
  $region57: #{forward.2} parent=0
    _
  %s9 = ssub.s32 1, %s7
  %s10 = scalar_select 0, %s9, %s7
  loop: start=0, step=1, limit=4
  $region2: #{forward.2} parent=0 // loop_pre_header
    _
  $region3: #{forward.2} parent=0 // loop_header
    %s12 = sphi 0, %s16
    %p13 = scmp.ge.s32.totalorder %s12, 4
    %s22 = sphi 0, %s24
    %s25 = sphi 0, %s22
    %s26 = sphi 0, %s25
    %s42 = sphi 0, %s26
    %s46 = sphi 0, %s46
    %s48 = sphi 0, %s46
    %s49 = sphi 0, %s48
    %s63 = sphi 0, %s49
    %s67 = sphi 0, %s67
    %s69 = sphi 0, %s67
    %s70 = sphi 0, %s69
    %s84 = sphi 0, %s70
    %s88 = sphi 0, %s88
    %s90 = sphi 0, %s88
    %s91 = sphi 0, %s90
    %s105 = sphi 0, %s91
    %s109 = sphi 0, %s109
    %s111 = sphi 0, %s109
    %s112 = sphi 0, %s111
    %s126 = sphi 0, %s112
    %s130 = sphi 0, %s130
    %s132 = sphi 0, %s130
    %s133 = sphi 0, %s132
    %s147 = sphi 0, %s133
    %s153 = sphi 0, %s155
    %s156 = sphi 0, %s153
    %s157 = sphi 0, %s156
    %s173 = sphi 0, %s157
  $region4: #{forward.2} parent=0 // loop_header_branch
    %15 = sbr.rel (%p13) target = $region8
  $region5: #{forward.2} parent=0 // loop_body
    %s17 = ssub.s32 %s12, 1
    %s18 = ssub.s32 %s12, 2
    %s19 = sadd.s32 %s12, 1
    %s20 = ssub.s32 %s12, %s19
    %p21 = scmp.eq.s32.totalorder %s20, 0
    %s23 = sadd.s32 %s22, 1
    %s24 = scalar_select %p21, %s22, %s23
    %p27 = pneg %p21
    %p28 = scmp.eq.s32.totalorder %s12, 1
    %p29 = por %p27, %p28
    %p30 = scmp.ne.s32.totalorder %s22, %s25
    %p31 = scmp.eq.s32.totalorder %s12, 0
    %p32 = por %p30, %p31
    %p33 = scmp.ne.s32.totalorder %s22, %s25
    %p34 = scmp.eq.s32.totalorder %s17, 1
    %p35 = por %p33, %p34
    %p36 = scmp.ne.s32.totalorder %s25, %s26
    %p37 = scmp.eq.s32.totalorder %s17, 0
    %p38 = por %p36, %p37
    %p39 = scmp.ne.s32.totalorder %s25, %s26
    %p40 = scmp.eq.s32.totalorder %s18, 1
    %p41 = por %p39, %p40
    %p43 = scmp.ne.s32.totalorder %s26, %s42
    %p44 = scmp.eq.s32.totalorder %s18, 0
    %p45 = por %p43, %p44
    %s47 = sadd.s32 %s46, 1
    %p50 = scmp.eq.s32.totalorder %s12, 1
    %p51 = scmp.ne.s32.totalorder %s46, %s48
    %p52 = scmp.eq.s32.totalorder %s12, 0
    %p53 = por %p51, %p52
    %p54 = scmp.ne.s32.totalorder %s46, %s48
    %p55 = scmp.eq.s32.totalorder %s17, 1
    %p56 = por %p54, %p55
    %p57 = scmp.ne.s32.totalorder %s48, %s49
    %p58 = scmp.eq.s32.totalorder %s17, 0
    %p59 = por %p57, %p58
    %p60 = scmp.ne.s32.totalorder %s48, %s49
    %p61 = scmp.eq.s32.totalorder %s18, 1
    %p62 = por %p60, %p61
    %p64 = scmp.ne.s32.totalorder %s49, %s63
    %p65 = scmp.eq.s32.totalorder %s18, 0
    %p66 = por %p64, %p65
    %s68 = sadd.s32 %s67, 1
    %p71 = scmp.eq.s32.totalorder %s12, 1
    %p72 = scmp.ne.s32.totalorder %s67, %s69
    %p73 = scmp.eq.s32.totalorder %s12, 0
    %p74 = por %p72, %p73
    %p75 = scmp.ne.s32.totalorder %s67, %s69
    %p76 = scmp.eq.s32.totalorder %s17, 1
    %p77 = por %p75, %p76
    %p78 = scmp.ne.s32.totalorder %s69, %s70
    %p79 = scmp.eq.s32.totalorder %s17, 0
    %p80 = por %p78, %p79
    %p81 = scmp.ne.s32.totalorder %s69, %s70
    %p82 = scmp.eq.s32.totalorder %s18, 1
    %p83 = por %p81, %p82
    %p85 = scmp.ne.s32.totalorder %s70, %s84
    %p86 = scmp.eq.s32.totalorder %s18, 0
    %p87 = por %p85, %p86
    %s89 = sadd.s32 %s88, 1
    %p92 = scmp.eq.s32.totalorder %s12, 1
    %p93 = scmp.ne.s32.totalorder %s88, %s90
    %p94 = scmp.eq.s32.totalorder %s12, 0
    %p95 = por %p93, %p94
    %p96 = scmp.ne.s32.totalorder %s88, %s90
    %p97 = scmp.eq.s32.totalorder %s17, 1
    %p98 = por %p96, %p97
    %p99 = scmp.ne.s32.totalorder %s90, %s91
    %p100 = scmp.eq.s32.totalorder %s17, 0
    %p101 = por %p99, %p100
    %p102 = scmp.ne.s32.totalorder %s90, %s91
    %p103 = scmp.eq.s32.totalorder %s18, 1
    %p104 = por %p102, %p103
    %p106 = scmp.ne.s32.totalorder %s91, %s105
    %p107 = scmp.eq.s32.totalorder %s18, 0
    %p108 = por %p106, %p107
    %s110 = sadd.s32 %s109, 1
    %p113 = scmp.eq.s32.totalorder %s12, 1
    %p114 = scmp.ne.s32.totalorder %s109, %s111
    %p115 = scmp.eq.s32.totalorder %s12, 0
    %p116 = por %p114, %p115
    %p117 = scmp.ne.s32.totalorder %s109, %s111
    %p118 = scmp.eq.s32.totalorder %s17, 1
    %p119 = por %p117, %p118
    %p120 = scmp.ne.s32.totalorder %s111, %s112
    %p121 = scmp.eq.s32.totalorder %s17, 0
    %p122 = por %p120, %p121
    %p123 = scmp.ne.s32.totalorder %s111, %s112
    %p124 = scmp.eq.s32.totalorder %s18, 1
    %p125 = por %p123, %p124
    %p127 = scmp.ne.s32.totalorder %s112, %s126
    %p128 = scmp.eq.s32.totalorder %s18, 0
    %p129 = por %p127, %p128
    %s131 = sadd.s32 %s130, 1
    %p134 = scmp.eq.s32.totalorder %s12, 1
    %p135 = scmp.ne.s32.totalorder %s130, %s132
    %p136 = scmp.eq.s32.totalorder %s12, 0
    %p137 = por %p135, %p136
    %p138 = scmp.ne.s32.totalorder %s130, %s132
    %p139 = scmp.eq.s32.totalorder %s17, 1
    %p140 = por %p138, %p139
    %p141 = scmp.ne.s32.totalorder %s132, %s133
    %p142 = scmp.eq.s32.totalorder %s17, 0
    %p143 = por %p141, %p142
    %p144 = scmp.ne.s32.totalorder %s132, %s133
    %p145 = scmp.eq.s32.totalorder %s18, 1
    %p146 = por %p144, %p145
    %p148 = scmp.ne.s32.totalorder %s133, %s147
    %p149 = scmp.eq.s32.totalorder %s18, 0
    %p150 = por %p148, %p149
    %s151 = ssub.s32 %s12, %s19
    %p152 = scmp.eq.s32.totalorder %s151, 0
    %s154 = sadd.s32 %s153, 1
    %s155 = scalar_select %p152, %s153, %s154
    %p158 = pneg %p152
    %p159 = scmp.eq.s32.totalorder %s12, 1
    %p160 = por %p158, %p159
    %p161 = scmp.ne.s32.totalorder %s153, %s156
    %p162 = scmp.eq.s32.totalorder %s12, 0
    %p163 = por %p161, %p162
    %p164 = scmp.ne.s32.totalorder %s153, %s156
    %p165 = scmp.eq.s32.totalorder %s17, 1
    %p166 = por %p164, %p165
    %p167 = scmp.ne.s32.totalorder %s156, %s157
    %p168 = scmp.eq.s32.totalorder %s17, 0
    %p169 = por %p167, %p168
    %p170 = scmp.ne.s32.totalorder %s156, %s157
    %p171 = scmp.eq.s32.totalorder %s18, 1
    %p172 = por %p170, %p171
    %p174 = scmp.ne.s32.totalorder %s157, %s173
    %p175 = scmp.eq.s32.totalorder %s18, 0
    %p176 = por %p174, %p175
    %p177 = scmp.le.s32.totalorder 1, %s12
    %p178 = scmp.lt.s32.totalorder %s12, 3
    %p179 = pnand %p177, %p178
    %p180 = pneg %p179
    // Predicated region
    $region9: #{forward.2} parent=5 // pred_check
      _
    $region10: #{forward.2} parent=5 // pred_check_branch
      %182 = sbr.rel (%p179) target = $region12
    $region11: #{forward.2} parent=5 // pred_region
      %s183 = ssub.s32 %s12, 1
      // Predicated region
      $region13: #{forward.2} parent=11 // pred_check
        %p184 = pneg %p59
      $region14: #{forward.2} parent=11 // pred_check_branch
        %186 = sbr.rel (%p184) target = $region16
      $region15: #{forward.2} parent=11 // pred_region
        _
      $region16: #{forward.2} parent=11 // pred_fallthru
        _
      // Predicated region
      $region17: #{forward.2} parent=11 // pred_check
        %p187 = pneg %p80
      $region18: #{forward.2} parent=11 // pred_check_branch
        %189 = sbr.rel (%p187) target = $region20
      $region19: #{forward.2} parent=11 // pred_region
        _
      $region20: #{forward.2} parent=11 // pred_fallthru
        _
      // Predicated region
      $region21: #{forward.2} parent=11 // pred_check
        %p190 = pneg %p101
      $region22: #{forward.2} parent=11 // pred_check_branch
        %192 = sbr.rel (%p190) target = $region24
      $region23: #{forward.2} parent=11 // pred_region
        _
      $region24: #{forward.2} parent=11 // pred_fallthru
        _
      // Predicated region
      $region25: #{forward.2} parent=11 // pred_check
        %p193 = pneg %p122
      $region26: #{forward.2} parent=11 // pred_check_branch
        %195 = sbr.rel (%p193) target = $region28
      $region27: #{forward.2} parent=11 // pred_region
        _
      $region28: #{forward.2} parent=11 // pred_fallthru
        _
      // Predicated region
      $region29: #{forward.2} parent=11 // pred_check
        %p196 = pneg %p143
      $region30: #{forward.2} parent=11 // pred_check_branch
        %198 = sbr.rel (%p196) target = $region32
      $region31: #{forward.2} parent=11 // pred_region
        _
      $region32: #{forward.2} parent=11 // pred_fallthru
        _
    $region12: #{forward.2} parent=5 // pred_fallthru
      _
    %p199 = scmp.lt.s32.totalorder %s12, 2
    // Predicated region
    $region33: #{forward.2} parent=5 // pred_check
      %p200 = pneg %p199
    $region34: #{forward.2} parent=5 // pred_check_branch
      %202 = sbr.rel (%p200) target = $region36
    $region35: #{forward.2} parent=5 // pred_region
      // Predicated region
      $region37: #{forward.2} parent=35 // pred_check
        %p203 = pneg %p32
      $region38: #{forward.2} parent=35 // pred_check_branch
        %205 = sbr.rel (%p203) target = $region40
      $region39: #{forward.2} parent=35 // pred_region
        %p206 = scmp.lt.s32.totalorder %s12, 1
        %s207 = scalar_select %p206, %s12, 1
        %s208 = smul.addr %s207, 86
        %s209 = smul.addr %s208, 4
        %s210 = scalar_lea.vmem %s0, %s209
      $region40: #{forward.2} parent=35 // pred_fallthru
        _
    $region36: #{forward.2} parent=5 // pred_fallthru
      _
    %p211 = scmp.le.s32.totalorder 1, %s12
    %p212 = scmp.lt.s32.totalorder %s12, 3
    %p213 = pnand %p211, %p212
    %p214 = pneg %p213
    // Predicated region
    $region41: #{forward.2} parent=5 // pred_check
      _
    $region42: #{forward.2} parent=5 // pred_check_branch
      %216 = sbr.rel (%p213) target = $region44
    $region43: #{forward.2} parent=5 // pred_region
      %s217 = ssub.s32 %s12, 1
      %p218 = scmp.lt.s32.totalorder %s17, 1
      %s219 = scalar_select %p218, %s17, 1
      %s220 = smul.addr %s219, 86
      %s221 = smul.addr %s220, 4
      %s222 = scalar_lea.vmem %s0, %s221
      %p223 = pneg %p38
      %p224 = pneg %p35
      %p225 = pneg %p59
      %p226 = pneg %p56
      %p227 = pneg %p80
      %p228 = pneg %p77
      %p229 = pneg %p101
      %p230 = pneg %p98
      %p231 = pneg %p122
      %p232 = pneg %p119
      %p233 = pneg %p143
      %p234 = pneg %p140
      %p235 = pneg %p169
      %p236 = pneg %p166
      %p237 = scmp.lt.s32.totalorder %s17, 1
      %s238 = scalar_select %p237, %s17, 1
      %s239 = smul.addr %s238, 18
      %s240 = smul.addr %s239, 4
      %s241 = scalar_lea.vmem %s6, %s240
      %p242 = scmp.lt.s32.totalorder %s17, 1
      %s243 = scalar_select %p242, %s17, 1
      %s244 = smul.addr %s243, 86
      %s245 = smul.addr %s244, 4
      %s246 = scalar_lea.vmem %s0, %s245
      %p247 = scmp.lt.s32.totalorder %s17, 1
      %s248 = scalar_select %p247, %s17, 1
      %s249 = smul.addr %s248, 18
      %s250 = smul.addr %s249, 4
      %s251 = scalar_lea.vmem %s6, %s250
      %v253 = vld [vmem:[%s246] sm:$0xf]
      %v254 = vld [vmem:[%s246 + $0x4] sm:$0xf]
      %v255 = vld [vmem:[%s246 + $0x8] sm:$0xf]
      %v256 = vld [vmem:[%s246 + $0xc] sm:$0xf]
      %v257 = vld [vmem:[%s246 + $0x10] sm:$0xf]
      %v258 = vld [vmem:[%s246 + $0x14] sm:$0xf]
      %v259 = vld [vmem:[%s246 + $0x18] sm:$0xf]
      %v260 = vld [vmem:[%s246 + $0x1c] sm:$0xf]
      %v261 = vld [vmem:[%s246 + $0x20] sm:$0xf]
      %v262 = vld [vmem:[%s246 + $0x24] sm:$0xf]
      %v263 = vld [vmem:[%s246 + $0x28] sm:$0xf]
      %v264 = vld [vmem:[%s246 + $0x2c] sm:$0xf]
      %v265 = vld [vmem:[%s246 + $0x30] sm:$0xf]
      %v266 = vld [vmem:[%s246 + $0x34] sm:$0xf]
      %v267 = vld [vmem:[%s246 + $0x38] sm:$0xf]
      %v268 = vld [vmem:[%s246 + $0x3c] sm:$0xf]
      %v269 = vld [vmem:[%s246 + $0x40] sm:$0xf]
      %v270 = vld [vmem:[%s246 + $0x44] sm:$0xf]
      %v271 = vld [vmem:[%s246 + $0x48] sm:$0xf]
      %v272 = vld [vmem:[%s246 + $0x4c] sm:$0xf]
      %v273 = vld [vmem:[%s246 + $0x50] sm:$0xf]
      %v274 = vld [vmem:[%s246 + $0x54] sm:$0xf]
      %v275 = vld [vmem:[%s246 + $0x58] sm:$0xf]
      %v276 = vld [vmem:[%s246 + $0x5c] sm:$0xf]
      %v277 = vld [vmem:[%s246 + $0x60] sm:$0xf]
      %v278 = vld [vmem:[%s246 + $0x64] sm:$0xf]
      %v279 = vld [vmem:[%s246 + $0x68] sm:$0xf]
      %v280 = vld [vmem:[%s246 + $0x6c] sm:$0xf]
      %v281 = vld [vmem:[%s246 + $0x70] sm:$0xf]
      %v282 = vld [vmem:[%s246 + $0x74] sm:$0xf]
      %v283 = vld [vmem:[%s246 + $0x78] sm:$0xf]
      %v284 = vld [vmem:[%s246 + $0x7c] sm:$0xf]
      %v285 = vld [vmem:[%s246 + $0x80] sm:$0xf]
      %v286 = vld [vmem:[%s246 + $0x84] sm:$0xf]
      %v287 = vld [vmem:[%s246 + $0x88] sm:$0xf]
      %v288 = vld [vmem:[%s246 + $0x8c] sm:$0xf]
      %v289 = vld [vmem:[%s246 + $0x90] sm:$0xf]
      %v290 = vld [vmem:[%s246 + $0x94] sm:$0xf]
      %v291 = vld [vmem:[%s246 + $0x98] sm:$0xf]
      %v292 = vld [vmem:[%s246 + $0x9c] sm:$0xf]
      %v293 = vld [vmem:[%s246 + $0xa0] sm:$0xf]
      %v294 = vld [vmem:[%s246 + $0xa4] sm:$0xf]
      %v295 = vld [vmem:[%s246 + $0xa8] sm:$0xf]
      %v296 = vld [vmem:[%s246 + $0xac] sm:$0xf]
      %v297 = vld [vmem:[%s246 + $0xb0] sm:$0xf]
      %v298 = vld [vmem:[%s246 + $0xb4] sm:$0xf]
      %v299 = vld [vmem:[%s246 + $0xb8] sm:$0xf]
      %v300 = vld [vmem:[%s246 + $0xbc] sm:$0xf]
      %v301 = vld [vmem:[%s246 + $0xc0] sm:$0xf]
      %v302 = vld [vmem:[%s246 + $0xc4] sm:$0xf]
      %v303 = vld [vmem:[%s246 + $0xc8] sm:$0xf]
      %v304 = vld [vmem:[%s246 + $0xcc] sm:$0xf]
      %v305 = vld [vmem:[%s246 + $0xd0] sm:$0xf]
      %v306 = vld [vmem:[%s246 + $0xd4] sm:$0xf]
      %v307 = vld [vmem:[%s246 + $0xd8] sm:$0xf]
      %v308 = vld [vmem:[%s246 + $0xdc] sm:$0xf]
      %v309 = vld [vmem:[%s246 + $0xe0] sm:$0xf]
      %v310 = vld [vmem:[%s246 + $0xe4] sm:$0xf]
      %v311 = vld [vmem:[%s246 + $0xe8] sm:$0xf]
      %v312 = vld [vmem:[%s246 + $0xec] sm:$0xf]
      %v313 = vld [vmem:[%s246 + $0xf0] sm:$0xf]
      %v314 = vld [vmem:[%s246 + $0xf4] sm:$0xf]
      %v315 = vld [vmem:[%s246 + $0xf8] sm:$0xf]
      %v316 = vld [vmem:[%s246 + $0xfc] sm:$0xf]
      %v317 = vld [vmem:[%s246 + $0x100] sm:$0xf]
      %v318 = vld [vmem:[%s246 + $0x104] sm:$0xf]
      %v319 = vld [vmem:[%s246 + $0x108] sm:$0xf]
      %v320 = vld [vmem:[%s246 + $0x10c] sm:$0xf]
      %v321 = vld [vmem:[%s246 + $0x110] sm:$0xf]
      %v322 = vld [vmem:[%s246 + $0x114] sm:$0xf]
      %v323 = vld [vmem:[%s246 + $0x118] sm:$0xf]
      %v324 = vld [vmem:[%s246 + $0x11c] sm:$0xf]
      %v325 = vld [vmem:[%s246 + $0x120] sm:$0xf]
      %v326 = vld [vmem:[%s246 + $0x124] sm:$0xf]
      %v327 = vld [vmem:[%s246 + $0x128] sm:$0xf]
      %v328 = vld [vmem:[%s246 + $0x12c] sm:$0xf]
      %v329 = vld [vmem:[%s246 + $0x130] sm:$0xf]
      %v330 = vld [vmem:[%s246 + $0x134] sm:$0xf]
      %v331 = vld [vmem:[%s246 + $0x138] sm:$0xf]
      %v332 = vld [vmem:[%s246 + $0x13c] sm:$0xf]
      %v333 = vld [vmem:[%s246 + $0x140] sm:$0xf]
      %v334 = vld [vmem:[%s246 + $0x144] sm:$0xf]
      %v335 = vld [vmem:[%s246 + $0x148] sm:$0xf]
      %v336 = vld [vmem:[%s246 + $0x14c] sm:$0xf]
      %v337 = vld [vmem:[%s246 + $0x150] sm:$0xf]
      %v338 = vld [vmem:[%s246 + $0x154] sm:$0xf]
      %v339 = vld [vmem:[%s1] sm:$0xff]
      %v340 = vld [vmem:[%s1 + $0x8] sm:$0xf]
      %v341 = vld [vmem:[%s1 + $0xc] sm:$0xff]
      %v342 = vld [vmem:[%s1 + $0x14] sm:$0xf]
      %v343 = vld [vmem:[%s1 + $0x18] sm:$0xff]
      %v344 = vld [vmem:[%s1 + $0x20] sm:$0xf]
      %v345 = vld [vmem:[%s1 + $0x24] sm:$0x11]
      %v346 = vld [vmem:[%s1 + $0x2c] sm:$0x1]
      %v347 = vld [vmem:[%s2] sm:$0x7]
      %v349 = vlaneseq
      %v350 = vshrl.u32 %v349, 7
      %v351 = vsub.s32 0, %v350
      %v352 = vrot.slane %v347, %v351
      %v353 = vlaneseq
      %v354 = vshrl.u32 %v353, 7
      %v355 = vsub.s32 1, %v354
      %v356 = vrot.slane %v347, %v355
      %v357 = vlaneseq
      %v358 = vshrl.u32 %v357, 7
      %v359 = vsub.s32 2, %v358
      %v360 = vrot.slane %v347, %v359
      %v450 = vunpack.c.l.b16 %v253
      %v451 = vunpack.c.l.b16 %v254
      %v452 = vunpack.c.l.b16 %v255
      %v453 = vunpack.c.l.b16 %v256
      %v454 = vunpack.c.l.b16 %v257
      %v455 = vunpack.c.l.b16 %v258
      %v456 = vunpack.c.l.b16 %v259
      %v457 = vunpack.c.l.b16 %v260
      %v458 = vunpack.c.l.b16 %v261
      %v459 = vunpack.c.l.b16 %v262
      %v460 = vunpack.c.l.b16 %v263
      %v461 = vunpack.c.l.b16 %v264
      %v462 = vunpack.c.l.b16 %v265
      %v463 = vunpack.c.l.b16 %v266
      %v464 = vunpack.c.l.b16 %v267
      %v465 = vunpack.c.l.b16 %v268
      %v466 = vunpack.c.l.b16 %v269
      %v467 = vunpack.c.l.b16 %v270
      %v468 = vunpack.c.l.b16 %v271
      %v469 = vunpack.c.l.b16 %v272
      %v470 = vunpack.c.l.b16 %v273
      %v471 = vunpack.c.l.b16 %v274
      %v472 = vunpack.c.l.b16 %v275
      %v473 = vunpack.c.l.b16 %v276
      %v474 = vunpack.c.l.b16 %v277
      %v475 = vunpack.c.l.b16 %v278
      %v476 = vunpack.c.l.b16 %v279
      %v477 = vunpack.c.l.b16 %v280
      %v478 = vunpack.c.l.b16 %v281
      %v479 = vunpack.c.l.b16 %v282
      %v480 = vunpack.c.l.b16 %v283
      %v481 = vunpack.c.l.b16 %v284
      %v482 = vunpack.c.l.b16 %v285
      %v483 = vunpack.c.l.b16 %v286
      %v484 = vunpack.c.l.b16 %v287
      %v485 = vunpack.c.l.b16 %v288
      %v486 = vunpack.c.l.b16 %v289
      %v487 = vunpack.c.l.b16 %v290
      %v488 = vunpack.c.l.b16 %v291
      %v489 = vunpack.c.l.b16 %v292
      %v490 = vunpack.c.l.b16 %v293
      %v491 = vunpack.c.l.b16 %v294
      %v492 = vunpack.c.l.b16 %v295
      %v493 = vunpack.c.l.b16 %v296
      %v494 = vunpack.c.l.b16 %v297
      %v495 = vunpack.c.l.b16 %v298
      %v496 = vunpack.c.l.b16 %v299
      %v497 = vunpack.c.l.b16 %v300
      %v498 = vunpack.c.l.b16 %v301
      %v499 = vunpack.c.l.b16 %v302
      %v500 = vunpack.c.l.b16 %v303
      %v501 = vunpack.c.l.b16 %v304
      %v502 = vunpack.c.l.b16 %v305
      %v503 = vunpack.c.l.b16 %v306
      %v504 = vunpack.c.l.b16 %v307
      %v505 = vunpack.c.l.b16 %v308
      %v506 = vunpack.c.l.b16 %v309
      %v507 = vunpack.c.l.b16 %v310
      %v508 = vunpack.c.l.b16 %v311
      %v509 = vunpack.c.l.b16 %v312
      %v510 = vunpack.c.l.b16 %v313
      %v511 = vunpack.c.l.b16 %v314
      %v512 = vunpack.c.l.b16 %v315
      %v513 = vunpack.c.l.b16 %v316
      %v514 = vunpack.c.l.b16 %v317
      %v515 = vunpack.c.l.b16 %v318
      %v516 = vunpack.c.l.b16 %v319
      %v517 = vunpack.c.l.b16 %v320
      %v518 = vunpack.c.l.b16 %v321
      %v519 = vunpack.c.l.b16 %v322
      %v520 = vunpack.c.l.b16 %v323
      %v521 = vunpack.c.l.b16 %v324
      %v522 = vunpack.c.l.b16 %v325
      %v523 = vunpack.c.l.b16 %v326
      %v524 = vunpack.c.l.b16 %v327
      %v525 = vunpack.c.l.b16 %v328
      %v526 = vunpack.c.l.b16 %v329
      %v527 = vunpack.c.l.b16 %v330
      %v528 = vunpack.c.l.b16 %v331
      %v529 = vunpack.c.l.b16 %v332
      %v530 = vunpack.c.l.b16 %v333
      %v531 = vunpack.c.l.b16 %v334
      %v532 = vunpack.c.l.b16 %v335
      %v533 = vunpack.c.l.b16 %v336
      %v534 = vunpack.c.l.b16 %v337
      %v535 = vunpack.c.l.b16 %v338
      %v536 = vpack.c.b16 %v451, %v450
      %v537 = vpack.c.b16 %v453, %v452
      %v538 = vpack.c.b16 %v455, %v454
      %v539 = vpack.c.b16 %v457, %v456
      %v540 = vpack.c.b16 %v459, %v458
      %v541 = vpack.c.b16 %v461, %v460
      %v542 = vpack.c.b16 %v463, %v462
      %v543 = vpack.c.b16 %v465, %v464
      %v544 = vpack.c.b16 %v467, %v466
      %v545 = vpack.c.b16 %v469, %v468
      %v546 = vpack.c.b16 %v471, %v470
      %v547 = vpack.c.b16 %v473, %v472
      %v548 = vpack.c.b16 %v475, %v474
      %v549 = vpack.c.b16 %v477, %v476
      %v550 = vpack.c.b16 %v479, %v478
      %v551 = vpack.c.b16 %v481, %v480
      %v552 = vpack.c.b16 %v483, %v482
      %v553 = vpack.c.b16 %v485, %v484
      %v554 = vpack.c.b16 %v487, %v486
      %v555 = vpack.c.b16 %v489, %v488
      %v556 = vpack.c.b16 %v491, %v490
      %v557 = vpack.c.b16 %v493, %v492
      %v558 = vpack.c.b16 %v495, %v494
      %v559 = vpack.c.b16 %v497, %v496
      %v560 = vpack.c.b16 %v499, %v498
      %v561 = vpack.c.b16 %v501, %v500
      %v562 = vpack.c.b16 %v503, %v502
      %v563 = vpack.c.b16 %v505, %v504
      %v564 = vpack.c.b16 %v507, %v506
      %v565 = vpack.c.b16 %v509, %v508
      %v566 = vpack.c.b16 %v511, %v510
      %v567 = vpack.c.b16 %v513, %v512
      %v568 = vpack.c.b16 %v515, %v514
      %v569 = vpack.c.b16 %v517, %v516
      %v570 = vpack.c.b16 %v519, %v518
      %v571 = vpack.c.b16 %v521, %v520
      %v572 = vpack.c.b16 %v523, %v522
      %v573 = vpack.c.b16 %v525, %v524
      %v574 = vpack.c.b16 %v527, %v526
      %v575 = vpack.c.b16 %v529, %v528
      %v576 = vpack.c.b16 %v531, %v530
      %v577 = vpack.c.b16 %v533, %v532
      %v578 = vpack.c.b16 %v535, %v534
      %v587 = vunpack.c.l.b16 %v339
      %v588 = vunpack.c.h.b16 %v339
      %v589 = vunpack.c.l.b16 %v340
      %v590 = vunpack.c.l.b16 %v341
      %v591 = vunpack.c.h.b16 %v341
      %v592 = vunpack.c.l.b16 %v342
      %v593 = vunpack.c.l.b16 %v343
      %v594 = vunpack.c.h.b16 %v343
      %v595 = vunpack.c.l.b16 %v344
      %v596 = vunpack.c.l.b16 %v345
      %v597 = vunpack.c.h.b16 %v345
      %v598 = vunpack.c.l.b16 %v346
      %v599 = vpack.c.b16 %v590, %v587
      %v600 = vpack.c.b16 %v591, %v588
      %v601 = vpack.c.b16 %v592, %v589
      %v602 = vpack.c.b16 %v596, %v593
      %v603 = vpack.c.b16 %v597, %v594
      %v604 = vpack.c.b16 %v598, %v595
      %vm608 = vcmask 203776
      %v610 = vsel %vm608, %v536, 0
      %v613 = vsel %vm608, %v537, 0
      %v616 = vsel %vm608, %v538, 0
      %v619 = vsel %vm608, %v539, 0
      %v622 = vsel %vm608, %v540, 0
      %v625 = vsel %vm608, %v541, 0
      %v628 = vsel %vm608, %v542, 0
      %v631 = vsel %vm608, %v543, 0
      %v634 = vsel %vm608, %v544, 0
      %v637 = vsel %vm608, %v545, 0
      %v640 = vsel %vm608, %v546, 0
      %v643 = vsel %vm608, %v547, 0
      %v646 = vsel %vm608, %v548, 0
      %v649 = vsel %vm608, %v549, 0
      %v652 = vsel %vm608, %v550, 0
      %v655 = vsel %vm608, %v551, 0
      %v658 = vsel %vm608, %v552, 0
      %v661 = vsel %vm608, %v553, 0
      %v664 = vsel %vm608, %v554, 0
      %v667 = vsel %vm608, %v555, 0
      %v670 = vsel %vm608, %v556, 0
      %v673 = vsel %vm608, %v557, 0
      %v676 = vsel %vm608, %v558, 0
      %v679 = vsel %vm608, %v559, 0
      %v682 = vsel %vm608, %v560, 0
      %v685 = vsel %vm608, %v561, 0
      %v688 = vsel %vm608, %v562, 0
      %v691 = vsel %vm608, %v563, 0
      %v694 = vsel %vm608, %v564, 0
      %v697 = vsel %vm608, %v565, 0
      %v700 = vsel %vm608, %v566, 0
      %v703 = vsel %vm608, %v567, 0
      %v706 = vsel %vm608, %v568, 0
      %v709 = vsel %vm608, %v569, 0
      %v712 = vsel %vm608, %v570, 0
      %v715 = vsel %vm608, %v571, 0
      %v718 = vsel %vm608, %v572, 0
      %v721 = vsel %vm608, %v573, 0
      %v724 = vsel %vm608, %v574, 0
      %v727 = vsel %vm608, %v575, 0
      %v730 = vsel %vm608, %v576, 0
      %v733 = vsel %vm608, %v577, 0
      %v736 = vsel %vm608, %v578, 0
      %vm738 = vcmask 1043456
      %vm739 = vcmask 1044480
      %v740 = vsel %vm738, 4294967295, 65535
      %v741 = vsel %vm739, %v740, 0
      %v743 = vand.u32 %v602, %v741
      %v746 = vand.u32 %v603, %v741
      %v749 = vand.u32 %v604, %v741
      %751 = vmatprep.subr.bf16.mxu0 %v600
      %752 = vmatpush1.bf16.msra.mxu0 %v599
      %753 = vmatprep.subr.bf16.mxu0 %v746
      %754 = vmatpush1.bf16.msra.mxu0 %v743
      %755 = vmatprep.subr.bf16.mxu0 0
      %756 = vmatpush1.bf16.msra.mxu0 0
      %757 = vmatprep.subr.bf16.mxu0 0
      %758 = vmatpush1.bf16.msra.mxu0 0
      %759 = vmatprep.subr.bf16.mxu0 0
      %760 = vmatpush1.bf16.msra.mxu0 0
      %761 = vmatprep.subr.bf16.mxu0 0
      %762 = vmatpush1.bf16.msra.mxu0 0
      %763 = vmatprep.subr.bf16.mxu0 0
      %764 = vmatpush1.bf16.msra.mxu0 0
      %765 = vmatprep.subr.bf16.mxu0 0
      %766 = vmatpush1.bf16.msra.mxu0 0
      %767 = vmatprep.subr.bf16.mxu0 0
      %768 = vmatpush1.bf16.msra.mxu0 0
      %769 = vmatprep.subr.bf16.mxu0 0
      %770 = vmatpush1.bf16.msra.mxu0 0
      %771 = vmatprep.subr.bf16.mxu0 0
      %772 = vmatpush1.bf16.msra.mxu0 0
      %773 = vmatprep.subr.bf16.mxu0 0
      %774 = vmatpush1.bf16.msra.mxu0 0
      %775 = vmatprep.subr.bf16.mxu0 0
      %776 = vmatpush1.bf16.msra.mxu0 0
      %777 = vmatprep.subr.bf16.mxu0 0
      %778 = vmatpush1.bf16.msra.mxu0 0
      %779 = vmatprep.subr.bf16.mxu0 0
      %780 = vmatpush1.bf16.msra.mxu0 0
      %781 = vmatprep.subr.bf16.mxu0 0
      %782 = vmatpush1.bf16.msra.mxu0 0
      %783 = vmatprep.mubr.bf16.mxu0 0
      %784 = vmatmul.mubr.bf16.gmra.mrb[0].mxu0 %v610
      %v785 = vpop.f32.mrb[0].mxu0
      %v786 = vadd.f32 %v352, %v785
      %v787 = vpop.f32.mrb[0].mxu0
      %v788 = vadd.f32 %v356, %v787
      %v789 = vpop.f32.mrb[0].mxu0
      %v790 = vadd.f32 %v352, %v789
      %v791 = vpop.f32.mrb[0].mxu0
      %v792 = vadd.f32 %v356, %v791
      %793 = vmatprep.mubr.bf16.mxu0 0
      %794 = vmatmul.mubr.bf16.gmra.mrb[0].mxu0 %v613
      %v795 = vpop.f32.mrb[0].mxu0
      %v796 = vadd.f32 %v352, %v795
      %v797 = vpop.f32.mrb[0].mxu0
      %v798 = vadd.f32 %v356, %v797
      %v799 = vpop.f32.mrb[0].mxu0
      %v800 = vadd.f32 %v352, %v799
      %v801 = vpop.f32.mrb[0].mxu0
      %v802 = vadd.f32 %v356, %v801
      %803 = vmatprep.mubr.bf16.mxu0 0
      %804 = vmatmul.mubr.bf16.gmra.mrb[0].mxu0 %v616
      %v805 = vpop.f32.mrb[0].mxu0
      %v806 = vadd.f32 %v352, %v805
      %v807 = vpop.f32.mrb[0].mxu0
      %v808 = vadd.f32 %v356, %v807
      %v809 = vpop.f32.mrb[0].mxu0
      %v810 = vadd.f32 %v352, %v809
      %v811 = vpop.f32.mrb[0].mxu0
      %v812 = vadd.f32 %v356, %v811
      %813 = vmatprep.mubr.bf16.mxu0 0
      %814 = vmatmul.mubr.bf16.gmra.mrb[0].mxu0 %v619
      %v815 = vpop.f32.mrb[0].mxu0
      %v816 = vadd.f32 %v352, %v815
      %v817 = vpop.f32.mrb[0].mxu0
      %v818 = vadd.f32 %v356, %v817
      %v819 = vpop.f32.mrb[0].mxu0
      %v820 = vadd.f32 %v352, %v819
      %v821 = vpop.f32.mrb[0].mxu0
      %v822 = vadd.f32 %v356, %v821
      %823 = vmatprep.mubr.bf16.mxu0 0
      %824 = vmatmul.mubr.bf16.gmra.mrb[0].mxu0 %v622
      %v825 = vpop.f32.mrb[0].mxu0
      %v826 = vadd.f32 %v352, %v825
      %v827 = vpop.f32.mrb[0].mxu0
      %v828 = vadd.f32 %v356, %v827
      %v829 = vpop.f32.mrb[0].mxu0
      %v830 = vadd.f32 %v352, %v829
      %v831 = vpop.f32.mrb[0].mxu0
      %v832 = vadd.f32 %v356, %v831
      %833 = vmatprep.mubr.bf16.mxu0 0
      %834 = vmatmul.mubr.bf16.gmra.mrb[0].mxu0 %v625
      %v835 = vpop.f32.mrb[0].mxu0
      %v836 = vadd.f32 %v352, %v835
      %v837 = vpop.f32.mrb[0].mxu0
      %v838 = vadd.f32 %v356, %v837
      %v839 = vpop.f32.mrb[0].mxu0
      %v840 = vadd.f32 %v352, %v839
      %v841 = vpop.f32.mrb[0].mxu0
      %v842 = vadd.f32 %v356, %v841
      %843 = vmatprep.mubr.bf16.mxu0 0
      %844 = vmatmul.mubr.bf16.gmra.mrb[0].mxu0 %v628
      %v845 = vpop.f32.mrb[0].mxu0
      %v846 = vadd.f32 %v352, %v845
      %v847 = vpop.f32.mrb[0].mxu0
      %v848 = vadd.f32 %v356, %v847
      %v849 = vpop.f32.mrb[0].mxu0
      %v850 = vadd.f32 %v352, %v849
      %v851 = vpop.f32.mrb[0].mxu0
      %v852 = vadd.f32 %v356, %v851
      %853 = vmatprep.mubr.bf16.mxu0 0
      %854 = vmatmul.mubr.bf16.gmra.mrb[0].mxu0 %v631
      %v855 = vpop.f32.mrb[0].mxu0
      %v856 = vadd.f32 %v352, %v855
      %v857 = vpop.f32.mrb[0].mxu0
      %v858 = vadd.f32 %v356, %v857
      %v859 = vpop.f32.mrb[0].mxu0
      %v860 = vadd.f32 %v352, %v859
      %v861 = vpop.f32.mrb[0].mxu0
      %v862 = vadd.f32 %v356, %v861
      %863 = vmatprep.mubr.bf16.mxu0 0
      %864 = vmatmul.mubr.bf16.gmra.mrb[0].mxu0 %v634
      %v865 = vpop.f32.mrb[0].mxu0
      %v866 = vadd.f32 %v352, %v865
      %v867 = vpop.f32.mrb[0].mxu0
      %v868 = vadd.f32 %v356, %v867
      %v869 = vpop.f32.mrb[0].mxu0
      %v870 = vadd.f32 %v352, %v869
      %v871 = vpop.f32.mrb[0].mxu0
      %v872 = vadd.f32 %v356, %v871
      %873 = vmatprep.mubr.bf16.mxu0 0
      %874 = vmatmul.mubr.bf16.gmra.mrb[0].mxu0 %v637
      %v875 = vpop.f32.mrb[0].mxu0
      %v876 = vadd.f32 %v352, %v875
      %v877 = vpop.f32.mrb[0].mxu0
      %v878 = vadd.f32 %v356, %v877
      %v879 = vpop.f32.mrb[0].mxu0
      %v880 = vadd.f32 %v352, %v879
      %v881 = vpop.f32.mrb[0].mxu0
      %v882 = vadd.f32 %v356, %v881
      %883 = vmatprep.mubr.bf16.mxu0 0
      %884 = vmatmul.mubr.bf16.gmra.mrb[0].mxu0 %v640
      %v885 = vpop.f32.mrb[0].mxu0
      %v886 = vadd.f32 %v352, %v885
      %v887 = vpop.f32.mrb[0].mxu0
      %v888 = vadd.f32 %v356, %v887
      %v889 = vpop.f32.mrb[0].mxu0
      %v890 = vadd.f32 %v352, %v889
      %v891 = vpop.f32.mrb[0].mxu0
      %v892 = vadd.f32 %v356, %v891
      %893 = vmatprep.mubr.bf16.mxu0 0
      %894 = vmatmul.mubr.bf16.gmra.mrb[0].mxu0 %v643
      %v895 = vpop.f32.mrb[0].mxu0
      %v896 = vadd.f32 %v352, %v895
      %v897 = vpop.f32.mrb[0].mxu0
      %v898 = vadd.f32 %v356, %v897
      %v899 = vpop.f32.mrb[0].mxu0
      %v900 = vadd.f32 %v352, %v899
      %v901 = vpop.f32.mrb[0].mxu0
      %v902 = vadd.f32 %v356, %v901
      %903 = vmatprep.mubr.bf16.mxu0 0
      %904 = vmatmul.mubr.bf16.gmra.mrb[0].mxu0 %v646
      %v905 = vpop.f32.mrb[0].mxu0
      %v906 = vadd.f32 %v352, %v905
      %v907 = vpop.f32.mrb[0].mxu0
      %v908 = vadd.f32 %v356, %v907
      %v909 = vpop.f32.mrb[0].mxu0
      %v910 = vadd.f32 %v352, %v909
      %v911 = vpop.f32.mrb[0].mxu0
      %v912 = vadd.f32 %v356, %v911
      %913 = vmatprep.mubr.bf16.mxu0 0
      %914 = vmatmul.mubr.bf16.gmra.mrb[0].mxu0 %v649
      %v915 = vpop.f32.mrb[0].mxu0
      %v916 = vadd.f32 %v352, %v915
      %v917 = vpop.f32.mrb[0].mxu0
      %v918 = vadd.f32 %v356, %v917
      %v919 = vpop.f32.mrb[0].mxu0
      %v920 = vadd.f32 %v352, %v919
      %v921 = vpop.f32.mrb[0].mxu0
      %v922 = vadd.f32 %v356, %v921
      %923 = vmatprep.mubr.bf16.mxu0 0
      %924 = vmatmul.mubr.bf16.gmra.mrb[0].mxu0 %v652
      %v925 = vpop.f32.mrb[0].mxu0
      %v926 = vadd.f32 %v352, %v925
      %v927 = vpop.f32.mrb[0].mxu0
      %v928 = vadd.f32 %v356, %v927
      %v929 = vpop.f32.mrb[0].mxu0
      %v930 = vadd.f32 %v352, %v929
      %v931 = vpop.f32.mrb[0].mxu0
      %v932 = vadd.f32 %v356, %v931
      %933 = vmatprep.mubr.bf16.mxu0 0
      %934 = vmatmul.mubr.bf16.gmra.mrb[0].mxu0 %v655
      %v935 = vpop.f32.mrb[0].mxu0
      %v936 = vadd.f32 %v352, %v935
      %v937 = vpop.f32.mrb[0].mxu0
      %v938 = vadd.f32 %v356, %v937
      %v939 = vpop.f32.mrb[0].mxu0
      %v940 = vadd.f32 %v352, %v939
      %v941 = vpop.f32.mrb[0].mxu0
      %v942 = vadd.f32 %v356, %v941
      %943 = vmatprep.mubr.bf16.mxu0 0
      %944 = vmatmul.mubr.bf16.gmra.mrb[0].mxu0 %v658
      %v945 = vpop.f32.mrb[0].mxu0
      %v946 = vadd.f32 %v352, %v945
      %v947 = vpop.f32.mrb[0].mxu0
      %v948 = vadd.f32 %v356, %v947
      %v949 = vpop.f32.mrb[0].mxu0
      %v950 = vadd.f32 %v352, %v949
      %v951 = vpop.f32.mrb[0].mxu0
      %v952 = vadd.f32 %v356, %v951
      %953 = vmatprep.mubr.bf16.mxu0 0
      %954 = vmatmul.mubr.bf16.gmra.mrb[0].mxu0 %v661
      %v955 = vpop.f32.mrb[0].mxu0
      %v956 = vadd.f32 %v352, %v955
      %v957 = vpop.f32.mrb[0].mxu0
      %v958 = vadd.f32 %v356, %v957
      %v959 = vpop.f32.mrb[0].mxu0
      %v960 = vadd.f32 %v352, %v959
      %v961 = vpop.f32.mrb[0].mxu0
      %v962 = vadd.f32 %v356, %v961
      %963 = vmatprep.mubr.bf16.mxu0 0
      %964 = vmatmul.mubr.bf16.gmra.mrb[0].mxu0 %v664
      %v965 = vpop.f32.mrb[0].mxu0
      %v966 = vadd.f32 %v352, %v965
      %v967 = vpop.f32.mrb[0].mxu0
      %v968 = vadd.f32 %v356, %v967
      %v969 = vpop.f32.mrb[0].mxu0
      %v970 = vadd.f32 %v352, %v969
      %v971 = vpop.f32.mrb[0].mxu0
      %v972 = vadd.f32 %v356, %v971
      %973 = vmatprep.mubr.bf16.mxu0 0
      %974 = vmatmul.mubr.bf16.gmra.mrb[0].mxu0 %v667
      %v975 = vpop.f32.mrb[0].mxu0
      %v976 = vadd.f32 %v352, %v975
      %v977 = vpop.f32.mrb[0].mxu0
      %v978 = vadd.f32 %v356, %v977
      %v979 = vpop.f32.mrb[0].mxu0
      %v980 = vadd.f32 %v352, %v979
      %v981 = vpop.f32.mrb[0].mxu0
      %v982 = vadd.f32 %v356, %v981
      %983 = vmatprep.mubr.bf16.mxu0 0
      %984 = vmatmul.mubr.bf16.gmra.mrb[0].mxu0 %v670
      %v985 = vpop.f32.mrb[0].mxu0
      %v986 = vadd.f32 %v352, %v985
      %v987 = vpop.f32.mrb[0].mxu0
      %v988 = vadd.f32 %v356, %v987
      %v989 = vpop.f32.mrb[0].mxu0
      %v990 = vadd.f32 %v352, %v989
      %v991 = vpop.f32.mrb[0].mxu0
      %v992 = vadd.f32 %v356, %v991
      %993 = vmatprep.mubr.bf16.mxu0 0
      %994 = vmatmul.mubr.bf16.gmra.mrb[0].mxu0 %v673
      %v995 = vpop.f32.mrb[0].mxu0
      %v996 = vadd.f32 %v352, %v995
      %v997 = vpop.f32.mrb[0].mxu0
      %v998 = vadd.f32 %v356, %v997
      %v999 = vpop.f32.mrb[0].mxu0
      %v1000 = vadd.f32 %v352, %v999
      %v1001 = vpop.f32.mrb[0].mxu0
      %v1002 = vadd.f32 %v356, %v1001
      %1003 = vmatprep.mubr.bf16.mxu0 0
      %1004 = vmatmul.mubr.bf16.gmra.mrb[0].mxu0 %v676
      %v1005 = vpop.f32.mrb[0].mxu0
      %v1006 = vadd.f32 %v352, %v1005
      %v1007 = vpop.f32.mrb[0].mxu0
      %v1008 = vadd.f32 %v356, %v1007
      %v1009 = vpop.f32.mrb[0].mxu0
      %v1010 = vadd.f32 %v352, %v1009
      %v1011 = vpop.f32.mrb[0].mxu0
      %v1012 = vadd.f32 %v356, %v1011
      %1013 = vmatprep.mubr.bf16.mxu0 0
      %1014 = vmatmul.mubr.bf16.gmra.mrb[0].mxu0 %v679
      %v1015 = vpop.f32.mrb[0].mxu0
      %v1016 = vadd.f32 %v352, %v1015
      %v1017 = vpop.f32.mrb[0].mxu0
      %v1018 = vadd.f32 %v356, %v1017
      %v1019 = vpop.f32.mrb[0].mxu0
      %v1020 = vadd.f32 %v352, %v1019
      %v1021 = vpop.f32.mrb[0].mxu0
      %v1022 = vadd.f32 %v356, %v1021
      %1023 = vmatprep.mubr.bf16.mxu0 0
      %1024 = vmatmul.mubr.bf16.gmra.mrb[0].mxu0 %v682
      %v1025 = vpop.f32.mrb[0].mxu0
      %v1026 = vadd.f32 %v352, %v1025
      %v1027 = vpop.f32.mrb[0].mxu0
      %v1028 = vadd.f32 %v356, %v1027
      %v1029 = vpop.f32.mrb[0].mxu0
      %v1030 = vadd.f32 %v352, %v1029
      %v1031 = vpop.f32.mrb[0].mxu0
      %v1032 = vadd.f32 %v356, %v1031
      %1033 = vmatprep.mubr.bf16.mxu0 0
      %1034 = vmatmul.mubr.bf16.gmra.mrb[0].mxu0 %v685
      %v1035 = vpop.f32.mrb[0].mxu0
      %v1036 = vadd.f32 %v352, %v1035
      %v1037 = vpop.f32.mrb[0].mxu0
      %v1038 = vadd.f32 %v356, %v1037
      %v1039 = vpop.f32.mrb[0].mxu0
      %v1040 = vadd.f32 %v352, %v1039
      %v1041 = vpop.f32.mrb[0].mxu0
      %v1042 = vadd.f32 %v356, %v1041
      %1043 = vmatprep.mubr.bf16.mxu0 0
      %1044 = vmatmul.mubr.bf16.gmra.mrb[0].mxu0 %v688
      %v1045 = vpop.f32.mrb[0].mxu0
      %v1046 = vadd.f32 %v352, %v1045
      %v1047 = vpop.f32.mrb[0].mxu0
      %v1048 = vadd.f32 %v356, %v1047
      %v1049 = vpop.f32.mrb[0].mxu0
      %v1050 = vadd.f32 %v352, %v1049
      %v1051 = vpop.f32.mrb[0].mxu0
      %v1052 = vadd.f32 %v356, %v1051
      %1053 = vmatprep.mubr.bf16.mxu0 0
      %1054 = vmatmul.mubr.bf16.gmra.mrb[0].mxu0 %v691
      %v1055 = vpop.f32.mrb[0].mxu0
      %v1056 = vadd.f32 %v352, %v1055
      %v1057 = vpop.f32.mrb[0].mxu0
      %v1058 = vadd.f32 %v356, %v1057
      %v1059 = vpop.f32.mrb[0].mxu0
      %v1060 = vadd.f32 %v352, %v1059
      %v1061 = vpop.f32.mrb[0].mxu0
      %v1062 = vadd.f32 %v356, %v1061
      %1063 = vmatprep.mubr.bf16.mxu0 0
      %1064 = vmatmul.mubr.bf16.gmra.mrb[0].mxu0 %v694
      %v1065 = vpop.f32.mrb[0].mxu0
      %v1066 = vadd.f32 %v352, %v1065
      %v1067 = vpop.f32.mrb[0].mxu0
      %v1068 = vadd.f32 %v356, %v1067
      %v1069 = vpop.f32.mrb[0].mxu0
      %v1070 = vadd.f32 %v352, %v1069
      %v1071 = vpop.f32.mrb[0].mxu0
      %v1072 = vadd.f32 %v356, %v1071
      %1073 = vmatprep.mubr.bf16.mxu0 0
      %1074 = vmatmul.mubr.bf16.gmra.mrb[0].mxu0 %v697
      %v1075 = vpop.f32.mrb[0].mxu0
      %v1076 = vadd.f32 %v352, %v1075
      %v1077 = vpop.f32.mrb[0].mxu0
      %v1078 = vadd.f32 %v356, %v1077
      %v1079 = vpop.f32.mrb[0].mxu0
      %v1080 = vadd.f32 %v352, %v1079
      %v1081 = vpop.f32.mrb[0].mxu0
      %v1082 = vadd.f32 %v356, %v1081
      %1083 = vmatprep.mubr.bf16.mxu0 0
      %1084 = vmatmul.mubr.bf16.gmra.mrb[0].mxu0 %v700
      %v1085 = vpop.f32.mrb[0].mxu0
      %v1086 = vadd.f32 %v352, %v1085
      %v1087 = vpop.f32.mrb[0].mxu0
      %v1088 = vadd.f32 %v356, %v1087
      %v1089 = vpop.f32.mrb[0].mxu0
      %v1090 = vadd.f32 %v352, %v1089
      %v1091 = vpop.f32.mrb[0].mxu0
      %v1092 = vadd.f32 %v356, %v1091
      %1093 = vmatprep.mubr.bf16.mxu0 0
      %1094 = vmatmul.mubr.bf16.gmra.mrb[0].mxu0 %v703
      %v1095 = vpop.f32.mrb[0].mxu0
      %v1096 = vadd.f32 %v352, %v1095
      %v1097 = vpop.f32.mrb[0].mxu0
      %v1098 = vadd.f32 %v356, %v1097
      %v1099 = vpop.f32.mrb[0].mxu0
      %v1100 = vadd.f32 %v352, %v1099
      %v1101 = vpop.f32.mrb[0].mxu0
      %v1102 = vadd.f32 %v356, %v1101
      %1103 = vmatprep.mubr.bf16.mxu0 0
      %1104 = vmatmul.mubr.bf16.gmra.mrb[0].mxu0 %v706
      %v1105 = vpop.f32.mrb[0].mxu0
      %v1106 = vadd.f32 %v352, %v1105
      %v1107 = vpop.f32.mrb[0].mxu0
      %v1108 = vadd.f32 %v356, %v1107
      %v1109 = vpop.f32.mrb[0].mxu0
      %v1110 = vadd.f32 %v352, %v1109
      %v1111 = vpop.f32.mrb[0].mxu0
      %v1112 = vadd.f32 %v356, %v1111
      %1113 = vmatprep.mubr.bf16.mxu0 0
      %1114 = vmatmul.mubr.bf16.gmra.mrb[0].mxu0 %v709
      %v1115 = vpop.f32.mrb[0].mxu0
      %v1116 = vadd.f32 %v352, %v1115
      %v1117 = vpop.f32.mrb[0].mxu0
      %v1118 = vadd.f32 %v356, %v1117
      %v1119 = vpop.f32.mrb[0].mxu0
      %v1120 = vadd.f32 %v352, %v1119
      %v1121 = vpop.f32.mrb[0].mxu0
      %v1122 = vadd.f32 %v356, %v1121
      %1123 = vmatprep.mubr.bf16.mxu0 0
      %1124 = vmatmul.mubr.bf16.gmra.mrb[0].mxu0 %v712
      %v1125 = vpop.f32.mrb[0].mxu0
      %v1126 = vadd.f32 %v352, %v1125
      %v1127 = vpop.f32.mrb[0].mxu0
      %v1128 = vadd.f32 %v356, %v1127
      %v1129 = vpop.f32.mrb[0].mxu0
      %v1130 = vadd.f32 %v352, %v1129
      %v1131 = vpop.f32.mrb[0].mxu0
      %v1132 = vadd.f32 %v356, %v1131
      %1133 = vmatprep.mubr.bf16.mxu0 0
      %1134 = vmatmul.mubr.bf16.gmra.mrb[0].mxu0 %v715
      %v1135 = vpop.f32.mrb[0].mxu0
      %v1136 = vadd.f32 %v352, %v1135
      %v1137 = vpop.f32.mrb[0].mxu0
      %v1138 = vadd.f32 %v356, %v1137
      %v1139 = vpop.f32.mrb[0].mxu0
      %v1140 = vadd.f32 %v352, %v1139
      %v1141 = vpop.f32.mrb[0].mxu0
      %v1142 = vadd.f32 %v356, %v1141
      %1143 = vmatprep.mubr.bf16.mxu0 0
      %1144 = vmatmul.mubr.bf16.gmra.mrb[0].mxu0 %v718
      %v1145 = vpop.f32.mrb[0].mxu0
      %v1146 = vadd.f32 %v352, %v1145
      %v1147 = vpop.f32.mrb[0].mxu0
      %v1148 = vadd.f32 %v356, %v1147
      %v1149 = vpop.f32.mrb[0].mxu0
      %v1150 = vadd.f32 %v352, %v1149
      %v1151 = vpop.f32.mrb[0].mxu0
      %v1152 = vadd.f32 %v356, %v1151
      %1153 = vmatprep.mubr.bf16.mxu0 0
      %1154 = vmatmul.mubr.bf16.gmra.mrb[0].mxu0 %v721
      %v1155 = vpop.f32.mrb[0].mxu0
      %v1156 = vadd.f32 %v352, %v1155
      %v1157 = vpop.f32.mrb[0].mxu0
      %v1158 = vadd.f32 %v356, %v1157
      %v1159 = vpop.f32.mrb[0].mxu0
      %v1160 = vadd.f32 %v352, %v1159
      %v1161 = vpop.f32.mrb[0].mxu0
      %v1162 = vadd.f32 %v356, %v1161
      %1163 = vmatprep.mubr.bf16.mxu0 0
      %1164 = vmatmul.mubr.bf16.gmra.mrb[0].mxu0 %v724
      %v1165 = vpop.f32.mrb[0].mxu0
      %v1166 = vadd.f32 %v352, %v1165
      %v1167 = vpop.f32.mrb[0].mxu0
      %v1168 = vadd.f32 %v356, %v1167
      %v1169 = vpop.f32.mrb[0].mxu0
      %v1170 = vadd.f32 %v352, %v1169
      %v1171 = vpop.f32.mrb[0].mxu0
      %v1172 = vadd.f32 %v356, %v1171
      %1173 = vmatprep.mubr.bf16.mxu0 0
      %1174 = vmatmul.mubr.bf16.gmra.mrb[0].mxu0 %v727
      %v1175 = vpop.f32.mrb[0].mxu0
      %v1176 = vadd.f32 %v352, %v1175
      %v1177 = vpop.f32.mrb[0].mxu0
      %v1178 = vadd.f32 %v356, %v1177
      %v1179 = vpop.f32.mrb[0].mxu0
      %v1180 = vadd.f32 %v352, %v1179
      %v1181 = vpop.f32.mrb[0].mxu0
      %v1182 = vadd.f32 %v356, %v1181
      %1183 = vmatprep.mubr.bf16.mxu0 0
      %1184 = vmatmul.mubr.bf16.gmra.mrb[0].mxu0 %v730
      %v1185 = vpop.f32.mrb[0].mxu0
      %v1186 = vadd.f32 %v352, %v1185
      %v1187 = vpop.f32.mrb[0].mxu0
      %v1188 = vadd.f32 %v356, %v1187
      %v1189 = vpop.f32.mrb[0].mxu0
      %v1190 = vadd.f32 %v352, %v1189
      %v1191 = vpop.f32.mrb[0].mxu0
      %v1192 = vadd.f32 %v356, %v1191
      %1193 = vmatprep.mubr.bf16.mxu0 0
      %1194 = vmatmul.mubr.bf16.gmra.mrb[0].mxu0 %v733
      %v1195 = vpop.f32.mrb[0].mxu0
      %v1196 = vadd.f32 %v352, %v1195
      %v1197 = vpop.f32.mrb[0].mxu0
      %v1198 = vadd.f32 %v356, %v1197
      %v1199 = vpop.f32.mrb[0].mxu0
      %v1200 = vadd.f32 %v352, %v1199
      %v1201 = vpop.f32.mrb[0].mxu0
      %v1202 = vadd.f32 %v356, %v1201
      %1203 = vmatprep.mubr.bf16.mxu0 0
      %1204 = vmatmul.mubr.bf16.gmra.mrb[0].mxu0 %v736
      %v1205 = vpop.f32.mrb[0].mxu0
      %v1206 = vadd.f32 %v352, %v1205
      %v1207 = vpop.f32.mrb[0].mxu0
      %v1208 = vadd.f32 %v356, %v1207
      %v1209 = vpop.f32.mrb[0].mxu0
      %v1210 = vadd.f32 %v352, %v1209
      %v1211 = vpop.f32.mrb[0].mxu0
      %v1212 = vadd.f32 %v356, %v1211
      %1213 = vdwg.mxu0
      %1214 = vmatprep.subr.bf16.mxu0 0
      %1215 = vmatpush1.bf16.msra.mxu0 %v601
      %1216 = vmatprep.subr.bf16.mxu0 0
      %1217 = vmatpush1.bf16.msra.mxu0 %v749
      %1218 = vmatprep.subr.bf16.mxu0 0
      %1219 = vmatpush1.bf16.msra.mxu0 0
      %1220 = vmatprep.subr.bf16.mxu0 0
      %1221 = vmatpush1.bf16.msra.mxu0 0
      %1222 = vmatprep.subr.bf16.mxu0 0
      %1223 = vmatpush1.bf16.msra.mxu0 0
      %1224 = vmatprep.subr.bf16.mxu0 0
      %1225 = vmatpush1.bf16.msra.mxu0 0
      %1226 = vmatprep.subr.bf16.mxu0 0
      %1227 = vmatpush1.bf16.msra.mxu0 0
      %1228 = vmatprep.subr.bf16.mxu0 0
      %1229 = vmatpush1.bf16.msra.mxu0 0
      %1230 = vmatprep.subr.bf16.mxu0 0
      %1231 = vmatpush1.bf16.msra.mxu0 0
      %1232 = vmatprep.subr.bf16.mxu0 0
      %1233 = vmatpush1.bf16.msra.mxu0 0
      %1234 = vmatprep.subr.bf16.mxu0 0
      %1235 = vmatpush1.bf16.msra.mxu0 0
      %1236 = vmatprep.subr.bf16.mxu0 0
      %1237 = vmatpush1.bf16.msra.mxu0 0
      %1238 = vmatprep.subr.bf16.mxu0 0
      %1239 = vmatpush1.bf16.msra.mxu0 0
      %1240 = vmatprep.subr.bf16.mxu0 0
      %1241 = vmatpush1.bf16.msra.mxu0 0
      %1242 = vmatprep.subr.bf16.mxu0 0
      %1243 = vmatpush1.bf16.msra.mxu0 0
      %1244 = vmatprep.subr.bf16.mxu0 0
      %1245 = vmatpush1.bf16.msra.mxu0 0
      %1246 = vmatprep.mubr.bf16.mxu0 0
      %1247 = vmatmul.mubr.bf16.gmra.mrb[0].mxu0 %v610
      %v1248 = vpop.f32.mrb[0].mxu0
      %v1249 = vadd.f32 %v360, %v1248
      %v1250 = vpop.f32.mrb[0].mxu0
      %v1251 = vpop.f32.mrb[0].mxu0
      %v1252 = vadd.f32 %v360, %v1251
      %v1253 = vpop.f32.mrb[0].mxu0
      %1254 = vmatprep.mubr.bf16.mxu0 0
      %1255 = vmatmul.mubr.bf16.gmra.mrb[0].mxu0 %v613
      %v1256 = vpop.f32.mrb[0].mxu0
      %v1257 = vadd.f32 %v360, %v1256
      %v1258 = vpop.f32.mrb[0].mxu0
      %v1259 = vpop.f32.mrb[0].mxu0
      %v1260 = vadd.f32 %v360, %v1259
      %v1261 = vpop.f32.mrb[0].mxu0
      %1262 = vmatprep.mubr.bf16.mxu0 0
      %1263 = vmatmul.mubr.bf16.gmra.mrb[0].mxu0 %v616
      %v1264 = vpop.f32.mrb[0].mxu0
      %v1265 = vadd.f32 %v360, %v1264
      %v1266 = vpop.f32.mrb[0].mxu0
      %v1267 = vpop.f32.mrb[0].mxu0
      %v1268 = vadd.f32 %v360, %v1267
      %v1269 = vpop.f32.mrb[0].mxu0
      %1270 = vmatprep.mubr.bf16.mxu0 0
      %1271 = vmatmul.mubr.bf16.gmra.mrb[0].mxu0 %v619
      %v1272 = vpop.f32.mrb[0].mxu0
      %v1273 = vadd.f32 %v360, %v1272
      %v1274 = vpop.f32.mrb[0].mxu0
      %v1275 = vpop.f32.mrb[0].mxu0
      %v1276 = vadd.f32 %v360, %v1275
      %v1277 = vpop.f32.mrb[0].mxu0
      %1278 = vmatprep.mubr.bf16.mxu0 0
      %1279 = vmatmul.mubr.bf16.gmra.mrb[0].mxu0 %v622
      %v1280 = vpop.f32.mrb[0].mxu0
      %v1281 = vadd.f32 %v360, %v1280
      %v1282 = vpop.f32.mrb[0].mxu0
      %v1283 = vpop.f32.mrb[0].mxu0
      %v1284 = vadd.f32 %v360, %v1283
      %v1285 = vpop.f32.mrb[0].mxu0
      %1286 = vmatprep.mubr.bf16.mxu0 0
      %1287 = vmatmul.mubr.bf16.gmra.mrb[0].mxu0 %v625
      %v1288 = vpop.f32.mrb[0].mxu0
      %v1289 = vadd.f32 %v360, %v1288
      %v1290 = vpop.f32.mrb[0].mxu0
      %v1291 = vpop.f32.mrb[0].mxu0
      %v1292 = vadd.f32 %v360, %v1291
      %v1293 = vpop.f32.mrb[0].mxu0
      %1294 = vmatprep.mubr.bf16.mxu0 0
      %1295 = vmatmul.mubr.bf16.gmra.mrb[0].mxu0 %v628
      %v1296 = vpop.f32.mrb[0].mxu0
      %v1297 = vadd.f32 %v360, %v1296
      %v1298 = vpop.f32.mrb[0].mxu0
      %v1299 = vpop.f32.mrb[0].mxu0
      %v1300 = vadd.f32 %v360, %v1299
      %v1301 = vpop.f32.mrb[0].mxu0
      %1302 = vmatprep.mubr.bf16.mxu0 0
      %1303 = vmatmul.mubr.bf16.gmra.mrb[0].mxu0 %v631
      %v1304 = vpop.f32.mrb[0].mxu0
      %v1305 = vadd.f32 %v360, %v1304
      %v1306 = vpop.f32.mrb[0].mxu0
      %v1307 = vpop.f32.mrb[0].mxu0
      %v1308 = vadd.f32 %v360, %v1307
      %v1309 = vpop.f32.mrb[0].mxu0
      %1310 = vmatprep.mubr.bf16.mxu0 0
      %1311 = vmatmul.mubr.bf16.gmra.mrb[0].mxu0 %v634
      %v1312 = vpop.f32.mrb[0].mxu0
      %v1313 = vadd.f32 %v360, %v1312
      %v1314 = vpop.f32.mrb[0].mxu0
      %v1315 = vpop.f32.mrb[0].mxu0
      %v1316 = vadd.f32 %v360, %v1315
      %v1317 = vpop.f32.mrb[0].mxu0
      %1318 = vmatprep.mubr.bf16.mxu0 0
      %1319 = vmatmul.mubr.bf16.gmra.mrb[0].mxu0 %v637
      %v1320 = vpop.f32.mrb[0].mxu0
      %v1321 = vadd.f32 %v360, %v1320
      %v1322 = vpop.f32.mrb[0].mxu0
      %v1323 = vpop.f32.mrb[0].mxu0
      %v1324 = vadd.f32 %v360, %v1323
      %v1325 = vpop.f32.mrb[0].mxu0
      %1326 = vmatprep.mubr.bf16.mxu0 0
      %1327 = vmatmul.mubr.bf16.gmra.mrb[0].mxu0 %v640
      %v1328 = vpop.f32.mrb[0].mxu0
      %v1329 = vadd.f32 %v360, %v1328
      %v1330 = vpop.f32.mrb[0].mxu0
      %v1331 = vpop.f32.mrb[0].mxu0
      %v1332 = vadd.f32 %v360, %v1331
      %v1333 = vpop.f32.mrb[0].mxu0
      %1334 = vmatprep.mubr.bf16.mxu0 0
      %1335 = vmatmul.mubr.bf16.gmra.mrb[0].mxu0 %v643
      %v1336 = vpop.f32.mrb[0].mxu0
      %v1337 = vadd.f32 %v360, %v1336
      %v1338 = vpop.f32.mrb[0].mxu0
      %v1339 = vpop.f32.mrb[0].mxu0
      %v1340 = vadd.f32 %v360, %v1339
      %v1341 = vpop.f32.mrb[0].mxu0
      %1342 = vmatprep.mubr.bf16.mxu0 0
      %1343 = vmatmul.mubr.bf16.gmra.mrb[0].mxu0 %v646
      %v1344 = vpop.f32.mrb[0].mxu0
      %v1345 = vadd.f32 %v360, %v1344
      %v1346 = vpop.f32.mrb[0].mxu0
      %v1347 = vpop.f32.mrb[0].mxu0
      %v1348 = vadd.f32 %v360, %v1347
      %v1349 = vpop.f32.mrb[0].mxu0
      %1350 = vmatprep.mubr.bf16.mxu0 0
      %1351 = vmatmul.mubr.bf16.gmra.mrb[0].mxu0 %v649
      %v1352 = vpop.f32.mrb[0].mxu0
      %v1353 = vadd.f32 %v360, %v1352
      %v1354 = vpop.f32.mrb[0].mxu0
      %v1355 = vpop.f32.mrb[0].mxu0
      %v1356 = vadd.f32 %v360, %v1355
      %v1357 = vpop.f32.mrb[0].mxu0
      %1358 = vmatprep.mubr.bf16.mxu0 0
      %1359 = vmatmul.mubr.bf16.gmra.mrb[0].mxu0 %v652
      %v1360 = vpop.f32.mrb[0].mxu0
      %v1361 = vadd.f32 %v360, %v1360
      %v1362 = vpop.f32.mrb[0].mxu0
      %v1363 = vpop.f32.mrb[0].mxu0
      %v1364 = vadd.f32 %v360, %v1363
      %v1365 = vpop.f32.mrb[0].mxu0
      %1366 = vmatprep.mubr.bf16.mxu0 0
      %1367 = vmatmul.mubr.bf16.gmra.mrb[0].mxu0 %v655
      %v1368 = vpop.f32.mrb[0].mxu0
      %v1369 = vadd.f32 %v360, %v1368
      %v1370 = vpop.f32.mrb[0].mxu0
      %v1371 = vpop.f32.mrb[0].mxu0
      %v1372 = vadd.f32 %v360, %v1371
      %v1373 = vpop.f32.mrb[0].mxu0
      %1374 = vmatprep.mubr.bf16.mxu0 0
      %1375 = vmatmul.mubr.bf16.gmra.mrb[0].mxu0 %v658
      %v1376 = vpop.f32.mrb[0].mxu0
      %v1377 = vadd.f32 %v360, %v1376
      %v1378 = vpop.f32.mrb[0].mxu0
      %v1379 = vpop.f32.mrb[0].mxu0
      %v1380 = vadd.f32 %v360, %v1379
      %v1381 = vpop.f32.mrb[0].mxu0
      %1382 = vmatprep.mubr.bf16.mxu0 0
      %1383 = vmatmul.mubr.bf16.gmra.mrb[0].mxu0 %v661
      %v1384 = vpop.f32.mrb[0].mxu0
      %v1385 = vadd.f32 %v360, %v1384
      %v1386 = vpop.f32.mrb[0].mxu0
      %v1387 = vpop.f32.mrb[0].mxu0
      %v1388 = vadd.f32 %v360, %v1387
      %v1389 = vpop.f32.mrb[0].mxu0
      %1390 = vmatprep.mubr.bf16.mxu0 0
      %1391 = vmatmul.mubr.bf16.gmra.mrb[0].mxu0 %v664
      %v1392 = vpop.f32.mrb[0].mxu0
      %v1393 = vadd.f32 %v360, %v1392
      %v1394 = vpop.f32.mrb[0].mxu0
      %v1395 = vpop.f32.mrb[0].mxu0
      %v1396 = vadd.f32 %v360, %v1395
      %v1397 = vpop.f32.mrb[0].mxu0
      %1398 = vmatprep.mubr.bf16.mxu0 0
      %1399 = vmatmul.mubr.bf16.gmra.mrb[0].mxu0 %v667
      %v1400 = vpop.f32.mrb[0].mxu0
      %v1401 = vadd.f32 %v360, %v1400
      %v1402 = vpop.f32.mrb[0].mxu0
      %v1403 = vpop.f32.mrb[0].mxu0
      %v1404 = vadd.f32 %v360, %v1403
      %v1405 = vpop.f32.mrb[0].mxu0
      %1406 = vmatprep.mubr.bf16.mxu0 0
      %1407 = vmatmul.mubr.bf16.gmra.mrb[0].mxu0 %v670
      %v1408 = vpop.f32.mrb[0].mxu0
      %v1409 = vadd.f32 %v360, %v1408
      %v1410 = vpop.f32.mrb[0].mxu0
      %v1411 = vpop.f32.mrb[0].mxu0
      %v1412 = vadd.f32 %v360, %v1411
      %v1413 = vpop.f32.mrb[0].mxu0
      %1414 = vmatprep.mubr.bf16.mxu0 0
      %1415 = vmatmul.mubr.bf16.gmra.mrb[0].mxu0 %v673
      %v1416 = vpop.f32.mrb[0].mxu0
      %v1417 = vadd.f32 %v360, %v1416
      %v1418 = vpop.f32.mrb[0].mxu0
      %v1419 = vpop.f32.mrb[0].mxu0
      %v1420 = vadd.f32 %v360, %v1419
      %v1421 = vpop.f32.mrb[0].mxu0
      %1422 = vmatprep.mubr.bf16.mxu0 0
      %1423 = vmatmul.mubr.bf16.gmra.mrb[0].mxu0 %v676
      %v1424 = vpop.f32.mrb[0].mxu0
      %v1425 = vadd.f32 %v360, %v1424
      %v1426 = vpop.f32.mrb[0].mxu0
      %v1427 = vpop.f32.mrb[0].mxu0
      %v1428 = vadd.f32 %v360, %v1427
      %v1429 = vpop.f32.mrb[0].mxu0
      %1430 = vmatprep.mubr.bf16.mxu0 0
      %1431 = vmatmul.mubr.bf16.gmra.mrb[0].mxu0 %v679
      %v1432 = vpop.f32.mrb[0].mxu0
      %v1433 = vadd.f32 %v360, %v1432
      %v1434 = vpop.f32.mrb[0].mxu0
      %v1435 = vpop.f32.mrb[0].mxu0
      %v1436 = vadd.f32 %v360, %v1435
      %v1437 = vpop.f32.mrb[0].mxu0
      %1438 = vmatprep.mubr.bf16.mxu0 0
      %1439 = vmatmul.mubr.bf16.gmra.mrb[0].mxu0 %v682
      %v1440 = vpop.f32.mrb[0].mxu0
      %v1441 = vadd.f32 %v360, %v1440
      %v1442 = vpop.f32.mrb[0].mxu0
      %v1443 = vpop.f32.mrb[0].mxu0
      %v1444 = vadd.f32 %v360, %v1443
      %v1445 = vpop.f32.mrb[0].mxu0
      %1446 = vmatprep.mubr.bf16.mxu0 0
      %1447 = vmatmul.mubr.bf16.gmra.mrb[0].mxu0 %v685
      %v1448 = vpop.f32.mrb[0].mxu0
      %v1449 = vadd.f32 %v360, %v1448
      %v1450 = vpop.f32.mrb[0].mxu0
      %v1451 = vpop.f32.mrb[0].mxu0
      %v1452 = vadd.f32 %v360, %v1451
      %v1453 = vpop.f32.mrb[0].mxu0
      %1454 = vmatprep.mubr.bf16.mxu0 0
      %1455 = vmatmul.mubr.bf16.gmra.mrb[0].mxu0 %v688
      %v1456 = vpop.f32.mrb[0].mxu0
      %v1457 = vadd.f32 %v360, %v1456
      %v1458 = vpop.f32.mrb[0].mxu0
      %v1459 = vpop.f32.mrb[0].mxu0
      %v1460 = vadd.f32 %v360, %v1459
      %v1461 = vpop.f32.mrb[0].mxu0
      %1462 = vmatprep.mubr.bf16.mxu0 0
      %1463 = vmatmul.mubr.bf16.gmra.mrb[0].mxu0 %v691
      %v1464 = vpop.f32.mrb[0].mxu0
      %v1465 = vadd.f32 %v360, %v1464
      %v1466 = vpop.f32.mrb[0].mxu0
      %v1467 = vpop.f32.mrb[0].mxu0
      %v1468 = vadd.f32 %v360, %v1467
      %v1469 = vpop.f32.mrb[0].mxu0
      %1470 = vmatprep.mubr.bf16.mxu0 0
      %1471 = vmatmul.mubr.bf16.gmra.mrb[0].mxu0 %v694
      %v1472 = vpop.f32.mrb[0].mxu0
      %v1473 = vadd.f32 %v360, %v1472
      %v1474 = vpop.f32.mrb[0].mxu0
      %v1475 = vpop.f32.mrb[0].mxu0
      %v1476 = vadd.f32 %v360, %v1475
      %v1477 = vpop.f32.mrb[0].mxu0
      %1478 = vmatprep.mubr.bf16.mxu0 0
      %1479 = vmatmul.mubr.bf16.gmra.mrb[0].mxu0 %v697
      %v1480 = vpop.f32.mrb[0].mxu0
      %v1481 = vadd.f32 %v360, %v1480
      %v1482 = vpop.f32.mrb[0].mxu0
      %v1483 = vpop.f32.mrb[0].mxu0
      %v1484 = vadd.f32 %v360, %v1483
      %v1485 = vpop.f32.mrb[0].mxu0
      %1486 = vmatprep.mubr.bf16.mxu0 0
      %1487 = vmatmul.mubr.bf16.gmra.mrb[0].mxu0 %v700
      %v1488 = vpop.f32.mrb[0].mxu0
      %v1489 = vadd.f32 %v360, %v1488
      %v1490 = vpop.f32.mrb[0].mxu0
      %v1491 = vpop.f32.mrb[0].mxu0
      %v1492 = vadd.f32 %v360, %v1491
      %v1493 = vpop.f32.mrb[0].mxu0
      %1494 = vmatprep.mubr.bf16.mxu0 0
      %1495 = vmatmul.mubr.bf16.gmra.mrb[0].mxu0 %v703
      %v1496 = vpop.f32.mrb[0].mxu0
      %v1497 = vadd.f32 %v360, %v1496
      %v1498 = vpop.f32.mrb[0].mxu0
      %v1499 = vpop.f32.mrb[0].mxu0
      %v1500 = vadd.f32 %v360, %v1499
      %v1501 = vpop.f32.mrb[0].mxu0
      %1502 = vmatprep.mubr.bf16.mxu0 0
      %1503 = vmatmul.mubr.bf16.gmra.mrb[0].mxu0 %v706
      %v1504 = vpop.f32.mrb[0].mxu0
      %v1505 = vadd.f32 %v360, %v1504
      %v1506 = vpop.f32.mrb[0].mxu0
      %v1507 = vpop.f32.mrb[0].mxu0
      %v1508 = vadd.f32 %v360, %v1507
      %v1509 = vpop.f32.mrb[0].mxu0
      %1510 = vmatprep.mubr.bf16.mxu0 0
      %1511 = vmatmul.mubr.bf16.gmra.mrb[0].mxu0 %v709
      %v1512 = vpop.f32.mrb[0].mxu0
      %v1513 = vadd.f32 %v360, %v1512
      %v1514 = vpop.f32.mrb[0].mxu0
      %v1515 = vpop.f32.mrb[0].mxu0
      %v1516 = vadd.f32 %v360, %v1515
      %v1517 = vpop.f32.mrb[0].mxu0
      %1518 = vmatprep.mubr.bf16.mxu0 0
      %1519 = vmatmul.mubr.bf16.gmra.mrb[0].mxu0 %v712
      %v1520 = vpop.f32.mrb[0].mxu0
      %v1521 = vadd.f32 %v360, %v1520
      %v1522 = vpop.f32.mrb[0].mxu0
      %v1523 = vpop.f32.mrb[0].mxu0
      %v1524 = vadd.f32 %v360, %v1523
      %v1525 = vpop.f32.mrb[0].mxu0
      %1526 = vmatprep.mubr.bf16.mxu0 0
      %1527 = vmatmul.mubr.bf16.gmra.mrb[0].mxu0 %v715
      %v1528 = vpop.f32.mrb[0].mxu0
      %v1529 = vadd.f32 %v360, %v1528
      %v1530 = vpop.f32.mrb[0].mxu0
      %v1531 = vpop.f32.mrb[0].mxu0
      %v1532 = vadd.f32 %v360, %v1531
      %v1533 = vpop.f32.mrb[0].mxu0
      %1534 = vmatprep.mubr.bf16.mxu0 0
      %1535 = vmatmul.mubr.bf16.gmra.mrb[0].mxu0 %v718
      %v1536 = vpop.f32.mrb[0].mxu0
      %v1537 = vadd.f32 %v360, %v1536
      %v1538 = vpop.f32.mrb[0].mxu0
      %v1539 = vpop.f32.mrb[0].mxu0
      %v1540 = vadd.f32 %v360, %v1539
      %v1541 = vpop.f32.mrb[0].mxu0
      %1542 = vmatprep.mubr.bf16.mxu0 0
      %1543 = vmatmul.mubr.bf16.gmra.mrb[0].mxu0 %v721
      %v1544 = vpop.f32.mrb[0].mxu0
      %v1545 = vadd.f32 %v360, %v1544
      %v1546 = vpop.f32.mrb[0].mxu0
      %v1547 = vpop.f32.mrb[0].mxu0
      %v1548 = vadd.f32 %v360, %v1547
      %v1549 = vpop.f32.mrb[0].mxu0
      %1550 = vmatprep.mubr.bf16.mxu0 0
      %1551 = vmatmul.mubr.bf16.gmra.mrb[0].mxu0 %v724
      %v1552 = vpop.f32.mrb[0].mxu0
      %v1553 = vadd.f32 %v360, %v1552
      %v1554 = vpop.f32.mrb[0].mxu0
      %v1555 = vpop.f32.mrb[0].mxu0
      %v1556 = vadd.f32 %v360, %v1555
      %v1557 = vpop.f32.mrb[0].mxu0
      %1558 = vmatprep.mubr.bf16.mxu0 0
      %1559 = vmatmul.mubr.bf16.gmra.mrb[0].mxu0 %v727
      %v1560 = vpop.f32.mrb[0].mxu0
      %v1561 = vadd.f32 %v360, %v1560
      %v1562 = vpop.f32.mrb[0].mxu0
      %v1563 = vpop.f32.mrb[0].mxu0
      %v1564 = vadd.f32 %v360, %v1563
      %v1565 = vpop.f32.mrb[0].mxu0
      %1566 = vmatprep.mubr.bf16.mxu0 0
      %1567 = vmatmul.mubr.bf16.gmra.mrb[0].mxu0 %v730
      %v1568 = vpop.f32.mrb[0].mxu0
      %v1569 = vadd.f32 %v360, %v1568
      %v1570 = vpop.f32.mrb[0].mxu0
      %v1571 = vpop.f32.mrb[0].mxu0
      %v1572 = vadd.f32 %v360, %v1571
      %v1573 = vpop.f32.mrb[0].mxu0
      %1574 = vmatprep.mubr.bf16.mxu0 0
      %1575 = vmatmul.mubr.bf16.gmra.mrb[0].mxu0 %v733
      %v1576 = vpop.f32.mrb[0].mxu0
      %v1577 = vadd.f32 %v360, %v1576
      %v1578 = vpop.f32.mrb[0].mxu0
      %v1579 = vpop.f32.mrb[0].mxu0
      %v1580 = vadd.f32 %v360, %v1579
      %v1581 = vpop.f32.mrb[0].mxu0
      %1582 = vmatprep.mubr.bf16.mxu0 0
      %1583 = vmatmul.mubr.bf16.gmra.mrb[0].mxu0 %v736
      %v1584 = vpop.f32.mrb[0].mxu0
      %v1585 = vadd.f32 %v360, %v1584
      %v1586 = vpop.f32.mrb[0].mxu0
      %v1587 = vpop.f32.mrb[0].mxu0
      %v1588 = vadd.f32 %v360, %v1587
      %v1589 = vpop.f32.mrb[0].mxu0
      %1590 = vdwg.mxu0
      %v1591 = vmax.f32 %v786, 0.0
      %v1592 = vmax.f32 %v788, 0.0
      %v1593 = vmax.f32 %v1249, 0.0
      %v1594 = vmax.f32 %v790, 0.0
      %v1595 = vmax.f32 %v792, 0.0
      %v1596 = vmax.f32 %v1252, 0.0
      %v1597 = vmax.f32 %v796, 0.0
      %v1598 = vmax.f32 %v798, 0.0
      %v1599 = vmax.f32 %v1257, 0.0
      %v1600 = vmax.f32 %v800, 0.0
      %v1601 = vmax.f32 %v802, 0.0
      %v1602 = vmax.f32 %v1260, 0.0
      %v1603 = vmax.f32 %v806, 0.0
      %v1604 = vmax.f32 %v808, 0.0
      %v1605 = vmax.f32 %v1265, 0.0
      %v1606 = vmax.f32 %v810, 0.0
      %v1607 = vmax.f32 %v812, 0.0
      %v1608 = vmax.f32 %v1268, 0.0
      %v1609 = vmax.f32 %v816, 0.0
      %v1610 = vmax.f32 %v818, 0.0
      %v1611 = vmax.f32 %v1273, 0.0
      %v1612 = vmax.f32 %v820, 0.0
      %v1613 = vmax.f32 %v822, 0.0
      %v1614 = vmax.f32 %v1276, 0.0
      %v1615 = vmax.f32 %v826, 0.0
      %v1616 = vmax.f32 %v828, 0.0
      %v1617 = vmax.f32 %v1281, 0.0
      %v1618 = vmax.f32 %v830, 0.0
      %v1619 = vmax.f32 %v832, 0.0
      %v1620 = vmax.f32 %v1284, 0.0
      %v1621 = vmax.f32 %v836, 0.0
      %v1622 = vmax.f32 %v838, 0.0
      %v1623 = vmax.f32 %v1289, 0.0
      %v1624 = vmax.f32 %v840, 0.0
      %v1625 = vmax.f32 %v842, 0.0
      %v1626 = vmax.f32 %v1292, 0.0
      %v1627 = vmax.f32 %v846, 0.0
      %v1628 = vmax.f32 %v848, 0.0
      %v1629 = vmax.f32 %v1297, 0.0
      %v1630 = vmax.f32 %v850, 0.0
      %v1631 = vmax.f32 %v852, 0.0
      %v1632 = vmax.f32 %v1300, 0.0
      %v1633 = vmax.f32 %v856, 0.0
      %v1634 = vmax.f32 %v858, 0.0
      %v1635 = vmax.f32 %v1305, 0.0
      %v1636 = vmax.f32 %v860, 0.0
      %v1637 = vmax.f32 %v862, 0.0
      %v1638 = vmax.f32 %v1308, 0.0
      %v1639 = vmax.f32 %v866, 0.0
      %v1640 = vmax.f32 %v868, 0.0
      %v1641 = vmax.f32 %v1313, 0.0
      %v1642 = vmax.f32 %v870, 0.0
      %v1643 = vmax.f32 %v872, 0.0
      %v1644 = vmax.f32 %v1316, 0.0
      %v1645 = vmax.f32 %v876, 0.0
      %v1646 = vmax.f32 %v878, 0.0
      %v1647 = vmax.f32 %v1321, 0.0
      %v1648 = vmax.f32 %v880, 0.0
      %v1649 = vmax.f32 %v882, 0.0
      %v1650 = vmax.f32 %v1324, 0.0
      %v1651 = vmax.f32 %v886, 0.0
      %v1652 = vmax.f32 %v888, 0.0
      %v1653 = vmax.f32 %v1329, 0.0
      %v1654 = vmax.f32 %v890, 0.0
      %v1655 = vmax.f32 %v892, 0.0
      %v1656 = vmax.f32 %v1332, 0.0
      %v1657 = vmax.f32 %v896, 0.0
      %v1658 = vmax.f32 %v898, 0.0
      %v1659 = vmax.f32 %v1337, 0.0
      %v1660 = vmax.f32 %v900, 0.0
      %v1661 = vmax.f32 %v902, 0.0
      %v1662 = vmax.f32 %v1340, 0.0
      %v1663 = vmax.f32 %v906, 0.0
      %v1664 = vmax.f32 %v908, 0.0
      %v1665 = vmax.f32 %v1345, 0.0
      %v1666 = vmax.f32 %v910, 0.0
      %v1667 = vmax.f32 %v912, 0.0
      %v1668 = vmax.f32 %v1348, 0.0
      %v1669 = vmax.f32 %v916, 0.0
      %v1670 = vmax.f32 %v918, 0.0
      %v1671 = vmax.f32 %v1353, 0.0
      %v1672 = vmax.f32 %v920, 0.0
      %v1673 = vmax.f32 %v922, 0.0
      %v1674 = vmax.f32 %v1356, 0.0
      %v1675 = vmax.f32 %v926, 0.0
      %v1676 = vmax.f32 %v928, 0.0
      %v1677 = vmax.f32 %v1361, 0.0
      %v1678 = vmax.f32 %v930, 0.0
      %v1679 = vmax.f32 %v932, 0.0
      %v1680 = vmax.f32 %v1364, 0.0
      %v1681 = vmax.f32 %v936, 0.0
      %v1682 = vmax.f32 %v938, 0.0
      %v1683 = vmax.f32 %v1369, 0.0
      %v1684 = vmax.f32 %v940, 0.0
      %v1685 = vmax.f32 %v942, 0.0
      %v1686 = vmax.f32 %v1372, 0.0
      %v1687 = vmax.f32 %v946, 0.0
      %v1688 = vmax.f32 %v948, 0.0
      %v1689 = vmax.f32 %v1377, 0.0
      %v1690 = vmax.f32 %v950, 0.0
      %v1691 = vmax.f32 %v952, 0.0
      %v1692 = vmax.f32 %v1380, 0.0
      %v1693 = vmax.f32 %v956, 0.0
      %v1694 = vmax.f32 %v958, 0.0
      %v1695 = vmax.f32 %v1385, 0.0
      %v1696 = vmax.f32 %v960, 0.0
      %v1697 = vmax.f32 %v962, 0.0
      %v1698 = vmax.f32 %v1388, 0.0
      %v1699 = vmax.f32 %v966, 0.0
      %v1700 = vmax.f32 %v968, 0.0
      %v1701 = vmax.f32 %v1393, 0.0
      %v1702 = vmax.f32 %v970, 0.0
      %v1703 = vmax.f32 %v972, 0.0
      %v1704 = vmax.f32 %v1396, 0.0
      %v1705 = vmax.f32 %v976, 0.0
      %v1706 = vmax.f32 %v978, 0.0
      %v1707 = vmax.f32 %v1401, 0.0
      %v1708 = vmax.f32 %v980, 0.0
      %v1709 = vmax.f32 %v982, 0.0
      %v1710 = vmax.f32 %v1404, 0.0
      %v1711 = vmax.f32 %v986, 0.0
      %v1712 = vmax.f32 %v988, 0.0
      %v1713 = vmax.f32 %v1409, 0.0
      %v1714 = vmax.f32 %v990, 0.0
      %v1715 = vmax.f32 %v992, 0.0
      %v1716 = vmax.f32 %v1412, 0.0
      %v1717 = vmax.f32 %v996, 0.0
      %v1718 = vmax.f32 %v998, 0.0
      %v1719 = vmax.f32 %v1417, 0.0
      %v1720 = vmax.f32 %v1000, 0.0
      %v1721 = vmax.f32 %v1002, 0.0
      %v1722 = vmax.f32 %v1420, 0.0
      %v1723 = vmax.f32 %v1006, 0.0
      %v1724 = vmax.f32 %v1008, 0.0
      %v1725 = vmax.f32 %v1425, 0.0
      %v1726 = vmax.f32 %v1010, 0.0
      %v1727 = vmax.f32 %v1012, 0.0
      %v1728 = vmax.f32 %v1428, 0.0
      %v1729 = vmax.f32 %v1016, 0.0
      %v1730 = vmax.f32 %v1018, 0.0
      %v1731 = vmax.f32 %v1433, 0.0
      %v1732 = vmax.f32 %v1020, 0.0
      %v1733 = vmax.f32 %v1022, 0.0
      %v1734 = vmax.f32 %v1436, 0.0
      %v1735 = vmax.f32 %v1026, 0.0
      %v1736 = vmax.f32 %v1028, 0.0
      %v1737 = vmax.f32 %v1441, 0.0
      %v1738 = vmax.f32 %v1030, 0.0
      %v1739 = vmax.f32 %v1032, 0.0
      %v1740 = vmax.f32 %v1444, 0.0
      %v1741 = vmax.f32 %v1036, 0.0
      %v1742 = vmax.f32 %v1038, 0.0
      %v1743 = vmax.f32 %v1449, 0.0
      %v1744 = vmax.f32 %v1040, 0.0
      %v1745 = vmax.f32 %v1042, 0.0
      %v1746 = vmax.f32 %v1452, 0.0
      %v1747 = vmax.f32 %v1046, 0.0
      %v1748 = vmax.f32 %v1048, 0.0
      %v1749 = vmax.f32 %v1457, 0.0
      %v1750 = vmax.f32 %v1050, 0.0
      %v1751 = vmax.f32 %v1052, 0.0
      %v1752 = vmax.f32 %v1460, 0.0
      %v1753 = vmax.f32 %v1056, 0.0
      %v1754 = vmax.f32 %v1058, 0.0
      %v1755 = vmax.f32 %v1465, 0.0
      %v1756 = vmax.f32 %v1060, 0.0
      %v1757 = vmax.f32 %v1062, 0.0
      %v1758 = vmax.f32 %v1468, 0.0
      %v1759 = vmax.f32 %v1066, 0.0
      %v1760 = vmax.f32 %v1068, 0.0
      %v1761 = vmax.f32 %v1473, 0.0
      %v1762 = vmax.f32 %v1070, 0.0
      %v1763 = vmax.f32 %v1072, 0.0
      %v1764 = vmax.f32 %v1476, 0.0
      %v1765 = vmax.f32 %v1076, 0.0
      %v1766 = vmax.f32 %v1078, 0.0
      %v1767 = vmax.f32 %v1481, 0.0
      %v1768 = vmax.f32 %v1080, 0.0
      %v1769 = vmax.f32 %v1082, 0.0
      %v1770 = vmax.f32 %v1484, 0.0
      %v1771 = vmax.f32 %v1086, 0.0
      %v1772 = vmax.f32 %v1088, 0.0
      %v1773 = vmax.f32 %v1489, 0.0
      %v1774 = vmax.f32 %v1090, 0.0
      %v1775 = vmax.f32 %v1092, 0.0
      %v1776 = vmax.f32 %v1492, 0.0
      %v1777 = vmax.f32 %v1096, 0.0
      %v1778 = vmax.f32 %v1098, 0.0
      %v1779 = vmax.f32 %v1497, 0.0
      %v1780 = vmax.f32 %v1100, 0.0
      %v1781 = vmax.f32 %v1102, 0.0
      %v1782 = vmax.f32 %v1500, 0.0
      %v1783 = vmax.f32 %v1106, 0.0
      %v1784 = vmax.f32 %v1108, 0.0
      %v1785 = vmax.f32 %v1505, 0.0
      %v1786 = vmax.f32 %v1110, 0.0
      %v1787 = vmax.f32 %v1112, 0.0
      %v1788 = vmax.f32 %v1508, 0.0
      %v1789 = vmax.f32 %v1116, 0.0
      %v1790 = vmax.f32 %v1118, 0.0
      %v1791 = vmax.f32 %v1513, 0.0
      %v1792 = vmax.f32 %v1120, 0.0
      %v1793 = vmax.f32 %v1122, 0.0
      %v1794 = vmax.f32 %v1516, 0.0
      %v1795 = vmax.f32 %v1126, 0.0
      %v1796 = vmax.f32 %v1128, 0.0
      %v1797 = vmax.f32 %v1521, 0.0
      %v1798 = vmax.f32 %v1130, 0.0
      %v1799 = vmax.f32 %v1132, 0.0
      %v1800 = vmax.f32 %v1524, 0.0
      %v1801 = vmax.f32 %v1136, 0.0
      %v1802 = vmax.f32 %v1138, 0.0
      %v1803 = vmax.f32 %v1529, 0.0
      %v1804 = vmax.f32 %v1140, 0.0
      %v1805 = vmax.f32 %v1142, 0.0
      %v1806 = vmax.f32 %v1532, 0.0
      %v1807 = vmax.f32 %v1146, 0.0
      %v1808 = vmax.f32 %v1148, 0.0
      %v1809 = vmax.f32 %v1537, 0.0
      %v1810 = vmax.f32 %v1150, 0.0
      %v1811 = vmax.f32 %v1152, 0.0
      %v1812 = vmax.f32 %v1540, 0.0
      %v1813 = vmax.f32 %v1156, 0.0
      %v1814 = vmax.f32 %v1158, 0.0
      %v1815 = vmax.f32 %v1545, 0.0
      %v1816 = vmax.f32 %v1160, 0.0
      %v1817 = vmax.f32 %v1162, 0.0
      %v1818 = vmax.f32 %v1548, 0.0
      %v1819 = vmax.f32 %v1166, 0.0
      %v1820 = vmax.f32 %v1168, 0.0
      %v1821 = vmax.f32 %v1553, 0.0
      %v1822 = vmax.f32 %v1170, 0.0
      %v1823 = vmax.f32 %v1172, 0.0
      %v1824 = vmax.f32 %v1556, 0.0
      %v1825 = vmax.f32 %v1176, 0.0
      %v1826 = vmax.f32 %v1178, 0.0
      %v1827 = vmax.f32 %v1561, 0.0
      %v1828 = vmax.f32 %v1180, 0.0
      %v1829 = vmax.f32 %v1182, 0.0
      %v1830 = vmax.f32 %v1564, 0.0
      %v1831 = vmax.f32 %v1186, 0.0
      %v1832 = vmax.f32 %v1188, 0.0
      %v1833 = vmax.f32 %v1569, 0.0
      %v1834 = vmax.f32 %v1190, 0.0
      %v1835 = vmax.f32 %v1192, 0.0
      %v1836 = vmax.f32 %v1572, 0.0
      %v1837 = vmax.f32 %v1196, 0.0
      %v1838 = vmax.f32 %v1198, 0.0
      %v1839 = vmax.f32 %v1577, 0.0
      %v1840 = vmax.f32 %v1200, 0.0
      %v1841 = vmax.f32 %v1202, 0.0
      %v1842 = vmax.f32 %v1580, 0.0
      %v1843 = vmax.f32 %v1206, 0.0
      %v1844 = vmax.f32 %v1208, 0.0
      %v1845 = vmax.f32 %v1585, 0.0
      %v1846 = vmax.f32 %v1210, 0.0
      %v1847 = vmax.f32 %v1212, 0.0
      %v1848 = vmax.f32 %v1588, 0.0
      %v1849 = vpack.c.bf16 %v1594, %v1591
      %v1850 = vpack.c.bf16 %v1595, %v1592
      %v1851 = vpack.c.bf16 %v1596, %v1593
      %v1852 = vpack.c.bf16 %v1600, %v1597
      %v1853 = vpack.c.bf16 %v1601, %v1598
      %v1854 = vpack.c.bf16 %v1602, %v1599
      %v1855 = vpack.c.bf16 %v1606, %v1603
      %v1856 = vpack.c.bf16 %v1607, %v1604
      %v1857 = vpack.c.bf16 %v1608, %v1605
      %v1858 = vpack.c.bf16 %v1612, %v1609
      %v1859 = vpack.c.bf16 %v1613, %v1610
      %v1860 = vpack.c.bf16 %v1614, %v1611
      %v1861 = vpack.c.bf16 %v1618, %v1615
      %v1862 = vpack.c.bf16 %v1619, %v1616
      %v1863 = vpack.c.bf16 %v1620, %v1617
      %v1864 = vpack.c.bf16 %v1624, %v1621
      %v1865 = vpack.c.bf16 %v1625, %v1622
      %v1866 = vpack.c.bf16 %v1626, %v1623
      %v1867 = vpack.c.bf16 %v1630, %v1627
      %v1868 = vpack.c.bf16 %v1631, %v1628
      %v1869 = vpack.c.bf16 %v1632, %v1629
      %v1870 = vpack.c.bf16 %v1636, %v1633
      %v1871 = vpack.c.bf16 %v1637, %v1634
      %v1872 = vpack.c.bf16 %v1638, %v1635
      %v1873 = vpack.c.bf16 %v1642, %v1639
      %v1874 = vpack.c.bf16 %v1643, %v1640
      %v1875 = vpack.c.bf16 %v1644, %v1641
      %v1876 = vpack.c.bf16 %v1648, %v1645
      %v1877 = vpack.c.bf16 %v1649, %v1646
      %v1878 = vpack.c.bf16 %v1650, %v1647
      %v1879 = vpack.c.bf16 %v1654, %v1651
      %v1880 = vpack.c.bf16 %v1655, %v1652
      %v1881 = vpack.c.bf16 %v1656, %v1653
      %v1882 = vpack.c.bf16 %v1660, %v1657
      %v1883 = vpack.c.bf16 %v1661, %v1658
      %v1884 = vpack.c.bf16 %v1662, %v1659
      %v1885 = vpack.c.bf16 %v1666, %v1663
      %v1886 = vpack.c.bf16 %v1667, %v1664
      %v1887 = vpack.c.bf16 %v1668, %v1665
      %v1888 = vpack.c.bf16 %v1672, %v1669
      %v1889 = vpack.c.bf16 %v1673, %v1670
      %v1890 = vpack.c.bf16 %v1674, %v1671
      %v1891 = vpack.c.bf16 %v1678, %v1675
      %v1892 = vpack.c.bf16 %v1679, %v1676
      %v1893 = vpack.c.bf16 %v1680, %v1677
      %v1894 = vpack.c.bf16 %v1684, %v1681
      %v1895 = vpack.c.bf16 %v1685, %v1682
      %v1896 = vpack.c.bf16 %v1686, %v1683
      %v1897 = vpack.c.bf16 %v1690, %v1687
      %v1898 = vpack.c.bf16 %v1691, %v1688
      %v1899 = vpack.c.bf16 %v1692, %v1689
      %v1900 = vpack.c.bf16 %v1696, %v1693
      %v1901 = vpack.c.bf16 %v1697, %v1694
      %v1902 = vpack.c.bf16 %v1698, %v1695
      %v1903 = vpack.c.bf16 %v1702, %v1699
      %v1904 = vpack.c.bf16 %v1703, %v1700
      %v1905 = vpack.c.bf16 %v1704, %v1701
      %v1906 = vpack.c.bf16 %v1708, %v1705
      %v1907 = vpack.c.bf16 %v1709, %v1706
      %v1908 = vpack.c.bf16 %v1710, %v1707
      %v1909 = vpack.c.bf16 %v1714, %v1711
      %v1910 = vpack.c.bf16 %v1715, %v1712
      %v1911 = vpack.c.bf16 %v1716, %v1713
      %v1912 = vpack.c.bf16 %v1720, %v1717
      %v1913 = vpack.c.bf16 %v1721, %v1718
      %v1914 = vpack.c.bf16 %v1722, %v1719
      %v1915 = vpack.c.bf16 %v1726, %v1723
      %v1916 = vpack.c.bf16 %v1727, %v1724
      %v1917 = vpack.c.bf16 %v1728, %v1725
      %v1918 = vpack.c.bf16 %v1732, %v1729
      %v1919 = vpack.c.bf16 %v1733, %v1730
      %v1920 = vpack.c.bf16 %v1734, %v1731
      %v1921 = vpack.c.bf16 %v1738, %v1735
      %v1922 = vpack.c.bf16 %v1739, %v1736
      %v1923 = vpack.c.bf16 %v1740, %v1737
      %v1924 = vpack.c.bf16 %v1744, %v1741
      %v1925 = vpack.c.bf16 %v1745, %v1742
      %v1926 = vpack.c.bf16 %v1746, %v1743
      %v1927 = vpack.c.bf16 %v1750, %v1747
      %v1928 = vpack.c.bf16 %v1751, %v1748
      %v1929 = vpack.c.bf16 %v1752, %v1749
      %v1930 = vpack.c.bf16 %v1756, %v1753
      %v1931 = vpack.c.bf16 %v1757, %v1754
      %v1932 = vpack.c.bf16 %v1758, %v1755
      %v1933 = vpack.c.bf16 %v1762, %v1759
      %v1934 = vpack.c.bf16 %v1763, %v1760
      %v1935 = vpack.c.bf16 %v1764, %v1761
      %v1936 = vpack.c.bf16 %v1768, %v1765
      %v1937 = vpack.c.bf16 %v1769, %v1766
      %v1938 = vpack.c.bf16 %v1770, %v1767
      %v1939 = vpack.c.bf16 %v1774, %v1771
      %v1940 = vpack.c.bf16 %v1775, %v1772
      %v1941 = vpack.c.bf16 %v1776, %v1773
      %v1942 = vpack.c.bf16 %v1780, %v1777
      %v1943 = vpack.c.bf16 %v1781, %v1778
      %v1944 = vpack.c.bf16 %v1782, %v1779
      %v1945 = vpack.c.bf16 %v1786, %v1783
      %v1946 = vpack.c.bf16 %v1787, %v1784
      %v1947 = vpack.c.bf16 %v1788, %v1785
      %v1948 = vpack.c.bf16 %v1792, %v1789
      %v1949 = vpack.c.bf16 %v1793, %v1790
      %v1950 = vpack.c.bf16 %v1794, %v1791
      %v1951 = vpack.c.bf16 %v1798, %v1795
      %v1952 = vpack.c.bf16 %v1799, %v1796
      %v1953 = vpack.c.bf16 %v1800, %v1797
      %v1954 = vpack.c.bf16 %v1804, %v1801
      %v1955 = vpack.c.bf16 %v1805, %v1802
      %v1956 = vpack.c.bf16 %v1806, %v1803
      %v1957 = vpack.c.bf16 %v1810, %v1807
      %v1958 = vpack.c.bf16 %v1811, %v1808
      %v1959 = vpack.c.bf16 %v1812, %v1809
      %v1960 = vpack.c.bf16 %v1816, %v1813
      %v1961 = vpack.c.bf16 %v1817, %v1814
      %v1962 = vpack.c.bf16 %v1818, %v1815
      %v1963 = vpack.c.bf16 %v1822, %v1819
      %v1964 = vpack.c.bf16 %v1823, %v1820
      %v1965 = vpack.c.bf16 %v1824, %v1821
      %v1966 = vpack.c.bf16 %v1828, %v1825
      %v1967 = vpack.c.bf16 %v1829, %v1826
      %v1968 = vpack.c.bf16 %v1830, %v1827
      %v1969 = vpack.c.bf16 %v1834, %v1831
      %v1970 = vpack.c.bf16 %v1835, %v1832
      %v1971 = vpack.c.bf16 %v1836, %v1833
      %v1972 = vpack.c.bf16 %v1840, %v1837
      %v1973 = vpack.c.bf16 %v1841, %v1838
      %v1974 = vpack.c.bf16 %v1842, %v1839
      %v1975 = vpack.c.bf16 %v1846, %v1843
      %v1976 = vpack.c.bf16 %v1847, %v1844
      %v1977 = vpack.c.bf16 %v1848, %v1845
      %v1978 = vld [vmem:[%s3] sm:$0xf]
      %v1979 = vld [vmem:[%s3 + $0x4] sm:$0xf]
      %v1980 = vld [vmem:[%s3 + $0x8] sm:$0xf]
      %v1981 = vld [vmem:[%s3 + $0xc] sm:$0xf]
      %v1982 = vld [vmem:[%s3 + $0x10] sm:$0xf]
      %v1983 = vld [vmem:[%s3 + $0x14] sm:$0xf]
      %v1984 = vld [vmem:[%s3 + $0x18] sm:$0xf]
      %v1985 = vld [vmem:[%s3 + $0x1c] sm:$0xf]
      %v1986 = vld [vmem:[%s3 + $0x20] sm:$0xf]
      %v1987 = vld [vmem:[%s3 + $0x24] sm:$0xf]
      %v1988 = vld [vmem:[%s3 + $0x28] sm:$0xf]
      %v1989 = vld [vmem:[%s3 + $0x2c] sm:$0xf]
      %v1990 = vld [vmem:[%s3 + $0x30] sm:$0xf]
      %v1991 = vld [vmem:[%s3 + $0x34] sm:$0xf]
      %v1992 = vld [vmem:[%s3 + $0x38] sm:$0xf]
      %v1993 = vld [vmem:[%s3 + $0x3c] sm:$0xf]
      %v1994 = vld [vmem:[%s3 + $0x40] sm:$0xf]
      %v1995 = vld [vmem:[%s3 + $0x44] sm:$0xf]
      %v1996 = vld [vmem:[%s3 + $0x48] sm:$0xf]
      %v1997 = vld [vmem:[%s3 + $0x4c] sm:$0xf]
      %v1998 = vld [vmem:[%s3 + $0x50] sm:$0xf]
      %v1999 = vld [vmem:[%s3 + $0x54] sm:$0xf]
      %v2000 = vld [vmem:[%s3 + $0x58] sm:$0xf]
      %v2001 = vld [vmem:[%s3 + $0x5c] sm:$0xf]
      %v2002 = vld [vmem:[%s3 + $0x60] sm:$0xf]
      %v2003 = vld [vmem:[%s3 + $0x64] sm:$0xf]
      %v2004 = vld [vmem:[%s3 + $0x68] sm:$0xf]
      %v2005 = vld [vmem:[%s3 + $0x6c] sm:$0xf]
      %v2006 = vld [vmem:[%s3 + $0x70] sm:$0xf]
      %v2007 = vld [vmem:[%s3 + $0x74] sm:$0xf]
      %v2008 = vld [vmem:[%s3 + $0x78] sm:$0xf]
      %v2009 = vld [vmem:[%s3 + $0x7c] sm:$0xf]
      %v2010 = vld [vmem:[%s3 + $0x80] sm:$0xf]
      %v2011 = vld [vmem:[%s3 + $0x84] sm:$0xf]
      %v2012 = vld [vmem:[%s3 + $0x88] sm:$0xf]
      %v2013 = vld [vmem:[%s3 + $0x8c] sm:$0xf]
      %v2014 = vld [vmem:[%s4] sm:$0x1]
      %v2016 = vlaneseq
      %v2017 = vshrl.u32 %v2016, 7
      %v2018 = vsub.s32 0, %v2017
      %v2019 = vrot.slane %v2014, %v2018
      %v2057 = vunpack.c.l.b16 %v1978
      %v2058 = vunpack.c.l.b16 %v1979
      %v2059 = vunpack.c.l.b16 %v1980
      %v2060 = vunpack.c.l.b16 %v1981
      %v2061 = vunpack.c.l.b16 %v1982
      %v2062 = vunpack.c.l.b16 %v1983
      %v2063 = vunpack.c.l.b16 %v1984
      %v2064 = vunpack.c.l.b16 %v1985
      %v2065 = vunpack.c.l.b16 %v1986
      %v2066 = vunpack.c.l.b16 %v1987
      %v2067 = vunpack.c.l.b16 %v1988
      %v2068 = vunpack.c.l.b16 %v1989
      %v2069 = vunpack.c.l.b16 %v1990
      %v2070 = vunpack.c.l.b16 %v1991
      %v2071 = vunpack.c.l.b16 %v1992
      %v2072 = vunpack.c.l.b16 %v1993
      %v2073 = vunpack.c.l.b16 %v1994
      %v2074 = vunpack.c.l.b16 %v1995
      %v2075 = vunpack.c.l.b16 %v1996
      %v2076 = vunpack.c.l.b16 %v1997
      %v2077 = vunpack.c.l.b16 %v1998
      %v2078 = vunpack.c.l.b16 %v1999
      %v2079 = vunpack.c.l.b16 %v2000
      %v2080 = vunpack.c.l.b16 %v2001
      %v2081 = vunpack.c.l.b16 %v2002
      %v2082 = vunpack.c.l.b16 %v2003
      %v2083 = vunpack.c.l.b16 %v2004
      %v2084 = vunpack.c.l.b16 %v2005
      %v2085 = vunpack.c.l.b16 %v2006
      %v2086 = vunpack.c.l.b16 %v2007
      %v2087 = vunpack.c.l.b16 %v2008
      %v2088 = vunpack.c.l.b16 %v2009
      %v2089 = vunpack.c.l.b16 %v2010
      %v2090 = vunpack.c.l.b16 %v2011
      %v2091 = vunpack.c.l.b16 %v2012
      %v2092 = vunpack.c.l.b16 %v2013
      %v2093 = vpack.c.b16 %v2058, %v2057
      %v2094 = vpack.c.b16 %v2060, %v2059
      %v2095 = vpack.c.b16 %v2062, %v2061
      %v2096 = vpack.c.b16 %v2064, %v2063
      %v2097 = vpack.c.b16 %v2066, %v2065
      %v2098 = vpack.c.b16 %v2068, %v2067
      %v2099 = vpack.c.b16 %v2070, %v2069
      %v2100 = vpack.c.b16 %v2072, %v2071
      %v2101 = vpack.c.b16 %v2074, %v2073
      %v2102 = vpack.c.b16 %v2076, %v2075
      %v2103 = vpack.c.b16 %v2078, %v2077
      %v2104 = vpack.c.b16 %v2080, %v2079
      %v2105 = vpack.c.b16 %v2082, %v2081
      %v2106 = vpack.c.b16 %v2084, %v2083
      %v2107 = vpack.c.b16 %v2086, %v2085
      %v2108 = vpack.c.b16 %v2088, %v2087
      %v2109 = vpack.c.b16 %v2090, %v2089
      %v2110 = vpack.c.b16 %v2092, %v2091
      %vm2129 = vcmask 261120
      %v2131 = vsel %vm2129, %v1851, 0
      %v2134 = vsel %vm2129, %v1854, 0
      %v2137 = vsel %vm2129, %v1857, 0
      %v2140 = vsel %vm2129, %v1860, 0
      %v2143 = vsel %vm2129, %v1863, 0
      %v2146 = vsel %vm2129, %v1866, 0
      %v2149 = vsel %vm2129, %v1869, 0
      %v2152 = vsel %vm2129, %v1872, 0
      %v2155 = vsel %vm2129, %v1875, 0
      %v2158 = vsel %vm2129, %v1878, 0
      %v2161 = vsel %vm2129, %v1881, 0
      %v2164 = vsel %vm2129, %v1884, 0
      %v2167 = vsel %vm2129, %v1887, 0
      %v2170 = vsel %vm2129, %v1890, 0
      %v2173 = vsel %vm2129, %v1893, 0
      %v2176 = vsel %vm2129, %v1896, 0
      %v2179 = vsel %vm2129, %v1899, 0
      %v2182 = vsel %vm2129, %v1902, 0
      %v2185 = vsel %vm2129, %v1905, 0
      %v2188 = vsel %vm2129, %v1908, 0
      %v2191 = vsel %vm2129, %v1911, 0
      %v2194 = vsel %vm2129, %v1914, 0
      %v2197 = vsel %vm2129, %v1917, 0
      %v2200 = vsel %vm2129, %v1920, 0
      %v2203 = vsel %vm2129, %v1923, 0
      %v2206 = vsel %vm2129, %v1926, 0
      %v2209 = vsel %vm2129, %v1929, 0
      %v2212 = vsel %vm2129, %v1932, 0
      %v2215 = vsel %vm2129, %v1935, 0
      %v2218 = vsel %vm2129, %v1938, 0
      %v2221 = vsel %vm2129, %v1941, 0
      %v2224 = vsel %vm2129, %v1944, 0
      %v2227 = vsel %vm2129, %v1947, 0
      %v2230 = vsel %vm2129, %v1950, 0
      %v2233 = vsel %vm2129, %v1953, 0
      %v2236 = vsel %vm2129, %v1956, 0
      %v2239 = vsel %vm2129, %v1959, 0
      %v2242 = vsel %vm2129, %v1962, 0
      %v2245 = vsel %vm2129, %v1965, 0
      %v2248 = vsel %vm2129, %v1968, 0
      %v2251 = vsel %vm2129, %v1971, 0
      %v2254 = vsel %vm2129, %v1974, 0
      %v2257 = vsel %vm2129, %v1977, 0
      %2259 = vmatprep.subr.bf16.mxu0 0
      %2260 = vmatpush1.bf16.msra.mxu0 %v2093
      %2261 = vmatprep.subr.bf16.mxu0 0
      %2262 = vmatpush1.bf16.msra.mxu0 %v2094
      %2263 = vmatprep.subr.bf16.mxu0 0
      %2264 = vmatpush1.bf16.msra.mxu0 %v2095
      %2265 = vmatprep.subr.bf16.mxu0 0
      %2266 = vmatpush1.bf16.msra.mxu0 %v2096
      %2267 = vmatprep.subr.bf16.mxu0 0
      %2268 = vmatpush1.bf16.msra.mxu0 %v2097
      %2269 = vmatprep.subr.bf16.mxu0 0
      %2270 = vmatpush1.bf16.msra.mxu0 %v2098
      %2271 = vmatprep.subr.bf16.mxu0 0
      %2272 = vmatpush1.bf16.msra.mxu0 %v2099
      %2273 = vmatprep.subr.bf16.mxu0 0
      %2274 = vmatpush1.bf16.msra.mxu0 %v2100
      %2275 = vmatprep.subr.bf16.mxu0 0
      %2276 = vmatpush1.bf16.msra.mxu0 %v2101
      %2277 = vmatprep.subr.bf16.mxu0 0
      %2278 = vmatpush1.bf16.msra.mxu0 %v2102
      %2279 = vmatprep.subr.bf16.mxu0 0
      %2280 = vmatpush1.bf16.msra.mxu0 %v2103
      %2281 = vmatprep.subr.bf16.mxu0 0
      %2282 = vmatpush1.bf16.msra.mxu0 %v2104
      %2283 = vmatprep.subr.bf16.mxu0 0
      %2284 = vmatpush1.bf16.msra.mxu0 %v2105
      %2285 = vmatprep.subr.bf16.mxu0 0
      %2286 = vmatpush1.bf16.msra.mxu0 %v2106
      %2287 = vmatprep.subr.bf16.mxu0 0
      %2288 = vmatpush1.bf16.msra.mxu0 %v2107
      %2289 = vmatprep.subr.bf16.mxu0 0
      %2290 = vmatpush1.bf16.msra.mxu0 %v2108
      %2291 = vmatprep.mubr.bf16.mxu0 %v1850
      %2292 = vmatmul.mubr.bf16.gmra.mrb[0].mxu0 %v1849
      %v2293 = vpop.f32.mrb[0].mxu0
      %v2294 = vadd.f32 %v2019, %v2293
      %v2295 = vpop.f32.mrb[0].mxu0
      %v2296 = vpop.f32.mrb[0].mxu0
      %v2297 = vadd.f32 %v2019, %v2296
      %v2298 = vpop.f32.mrb[0].mxu0
      %2299 = vmatprep.mubr.bf16.mxu0 %v1853
      %2300 = vmatmul.mubr.bf16.gmra.mrb[0].mxu0 %v1852
      %v2301 = vpop.f32.mrb[0].mxu0
      %v2302 = vadd.f32 %v2019, %v2301
      %v2303 = vpop.f32.mrb[0].mxu0
      %v2304 = vpop.f32.mrb[0].mxu0
      %v2305 = vadd.f32 %v2019, %v2304
      %v2306 = vpop.f32.mrb[0].mxu0
      %2307 = vmatprep.mubr.bf16.mxu0 %v1856
      %2308 = vmatmul.mubr.bf16.gmra.mrb[0].mxu0 %v1855
      %v2309 = vpop.f32.mrb[0].mxu0
      %v2310 = vadd.f32 %v2019, %v2309
      %v2311 = vpop.f32.mrb[0].mxu0
      %v2312 = vpop.f32.mrb[0].mxu0
      %v2313 = vadd.f32 %v2019, %v2312
      %v2314 = vpop.f32.mrb[0].mxu0
      %2315 = vmatprep.mubr.bf16.mxu0 %v1859
      %2316 = vmatmul.mubr.bf16.gmra.mrb[0].mxu0 %v1858
      %v2317 = vpop.f32.mrb[0].mxu0
      %v2318 = vadd.f32 %v2019, %v2317
      %v2319 = vpop.f32.mrb[0].mxu0
      %v2320 = vpop.f32.mrb[0].mxu0
      %v2321 = vadd.f32 %v2019, %v2320
      %v2322 = vpop.f32.mrb[0].mxu0
      %2323 = vmatprep.mubr.bf16.mxu0 %v1862
      %2324 = vmatmul.mubr.bf16.gmra.mrb[0].mxu0 %v1861
      %v2325 = vpop.f32.mrb[0].mxu0
      %v2326 = vadd.f32 %v2019, %v2325
      %v2327 = vpop.f32.mrb[0].mxu0
      %v2328 = vpop.f32.mrb[0].mxu0
      %v2329 = vadd.f32 %v2019, %v2328
      %v2330 = vpop.f32.mrb[0].mxu0
      %2331 = vmatprep.mubr.bf16.mxu0 %v1865
      %2332 = vmatmul.mubr.bf16.gmra.mrb[0].mxu0 %v1864
      %v2333 = vpop.f32.mrb[0].mxu0
      %v2334 = vadd.f32 %v2019, %v2333
      %v2335 = vpop.f32.mrb[0].mxu0
      %v2336 = vpop.f32.mrb[0].mxu0
      %v2337 = vadd.f32 %v2019, %v2336
      %v2338 = vpop.f32.mrb[0].mxu0
      %2339 = vmatprep.mubr.bf16.mxu0 %v1868
      %2340 = vmatmul.mubr.bf16.gmra.mrb[0].mxu0 %v1867
      %v2341 = vpop.f32.mrb[0].mxu0
      %v2342 = vadd.f32 %v2019, %v2341
      %v2343 = vpop.f32.mrb[0].mxu0
      %v2344 = vpop.f32.mrb[0].mxu0
      %v2345 = vadd.f32 %v2019, %v2344
      %v2346 = vpop.f32.mrb[0].mxu0
      %2347 = vmatprep.mubr.bf16.mxu0 %v1871
      %2348 = vmatmul.mubr.bf16.gmra.mrb[0].mxu0 %v1870
      %v2349 = vpop.f32.mrb[0].mxu0
      %v2350 = vadd.f32 %v2019, %v2349
      %v2351 = vpop.f32.mrb[0].mxu0
      %v2352 = vpop.f32.mrb[0].mxu0
      %v2353 = vadd.f32 %v2019, %v2352
      %v2354 = vpop.f32.mrb[0].mxu0
      %2355 = vmatprep.mubr.bf16.mxu0 %v1874
      %2356 = vmatmul.mubr.bf16.gmra.mrb[0].mxu0 %v1873
      %v2357 = vpop.f32.mrb[0].mxu0
      %v2358 = vadd.f32 %v2019, %v2357
      %v2359 = vpop.f32.mrb[0].mxu0
      %v2360 = vpop.f32.mrb[0].mxu0
      %v2361 = vadd.f32 %v2019, %v2360
      %v2362 = vpop.f32.mrb[0].mxu0
      %2363 = vmatprep.mubr.bf16.mxu0 %v1877
      %2364 = vmatmul.mubr.bf16.gmra.mrb[0].mxu0 %v1876
      %v2365 = vpop.f32.mrb[0].mxu0
      %v2366 = vadd.f32 %v2019, %v2365
      %v2367 = vpop.f32.mrb[0].mxu0
      %v2368 = vpop.f32.mrb[0].mxu0
      %v2369 = vadd.f32 %v2019, %v2368
      %v2370 = vpop.f32.mrb[0].mxu0
      %2371 = vmatprep.mubr.bf16.mxu0 %v1880
      %2372 = vmatmul.mubr.bf16.gmra.mrb[0].mxu0 %v1879
      %v2373 = vpop.f32.mrb[0].mxu0
      %v2374 = vadd.f32 %v2019, %v2373
      %v2375 = vpop.f32.mrb[0].mxu0
      %v2376 = vpop.f32.mrb[0].mxu0
      %v2377 = vadd.f32 %v2019, %v2376
      %v2378 = vpop.f32.mrb[0].mxu0
      %2379 = vmatprep.mubr.bf16.mxu0 %v1883
      %2380 = vmatmul.mubr.bf16.gmra.mrb[0].mxu0 %v1882
      %v2381 = vpop.f32.mrb[0].mxu0
      %v2382 = vadd.f32 %v2019, %v2381
      %v2383 = vpop.f32.mrb[0].mxu0
      %v2384 = vpop.f32.mrb[0].mxu0
      %v2385 = vadd.f32 %v2019, %v2384
      %v2386 = vpop.f32.mrb[0].mxu0
      %2387 = vmatprep.mubr.bf16.mxu0 %v1886
      %2388 = vmatmul.mubr.bf16.gmra.mrb[0].mxu0 %v1885
      %v2389 = vpop.f32.mrb[0].mxu0
      %v2390 = vadd.f32 %v2019, %v2389
      %v2391 = vpop.f32.mrb[0].mxu0
      %v2392 = vpop.f32.mrb[0].mxu0
      %v2393 = vadd.f32 %v2019, %v2392
      %v2394 = vpop.f32.mrb[0].mxu0
      %2395 = vmatprep.mubr.bf16.mxu0 %v1889
      %2396 = vmatmul.mubr.bf16.gmra.mrb[0].mxu0 %v1888
      %v2397 = vpop.f32.mrb[0].mxu0
      %v2398 = vadd.f32 %v2019, %v2397
      %v2399 = vpop.f32.mrb[0].mxu0
      %v2400 = vpop.f32.mrb[0].mxu0
      %v2401 = vadd.f32 %v2019, %v2400
      %v2402 = vpop.f32.mrb[0].mxu0
      %2403 = vmatprep.mubr.bf16.mxu0 %v1892
      %2404 = vmatmul.mubr.bf16.gmra.mrb[0].mxu0 %v1891
      %v2405 = vpop.f32.mrb[0].mxu0
      %v2406 = vadd.f32 %v2019, %v2405
      %v2407 = vpop.f32.mrb[0].mxu0
      %v2408 = vpop.f32.mrb[0].mxu0
      %v2409 = vadd.f32 %v2019, %v2408
      %v2410 = vpop.f32.mrb[0].mxu0
      %2411 = vmatprep.mubr.bf16.mxu0 %v1895
      %2412 = vmatmul.mubr.bf16.gmra.mrb[0].mxu0 %v1894
      %v2413 = vpop.f32.mrb[0].mxu0
      %v2414 = vadd.f32 %v2019, %v2413
      %v2415 = vpop.f32.mrb[0].mxu0
      %v2416 = vpop.f32.mrb[0].mxu0
      %v2417 = vadd.f32 %v2019, %v2416
      %v2418 = vpop.f32.mrb[0].mxu0
      %2419 = vmatprep.mubr.bf16.mxu0 %v1898
      %2420 = vmatmul.mubr.bf16.gmra.mrb[0].mxu0 %v1897
      %v2421 = vpop.f32.mrb[0].mxu0
      %v2422 = vadd.f32 %v2019, %v2421
      %v2423 = vpop.f32.mrb[0].mxu0
      %v2424 = vpop.f32.mrb[0].mxu0
      %v2425 = vadd.f32 %v2019, %v2424
      %v2426 = vpop.f32.mrb[0].mxu0
      %2427 = vmatprep.mubr.bf16.mxu0 %v1901
      %2428 = vmatmul.mubr.bf16.gmra.mrb[0].mxu0 %v1900
      %v2429 = vpop.f32.mrb[0].mxu0
      %v2430 = vadd.f32 %v2019, %v2429
      %v2431 = vpop.f32.mrb[0].mxu0
      %v2432 = vpop.f32.mrb[0].mxu0
      %v2433 = vadd.f32 %v2019, %v2432
      %v2434 = vpop.f32.mrb[0].mxu0
      %2435 = vmatprep.mubr.bf16.mxu0 %v1904
      %2436 = vmatmul.mubr.bf16.gmra.mrb[0].mxu0 %v1903
      %v2437 = vpop.f32.mrb[0].mxu0
      %v2438 = vadd.f32 %v2019, %v2437
      %v2439 = vpop.f32.mrb[0].mxu0
      %v2440 = vpop.f32.mrb[0].mxu0
      %v2441 = vadd.f32 %v2019, %v2440
      %v2442 = vpop.f32.mrb[0].mxu0
      %2443 = vmatprep.mubr.bf16.mxu0 %v1907
      %2444 = vmatmul.mubr.bf16.gmra.mrb[0].mxu0 %v1906
      %v2445 = vpop.f32.mrb[0].mxu0
      %v2446 = vadd.f32 %v2019, %v2445
      %v2447 = vpop.f32.mrb[0].mxu0
      %v2448 = vpop.f32.mrb[0].mxu0
      %v2449 = vadd.f32 %v2019, %v2448
      %v2450 = vpop.f32.mrb[0].mxu0
      %2451 = vmatprep.mubr.bf16.mxu0 %v1910
      %2452 = vmatmul.mubr.bf16.gmra.mrb[0].mxu0 %v1909
      %v2453 = vpop.f32.mrb[0].mxu0
      %v2454 = vadd.f32 %v2019, %v2453
      %v2455 = vpop.f32.mrb[0].mxu0
      %v2456 = vpop.f32.mrb[0].mxu0
      %v2457 = vadd.f32 %v2019, %v2456
      %v2458 = vpop.f32.mrb[0].mxu0
      %2459 = vmatprep.mubr.bf16.mxu0 %v1913
      %2460 = vmatmul.mubr.bf16.gmra.mrb[0].mxu0 %v1912
      %v2461 = vpop.f32.mrb[0].mxu0
      %v2462 = vadd.f32 %v2019, %v2461
      %v2463 = vpop.f32.mrb[0].mxu0
      %v2464 = vpop.f32.mrb[0].mxu0
      %v2465 = vadd.f32 %v2019, %v2464
      %v2466 = vpop.f32.mrb[0].mxu0
      %2467 = vmatprep.mubr.bf16.mxu0 %v1916
      %2468 = vmatmul.mubr.bf16.gmra.mrb[0].mxu0 %v1915
      %v2469 = vpop.f32.mrb[0].mxu0
      %v2470 = vadd.f32 %v2019, %v2469
      %v2471 = vpop.f32.mrb[0].mxu0
      %v2472 = vpop.f32.mrb[0].mxu0
      %v2473 = vadd.f32 %v2019, %v2472
      %v2474 = vpop.f32.mrb[0].mxu0
      %2475 = vmatprep.mubr.bf16.mxu0 %v1919
      %2476 = vmatmul.mubr.bf16.gmra.mrb[0].mxu0 %v1918
      %v2477 = vpop.f32.mrb[0].mxu0
      %v2478 = vadd.f32 %v2019, %v2477
      %v2479 = vpop.f32.mrb[0].mxu0
      %v2480 = vpop.f32.mrb[0].mxu0
      %v2481 = vadd.f32 %v2019, %v2480
      %v2482 = vpop.f32.mrb[0].mxu0
      %2483 = vmatprep.mubr.bf16.mxu0 %v1922
      %2484 = vmatmul.mubr.bf16.gmra.mrb[0].mxu0 %v1921
      %v2485 = vpop.f32.mrb[0].mxu0
      %v2486 = vadd.f32 %v2019, %v2485
      %v2487 = vpop.f32.mrb[0].mxu0
      %v2488 = vpop.f32.mrb[0].mxu0
      %v2489 = vadd.f32 %v2019, %v2488
      %v2490 = vpop.f32.mrb[0].mxu0
      %2491 = vmatprep.mubr.bf16.mxu0 %v1925
      %2492 = vmatmul.mubr.bf16.gmra.mrb[0].mxu0 %v1924
      %v2493 = vpop.f32.mrb[0].mxu0
      %v2494 = vadd.f32 %v2019, %v2493
      %v2495 = vpop.f32.mrb[0].mxu0
      %v2496 = vpop.f32.mrb[0].mxu0
      %v2497 = vadd.f32 %v2019, %v2496
      %v2498 = vpop.f32.mrb[0].mxu0
      %2499 = vmatprep.mubr.bf16.mxu0 %v1928
      %2500 = vmatmul.mubr.bf16.gmra.mrb[0].mxu0 %v1927
      %v2501 = vpop.f32.mrb[0].mxu0
      %v2502 = vadd.f32 %v2019, %v2501
      %v2503 = vpop.f32.mrb[0].mxu0
      %v2504 = vpop.f32.mrb[0].mxu0
      %v2505 = vadd.f32 %v2019, %v2504
      %v2506 = vpop.f32.mrb[0].mxu0
      %2507 = vmatprep.mubr.bf16.mxu0 %v1931
      %2508 = vmatmul.mubr.bf16.gmra.mrb[0].mxu0 %v1930
      %v2509 = vpop.f32.mrb[0].mxu0
      %v2510 = vadd.f32 %v2019, %v2509
      %v2511 = vpop.f32.mrb[0].mxu0
      %v2512 = vpop.f32.mrb[0].mxu0
      %v2513 = vadd.f32 %v2019, %v2512
      %v2514 = vpop.f32.mrb[0].mxu0
      %2515 = vmatprep.mubr.bf16.mxu0 %v1934
      %2516 = vmatmul.mubr.bf16.gmra.mrb[0].mxu0 %v1933
      %v2517 = vpop.f32.mrb[0].mxu0
      %v2518 = vadd.f32 %v2019, %v2517
      %v2519 = vpop.f32.mrb[0].mxu0
      %v2520 = vpop.f32.mrb[0].mxu0
      %v2521 = vadd.f32 %v2019, %v2520
      %v2522 = vpop.f32.mrb[0].mxu0
      %2523 = vmatprep.mubr.bf16.mxu0 %v1937
      %2524 = vmatmul.mubr.bf16.gmra.mrb[0].mxu0 %v1936
      %v2525 = vpop.f32.mrb[0].mxu0
      %v2526 = vadd.f32 %v2019, %v2525
      %v2527 = vpop.f32.mrb[0].mxu0
      %v2528 = vpop.f32.mrb[0].mxu0
      %v2529 = vadd.f32 %v2019, %v2528
      %v2530 = vpop.f32.mrb[0].mxu0
      %2531 = vmatprep.mubr.bf16.mxu0 %v1940
      %2532 = vmatmul.mubr.bf16.gmra.mrb[0].mxu0 %v1939
      %v2533 = vpop.f32.mrb[0].mxu0
      %v2534 = vadd.f32 %v2019, %v2533
      %v2535 = vpop.f32.mrb[0].mxu0
      %v2536 = vpop.f32.mrb[0].mxu0
      %v2537 = vadd.f32 %v2019, %v2536
      %v2538 = vpop.f32.mrb[0].mxu0
      %2539 = vmatprep.mubr.bf16.mxu0 %v1943
      %2540 = vmatmul.mubr.bf16.gmra.mrb[0].mxu0 %v1942
      %v2541 = vpop.f32.mrb[0].mxu0
      %v2542 = vadd.f32 %v2019, %v2541
      %v2543 = vpop.f32.mrb[0].mxu0
      %v2544 = vpop.f32.mrb[0].mxu0
      %v2545 = vadd.f32 %v2019, %v2544
      %v2546 = vpop.f32.mrb[0].mxu0
      %2547 = vmatprep.mubr.bf16.mxu0 %v1946
      %2548 = vmatmul.mubr.bf16.gmra.mrb[0].mxu0 %v1945
      %v2549 = vpop.f32.mrb[0].mxu0
      %v2550 = vadd.f32 %v2019, %v2549
      %v2551 = vpop.f32.mrb[0].mxu0
      %v2552 = vpop.f32.mrb[0].mxu0
      %v2553 = vadd.f32 %v2019, %v2552
      %v2554 = vpop.f32.mrb[0].mxu0
      %2555 = vmatprep.mubr.bf16.mxu0 %v1949
      %2556 = vmatmul.mubr.bf16.gmra.mrb[0].mxu0 %v1948
      %v2557 = vpop.f32.mrb[0].mxu0
      %v2558 = vadd.f32 %v2019, %v2557
      %v2559 = vpop.f32.mrb[0].mxu0
      %v2560 = vpop.f32.mrb[0].mxu0
      %v2561 = vadd.f32 %v2019, %v2560
      %v2562 = vpop.f32.mrb[0].mxu0
      %2563 = vmatprep.mubr.bf16.mxu0 %v1952
      %2564 = vmatmul.mubr.bf16.gmra.mrb[0].mxu0 %v1951
      %v2565 = vpop.f32.mrb[0].mxu0
      %v2566 = vadd.f32 %v2019, %v2565
      %v2567 = vpop.f32.mrb[0].mxu0
      %v2568 = vpop.f32.mrb[0].mxu0
      %v2569 = vadd.f32 %v2019, %v2568
      %v2570 = vpop.f32.mrb[0].mxu0
      %2571 = vmatprep.mubr.bf16.mxu0 %v1955
      %2572 = vmatmul.mubr.bf16.gmra.mrb[0].mxu0 %v1954
      %v2573 = vpop.f32.mrb[0].mxu0
      %v2574 = vadd.f32 %v2019, %v2573
      %v2575 = vpop.f32.mrb[0].mxu0
      %v2576 = vpop.f32.mrb[0].mxu0
      %v2577 = vadd.f32 %v2019, %v2576
      %v2578 = vpop.f32.mrb[0].mxu0
      %2579 = vmatprep.mubr.bf16.mxu0 %v1958
      %2580 = vmatmul.mubr.bf16.gmra.mrb[0].mxu0 %v1957
      %v2581 = vpop.f32.mrb[0].mxu0
      %v2582 = vadd.f32 %v2019, %v2581
      %v2583 = vpop.f32.mrb[0].mxu0
      %v2584 = vpop.f32.mrb[0].mxu0
      %v2585 = vadd.f32 %v2019, %v2584
      %v2586 = vpop.f32.mrb[0].mxu0
      %2587 = vmatprep.mubr.bf16.mxu0 %v1961
      %2588 = vmatmul.mubr.bf16.gmra.mrb[0].mxu0 %v1960
      %v2589 = vpop.f32.mrb[0].mxu0
      %v2590 = vadd.f32 %v2019, %v2589
      %v2591 = vpop.f32.mrb[0].mxu0
      %v2592 = vpop.f32.mrb[0].mxu0
      %v2593 = vadd.f32 %v2019, %v2592
      %v2594 = vpop.f32.mrb[0].mxu0
      %2595 = vmatprep.mubr.bf16.mxu0 %v1964
      %2596 = vmatmul.mubr.bf16.gmra.mrb[0].mxu0 %v1963
      %v2597 = vpop.f32.mrb[0].mxu0
      %v2598 = vadd.f32 %v2019, %v2597
      %v2599 = vpop.f32.mrb[0].mxu0
      %v2600 = vpop.f32.mrb[0].mxu0
      %v2601 = vadd.f32 %v2019, %v2600
      %v2602 = vpop.f32.mrb[0].mxu0
      %2603 = vmatprep.mubr.bf16.mxu0 %v1967
      %2604 = vmatmul.mubr.bf16.gmra.mrb[0].mxu0 %v1966
      %v2605 = vpop.f32.mrb[0].mxu0
      %v2606 = vadd.f32 %v2019, %v2605
      %v2607 = vpop.f32.mrb[0].mxu0
      %v2608 = vpop.f32.mrb[0].mxu0
      %v2609 = vadd.f32 %v2019, %v2608
      %v2610 = vpop.f32.mrb[0].mxu0
      %2611 = vmatprep.mubr.bf16.mxu0 %v1970
      %2612 = vmatmul.mubr.bf16.gmra.mrb[0].mxu0 %v1969
      %v2613 = vpop.f32.mrb[0].mxu0
      %v2614 = vadd.f32 %v2019, %v2613
      %v2615 = vpop.f32.mrb[0].mxu0
      %v2616 = vpop.f32.mrb[0].mxu0
      %v2617 = vadd.f32 %v2019, %v2616
      %v2618 = vpop.f32.mrb[0].mxu0
      %2619 = vmatprep.mubr.bf16.mxu0 %v1973
      %2620 = vmatmul.mubr.bf16.gmra.mrb[0].mxu0 %v1972
      %v2621 = vpop.f32.mrb[0].mxu0
      %v2622 = vadd.f32 %v2019, %v2621
      %v2623 = vpop.f32.mrb[0].mxu0
      %v2624 = vpop.f32.mrb[0].mxu0
      %v2625 = vadd.f32 %v2019, %v2624
      %v2626 = vpop.f32.mrb[0].mxu0
      %2627 = vmatprep.mubr.bf16.mxu0 %v1976
      %2628 = vmatmul.mubr.bf16.gmra.mrb[0].mxu0 %v1975
      %v2629 = vpop.f32.mrb[0].mxu0
      %v2630 = vadd.f32 %v2019, %v2629
      %v2631 = vpop.f32.mrb[0].mxu0
      %v2632 = vpop.f32.mrb[0].mxu0
      %v2633 = vadd.f32 %v2019, %v2632
      %v2634 = vpop.f32.mrb[0].mxu0
      %2635 = vdwg.mxu0
      %2636 = vmatprep.subr.bf16.mxu0 0
      %2637 = vmatpush1.bf16.msra.mxu0 %v2109
      %2638 = vmatprep.subr.bf16.mxu0 0
      %2639 = vmatpush1.bf16.msra.mxu0 %v2110
      %2640 = vmatprep.subr.bf16.mxu0 0
      %2641 = vmatpush1.bf16.msra.mxu0 0
      %2642 = vmatprep.subr.bf16.mxu0 0
      %2643 = vmatpush1.bf16.msra.mxu0 0
      %2644 = vmatprep.subr.bf16.mxu0 0
      %2645 = vmatpush1.bf16.msra.mxu0 0
      %2646 = vmatprep.subr.bf16.mxu0 0
      %2647 = vmatpush1.bf16.msra.mxu0 0
      %2648 = vmatprep.subr.bf16.mxu0 0
      %2649 = vmatpush1.bf16.msra.mxu0 0
      %2650 = vmatprep.subr.bf16.mxu0 0
      %2651 = vmatpush1.bf16.msra.mxu0 0
      %2652 = vmatprep.subr.bf16.mxu0 0
      %2653 = vmatpush1.bf16.msra.mxu0 0
      %2654 = vmatprep.subr.bf16.mxu0 0
      %2655 = vmatpush1.bf16.msra.mxu0 0
      %2656 = vmatprep.subr.bf16.mxu0 0
      %2657 = vmatpush1.bf16.msra.mxu0 0
      %2658 = vmatprep.subr.bf16.mxu0 0
      %2659 = vmatpush1.bf16.msra.mxu0 0
      %2660 = vmatprep.subr.bf16.mxu0 0
      %2661 = vmatpush1.bf16.msra.mxu0 0
      %2662 = vmatprep.subr.bf16.mxu0 0
      %2663 = vmatpush1.bf16.msra.mxu0 0
      %2664 = vmatprep.subr.bf16.mxu0 0
      %2665 = vmatpush1.bf16.msra.mxu0 0
      %2666 = vmatprep.subr.bf16.mxu0 0
      %2667 = vmatpush1.bf16.msra.mxu0 0
      %2668 = vmatprep.mubr.bf16.mxu0 0
      %2669 = vmatmul.mubr.bf16.gmra.mrb[0].mxu0 %v2131
      %v2670 = vpop.f32.mrb[0].mxu0
      %v2671 = vadd.f32 %v2294, %v2670
      %v2672 = vpop.f32.mrb[0].mxu0
      %v2673 = vpop.f32.mrb[0].mxu0
      %v2674 = vadd.f32 %v2297, %v2673
      %v2675 = vpop.f32.mrb[0].mxu0
      %2676 = vmatprep.mubr.bf16.mxu0 0
      %2677 = vmatmul.mubr.bf16.gmra.mrb[0].mxu0 %v2134
      %v2678 = vpop.f32.mrb[0].mxu0
      %v2679 = vadd.f32 %v2302, %v2678
      %v2680 = vpop.f32.mrb[0].mxu0
      %v2681 = vpop.f32.mrb[0].mxu0
      %v2682 = vadd.f32 %v2305, %v2681
      %v2683 = vpop.f32.mrb[0].mxu0
      %2684 = vmatprep.mubr.bf16.mxu0 0
      %2685 = vmatmul.mubr.bf16.gmra.mrb[0].mxu0 %v2137
      %v2686 = vpop.f32.mrb[0].mxu0
      %v2687 = vadd.f32 %v2310, %v2686
      %v2688 = vpop.f32.mrb[0].mxu0
      %v2689 = vpop.f32.mrb[0].mxu0
      %v2690 = vadd.f32 %v2313, %v2689
      %v2691 = vpop.f32.mrb[0].mxu0
      %2692 = vmatprep.mubr.bf16.mxu0 0
      %2693 = vmatmul.mubr.bf16.gmra.mrb[0].mxu0 %v2140
      %v2694 = vpop.f32.mrb[0].mxu0
      %v2695 = vadd.f32 %v2318, %v2694
      %v2696 = vpop.f32.mrb[0].mxu0
      %v2697 = vpop.f32.mrb[0].mxu0
      %v2698 = vadd.f32 %v2321, %v2697
      %v2699 = vpop.f32.mrb[0].mxu0
      %2700 = vmatprep.mubr.bf16.mxu0 0
      %2701 = vmatmul.mubr.bf16.gmra.mrb[0].mxu0 %v2143
      %v2702 = vpop.f32.mrb[0].mxu0
      %v2703 = vadd.f32 %v2326, %v2702
      %v2704 = vpop.f32.mrb[0].mxu0
      %v2705 = vpop.f32.mrb[0].mxu0
      %v2706 = vadd.f32 %v2329, %v2705
      %v2707 = vpop.f32.mrb[0].mxu0
      %2708 = vmatprep.mubr.bf16.mxu0 0
      %2709 = vmatmul.mubr.bf16.gmra.mrb[0].mxu0 %v2146
      %v2710 = vpop.f32.mrb[0].mxu0
      %v2711 = vadd.f32 %v2334, %v2710
      %v2712 = vpop.f32.mrb[0].mxu0
      %v2713 = vpop.f32.mrb[0].mxu0
      %v2714 = vadd.f32 %v2337, %v2713
      %v2715 = vpop.f32.mrb[0].mxu0
      %2716 = vmatprep.mubr.bf16.mxu0 0
      %2717 = vmatmul.mubr.bf16.gmra.mrb[0].mxu0 %v2149
      %v2718 = vpop.f32.mrb[0].mxu0
      %v2719 = vadd.f32 %v2342, %v2718
      %v2720 = vpop.f32.mrb[0].mxu0
      %v2721 = vpop.f32.mrb[0].mxu0
      %v2722 = vadd.f32 %v2345, %v2721
      %v2723 = vpop.f32.mrb[0].mxu0
      %2724 = vmatprep.mubr.bf16.mxu0 0
      %2725 = vmatmul.mubr.bf16.gmra.mrb[0].mxu0 %v2152
      %v2726 = vpop.f32.mrb[0].mxu0
      %v2727 = vadd.f32 %v2350, %v2726
      %v2728 = vpop.f32.mrb[0].mxu0
      %v2729 = vpop.f32.mrb[0].mxu0
      %v2730 = vadd.f32 %v2353, %v2729
      %v2731 = vpop.f32.mrb[0].mxu0
      %2732 = vmatprep.mubr.bf16.mxu0 0
      %2733 = vmatmul.mubr.bf16.gmra.mrb[0].mxu0 %v2155
      %v2734 = vpop.f32.mrb[0].mxu0
      %v2735 = vadd.f32 %v2358, %v2734
      %v2736 = vpop.f32.mrb[0].mxu0
      %v2737 = vpop.f32.mrb[0].mxu0
      %v2738 = vadd.f32 %v2361, %v2737
      %v2739 = vpop.f32.mrb[0].mxu0
      %2740 = vmatprep.mubr.bf16.mxu0 0
      %2741 = vmatmul.mubr.bf16.gmra.mrb[0].mxu0 %v2158
      %v2742 = vpop.f32.mrb[0].mxu0
      %v2743 = vadd.f32 %v2366, %v2742
      %v2744 = vpop.f32.mrb[0].mxu0
      %v2745 = vpop.f32.mrb[0].mxu0
      %v2746 = vadd.f32 %v2369, %v2745
      %v2747 = vpop.f32.mrb[0].mxu0
      %2748 = vmatprep.mubr.bf16.mxu0 0
      %2749 = vmatmul.mubr.bf16.gmra.mrb[0].mxu0 %v2161
      %v2750 = vpop.f32.mrb[0].mxu0
      %v2751 = vadd.f32 %v2374, %v2750
      %v2752 = vpop.f32.mrb[0].mxu0
      %v2753 = vpop.f32.mrb[0].mxu0
      %v2754 = vadd.f32 %v2377, %v2753
      %v2755 = vpop.f32.mrb[0].mxu0
      %2756 = vmatprep.mubr.bf16.mxu0 0
      %2757 = vmatmul.mubr.bf16.gmra.mrb[0].mxu0 %v2164
      %v2758 = vpop.f32.mrb[0].mxu0
      %v2759 = vadd.f32 %v2382, %v2758
      %v2760 = vpop.f32.mrb[0].mxu0
      %v2761 = vpop.f32.mrb[0].mxu0
      %v2762 = vadd.f32 %v2385, %v2761
      %v2763 = vpop.f32.mrb[0].mxu0
      %2764 = vmatprep.mubr.bf16.mxu0 0
      %2765 = vmatmul.mubr.bf16.gmra.mrb[0].mxu0 %v2167
      %v2766 = vpop.f32.mrb[0].mxu0
      %v2767 = vadd.f32 %v2390, %v2766
      %v2768 = vpop.f32.mrb[0].mxu0
      %v2769 = vpop.f32.mrb[0].mxu0
      %v2770 = vadd.f32 %v2393, %v2769
      %v2771 = vpop.f32.mrb[0].mxu0
      %2772 = vmatprep.mubr.bf16.mxu0 0
      %2773 = vmatmul.mubr.bf16.gmra.mrb[0].mxu0 %v2170
      %v2774 = vpop.f32.mrb[0].mxu0
      %v2775 = vadd.f32 %v2398, %v2774
      %v2776 = vpop.f32.mrb[0].mxu0
      %v2777 = vpop.f32.mrb[0].mxu0
      %v2778 = vadd.f32 %v2401, %v2777
      %v2779 = vpop.f32.mrb[0].mxu0
      %2780 = vmatprep.mubr.bf16.mxu0 0
      %2781 = vmatmul.mubr.bf16.gmra.mrb[0].mxu0 %v2173
      %v2782 = vpop.f32.mrb[0].mxu0
      %v2783 = vadd.f32 %v2406, %v2782
      %v2784 = vpop.f32.mrb[0].mxu0
      %v2785 = vpop.f32.mrb[0].mxu0
      %v2786 = vadd.f32 %v2409, %v2785
      %v2787 = vpop.f32.mrb[0].mxu0
      %2788 = vmatprep.mubr.bf16.mxu0 0
      %2789 = vmatmul.mubr.bf16.gmra.mrb[0].mxu0 %v2176
      %v2790 = vpop.f32.mrb[0].mxu0
      %v2791 = vadd.f32 %v2414, %v2790
      %v2792 = vpop.f32.mrb[0].mxu0
      %v2793 = vpop.f32.mrb[0].mxu0
      %v2794 = vadd.f32 %v2417, %v2793
      %v2795 = vpop.f32.mrb[0].mxu0
      %2796 = vmatprep.mubr.bf16.mxu0 0
      %2797 = vmatmul.mubr.bf16.gmra.mrb[0].mxu0 %v2179
      %v2798 = vpop.f32.mrb[0].mxu0
      %v2799 = vadd.f32 %v2422, %v2798
      %v2800 = vpop.f32.mrb[0].mxu0
      %v2801 = vpop.f32.mrb[0].mxu0
      %v2802 = vadd.f32 %v2425, %v2801
      %v2803 = vpop.f32.mrb[0].mxu0
      %2804 = vmatprep.mubr.bf16.mxu0 0
      %2805 = vmatmul.mubr.bf16.gmra.mrb[0].mxu0 %v2182
      %v2806 = vpop.f32.mrb[0].mxu0
      %v2807 = vadd.f32 %v2430, %v2806
      %v2808 = vpop.f32.mrb[0].mxu0
      %v2809 = vpop.f32.mrb[0].mxu0
      %v2810 = vadd.f32 %v2433, %v2809
      %v2811 = vpop.f32.mrb[0].mxu0
      %2812 = vmatprep.mubr.bf16.mxu0 0
      %2813 = vmatmul.mubr.bf16.gmra.mrb[0].mxu0 %v2185
      %v2814 = vpop.f32.mrb[0].mxu0
      %v2815 = vadd.f32 %v2438, %v2814
      %v2816 = vpop.f32.mrb[0].mxu0
      %v2817 = vpop.f32.mrb[0].mxu0
      %v2818 = vadd.f32 %v2441, %v2817
      %v2819 = vpop.f32.mrb[0].mxu0
      %2820 = vmatprep.mubr.bf16.mxu0 0
      %2821 = vmatmul.mubr.bf16.gmra.mrb[0].mxu0 %v2188
      %v2822 = vpop.f32.mrb[0].mxu0
      %v2823 = vadd.f32 %v2446, %v2822
      %v2824 = vpop.f32.mrb[0].mxu0
      %v2825 = vpop.f32.mrb[0].mxu0
      %v2826 = vadd.f32 %v2449, %v2825
      %v2827 = vpop.f32.mrb[0].mxu0
      %2828 = vmatprep.mubr.bf16.mxu0 0
      %2829 = vmatmul.mubr.bf16.gmra.mrb[0].mxu0 %v2191
      %v2830 = vpop.f32.mrb[0].mxu0
      %v2831 = vadd.f32 %v2454, %v2830
      %v2832 = vpop.f32.mrb[0].mxu0
      %v2833 = vpop.f32.mrb[0].mxu0
      %v2834 = vadd.f32 %v2457, %v2833
      %v2835 = vpop.f32.mrb[0].mxu0
      %2836 = vmatprep.mubr.bf16.mxu0 0
      %2837 = vmatmul.mubr.bf16.gmra.mrb[0].mxu0 %v2194
      %v2838 = vpop.f32.mrb[0].mxu0
      %v2839 = vadd.f32 %v2462, %v2838
      %v2840 = vpop.f32.mrb[0].mxu0
      %v2841 = vpop.f32.mrb[0].mxu0
      %v2842 = vadd.f32 %v2465, %v2841
      %v2843 = vpop.f32.mrb[0].mxu0
      %2844 = vmatprep.mubr.bf16.mxu0 0
      %2845 = vmatmul.mubr.bf16.gmra.mrb[0].mxu0 %v2197
      %v2846 = vpop.f32.mrb[0].mxu0
      %v2847 = vadd.f32 %v2470, %v2846
      %v2848 = vpop.f32.mrb[0].mxu0
      %v2849 = vpop.f32.mrb[0].mxu0
      %v2850 = vadd.f32 %v2473, %v2849
      %v2851 = vpop.f32.mrb[0].mxu0
      %2852 = vmatprep.mubr.bf16.mxu0 0
      %2853 = vmatmul.mubr.bf16.gmra.mrb[0].mxu0 %v2200
      %v2854 = vpop.f32.mrb[0].mxu0
      %v2855 = vadd.f32 %v2478, %v2854
      %v2856 = vpop.f32.mrb[0].mxu0
      %v2857 = vpop.f32.mrb[0].mxu0
      %v2858 = vadd.f32 %v2481, %v2857
      %v2859 = vpop.f32.mrb[0].mxu0
      %2860 = vmatprep.mubr.bf16.mxu0 0
      %2861 = vmatmul.mubr.bf16.gmra.mrb[0].mxu0 %v2203
      %v2862 = vpop.f32.mrb[0].mxu0
      %v2863 = vadd.f32 %v2486, %v2862
      %v2864 = vpop.f32.mrb[0].mxu0
      %v2865 = vpop.f32.mrb[0].mxu0
      %v2866 = vadd.f32 %v2489, %v2865
      %v2867 = vpop.f32.mrb[0].mxu0
      %2868 = vmatprep.mubr.bf16.mxu0 0
      %2869 = vmatmul.mubr.bf16.gmra.mrb[0].mxu0 %v2206
      %v2870 = vpop.f32.mrb[0].mxu0
      %v2871 = vadd.f32 %v2494, %v2870
      %v2872 = vpop.f32.mrb[0].mxu0
      %v2873 = vpop.f32.mrb[0].mxu0
      %v2874 = vadd.f32 %v2497, %v2873
      %v2875 = vpop.f32.mrb[0].mxu0
      %2876 = vmatprep.mubr.bf16.mxu0 0
      %2877 = vmatmul.mubr.bf16.gmra.mrb[0].mxu0 %v2209
      %v2878 = vpop.f32.mrb[0].mxu0
      %v2879 = vadd.f32 %v2502, %v2878
      %v2880 = vpop.f32.mrb[0].mxu0
      %v2881 = vpop.f32.mrb[0].mxu0
      %v2882 = vadd.f32 %v2505, %v2881
      %v2883 = vpop.f32.mrb[0].mxu0
      %2884 = vmatprep.mubr.bf16.mxu0 0
      %2885 = vmatmul.mubr.bf16.gmra.mrb[0].mxu0 %v2212
      %v2886 = vpop.f32.mrb[0].mxu0
      %v2887 = vadd.f32 %v2510, %v2886
      %v2888 = vpop.f32.mrb[0].mxu0
      %v2889 = vpop.f32.mrb[0].mxu0
      %v2890 = vadd.f32 %v2513, %v2889
      %v2891 = vpop.f32.mrb[0].mxu0
      %2892 = vmatprep.mubr.bf16.mxu0 0
      %2893 = vmatmul.mubr.bf16.gmra.mrb[0].mxu0 %v2215
      %v2894 = vpop.f32.mrb[0].mxu0
      %v2895 = vadd.f32 %v2518, %v2894
      %v2896 = vpop.f32.mrb[0].mxu0
      %v2897 = vpop.f32.mrb[0].mxu0
      %v2898 = vadd.f32 %v2521, %v2897
      %v2899 = vpop.f32.mrb[0].mxu0
      %2900 = vmatprep.mubr.bf16.mxu0 0
      %2901 = vmatmul.mubr.bf16.gmra.mrb[0].mxu0 %v2218
      %v2902 = vpop.f32.mrb[0].mxu0
      %v2903 = vadd.f32 %v2526, %v2902
      %v2904 = vpop.f32.mrb[0].mxu0
      %v2905 = vpop.f32.mrb[0].mxu0
      %v2906 = vadd.f32 %v2529, %v2905
      %v2907 = vpop.f32.mrb[0].mxu0
      %2908 = vmatprep.mubr.bf16.mxu0 0
      %2909 = vmatmul.mubr.bf16.gmra.mrb[0].mxu0 %v2221
      %v2910 = vpop.f32.mrb[0].mxu0
      %v2911 = vadd.f32 %v2534, %v2910
      %v2912 = vpop.f32.mrb[0].mxu0
      %v2913 = vpop.f32.mrb[0].mxu0
      %v2914 = vadd.f32 %v2537, %v2913
      %v2915 = vpop.f32.mrb[0].mxu0
      %2916 = vmatprep.mubr.bf16.mxu0 0
      %2917 = vmatmul.mubr.bf16.gmra.mrb[0].mxu0 %v2224
      %v2918 = vpop.f32.mrb[0].mxu0
      %v2919 = vadd.f32 %v2542, %v2918
      %v2920 = vpop.f32.mrb[0].mxu0
      %v2921 = vpop.f32.mrb[0].mxu0
      %v2922 = vadd.f32 %v2545, %v2921
      %v2923 = vpop.f32.mrb[0].mxu0
      %2924 = vmatprep.mubr.bf16.mxu0 0
      %2925 = vmatmul.mubr.bf16.gmra.mrb[0].mxu0 %v2227
      %v2926 = vpop.f32.mrb[0].mxu0
      %v2927 = vadd.f32 %v2550, %v2926
      %v2928 = vpop.f32.mrb[0].mxu0
      %v2929 = vpop.f32.mrb[0].mxu0
      %v2930 = vadd.f32 %v2553, %v2929
      %v2931 = vpop.f32.mrb[0].mxu0
      %2932 = vmatprep.mubr.bf16.mxu0 0
      %2933 = vmatmul.mubr.bf16.gmra.mrb[0].mxu0 %v2230
      %v2934 = vpop.f32.mrb[0].mxu0
      %v2935 = vadd.f32 %v2558, %v2934
      %v2936 = vpop.f32.mrb[0].mxu0
      %v2937 = vpop.f32.mrb[0].mxu0
      %v2938 = vadd.f32 %v2561, %v2937
      %v2939 = vpop.f32.mrb[0].mxu0
      %2940 = vmatprep.mubr.bf16.mxu0 0
      %2941 = vmatmul.mubr.bf16.gmra.mrb[0].mxu0 %v2233
      %v2942 = vpop.f32.mrb[0].mxu0
      %v2943 = vadd.f32 %v2566, %v2942
      %v2944 = vpop.f32.mrb[0].mxu0
      %v2945 = vpop.f32.mrb[0].mxu0
      %v2946 = vadd.f32 %v2569, %v2945
      %v2947 = vpop.f32.mrb[0].mxu0
      %2948 = vmatprep.mubr.bf16.mxu0 0
      %2949 = vmatmul.mubr.bf16.gmra.mrb[0].mxu0 %v2236
      %v2950 = vpop.f32.mrb[0].mxu0
      %v2951 = vadd.f32 %v2574, %v2950
      %v2952 = vpop.f32.mrb[0].mxu0
      %v2953 = vpop.f32.mrb[0].mxu0
      %v2954 = vadd.f32 %v2577, %v2953
      %v2955 = vpop.f32.mrb[0].mxu0
      %2956 = vmatprep.mubr.bf16.mxu0 0
      %2957 = vmatmul.mubr.bf16.gmra.mrb[0].mxu0 %v2239
      %v2958 = vpop.f32.mrb[0].mxu0
      %v2959 = vadd.f32 %v2582, %v2958
      %v2960 = vpop.f32.mrb[0].mxu0
      %v2961 = vpop.f32.mrb[0].mxu0
      %v2962 = vadd.f32 %v2585, %v2961
      %v2963 = vpop.f32.mrb[0].mxu0
      %2964 = vmatprep.mubr.bf16.mxu0 0
      %2965 = vmatmul.mubr.bf16.gmra.mrb[0].mxu0 %v2242
      %v2966 = vpop.f32.mrb[0].mxu0
      %v2967 = vadd.f32 %v2590, %v2966
      %v2968 = vpop.f32.mrb[0].mxu0
      %v2969 = vpop.f32.mrb[0].mxu0
      %v2970 = vadd.f32 %v2593, %v2969
      %v2971 = vpop.f32.mrb[0].mxu0
      %2972 = vmatprep.mubr.bf16.mxu0 0
      %2973 = vmatmul.mubr.bf16.gmra.mrb[0].mxu0 %v2245
      %v2974 = vpop.f32.mrb[0].mxu0
      %v2975 = vadd.f32 %v2598, %v2974
      %v2976 = vpop.f32.mrb[0].mxu0
      %v2977 = vpop.f32.mrb[0].mxu0
      %v2978 = vadd.f32 %v2601, %v2977
      %v2979 = vpop.f32.mrb[0].mxu0
      %2980 = vmatprep.mubr.bf16.mxu0 0
      %2981 = vmatmul.mubr.bf16.gmra.mrb[0].mxu0 %v2248
      %v2982 = vpop.f32.mrb[0].mxu0
      %v2983 = vadd.f32 %v2606, %v2982
      %v2984 = vpop.f32.mrb[0].mxu0
      %v2985 = vpop.f32.mrb[0].mxu0
      %v2986 = vadd.f32 %v2609, %v2985
      %v2987 = vpop.f32.mrb[0].mxu0
      %2988 = vmatprep.mubr.bf16.mxu0 0
      %2989 = vmatmul.mubr.bf16.gmra.mrb[0].mxu0 %v2251
      %v2990 = vpop.f32.mrb[0].mxu0
      %v2991 = vadd.f32 %v2614, %v2990
      %v2992 = vpop.f32.mrb[0].mxu0
      %v2993 = vpop.f32.mrb[0].mxu0
      %v2994 = vadd.f32 %v2617, %v2993
      %v2995 = vpop.f32.mrb[0].mxu0
      %2996 = vmatprep.mubr.bf16.mxu0 0
      %2997 = vmatmul.mubr.bf16.gmra.mrb[0].mxu0 %v2254
      %v2998 = vpop.f32.mrb[0].mxu0
      %v2999 = vadd.f32 %v2622, %v2998
      %v3000 = vpop.f32.mrb[0].mxu0
      %v3001 = vpop.f32.mrb[0].mxu0
      %v3002 = vadd.f32 %v2625, %v3001
      %v3003 = vpop.f32.mrb[0].mxu0
      %3004 = vmatprep.mubr.bf16.mxu0 0
      %3005 = vmatmul.mubr.bf16.gmra.mrb[0].mxu0 %v2257
      %v3006 = vpop.f32.mrb[0].mxu0
      %v3007 = vadd.f32 %v2630, %v3006
      %v3008 = vpop.f32.mrb[0].mxu0
      %v3009 = vpop.f32.mrb[0].mxu0
      %v3010 = vadd.f32 %v2633, %v3009
      %v3011 = vpop.f32.mrb[0].mxu0
      %3012 = vdwg.mxu0
      %v3013 = vmax.f32 %v2671, 0.0
      %v3014 = vmax.f32 %v2674, 0.0
      %v3015 = vmax.f32 %v2679, 0.0
      %v3016 = vmax.f32 %v2682, 0.0
      %v3017 = vmax.f32 %v2687, 0.0
      %v3018 = vmax.f32 %v2690, 0.0
      %v3019 = vmax.f32 %v2695, 0.0
      %v3020 = vmax.f32 %v2698, 0.0
      %v3021 = vmax.f32 %v2703, 0.0
      %v3022 = vmax.f32 %v2706, 0.0
      %v3023 = vmax.f32 %v2711, 0.0
      %v3024 = vmax.f32 %v2714, 0.0
      %v3025 = vmax.f32 %v2719, 0.0
      %v3026 = vmax.f32 %v2722, 0.0
      %v3027 = vmax.f32 %v2727, 0.0
      %v3028 = vmax.f32 %v2730, 0.0
      %v3029 = vmax.f32 %v2735, 0.0
      %v3030 = vmax.f32 %v2738, 0.0
      %v3031 = vmax.f32 %v2743, 0.0
      %v3032 = vmax.f32 %v2746, 0.0
      %v3033 = vmax.f32 %v2751, 0.0
      %v3034 = vmax.f32 %v2754, 0.0
      %v3035 = vmax.f32 %v2759, 0.0
      %v3036 = vmax.f32 %v2762, 0.0
      %v3037 = vmax.f32 %v2767, 0.0
      %v3038 = vmax.f32 %v2770, 0.0
      %v3039 = vmax.f32 %v2775, 0.0
      %v3040 = vmax.f32 %v2778, 0.0
      %v3041 = vmax.f32 %v2783, 0.0
      %v3042 = vmax.f32 %v2786, 0.0
      %v3043 = vmax.f32 %v2791, 0.0
      %v3044 = vmax.f32 %v2794, 0.0
      %v3045 = vmax.f32 %v2799, 0.0
      %v3046 = vmax.f32 %v2802, 0.0
      %v3047 = vmax.f32 %v2807, 0.0
      %v3048 = vmax.f32 %v2810, 0.0
      %v3049 = vmax.f32 %v2815, 0.0
      %v3050 = vmax.f32 %v2818, 0.0
      %v3051 = vmax.f32 %v2823, 0.0
      %v3052 = vmax.f32 %v2826, 0.0
      %v3053 = vmax.f32 %v2831, 0.0
      %v3054 = vmax.f32 %v2834, 0.0
      %v3055 = vmax.f32 %v2839, 0.0
      %v3056 = vmax.f32 %v2842, 0.0
      %v3057 = vmax.f32 %v2847, 0.0
      %v3058 = vmax.f32 %v2850, 0.0
      %v3059 = vmax.f32 %v2855, 0.0
      %v3060 = vmax.f32 %v2858, 0.0
      %v3061 = vmax.f32 %v2863, 0.0
      %v3062 = vmax.f32 %v2866, 0.0
      %v3063 = vmax.f32 %v2871, 0.0
      %v3064 = vmax.f32 %v2874, 0.0
      %v3065 = vmax.f32 %v2879, 0.0
      %v3066 = vmax.f32 %v2882, 0.0
      %v3067 = vmax.f32 %v2887, 0.0
      %v3068 = vmax.f32 %v2890, 0.0
      %v3069 = vmax.f32 %v2895, 0.0
      %v3070 = vmax.f32 %v2898, 0.0
      %v3071 = vmax.f32 %v2903, 0.0
      %v3072 = vmax.f32 %v2906, 0.0
      %v3073 = vmax.f32 %v2911, 0.0
      %v3074 = vmax.f32 %v2914, 0.0
      %v3075 = vmax.f32 %v2919, 0.0
      %v3076 = vmax.f32 %v2922, 0.0
      %v3077 = vmax.f32 %v2927, 0.0
      %v3078 = vmax.f32 %v2930, 0.0
      %v3079 = vmax.f32 %v2935, 0.0
      %v3080 = vmax.f32 %v2938, 0.0
      %v3081 = vmax.f32 %v2943, 0.0
      %v3082 = vmax.f32 %v2946, 0.0
      %v3083 = vmax.f32 %v2951, 0.0
      %v3084 = vmax.f32 %v2954, 0.0
      %v3085 = vmax.f32 %v2959, 0.0
      %v3086 = vmax.f32 %v2962, 0.0
      %v3087 = vmax.f32 %v2967, 0.0
      %v3088 = vmax.f32 %v2970, 0.0
      %v3089 = vmax.f32 %v2975, 0.0
      %v3090 = vmax.f32 %v2978, 0.0
      %v3091 = vmax.f32 %v2983, 0.0
      %v3092 = vmax.f32 %v2986, 0.0
      %v3093 = vmax.f32 %v2991, 0.0
      %v3094 = vmax.f32 %v2994, 0.0
      %v3095 = vmax.f32 %v2999, 0.0
      %v3096 = vmax.f32 %v3002, 0.0
      %v3097 = vmax.f32 %v3007, 0.0
      %v3098 = vmax.f32 %v3010, 0.0
      %v3099 = vpack.c.bf16 %v3014, %v3013
      %v3100 = vpack.c.bf16 %v3016, %v3015
      %v3101 = vpack.c.bf16 %v3018, %v3017
      %v3102 = vpack.c.bf16 %v3020, %v3019
      %v3103 = vpack.c.bf16 %v3022, %v3021
      %v3104 = vpack.c.bf16 %v3024, %v3023
      %v3105 = vpack.c.bf16 %v3026, %v3025
      %v3106 = vpack.c.bf16 %v3028, %v3027
      %v3107 = vpack.c.bf16 %v3030, %v3029
      %v3108 = vpack.c.bf16 %v3032, %v3031
      %v3109 = vpack.c.bf16 %v3034, %v3033
      %v3110 = vpack.c.bf16 %v3036, %v3035
      %v3111 = vpack.c.bf16 %v3038, %v3037
      %v3112 = vpack.c.bf16 %v3040, %v3039
      %v3113 = vpack.c.bf16 %v3042, %v3041
      %v3114 = vpack.c.bf16 %v3044, %v3043
      %v3115 = vpack.c.bf16 %v3046, %v3045
      %v3116 = vpack.c.bf16 %v3048, %v3047
      %v3117 = vpack.c.bf16 %v3050, %v3049
      %v3118 = vpack.c.bf16 %v3052, %v3051
      %v3119 = vpack.c.bf16 %v3054, %v3053
      %v3120 = vpack.c.bf16 %v3056, %v3055
      %v3121 = vpack.c.bf16 %v3058, %v3057
      %v3122 = vpack.c.bf16 %v3060, %v3059
      %v3123 = vpack.c.bf16 %v3062, %v3061
      %v3124 = vpack.c.bf16 %v3064, %v3063
      %v3125 = vpack.c.bf16 %v3066, %v3065
      %v3126 = vpack.c.bf16 %v3068, %v3067
      %v3127 = vpack.c.bf16 %v3070, %v3069
      %v3128 = vpack.c.bf16 %v3072, %v3071
      %v3129 = vpack.c.bf16 %v3074, %v3073
      %v3130 = vpack.c.bf16 %v3076, %v3075
      %v3131 = vpack.c.bf16 %v3078, %v3077
      %v3132 = vpack.c.bf16 %v3080, %v3079
      %v3133 = vpack.c.bf16 %v3082, %v3081
      %v3134 = vpack.c.bf16 %v3084, %v3083
      %v3135 = vpack.c.bf16 %v3086, %v3085
      %v3136 = vpack.c.bf16 %v3088, %v3087
      %v3137 = vpack.c.bf16 %v3090, %v3089
      %v3138 = vpack.c.bf16 %v3092, %v3091
      %v3139 = vpack.c.bf16 %v3094, %v3093
      %v3140 = vpack.c.bf16 %v3096, %v3095
      %v3141 = vpack.c.bf16 %v3098, %v3097
      %v3142 = vld [vmem:[%s5] sm:$0xff]
      %v3143 = vld [vmem:[%s5 + $0x8] sm:$0xff]
      %v3144 = vld [vmem:[%s5 + $0x10] sm:$0xff]
      %v3145 = vld [vmem:[%s5 + $0x18] sm:$0xff]
      %v3146 = vld [vmem:[%s5 + $0x20] sm:$0xff]
      %v3147 = vld [vmem:[%s5 + $0x28] sm:$0xff]
      %v3148 = vld [vmem:[%s5 + $0x30] sm:$0xff]
      %v3149 = vld [vmem:[%s5 + $0x38] sm:$0xff]
      %v3150 = vld [vmem:[%s5 + $0x40] sm:$0xff]
      %v3151 = vld [vmem:[%s5 + $0x48] sm:$0xff]
      %v3152 = vld [vmem:[%s5 + $0x50] sm:$0xff]
      %v3153 = vld [vmem:[%s5 + $0x58] sm:$0xff]
      %v3154 = vld [vmem:[%s5 + $0x60] sm:$0xff]
      %v3155 = vld [vmem:[%s5 + $0x68] sm:$0xff]
      %v3156 = vld [vmem:[%s5 + $0x70] sm:$0xff]
      %v3157 = vld [vmem:[%s5 + $0x78] sm:$0xff]
      %v3158 = vld [vmem:[%s5 + $0x80] sm:$0xff]
      %v3159 = vld [vmem:[%s5 + $0x88] sm:$0xff]
      %v3160 = vld [vmem:[%s5 + $0x90] sm:$0xff]
      %v3161 = vld [vmem:[%s5 + $0x98] sm:$0xff]
      %v3162 = vld [vmem:[%s5 + $0xa0] sm:$0xff]
      %v3163 = vld [vmem:[%s5 + $0xa8] sm:$0xff]
      %v3164 = vld [vmem:[%s5 + $0xb0] sm:$0xff]
      %v3165 = vld [vmem:[%s5 + $0xb8] sm:$0xff]
      %v3166 = vld [vmem:[%s5 + $0xc0] sm:$0xff]
      %v3167 = vld [vmem:[%s5 + $0xc8] sm:$0xff]
      %v3168 = vld [vmem:[%s5 + $0xd0] sm:$0xff]
      %v3169 = vld [vmem:[%s5 + $0xd8] sm:$0xff]
      %v3170 = vld [vmem:[%s5 + $0xe0] sm:$0xff]
      %v3171 = vld [vmem:[%s5 + $0xe8] sm:$0xff]
      %v3172 = vld [vmem:[%s5 + $0xf0] sm:$0xff]
      %v3173 = vld [vmem:[%s5 + $0xf8] sm:$0xff]
      %v3174 = vld [vmem:[%s5 + $0x100] sm:$0xff]
      %v3175 = vld [vmem:[%s5 + $0x108] sm:$0xff]
      %v3176 = vld [vmem:[%s5 + $0x110] sm:$0xff]
      %v3177 = vld [vmem:[%s5 + $0x118] sm:$0xff]
      %v3178 = vld [vmem:[%s5 + $0x120] sm:$0xff]
      %v3179 = vld [vmem:[%s5 + $0x128] sm:$0xff]
      %v3180 = vld [vmem:[%s5 + $0x130] sm:$0xff]
      %v3181 = vld [vmem:[%s5 + $0x138] sm:$0xff]
      %v3182 = vld [vmem:[%s5 + $0x140] sm:$0xff]
      %v3183 = vld [vmem:[%s5 + $0x148] sm:$0xff]
      %v3184 = vld [vmem:[%s5 + $0x150] sm:$0xff]
      %v3185 = vld [vmem:[%s5 + $0x158] sm:$0xff]
      %v3186 = vld [vmem:[%s5 + $0x160] sm:$0xff]
      %v3187 = vld [vmem:[%s5 + $0x168] sm:$0xff]
      %v3188 = vld [vmem:[%s5 + $0x170] sm:$0xff]
      %v3189 = vld [vmem:[%s5 + $0x178] sm:$0xff]
      %v3190 = vld [vmem:[%s5 + $0x180] sm:$0xff]
      %v3191 = vld [vmem:[%s5 + $0x188] sm:$0xff]
      %v3192 = vld [vmem:[%s5 + $0x190] sm:$0xff]
      %v3193 = vld [vmem:[%s5 + $0x198] sm:$0xff]
      %v3194 = vld [vmem:[%s5 + $0x1a0] sm:$0xff]
      %v3195 = vld [vmem:[%s5 + $0x1a8] sm:$0xff]
      %v3196 = vld [vmem:[%s5 + $0x1b0] sm:$0xff]
      %v3197 = vld [vmem:[%s5 + $0x1b8] sm:$0xff]
      %v3198 = vld [vmem:[%s5 + $0x1c0] sm:$0xff]
      %v3199 = vld [vmem:[%s5 + $0x1c8] sm:$0xff]
      %v3200 = vld [vmem:[%s5 + $0x1d0] sm:$0xff]
      %v3201 = vld [vmem:[%s5 + $0x1d8] sm:$0xff]
      %v3202 = vld [vmem:[%s5 + $0x1e0] sm:$0xff]
      %v3203 = vld [vmem:[%s5 + $0x1e8] sm:$0xff]
      %v3204 = vld [vmem:[%s5 + $0x1f0] sm:$0xff]
      %v3205 = vld [vmem:[%s5 + $0x1f8] sm:$0xff]
      %v3206 = vld [vmem:[%s5 + $0x200] sm:$0xff]
      %v3207 = vld [vmem:[%s5 + $0x208] sm:$0xff]
      %v3208 = vld [vmem:[%s5 + $0x210] sm:$0xff]
      %v3209 = vld [vmem:[%s5 + $0x218] sm:$0xff]
      %v3210 = vld [vmem:[%s5 + $0x220] sm:$0xff]
      %v3211 = vld [vmem:[%s5 + $0x228] sm:$0xff]
      %v3212 = vld [vmem:[%s5 + $0x230] sm:$0xff]
      %v3213 = vld [vmem:[%s5 + $0x238] sm:$0xff]
      %v3214 = vld [vmem:[%s5 + $0x240] sm:$0xff]
      %v3215 = vld [vmem:[%s5 + $0x248] sm:$0xff]
      %v3216 = vld [vmem:[%s5 + $0x250] sm:$0xff]
      %v3217 = vld [vmem:[%s5 + $0x258] sm:$0xff]
      %v3218 = vld [vmem:[%s5 + $0x260] sm:$0xff]
      %v3219 = vld [vmem:[%s5 + $0x268] sm:$0xff]
      %v3220 = vld [vmem:[%s5 + $0x270] sm:$0xff]
      %v3221 = vld [vmem:[%s5 + $0x278] sm:$0xff]
      %v3222 = vld [vmem:[%s5 + $0x280] sm:$0xff]
      %v3223 = vld [vmem:[%s5 + $0x288] sm:$0xff]
      %v3224 = vld [vmem:[%s5 + $0x290] sm:$0xff]
      %v3225 = vld [vmem:[%s5 + $0x298] sm:$0xff]
      %v3226 = vld [vmem:[%s5 + $0x2a0] sm:$0xff]
      %v3227 = vld [vmem:[%s5 + $0x2a8] sm:$0xff]
      %v3228 = vld [vmem:[%s5 + $0x2b0] sm:$0xff]
      %v3229 = vld [vmem:[%s5 + $0x2b8] sm:$0xff]
      %v3230 = vld [vmem:[%s5 + $0x2c0] sm:$0xff]
      %v3231 = vld [vmem:[%s5 + $0x2c8] sm:$0xff]
      %v3232 = vld [vmem:[%s5 + $0x2d0] sm:$0xff]
      %v3233 = vld [vmem:[%s5 + $0x2d8] sm:$0xff]
      %v3234 = vld [vmem:[%s5 + $0x2e0] sm:$0xff]
      %v3235 = vld [vmem:[%s5 + $0x2e8] sm:$0xff]
      %v3236 = vld [vmem:[%s5 + $0x2f0] sm:$0xff]
      %v3237 = vld [vmem:[%s5 + $0x2f8] sm:$0xff]
      %v3238 = vld [vmem:[%s5 + $0x300] sm:$0xff]
      %v3239 = vld [vmem:[%s5 + $0x308] sm:$0xff]
      %v3240 = vld [vmem:[%s5 + $0x310] sm:$0xff]
      %v3241 = vld [vmem:[%s5 + $0x318] sm:$0xff]
      %v3242 = vld [vmem:[%s5 + $0x320] sm:$0xff]
      %v3243 = vld [vmem:[%s5 + $0x328] sm:$0xff]
      %v3244 = vld [vmem:[%s5 + $0x330] sm:$0xff]
      %v3245 = vld [vmem:[%s5 + $0x338] sm:$0xff]
      %v3246 = vld [vmem:[%s5 + $0x340] sm:$0xff]
      %v3247 = vld [vmem:[%s5 + $0x348] sm:$0xff]
      %v3248 = vld [vmem:[%s5 + $0x350] sm:$0xff]
      %v3249 = vld [vmem:[%s5 + $0x358] sm:$0xff]
      %v3250 = vld [vmem:[%s5 + $0x360] sm:$0xff]
      %v3251 = vld [vmem:[%s5 + $0x368] sm:$0xff]
      %v3252 = vld [vmem:[%s5 + $0x370] sm:$0xff]
      %v3253 = vld [vmem:[%s5 + $0x378] sm:$0xff]
      %v3254 = vld [vmem:[%s5 + $0x380] sm:$0xff]
      %v3255 = vld [vmem:[%s5 + $0x388] sm:$0xff]
      %v3256 = vld [vmem:[%s5 + $0x390] sm:$0xff]
      %v3257 = vld [vmem:[%s5 + $0x398] sm:$0xff]
      %v3258 = vld [vmem:[%s5 + $0x3a0] sm:$0xff]
      %v3259 = vld [vmem:[%s5 + $0x3a8] sm:$0xff]
      %v3260 = vld [vmem:[%s5 + $0x3b0] sm:$0xff]
      %v3261 = vld [vmem:[%s5 + $0x3b8] sm:$0xff]
      %v3262 = vld [vmem:[%s5 + $0x3c0] sm:$0xff]
      %v3263 = vld [vmem:[%s5 + $0x3c8] sm:$0xff]
      %v3264 = vld [vmem:[%s5 + $0x3d0] sm:$0xff]
      %v3265 = vld [vmem:[%s5 + $0x3d8] sm:$0xff]
      %v3266 = vld [vmem:[%s5 + $0x3e0] sm:$0xff]
      %v3267 = vld [vmem:[%s5 + $0x3e8] sm:$0xff]
      %v3268 = vld [vmem:[%s5 + $0x3f0] sm:$0xff]
      %v3269 = vld [vmem:[%s5 + $0x3f8] sm:$0xff]
      %v3270 = vld [vmem:[%s5 + $0x400] sm:$0xff]
      %v3271 = vld [vmem:[%s5 + $0x408] sm:$0xff]
      %v3272 = vld [vmem:[%s5 + $0x410] sm:$0xff]
      %v3273 = vld [vmem:[%s5 + $0x418] sm:$0xff]
      %v3274 = vld [vmem:[%s5 + $0x420] sm:$0xff]
      %v3275 = vld [vmem:[%s5 + $0x428] sm:$0xff]
      %v3276 = vld [vmem:[%s5 + $0x430] sm:$0xff]
      %v3277 = vld [vmem:[%s5 + $0x438] sm:$0xff]
      %v3278 = vld [vmem:[%s5 + $0x440] sm:$0xff]
      %v3279 = vld [vmem:[%s5 + $0x448] sm:$0xff]
      %v3280 = vld [vmem:[%s5 + $0x450] sm:$0xff]
      %v3281 = vld [vmem:[%s5 + $0x458] sm:$0xff]
      %v3282 = vld [vmem:[%s5 + $0x460] sm:$0xff]
      %v3283 = vld [vmem:[%s5 + $0x468] sm:$0xff]
      %v3284 = vld [vmem:[%s5 + $0x470] sm:$0xff]
      %v3285 = vld [vmem:[%s5 + $0x478] sm:$0xff]
      %v3286 = vld [vmem:[%s5 + $0x480] sm:$0xff]
      %v3287 = vld [vmem:[%s5 + $0x488] sm:$0xff]
      %v3288 = vld [vmem:[%s5 + $0x490] sm:$0xff]
      %v3289 = vld [vmem:[%s5 + $0x498] sm:$0xff]
      %v3290 = vld [vmem:[%s5 + $0x4a0] sm:$0xff]
      %v3291 = vld [vmem:[%s5 + $0x4a8] sm:$0xff]
      %v3292 = vld [vmem:[%s5 + $0x4b0] sm:$0xff]
      %v3293 = vld [vmem:[%s5 + $0x4b8] sm:$0xff]
      %v3294 = vld [vmem:[%s5 + $0x4c0] sm:$0xff]
      %v3295 = vld [vmem:[%s5 + $0x4c8] sm:$0xff]
      %v3296 = vld [vmem:[%s5 + $0x4d0] sm:$0xff]
      %v3297 = vld [vmem:[%s5 + $0x4d8] sm:$0xff]
      %v3298 = vld [vmem:[%s5 + $0x4e0] sm:$0xff]
      %v3299 = vld [vmem:[%s5 + $0x4e8] sm:$0xff]
      %v3300 = vld [vmem:[%s5 + $0x4f0] sm:$0xff]
      %v3301 = vld [vmem:[%s5 + $0x4f8] sm:$0xff]
      %v3302 = vld [vmem:[%s5 + $0x500] sm:$0xff]
      %v3303 = vld [vmem:[%s5 + $0x508] sm:$0xff]
      %v3304 = vld [vmem:[%s5 + $0x510] sm:$0xff]
      %v3305 = vld [vmem:[%s5 + $0x518] sm:$0xff]
      %v3306 = vld [vmem:[%s5 + $0x520] sm:$0xff]
      %v3307 = vld [vmem:[%s5 + $0x528] sm:$0xff]
      %v3308 = vld [vmem:[%s5 + $0x530] sm:$0xff]
      %v3309 = vld [vmem:[%s5 + $0x538] sm:$0xff]
      %v3310 = vld [vmem:[%s5 + $0x540] sm:$0xff]
      %v3311 = vld [vmem:[%s5 + $0x548] sm:$0xff]
      %v3312 = vld [vmem:[%s5 + $0x550] sm:$0xff]
      %v3313 = vld [vmem:[%s5 + $0x558] sm:$0xff]
      %v3314 = vld [vmem:[%s5 + $0x560] sm:$0xff]
      %v3315 = vld [vmem:[%s5 + $0x568] sm:$0xff]
      %v3316 = vld [vmem:[%s5 + $0x570] sm:$0xff]
      %v3317 = vld [vmem:[%s5 + $0x578] sm:$0xff]
      %v3318 = vld [vmem:[%s5 + $0x580] sm:$0xff]
      %v3319 = vld [vmem:[%s5 + $0x588] sm:$0xff]
      %v3320 = vld [vmem:[%s5 + $0x590] sm:$0xff]
      %v3321 = vld [vmem:[%s5 + $0x598] sm:$0xff]
      %v3322 = vld [vmem:[%s5 + $0x5a0] sm:$0xff]
      %v3323 = vld [vmem:[%s5 + $0x5a8] sm:$0xff]
      %v3324 = vld [vmem:[%s5 + $0x5b0] sm:$0xff]
      %v3325 = vld [vmem:[%s5 + $0x5b8] sm:$0xff]
      %v3326 = vld [vmem:[%s5 + $0x5c0] sm:$0xff]
      %v3327 = vld [vmem:[%s5 + $0x5c8] sm:$0xff]
      %v3328 = vld [vmem:[%s5 + $0x5d0] sm:$0xff]
      %v3329 = vld [vmem:[%s5 + $0x5d8] sm:$0xff]
      %v3330 = vld [vmem:[%s5 + $0x5e0] sm:$0xff]
      %v3331 = vld [vmem:[%s5 + $0x5e8] sm:$0xff]
      %v3332 = vld [vmem:[%s5 + $0x5f0] sm:$0xff]
      %v3333 = vld [vmem:[%s5 + $0x5f8] sm:$0xff]
      %v3334 = vld [vmem:[%s5 + $0x600] sm:$0xff]
      %v3335 = vld [vmem:[%s5 + $0x608] sm:$0xff]
      %v3336 = vld [vmem:[%s5 + $0x610] sm:$0xff]
      %v3337 = vld [vmem:[%s5 + $0x618] sm:$0xff]
      %v3338 = vld [vmem:[%s5 + $0x620] sm:$0xff]
      %v3339 = vld [vmem:[%s5 + $0x628] sm:$0xff]
      %v3340 = vld [vmem:[%s5 + $0x630] sm:$0xff]
      %v3341 = vld [vmem:[%s5 + $0x638] sm:$0xff]
      %v3342 = vld [vmem:[%s5 + $0x640] sm:$0xff]
      %v3343 = vld [vmem:[%s5 + $0x648] sm:$0xff]
      %v3344 = vld [vmem:[%s5 + $0x650] sm:$0xff]
      %v3345 = vld [vmem:[%s5 + $0x658] sm:$0xff]
      %v3346 = vld [vmem:[%s5 + $0x660] sm:$0xff]
      %v3347 = vld [vmem:[%s5 + $0x668] sm:$0xff]
      %v3348 = vld [vmem:[%s5 + $0x670] sm:$0xff]
      %v3349 = vld [vmem:[%s5 + $0x678] sm:$0xff]
      %v3350 = vld [vmem:[%s5 + $0x680] sm:$0xff]
      %v3351 = vld [vmem:[%s5 + $0x688] sm:$0xff]
      %v3352 = vld [vmem:[%s5 + $0x690] sm:$0xff]
      %v3353 = vld [vmem:[%s5 + $0x698] sm:$0xff]
      %v3354 = vld [vmem:[%s5 + $0x6a0] sm:$0xff]
      %v3355 = vld [vmem:[%s5 + $0x6a8] sm:$0xff]
      %v3356 = vld [vmem:[%s5 + $0x6b0] sm:$0xff]
      %v3357 = vld [vmem:[%s5 + $0x6b8] sm:$0xff]
      %v3574 = vunpack.c.l.b16 %v3142
      %v3575 = vunpack.c.h.b16 %v3142
      %v3576 = vunpack.c.l.b16 %v3143
      %v3577 = vunpack.c.h.b16 %v3143
      %v3578 = vunpack.c.l.b16 %v3144
      %v3579 = vunpack.c.h.b16 %v3144
      %v3580 = vunpack.c.l.b16 %v3145
      %v3581 = vunpack.c.h.b16 %v3145
      %v3582 = vunpack.c.l.b16 %v3146
      %v3583 = vunpack.c.h.b16 %v3146
      %v3584 = vunpack.c.l.b16 %v3147
      %v3585 = vunpack.c.h.b16 %v3147
      %v3586 = vunpack.c.l.b16 %v3148
      %v3587 = vunpack.c.h.b16 %v3148
      %v3588 = vunpack.c.l.b16 %v3149
      %v3589 = vunpack.c.h.b16 %v3149
      %v3590 = vunpack.c.l.b16 %v3150
      %v3591 = vunpack.c.h.b16 %v3150
      %v3592 = vunpack.c.l.b16 %v3151
      %v3593 = vunpack.c.h.b16 %v3151
      %v3594 = vunpack.c.l.b16 %v3152
      %v3595 = vunpack.c.h.b16 %v3152
      %v3596 = vunpack.c.l.b16 %v3153
      %v3597 = vunpack.c.h.b16 %v3153
      %v3598 = vunpack.c.l.b16 %v3154
      %v3599 = vunpack.c.h.b16 %v3154
      %v3600 = vunpack.c.l.b16 %v3155
      %v3601 = vunpack.c.h.b16 %v3155
      %v3602 = vunpack.c.l.b16 %v3156
      %v3603 = vunpack.c.h.b16 %v3156
      %v3604 = vunpack.c.l.b16 %v3157
      %v3605 = vunpack.c.h.b16 %v3157
      %v3606 = vunpack.c.l.b16 %v3158
      %v3607 = vunpack.c.h.b16 %v3158
      %v3608 = vunpack.c.l.b16 %v3159
      %v3609 = vunpack.c.h.b16 %v3159
      %v3610 = vunpack.c.l.b16 %v3160
      %v3611 = vunpack.c.h.b16 %v3160
      %v3612 = vunpack.c.l.b16 %v3161
      %v3613 = vunpack.c.h.b16 %v3161
      %v3614 = vunpack.c.l.b16 %v3162
      %v3615 = vunpack.c.h.b16 %v3162
      %v3616 = vunpack.c.l.b16 %v3163
      %v3617 = vunpack.c.h.b16 %v3163
      %v3618 = vunpack.c.l.b16 %v3164
      %v3619 = vunpack.c.h.b16 %v3164
      %v3620 = vunpack.c.l.b16 %v3165
      %v3621 = vunpack.c.h.b16 %v3165
      %v3622 = vunpack.c.l.b16 %v3166
      %v3623 = vunpack.c.h.b16 %v3166
      %v3624 = vunpack.c.l.b16 %v3167
      %v3625 = vunpack.c.h.b16 %v3167
      %v3626 = vunpack.c.l.b16 %v3168
      %v3627 = vunpack.c.h.b16 %v3168
      %v3628 = vunpack.c.l.b16 %v3169
      %v3629 = vunpack.c.h.b16 %v3169
      %v3630 = vunpack.c.l.b16 %v3170
      %v3631 = vunpack.c.h.b16 %v3170
      %v3632 = vunpack.c.l.b16 %v3171
      %v3633 = vunpack.c.h.b16 %v3171
      %v3634 = vunpack.c.l.b16 %v3172
      %v3635 = vunpack.c.h.b16 %v3172
      %v3636 = vunpack.c.l.b16 %v3173
      %v3637 = vunpack.c.h.b16 %v3173
      %v3638 = vunpack.c.l.b16 %v3174
      %v3639 = vunpack.c.h.b16 %v3174
      %v3640 = vunpack.c.l.b16 %v3175
      %v3641 = vunpack.c.h.b16 %v3175
      %v3642 = vunpack.c.l.b16 %v3176
      %v3643 = vunpack.c.h.b16 %v3176
      %v3644 = vunpack.c.l.b16 %v3177
      %v3645 = vunpack.c.h.b16 %v3177
      %v3646 = vunpack.c.l.b16 %v3178
      %v3647 = vunpack.c.h.b16 %v3178
      %v3648 = vunpack.c.l.b16 %v3179
      %v3649 = vunpack.c.h.b16 %v3179
      %v3650 = vunpack.c.l.b16 %v3180
      %v3651 = vunpack.c.h.b16 %v3180
      %v3652 = vunpack.c.l.b16 %v3181
      %v3653 = vunpack.c.h.b16 %v3181
      %v3654 = vunpack.c.l.b16 %v3182
      %v3655 = vunpack.c.h.b16 %v3182
      %v3656 = vunpack.c.l.b16 %v3183
      %v3657 = vunpack.c.h.b16 %v3183
      %v3658 = vunpack.c.l.b16 %v3184
      %v3659 = vunpack.c.h.b16 %v3184
      %v3660 = vunpack.c.l.b16 %v3185
      %v3661 = vunpack.c.h.b16 %v3185
      %v3662 = vunpack.c.l.b16 %v3186
      %v3663 = vunpack.c.h.b16 %v3186
      %v3664 = vunpack.c.l.b16 %v3187
      %v3665 = vunpack.c.h.b16 %v3187
      %v3666 = vunpack.c.l.b16 %v3188
      %v3667 = vunpack.c.h.b16 %v3188
      %v3668 = vunpack.c.l.b16 %v3189
      %v3669 = vunpack.c.h.b16 %v3189
      %v3670 = vunpack.c.l.b16 %v3190
      %v3671 = vunpack.c.h.b16 %v3190
      %v3672 = vunpack.c.l.b16 %v3191
      %v3673 = vunpack.c.h.b16 %v3191
      %v3674 = vunpack.c.l.b16 %v3192
      %v3675 = vunpack.c.h.b16 %v3192
      %v3676 = vunpack.c.l.b16 %v3193
      %v3677 = vunpack.c.h.b16 %v3193
      %v3678 = vunpack.c.l.b16 %v3194
      %v3679 = vunpack.c.h.b16 %v3194
      %v3680 = vunpack.c.l.b16 %v3195
      %v3681 = vunpack.c.h.b16 %v3195
      %v3682 = vunpack.c.l.b16 %v3196
      %v3683 = vunpack.c.h.b16 %v3196
      %v3684 = vunpack.c.l.b16 %v3197
      %v3685 = vunpack.c.h.b16 %v3197
      %v3686 = vunpack.c.l.b16 %v3198
      %v3687 = vunpack.c.h.b16 %v3198
      %v3688 = vunpack.c.l.b16 %v3199
      %v3689 = vunpack.c.h.b16 %v3199
      %v3690 = vunpack.c.l.b16 %v3200
      %v3691 = vunpack.c.h.b16 %v3200
      %v3692 = vunpack.c.l.b16 %v3201
      %v3693 = vunpack.c.h.b16 %v3201
      %v3694 = vunpack.c.l.b16 %v3202
      %v3695 = vunpack.c.h.b16 %v3202
      %v3696 = vunpack.c.l.b16 %v3203
      %v3697 = vunpack.c.h.b16 %v3203
      %v3698 = vunpack.c.l.b16 %v3204
      %v3699 = vunpack.c.h.b16 %v3204
      %v3700 = vunpack.c.l.b16 %v3205
      %v3701 = vunpack.c.h.b16 %v3205
      %v3702 = vunpack.c.l.b16 %v3206
      %v3703 = vunpack.c.h.b16 %v3206
      %v3704 = vunpack.c.l.b16 %v3207
      %v3705 = vunpack.c.h.b16 %v3207
      %v3706 = vunpack.c.l.b16 %v3208
      %v3707 = vunpack.c.h.b16 %v3208
      %v3708 = vunpack.c.l.b16 %v3209
      %v3709 = vunpack.c.h.b16 %v3209
      %v3710 = vunpack.c.l.b16 %v3210
      %v3711 = vunpack.c.h.b16 %v3210
      %v3712 = vunpack.c.l.b16 %v3211
      %v3713 = vunpack.c.h.b16 %v3211
      %v3714 = vunpack.c.l.b16 %v3212
      %v3715 = vunpack.c.h.b16 %v3212
      %v3716 = vunpack.c.l.b16 %v3213
      %v3717 = vunpack.c.h.b16 %v3213
      %v3718 = vunpack.c.l.b16 %v3214
      %v3719 = vunpack.c.h.b16 %v3214
      %v3720 = vunpack.c.l.b16 %v3215
      %v3721 = vunpack.c.h.b16 %v3215
      %v3722 = vunpack.c.l.b16 %v3216
      %v3723 = vunpack.c.h.b16 %v3216
      %v3724 = vunpack.c.l.b16 %v3217
      %v3725 = vunpack.c.h.b16 %v3217
      %v3726 = vunpack.c.l.b16 %v3218
      %v3727 = vunpack.c.h.b16 %v3218
      %v3728 = vunpack.c.l.b16 %v3219
      %v3729 = vunpack.c.h.b16 %v3219
      %v3730 = vunpack.c.l.b16 %v3220
      %v3731 = vunpack.c.h.b16 %v3220
      %v3732 = vunpack.c.l.b16 %v3221
      %v3733 = vunpack.c.h.b16 %v3221
      %v3734 = vunpack.c.l.b16 %v3222
      %v3735 = vunpack.c.h.b16 %v3222
      %v3736 = vunpack.c.l.b16 %v3223
      %v3737 = vunpack.c.h.b16 %v3223
      %v3738 = vunpack.c.l.b16 %v3224
      %v3739 = vunpack.c.h.b16 %v3224
      %v3740 = vunpack.c.l.b16 %v3225
      %v3741 = vunpack.c.h.b16 %v3225
      %v3742 = vunpack.c.l.b16 %v3226
      %v3743 = vunpack.c.h.b16 %v3226
      %v3744 = vunpack.c.l.b16 %v3227
      %v3745 = vunpack.c.h.b16 %v3227
      %v3746 = vunpack.c.l.b16 %v3228
      %v3747 = vunpack.c.h.b16 %v3228
      %v3748 = vunpack.c.l.b16 %v3229
      %v3749 = vunpack.c.h.b16 %v3229
      %v3750 = vunpack.c.l.b16 %v3230
      %v3751 = vunpack.c.h.b16 %v3230
      %v3752 = vunpack.c.l.b16 %v3231
      %v3753 = vunpack.c.h.b16 %v3231
      %v3754 = vunpack.c.l.b16 %v3232
      %v3755 = vunpack.c.h.b16 %v3232
      %v3756 = vunpack.c.l.b16 %v3233
      %v3757 = vunpack.c.h.b16 %v3233
      %v3758 = vunpack.c.l.b16 %v3234
      %v3759 = vunpack.c.h.b16 %v3234
      %v3760 = vunpack.c.l.b16 %v3235
      %v3761 = vunpack.c.h.b16 %v3235
      %v3762 = vunpack.c.l.b16 %v3236
      %v3763 = vunpack.c.h.b16 %v3236
      %v3764 = vunpack.c.l.b16 %v3237
      %v3765 = vunpack.c.h.b16 %v3237
      %v3766 = vunpack.c.l.b16 %v3238
      %v3767 = vunpack.c.h.b16 %v3238
      %v3768 = vunpack.c.l.b16 %v3239
      %v3769 = vunpack.c.h.b16 %v3239
      %v3770 = vunpack.c.l.b16 %v3240
      %v3771 = vunpack.c.h.b16 %v3240
      %v3772 = vunpack.c.l.b16 %v3241
      %v3773 = vunpack.c.h.b16 %v3241
      %v3774 = vunpack.c.l.b16 %v3242
      %v3775 = vunpack.c.h.b16 %v3242
      %v3776 = vunpack.c.l.b16 %v3243
      %v3777 = vunpack.c.h.b16 %v3243
      %v3778 = vunpack.c.l.b16 %v3244
      %v3779 = vunpack.c.h.b16 %v3244
      %v3780 = vunpack.c.l.b16 %v3245
      %v3781 = vunpack.c.h.b16 %v3245
      %v3782 = vunpack.c.l.b16 %v3246
      %v3783 = vunpack.c.h.b16 %v3246
      %v3784 = vunpack.c.l.b16 %v3247
      %v3785 = vunpack.c.h.b16 %v3247
      %v3786 = vunpack.c.l.b16 %v3248
      %v3787 = vunpack.c.h.b16 %v3248
      %v3788 = vunpack.c.l.b16 %v3249
      %v3789 = vunpack.c.h.b16 %v3249
      %v3790 = vunpack.c.l.b16 %v3250
      %v3791 = vunpack.c.h.b16 %v3250
      %v3792 = vunpack.c.l.b16 %v3251
      %v3793 = vunpack.c.h.b16 %v3251
      %v3794 = vunpack.c.l.b16 %v3252
      %v3795 = vunpack.c.h.b16 %v3252
      %v3796 = vunpack.c.l.b16 %v3253
      %v3797 = vunpack.c.h.b16 %v3253
      %v3798 = vunpack.c.l.b16 %v3254
      %v3799 = vunpack.c.h.b16 %v3254
      %v3800 = vunpack.c.l.b16 %v3255
      %v3801 = vunpack.c.h.b16 %v3255
      %v3802 = vunpack.c.l.b16 %v3256
      %v3803 = vunpack.c.h.b16 %v3256
      %v3804 = vunpack.c.l.b16 %v3257
      %v3805 = vunpack.c.h.b16 %v3257
      %v3806 = vunpack.c.l.b16 %v3258
      %v3807 = vunpack.c.h.b16 %v3258
      %v3808 = vunpack.c.l.b16 %v3259
      %v3809 = vunpack.c.h.b16 %v3259
      %v3810 = vunpack.c.l.b16 %v3260
      %v3811 = vunpack.c.h.b16 %v3260
      %v3812 = vunpack.c.l.b16 %v3261
      %v3813 = vunpack.c.h.b16 %v3261
      %v3814 = vunpack.c.l.b16 %v3262
      %v3815 = vunpack.c.h.b16 %v3262
      %v3816 = vunpack.c.l.b16 %v3263
      %v3817 = vunpack.c.h.b16 %v3263
      %v3818 = vunpack.c.l.b16 %v3264
      %v3819 = vunpack.c.h.b16 %v3264
      %v3820 = vunpack.c.l.b16 %v3265
      %v3821 = vunpack.c.h.b16 %v3265
      %v3822 = vunpack.c.l.b16 %v3266
      %v3823 = vunpack.c.h.b16 %v3266
      %v3824 = vunpack.c.l.b16 %v3267
      %v3825 = vunpack.c.h.b16 %v3267
      %v3826 = vunpack.c.l.b16 %v3268
      %v3827 = vunpack.c.h.b16 %v3268
      %v3828 = vunpack.c.l.b16 %v3269
      %v3829 = vunpack.c.h.b16 %v3269
      %v3830 = vunpack.c.l.b16 %v3270
      %v3831 = vunpack.c.h.b16 %v3270
      %v3832 = vunpack.c.l.b16 %v3271
      %v3833 = vunpack.c.h.b16 %v3271
      %v3834 = vunpack.c.l.b16 %v3272
      %v3835 = vunpack.c.h.b16 %v3272
      %v3836 = vunpack.c.l.b16 %v3273
      %v3837 = vunpack.c.h.b16 %v3273
      %v3838 = vunpack.c.l.b16 %v3274
      %v3839 = vunpack.c.h.b16 %v3274
      %v3840 = vunpack.c.l.b16 %v3275
      %v3841 = vunpack.c.h.b16 %v3275
      %v3842 = vunpack.c.l.b16 %v3276
      %v3843 = vunpack.c.h.b16 %v3276
      %v3844 = vunpack.c.l.b16 %v3277
      %v3845 = vunpack.c.h.b16 %v3277
      %v3846 = vunpack.c.l.b16 %v3278
      %v3847 = vunpack.c.h.b16 %v3278
      %v3848 = vunpack.c.l.b16 %v3279
      %v3849 = vunpack.c.h.b16 %v3279
      %v3850 = vunpack.c.l.b16 %v3280
      %v3851 = vunpack.c.h.b16 %v3280
      %v3852 = vunpack.c.l.b16 %v3281
      %v3853 = vunpack.c.h.b16 %v3281
      %v3854 = vunpack.c.l.b16 %v3282
      %v3855 = vunpack.c.h.b16 %v3282
      %v3856 = vunpack.c.l.b16 %v3283
      %v3857 = vunpack.c.h.b16 %v3283
      %v3858 = vunpack.c.l.b16 %v3284
      %v3859 = vunpack.c.h.b16 %v3284
      %v3860 = vunpack.c.l.b16 %v3285
      %v3861 = vunpack.c.h.b16 %v3285
      %v3862 = vunpack.c.l.b16 %v3286
      %v3863 = vunpack.c.h.b16 %v3286
      %v3864 = vunpack.c.l.b16 %v3287
      %v3865 = vunpack.c.h.b16 %v3287
      %v3866 = vunpack.c.l.b16 %v3288
      %v3867 = vunpack.c.h.b16 %v3288
      %v3868 = vunpack.c.l.b16 %v3289
      %v3869 = vunpack.c.h.b16 %v3289
      %v3870 = vunpack.c.l.b16 %v3290
      %v3871 = vunpack.c.h.b16 %v3290
      %v3872 = vunpack.c.l.b16 %v3291
      %v3873 = vunpack.c.h.b16 %v3291
      %v3874 = vunpack.c.l.b16 %v3292
      %v3875 = vunpack.c.h.b16 %v3292
      %v3876 = vunpack.c.l.b16 %v3293
      %v3877 = vunpack.c.h.b16 %v3293
      %v3878 = vunpack.c.l.b16 %v3294
      %v3879 = vunpack.c.h.b16 %v3294
      %v3880 = vunpack.c.l.b16 %v3295
      %v3881 = vunpack.c.h.b16 %v3295
      %v3882 = vunpack.c.l.b16 %v3296
      %v3883 = vunpack.c.h.b16 %v3296
      %v3884 = vunpack.c.l.b16 %v3297
      %v3885 = vunpack.c.h.b16 %v3297
      %v3886 = vunpack.c.l.b16 %v3298
      %v3887 = vunpack.c.h.b16 %v3298
      %v3888 = vunpack.c.l.b16 %v3299
      %v3889 = vunpack.c.h.b16 %v3299
      %v3890 = vunpack.c.l.b16 %v3300
      %v3891 = vunpack.c.h.b16 %v3300
      %v3892 = vunpack.c.l.b16 %v3301
      %v3893 = vunpack.c.h.b16 %v3301
      %v3894 = vunpack.c.l.b16 %v3302
      %v3895 = vunpack.c.h.b16 %v3302
      %v3896 = vunpack.c.l.b16 %v3303
      %v3897 = vunpack.c.h.b16 %v3303
      %v3898 = vunpack.c.l.b16 %v3304
      %v3899 = vunpack.c.h.b16 %v3304
      %v3900 = vunpack.c.l.b16 %v3305
      %v3901 = vunpack.c.h.b16 %v3305
      %v3902 = vunpack.c.l.b16 %v3306
      %v3903 = vunpack.c.h.b16 %v3306
      %v3904 = vunpack.c.l.b16 %v3307
      %v3905 = vunpack.c.h.b16 %v3307
      %v3906 = vunpack.c.l.b16 %v3308
      %v3907 = vunpack.c.h.b16 %v3308
      %v3908 = vunpack.c.l.b16 %v3309
      %v3909 = vunpack.c.h.b16 %v3309
      %v3910 = vunpack.c.l.b16 %v3310
      %v3911 = vunpack.c.h.b16 %v3310
      %v3912 = vunpack.c.l.b16 %v3311
      %v3913 = vunpack.c.h.b16 %v3311
      %v3914 = vunpack.c.l.b16 %v3312
      %v3915 = vunpack.c.h.b16 %v3312
      %v3916 = vunpack.c.l.b16 %v3313
      %v3917 = vunpack.c.h.b16 %v3313
      %v3918 = vunpack.c.l.b16 %v3314
      %v3919 = vunpack.c.h.b16 %v3314
      %v3920 = vunpack.c.l.b16 %v3315
      %v3921 = vunpack.c.h.b16 %v3315
      %v3922 = vunpack.c.l.b16 %v3316
      %v3923 = vunpack.c.h.b16 %v3316
      %v3924 = vunpack.c.l.b16 %v3317
      %v3925 = vunpack.c.h.b16 %v3317
      %v3926 = vunpack.c.l.b16 %v3318
      %v3927 = vunpack.c.h.b16 %v3318
      %v3928 = vunpack.c.l.b16 %v3319
      %v3929 = vunpack.c.h.b16 %v3319
      %v3930 = vunpack.c.l.b16 %v3320
      %v3931 = vunpack.c.h.b16 %v3320
      %v3932 = vunpack.c.l.b16 %v3321
      %v3933 = vunpack.c.h.b16 %v3321
      %v3934 = vunpack.c.l.b16 %v3322
      %v3935 = vunpack.c.h.b16 %v3322
      %v3936 = vunpack.c.l.b16 %v3323
      %v3937 = vunpack.c.h.b16 %v3323
      %v3938 = vunpack.c.l.b16 %v3324
      %v3939 = vunpack.c.h.b16 %v3324
      %v3940 = vunpack.c.l.b16 %v3325
      %v3941 = vunpack.c.h.b16 %v3325
      %v3942 = vunpack.c.l.b16 %v3326
      %v3943 = vunpack.c.h.b16 %v3326
      %v3944 = vunpack.c.l.b16 %v3327
      %v3945 = vunpack.c.h.b16 %v3327
      %v3946 = vunpack.c.l.b16 %v3328
      %v3947 = vunpack.c.h.b16 %v3328
      %v3948 = vunpack.c.l.b16 %v3329
      %v3949 = vunpack.c.h.b16 %v3329
      %v3950 = vunpack.c.l.b16 %v3330
      %v3951 = vunpack.c.h.b16 %v3330
      %v3952 = vunpack.c.l.b16 %v3331
      %v3953 = vunpack.c.h.b16 %v3331
      %v3954 = vunpack.c.l.b16 %v3332
      %v3955 = vunpack.c.h.b16 %v3332
      %v3956 = vunpack.c.l.b16 %v3333
      %v3957 = vunpack.c.h.b16 %v3333
      %v3958 = vunpack.c.l.b16 %v3334
      %v3959 = vunpack.c.h.b16 %v3334
      %v3960 = vunpack.c.l.b16 %v3335
      %v3961 = vunpack.c.h.b16 %v3335
      %v3962 = vunpack.c.l.b16 %v3336
      %v3963 = vunpack.c.h.b16 %v3336
      %v3964 = vunpack.c.l.b16 %v3337
      %v3965 = vunpack.c.h.b16 %v3337
      %v3966 = vunpack.c.l.b16 %v3338
      %v3967 = vunpack.c.h.b16 %v3338
      %v3968 = vunpack.c.l.b16 %v3339
      %v3969 = vunpack.c.h.b16 %v3339
      %v3970 = vunpack.c.l.b16 %v3340
      %v3971 = vunpack.c.h.b16 %v3340
      %v3972 = vunpack.c.l.b16 %v3341
      %v3973 = vunpack.c.h.b16 %v3341
      %v3974 = vunpack.c.l.b16 %v3342
      %v3975 = vunpack.c.h.b16 %v3342
      %v3976 = vunpack.c.l.b16 %v3343
      %v3977 = vunpack.c.h.b16 %v3343
      %v3978 = vunpack.c.l.b16 %v3344
      %v3979 = vunpack.c.h.b16 %v3344
      %v3980 = vunpack.c.l.b16 %v3345
      %v3981 = vunpack.c.h.b16 %v3345
      %v3982 = vunpack.c.l.b16 %v3346
      %v3983 = vunpack.c.h.b16 %v3346
      %v3984 = vunpack.c.l.b16 %v3347
      %v3985 = vunpack.c.h.b16 %v3347
      %v3986 = vunpack.c.l.b16 %v3348
      %v3987 = vunpack.c.h.b16 %v3348
      %v3988 = vunpack.c.l.b16 %v3349
      %v3989 = vunpack.c.h.b16 %v3349
      %v3990 = vunpack.c.l.b16 %v3350
      %v3991 = vunpack.c.h.b16 %v3350
      %v3992 = vunpack.c.l.b16 %v3351
      %v3993 = vunpack.c.h.b16 %v3351
      %v3994 = vunpack.c.l.b16 %v3352
      %v3995 = vunpack.c.h.b16 %v3352
      %v3996 = vunpack.c.l.b16 %v3353
      %v3997 = vunpack.c.h.b16 %v3353
      %v3998 = vunpack.c.l.b16 %v3354
      %v3999 = vunpack.c.h.b16 %v3354
      %v4000 = vunpack.c.l.b16 %v3355
      %v4001 = vunpack.c.h.b16 %v3355
      %v4002 = vunpack.c.l.b16 %v3356
      %v4003 = vunpack.c.h.b16 %v3356
      %v4004 = vunpack.c.l.b16 %v3357
      %v4005 = vunpack.c.h.b16 %v3357
      %v4006 = vpack.c.b16 %v3580, %v3574
      %v4007 = vpack.c.b16 %v3581, %v3575
      %v4008 = vpack.c.b16 %v3582, %v3576
      %v4009 = vpack.c.b16 %v3583, %v3577
      %v4010 = vpack.c.b16 %v3584, %v3578
      %v4011 = vpack.c.b16 %v3585, %v3579
      %v4012 = vpack.c.b16 %v3592, %v3586
      %v4013 = vpack.c.b16 %v3593, %v3587
      %v4014 = vpack.c.b16 %v3594, %v3588
      %v4015 = vpack.c.b16 %v3595, %v3589
      %v4016 = vpack.c.b16 %v3596, %v3590
      %v4017 = vpack.c.b16 %v3597, %v3591
      %v4018 = vpack.c.b16 %v3604, %v3598
      %v4019 = vpack.c.b16 %v3605, %v3599
      %v4020 = vpack.c.b16 %v3606, %v3600
      %v4021 = vpack.c.b16 %v3607, %v3601
      %v4022 = vpack.c.b16 %v3608, %v3602
      %v4023 = vpack.c.b16 %v3609, %v3603
      %v4024 = vpack.c.b16 %v3616, %v3610
      %v4025 = vpack.c.b16 %v3617, %v3611
      %v4026 = vpack.c.b16 %v3618, %v3612
      %v4027 = vpack.c.b16 %v3619, %v3613
      %v4028 = vpack.c.b16 %v3620, %v3614
      %v4029 = vpack.c.b16 %v3621, %v3615
      %v4030 = vpack.c.b16 %v3628, %v3622
      %v4031 = vpack.c.b16 %v3629, %v3623
      %v4032 = vpack.c.b16 %v3630, %v3624
      %v4033 = vpack.c.b16 %v3631, %v3625
      %v4034 = vpack.c.b16 %v3632, %v3626
      %v4035 = vpack.c.b16 %v3633, %v3627
      %v4036 = vpack.c.b16 %v3640, %v3634
      %v4037 = vpack.c.b16 %v3641, %v3635
      %v4038 = vpack.c.b16 %v3642, %v3636
      %v4039 = vpack.c.b16 %v3643, %v3637
      %v4040 = vpack.c.b16 %v3644, %v3638
      %v4041 = vpack.c.b16 %v3645, %v3639
      %v4042 = vpack.c.b16 %v3652, %v3646
      %v4043 = vpack.c.b16 %v3653, %v3647
      %v4044 = vpack.c.b16 %v3654, %v3648
      %v4045 = vpack.c.b16 %v3655, %v3649
      %v4046 = vpack.c.b16 %v3656, %v3650
      %v4047 = vpack.c.b16 %v3657, %v3651
      %v4048 = vpack.c.b16 %v3664, %v3658
      %v4049 = vpack.c.b16 %v3665, %v3659
      %v4050 = vpack.c.b16 %v3666, %v3660
      %v4051 = vpack.c.b16 %v3667, %v3661
      %v4052 = vpack.c.b16 %v3668, %v3662
      %v4053 = vpack.c.b16 %v3669, %v3663
      %v4054 = vpack.c.b16 %v3676, %v3670
      %v4055 = vpack.c.b16 %v3677, %v3671
      %v4056 = vpack.c.b16 %v3678, %v3672
      %v4057 = vpack.c.b16 %v3679, %v3673
      %v4058 = vpack.c.b16 %v3680, %v3674
      %v4059 = vpack.c.b16 %v3681, %v3675
      %v4060 = vpack.c.b16 %v3688, %v3682
      %v4061 = vpack.c.b16 %v3689, %v3683
      %v4062 = vpack.c.b16 %v3690, %v3684
      %v4063 = vpack.c.b16 %v3691, %v3685
      %v4064 = vpack.c.b16 %v3692, %v3686
      %v4065 = vpack.c.b16 %v3693, %v3687
      %v4066 = vpack.c.b16 %v3700, %v3694
      %v4067 = vpack.c.b16 %v3701, %v3695
      %v4068 = vpack.c.b16 %v3702, %v3696
      %v4069 = vpack.c.b16 %v3703, %v3697
      %v4070 = vpack.c.b16 %v3704, %v3698
      %v4071 = vpack.c.b16 %v3705, %v3699
      %v4072 = vpack.c.b16 %v3712, %v3706
      %v4073 = vpack.c.b16 %v3713, %v3707
      %v4074 = vpack.c.b16 %v3714, %v3708
      %v4075 = vpack.c.b16 %v3715, %v3709
      %v4076 = vpack.c.b16 %v3716, %v3710
      %v4077 = vpack.c.b16 %v3717, %v3711
      %v4078 = vpack.c.b16 %v3724, %v3718
      %v4079 = vpack.c.b16 %v3725, %v3719
      %v4080 = vpack.c.b16 %v3726, %v3720
      %v4081 = vpack.c.b16 %v3727, %v3721
      %v4082 = vpack.c.b16 %v3728, %v3722
      %v4083 = vpack.c.b16 %v3729, %v3723
      %v4084 = vpack.c.b16 %v3736, %v3730
      %v4085 = vpack.c.b16 %v3737, %v3731
      %v4086 = vpack.c.b16 %v3738, %v3732
      %v4087 = vpack.c.b16 %v3739, %v3733
      %v4088 = vpack.c.b16 %v3740, %v3734
      %v4089 = vpack.c.b16 %v3741, %v3735
      %v4090 = vpack.c.b16 %v3748, %v3742
      %v4091 = vpack.c.b16 %v3749, %v3743
      %v4092 = vpack.c.b16 %v3750, %v3744
      %v4093 = vpack.c.b16 %v3751, %v3745
      %v4094 = vpack.c.b16 %v3752, %v3746
      %v4095 = vpack.c.b16 %v3753, %v3747
      %v4096 = vpack.c.b16 %v3760, %v3754
      %v4097 = vpack.c.b16 %v3761, %v3755
      %v4098 = vpack.c.b16 %v3762, %v3756
      %v4099 = vpack.c.b16 %v3763, %v3757
      %v4100 = vpack.c.b16 %v3764, %v3758
      %v4101 = vpack.c.b16 %v3765, %v3759
      %v4102 = vpack.c.b16 %v3772, %v3766
      %v4103 = vpack.c.b16 %v3773, %v3767
      %v4104 = vpack.c.b16 %v3774, %v3768
      %v4105 = vpack.c.b16 %v3775, %v3769
      %v4106 = vpack.c.b16 %v3776, %v3770
      %v4107 = vpack.c.b16 %v3777, %v3771
      %v4108 = vpack.c.b16 %v3784, %v3778
      %v4109 = vpack.c.b16 %v3785, %v3779
      %v4110 = vpack.c.b16 %v3786, %v3780
      %v4111 = vpack.c.b16 %v3787, %v3781
      %v4112 = vpack.c.b16 %v3788, %v3782
      %v4113 = vpack.c.b16 %v3789, %v3783
      %v4114 = vpack.c.b16 %v3796, %v3790
      %v4115 = vpack.c.b16 %v3797, %v3791
      %v4116 = vpack.c.b16 %v3798, %v3792
      %v4117 = vpack.c.b16 %v3799, %v3793
      %v4118 = vpack.c.b16 %v3800, %v3794
      %v4119 = vpack.c.b16 %v3801, %v3795
      %v4120 = vpack.c.b16 %v3808, %v3802
      %v4121 = vpack.c.b16 %v3809, %v3803
      %v4122 = vpack.c.b16 %v3810, %v3804
      %v4123 = vpack.c.b16 %v3811, %v3805
      %v4124 = vpack.c.b16 %v3812, %v3806
      %v4125 = vpack.c.b16 %v3813, %v3807
      %v4126 = vpack.c.b16 %v3820, %v3814
      %v4127 = vpack.c.b16 %v3821, %v3815
      %v4128 = vpack.c.b16 %v3822, %v3816
      %v4129 = vpack.c.b16 %v3823, %v3817
      %v4130 = vpack.c.b16 %v3824, %v3818
      %v4131 = vpack.c.b16 %v3825, %v3819
      %v4132 = vpack.c.b16 %v3832, %v3826
      %v4133 = vpack.c.b16 %v3833, %v3827
      %v4134 = vpack.c.b16 %v3834, %v3828
      %v4135 = vpack.c.b16 %v3835, %v3829
      %v4136 = vpack.c.b16 %v3836, %v3830
      %v4137 = vpack.c.b16 %v3837, %v3831
      %v4138 = vpack.c.b16 %v3844, %v3838
      %v4139 = vpack.c.b16 %v3845, %v3839
      %v4140 = vpack.c.b16 %v3846, %v3840
      %v4141 = vpack.c.b16 %v3847, %v3841
      %v4142 = vpack.c.b16 %v3848, %v3842
      %v4143 = vpack.c.b16 %v3849, %v3843
      %v4144 = vpack.c.b16 %v3856, %v3850
      %v4145 = vpack.c.b16 %v3857, %v3851
      %v4146 = vpack.c.b16 %v3858, %v3852
      %v4147 = vpack.c.b16 %v3859, %v3853
      %v4148 = vpack.c.b16 %v3860, %v3854
      %v4149 = vpack.c.b16 %v3861, %v3855
      %v4150 = vpack.c.b16 %v3868, %v3862
      %v4151 = vpack.c.b16 %v3869, %v3863
      %v4152 = vpack.c.b16 %v3870, %v3864
      %v4153 = vpack.c.b16 %v3871, %v3865
      %v4154 = vpack.c.b16 %v3872, %v3866
      %v4155 = vpack.c.b16 %v3873, %v3867
      %v4156 = vpack.c.b16 %v3880, %v3874
      %v4157 = vpack.c.b16 %v3881, %v3875
      %v4158 = vpack.c.b16 %v3882, %v3876
      %v4159 = vpack.c.b16 %v3883, %v3877
      %v4160 = vpack.c.b16 %v3884, %v3878
      %v4161 = vpack.c.b16 %v3885, %v3879
      %v4162 = vpack.c.b16 %v3892, %v3886
      %v4163 = vpack.c.b16 %v3893, %v3887
      %v4164 = vpack.c.b16 %v3894, %v3888
      %v4165 = vpack.c.b16 %v3895, %v3889
      %v4166 = vpack.c.b16 %v3896, %v3890
      %v4167 = vpack.c.b16 %v3897, %v3891
      %v4168 = vpack.c.b16 %v3904, %v3898
      %v4169 = vpack.c.b16 %v3905, %v3899
      %v4170 = vpack.c.b16 %v3906, %v3900
      %v4171 = vpack.c.b16 %v3907, %v3901
      %v4172 = vpack.c.b16 %v3908, %v3902
      %v4173 = vpack.c.b16 %v3909, %v3903
      %v4174 = vpack.c.b16 %v3916, %v3910
      %v4175 = vpack.c.b16 %v3917, %v3911
      %v4176 = vpack.c.b16 %v3918, %v3912
      %v4177 = vpack.c.b16 %v3919, %v3913
      %v4178 = vpack.c.b16 %v3920, %v3914
      %v4179 = vpack.c.b16 %v3921, %v3915
      %v4180 = vpack.c.b16 %v3928, %v3922
      %v4181 = vpack.c.b16 %v3929, %v3923
      %v4182 = vpack.c.b16 %v3930, %v3924
      %v4183 = vpack.c.b16 %v3931, %v3925
      %v4184 = vpack.c.b16 %v3932, %v3926
      %v4185 = vpack.c.b16 %v3933, %v3927
      %v4186 = vpack.c.b16 %v3940, %v3934
      %v4187 = vpack.c.b16 %v3941, %v3935
      %v4188 = vpack.c.b16 %v3942, %v3936
      %v4189 = vpack.c.b16 %v3943, %v3937
      %v4190 = vpack.c.b16 %v3944, %v3938
      %v4191 = vpack.c.b16 %v3945, %v3939
      %v4192 = vpack.c.b16 %v3952, %v3946
      %v4193 = vpack.c.b16 %v3953, %v3947
      %v4194 = vpack.c.b16 %v3954, %v3948
      %v4195 = vpack.c.b16 %v3955, %v3949
      %v4196 = vpack.c.b16 %v3956, %v3950
      %v4197 = vpack.c.b16 %v3957, %v3951
      %v4198 = vpack.c.b16 %v3964, %v3958
      %v4199 = vpack.c.b16 %v3965, %v3959
      %v4200 = vpack.c.b16 %v3966, %v3960
      %v4201 = vpack.c.b16 %v3967, %v3961
      %v4202 = vpack.c.b16 %v3968, %v3962
      %v4203 = vpack.c.b16 %v3969, %v3963
      %v4204 = vpack.c.b16 %v3976, %v3970
      %v4205 = vpack.c.b16 %v3977, %v3971
      %v4206 = vpack.c.b16 %v3978, %v3972
      %v4207 = vpack.c.b16 %v3979, %v3973
      %v4208 = vpack.c.b16 %v3980, %v3974
      %v4209 = vpack.c.b16 %v3981, %v3975
      %v4210 = vpack.c.b16 %v3988, %v3982
      %v4211 = vpack.c.b16 %v3989, %v3983
      %v4212 = vpack.c.b16 %v3990, %v3984
      %v4213 = vpack.c.b16 %v3991, %v3985
      %v4214 = vpack.c.b16 %v3992, %v3986
      %v4215 = vpack.c.b16 %v3993, %v3987
      %v4216 = vpack.c.b16 %v4000, %v3994
      %v4217 = vpack.c.b16 %v4001, %v3995
      %v4218 = vpack.c.b16 %v4002, %v3996
      %v4219 = vpack.c.b16 %v4003, %v3997
      %v4220 = vpack.c.b16 %v4004, %v3998
      %v4221 = vpack.c.b16 %v4005, %v3999
      %vm4402 = vcmask 392192
      %v4404 = vsel %vm4402, %v4011, 0
      %v4407 = vsel %vm4402, %v4017, 0
      %v4410 = vsel %vm4402, %v4023, 0
      %v4413 = vsel %vm4402, %v4029, 0
      %v4416 = vsel %vm4402, %v4035, 0
      %v4419 = vsel %vm4402, %v4041, 0
      %v4422 = vsel %vm4402, %v4047, 0
      %v4425 = vsel %vm4402, %v4053, 0
      %v4428 = vsel %vm4402, %v4059, 0
      %v4431 = vsel %vm4402, %v4065, 0
      %v4434 = vsel %vm4402, %v4071, 0
      %v4437 = vsel %vm4402, %v4077, 0
      %v4440 = vsel %vm4402, %v4083, 0
      %v4443 = vsel %vm4402, %v4089, 0
      %v4446 = vsel %vm4402, %v4095, 0
      %v4449 = vsel %vm4402, %v4101, 0
      %v4452 = vsel %vm4402, %v4107, 0
      %v4455 = vsel %vm4402, %v4113, 0
      %v4458 = vsel %vm4402, %v4119, 0
      %v4461 = vsel %vm4402, %v4125, 0
      %v4464 = vsel %vm4402, %v4131, 0
      %v4467 = vsel %vm4402, %v4137, 0
      %v4470 = vsel %vm4402, %v4143, 0
      %v4473 = vsel %vm4402, %v4149, 0
      %v4476 = vsel %vm4402, %v4155, 0
      %v4479 = vsel %vm4402, %v4161, 0
      %v4482 = vsel %vm4402, %v4167, 0
      %v4485 = vsel %vm4402, %v4173, 0
      %v4488 = vsel %vm4402, %v4179, 0
      %v4491 = vsel %vm4402, %v4185, 0
      %v4494 = vsel %vm4402, %v4191, 0
      %v4497 = vsel %vm4402, %v4197, 0
      %v4500 = vsel %vm4402, %v4203, 0
      %v4503 = vsel %vm4402, %v4209, 0
      %v4506 = vsel %vm4402, %v4215, 0
      %v4509 = vsel %vm4402, %v4221, 0
      %4511 = vmatprep.subr.bf16.mxu0 0
      %4512 = vmatpush1.bf16.msra.mxu0 %v3099
      %4513 = vmatprep.subr.bf16.mxu0 0
      %4514 = vmatpush1.bf16.msra.mxu0 %v3100
      %4515 = vmatprep.subr.bf16.mxu0 0
      %4516 = vmatpush1.bf16.msra.mxu0 %v3101
      %4517 = vmatprep.subr.bf16.mxu0 0
      %4518 = vmatpush1.bf16.msra.mxu0 %v3102
      %4519 = vmatprep.subr.bf16.mxu0 0
      %4520 = vmatpush1.bf16.msra.mxu0 %v3103
      %4521 = vmatprep.subr.bf16.mxu0 0
      %4522 = vmatpush1.bf16.msra.mxu0 %v3104
      %4523 = vmatprep.subr.bf16.mxu0 0
      %4524 = vmatpush1.bf16.msra.mxu0 %v3105
      %4525 = vmatprep.subr.bf16.mxu0 0
      %4526 = vmatpush1.bf16.msra.mxu0 %v3106
      %4527 = vmatprep.subr.bf16.mxu0 0
      %4528 = vmatpush1.bf16.msra.mxu0 %v3107
      %4529 = vmatprep.subr.bf16.mxu0 0
      %4530 = vmatpush1.bf16.msra.mxu0 %v3108
      %4531 = vmatprep.subr.bf16.mxu0 0
      %4532 = vmatpush1.bf16.msra.mxu0 %v3109
      %4533 = vmatprep.subr.bf16.mxu0 0
      %4534 = vmatpush1.bf16.msra.mxu0 %v3110
      %4535 = vmatprep.subr.bf16.mxu0 0
      %4536 = vmatpush1.bf16.msra.mxu0 %v3111
      %4537 = vmatprep.subr.bf16.mxu0 0
      %4538 = vmatpush1.bf16.msra.mxu0 %v3112
      %4539 = vmatprep.subr.bf16.mxu0 0
      %4540 = vmatpush1.bf16.msra.mxu0 %v3113
      %4541 = vmatprep.subr.bf16.mxu0 0
      %4542 = vmatpush1.bf16.msra.mxu0 %v3114
      %4543 = vmatprep.mubr.bf16.mxu0 %v4007
      %4544 = vmatmul.mubr.bf16.gmra.mrb[0].mxu0 %v4006
      %v4545 = vpop.f32.mrb[0].mxu0
      %v4546 = vadd.f32 0.0, %v4545
      %v4547 = vpop.f32.mrb[0].mxu0
      %v4548 = vpop.f32.mrb[0].mxu0
      %v4549 = vadd.f32 0.0, %v4548
      %v4550 = vpop.f32.mrb[0].mxu0
      %4551 = vmatprep.mubr.bf16.mxu0 %v4013
      %4552 = vmatmul.mubr.bf16.gmra.mrb[0].mxu0 %v4012
      %v4553 = vpop.f32.mrb[0].mxu0
      %v4554 = vadd.f32 0.0, %v4553
      %v4555 = vpop.f32.mrb[0].mxu0
      %v4556 = vpop.f32.mrb[0].mxu0
      %v4557 = vadd.f32 0.0, %v4556
      %v4558 = vpop.f32.mrb[0].mxu0
      %4559 = vmatprep.mubr.bf16.mxu0 %v4019
      %4560 = vmatmul.mubr.bf16.gmra.mrb[0].mxu0 %v4018
      %v4561 = vpop.f32.mrb[0].mxu0
      %v4562 = vadd.f32 0.0, %v4561
      %v4563 = vpop.f32.mrb[0].mxu0
      %v4564 = vpop.f32.mrb[0].mxu0
      %v4565 = vadd.f32 0.0, %v4564
      %v4566 = vpop.f32.mrb[0].mxu0
      %4567 = vmatprep.mubr.bf16.mxu0 %v4025
      %4568 = vmatmul.mubr.bf16.gmra.mrb[0].mxu0 %v4024
      %v4569 = vpop.f32.mrb[0].mxu0
      %v4570 = vadd.f32 0.0, %v4569
      %v4571 = vpop.f32.mrb[0].mxu0
      %v4572 = vpop.f32.mrb[0].mxu0
      %v4573 = vadd.f32 0.0, %v4572
      %v4574 = vpop.f32.mrb[0].mxu0
      %4575 = vmatprep.mubr.bf16.mxu0 %v4031
      %4576 = vmatmul.mubr.bf16.gmra.mrb[0].mxu0 %v4030
      %v4577 = vpop.f32.mrb[0].mxu0
      %v4578 = vadd.f32 0.0, %v4577
      %v4579 = vpop.f32.mrb[0].mxu0
      %v4580 = vpop.f32.mrb[0].mxu0
      %v4581 = vadd.f32 0.0, %v4580
      %v4582 = vpop.f32.mrb[0].mxu0
      %4583 = vmatprep.mubr.bf16.mxu0 %v4037
      %4584 = vmatmul.mubr.bf16.gmra.mrb[0].mxu0 %v4036
      %v4585 = vpop.f32.mrb[0].mxu0
      %v4586 = vadd.f32 0.0, %v4585
      %v4587 = vpop.f32.mrb[0].mxu0
      %v4588 = vpop.f32.mrb[0].mxu0
      %v4589 = vadd.f32 0.0, %v4588
      %v4590 = vpop.f32.mrb[0].mxu0
      %4591 = vmatprep.mubr.bf16.mxu0 %v4043
      %4592 = vmatmul.mubr.bf16.gmra.mrb[0].mxu0 %v4042
      %v4593 = vpop.f32.mrb[0].mxu0
      %v4594 = vadd.f32 0.0, %v4593
      %v4595 = vpop.f32.mrb[0].mxu0
      %v4596 = vpop.f32.mrb[0].mxu0
      %v4597 = vadd.f32 0.0, %v4596
      %v4598 = vpop.f32.mrb[0].mxu0
      %4599 = vmatprep.mubr.bf16.mxu0 %v4049
      %4600 = vmatmul.mubr.bf16.gmra.mrb[0].mxu0 %v4048
      %v4601 = vpop.f32.mrb[0].mxu0
      %v4602 = vadd.f32 0.0, %v4601
      %v4603 = vpop.f32.mrb[0].mxu0
      %v4604 = vpop.f32.mrb[0].mxu0
      %v4605 = vadd.f32 0.0, %v4604
      %v4606 = vpop.f32.mrb[0].mxu0
      %4607 = vmatprep.mubr.bf16.mxu0 %v4055
      %4608 = vmatmul.mubr.bf16.gmra.mrb[0].mxu0 %v4054
      %v4609 = vpop.f32.mrb[0].mxu0
      %v4610 = vadd.f32 0.0, %v4609
      %v4611 = vpop.f32.mrb[0].mxu0
      %v4612 = vpop.f32.mrb[0].mxu0
      %v4613 = vadd.f32 0.0, %v4612
      %v4614 = vpop.f32.mrb[0].mxu0
      %4615 = vmatprep.mubr.bf16.mxu0 %v4061
      %4616 = vmatmul.mubr.bf16.gmra.mrb[0].mxu0 %v4060
      %v4617 = vpop.f32.mrb[0].mxu0
      %v4618 = vadd.f32 0.0, %v4617
      %v4619 = vpop.f32.mrb[0].mxu0
      %v4620 = vpop.f32.mrb[0].mxu0
      %v4621 = vadd.f32 0.0, %v4620
      %v4622 = vpop.f32.mrb[0].mxu0
      %4623 = vmatprep.mubr.bf16.mxu0 %v4067
      %4624 = vmatmul.mubr.bf16.gmra.mrb[0].mxu0 %v4066
      %v4625 = vpop.f32.mrb[0].mxu0
      %v4626 = vadd.f32 0.0, %v4625
      %v4627 = vpop.f32.mrb[0].mxu0
      %v4628 = vpop.f32.mrb[0].mxu0
      %v4629 = vadd.f32 0.0, %v4628
      %v4630 = vpop.f32.mrb[0].mxu0
      %4631 = vmatprep.mubr.bf16.mxu0 %v4073
      %4632 = vmatmul.mubr.bf16.gmra.mrb[0].mxu0 %v4072
      %v4633 = vpop.f32.mrb[0].mxu0
      %v4634 = vadd.f32 0.0, %v4633
      %v4635 = vpop.f32.mrb[0].mxu0
      %v4636 = vpop.f32.mrb[0].mxu0
      %v4637 = vadd.f32 0.0, %v4636
      %v4638 = vpop.f32.mrb[0].mxu0
      %4639 = vmatprep.mubr.bf16.mxu0 %v4079
      %4640 = vmatmul.mubr.bf16.gmra.mrb[0].mxu0 %v4078
      %v4641 = vpop.f32.mrb[0].mxu0
      %v4642 = vadd.f32 0.0, %v4641
      %v4643 = vpop.f32.mrb[0].mxu0
      %v4644 = vpop.f32.mrb[0].mxu0
      %v4645 = vadd.f32 0.0, %v4644
      %v4646 = vpop.f32.mrb[0].mxu0
      %4647 = vmatprep.mubr.bf16.mxu0 %v4085
      %4648 = vmatmul.mubr.bf16.gmra.mrb[0].mxu0 %v4084
      %v4649 = vpop.f32.mrb[0].mxu0
      %v4650 = vadd.f32 0.0, %v4649
      %v4651 = vpop.f32.mrb[0].mxu0
      %v4652 = vpop.f32.mrb[0].mxu0
      %v4653 = vadd.f32 0.0, %v4652
      %v4654 = vpop.f32.mrb[0].mxu0
      %4655 = vmatprep.mubr.bf16.mxu0 %v4091
      %4656 = vmatmul.mubr.bf16.gmra.mrb[0].mxu0 %v4090
      %v4657 = vpop.f32.mrb[0].mxu0
      %v4658 = vadd.f32 0.0, %v4657
      %v4659 = vpop.f32.mrb[0].mxu0
      %v4660 = vpop.f32.mrb[0].mxu0
      %v4661 = vadd.f32 0.0, %v4660
      %v4662 = vpop.f32.mrb[0].mxu0
      %4663 = vmatprep.mubr.bf16.mxu0 %v4097
      %4664 = vmatmul.mubr.bf16.gmra.mrb[0].mxu0 %v4096
      %v4665 = vpop.f32.mrb[0].mxu0
      %v4666 = vadd.f32 0.0, %v4665
      %v4667 = vpop.f32.mrb[0].mxu0
      %v4668 = vpop.f32.mrb[0].mxu0
      %v4669 = vadd.f32 0.0, %v4668
      %v4670 = vpop.f32.mrb[0].mxu0
      %4671 = vmatprep.mubr.bf16.mxu0 %v4103
      %4672 = vmatmul.mubr.bf16.gmra.mrb[0].mxu0 %v4102
      %v4673 = vpop.f32.mrb[0].mxu0
      %v4674 = vadd.f32 0.0, %v4673
      %v4675 = vpop.f32.mrb[0].mxu0
      %v4676 = vpop.f32.mrb[0].mxu0
      %v4677 = vadd.f32 0.0, %v4676
      %v4678 = vpop.f32.mrb[0].mxu0
      %4679 = vmatprep.mubr.bf16.mxu0 %v4109
      %4680 = vmatmul.mubr.bf16.gmra.mrb[0].mxu0 %v4108
      %v4681 = vpop.f32.mrb[0].mxu0
      %v4682 = vadd.f32 0.0, %v4681
      %v4683 = vpop.f32.mrb[0].mxu0
      %v4684 = vpop.f32.mrb[0].mxu0
      %v4685 = vadd.f32 0.0, %v4684
      %v4686 = vpop.f32.mrb[0].mxu0
      %4687 = vmatprep.mubr.bf16.mxu0 %v4115
      %4688 = vmatmul.mubr.bf16.gmra.mrb[0].mxu0 %v4114
      %v4689 = vpop.f32.mrb[0].mxu0
      %v4690 = vadd.f32 0.0, %v4689
      %v4691 = vpop.f32.mrb[0].mxu0
      %v4692 = vpop.f32.mrb[0].mxu0
      %v4693 = vadd.f32 0.0, %v4692
      %v4694 = vpop.f32.mrb[0].mxu0
      %4695 = vmatprep.mubr.bf16.mxu0 %v4121
      %4696 = vmatmul.mubr.bf16.gmra.mrb[0].mxu0 %v4120
      %v4697 = vpop.f32.mrb[0].mxu0
      %v4698 = vadd.f32 0.0, %v4697
      %v4699 = vpop.f32.mrb[0].mxu0
      %v4700 = vpop.f32.mrb[0].mxu0
      %v4701 = vadd.f32 0.0, %v4700
      %v4702 = vpop.f32.mrb[0].mxu0
      %4703 = vmatprep.mubr.bf16.mxu0 %v4127
      %4704 = vmatmul.mubr.bf16.gmra.mrb[0].mxu0 %v4126
      %v4705 = vpop.f32.mrb[0].mxu0
      %v4706 = vadd.f32 0.0, %v4705
      %v4707 = vpop.f32.mrb[0].mxu0
      %v4708 = vpop.f32.mrb[0].mxu0
      %v4709 = vadd.f32 0.0, %v4708
      %v4710 = vpop.f32.mrb[0].mxu0
      %4711 = vmatprep.mubr.bf16.mxu0 %v4133
      %4712 = vmatmul.mubr.bf16.gmra.mrb[0].mxu0 %v4132
      %v4713 = vpop.f32.mrb[0].mxu0
      %v4714 = vadd.f32 0.0, %v4713
      %v4715 = vpop.f32.mrb[0].mxu0
      %v4716 = vpop.f32.mrb[0].mxu0
      %v4717 = vadd.f32 0.0, %v4716
      %v4718 = vpop.f32.mrb[0].mxu0
      %4719 = vmatprep.mubr.bf16.mxu0 %v4139
      %4720 = vmatmul.mubr.bf16.gmra.mrb[0].mxu0 %v4138
      %v4721 = vpop.f32.mrb[0].mxu0
      %v4722 = vadd.f32 0.0, %v4721
      %v4723 = vpop.f32.mrb[0].mxu0
      %v4724 = vpop.f32.mrb[0].mxu0
      %v4725 = vadd.f32 0.0, %v4724
      %v4726 = vpop.f32.mrb[0].mxu0
      %4727 = vmatprep.mubr.bf16.mxu0 %v4145
      %4728 = vmatmul.mubr.bf16.gmra.mrb[0].mxu0 %v4144
      %v4729 = vpop.f32.mrb[0].mxu0
      %v4730 = vadd.f32 0.0, %v4729
      %v4731 = vpop.f32.mrb[0].mxu0
      %v4732 = vpop.f32.mrb[0].mxu0
      %v4733 = vadd.f32 0.0, %v4732
      %v4734 = vpop.f32.mrb[0].mxu0
      %4735 = vmatprep.mubr.bf16.mxu0 %v4151
      %4736 = vmatmul.mubr.bf16.gmra.mrb[0].mxu0 %v4150
      %v4737 = vpop.f32.mrb[0].mxu0
      %v4738 = vadd.f32 0.0, %v4737
      %v4739 = vpop.f32.mrb[0].mxu0
      %v4740 = vpop.f32.mrb[0].mxu0
      %v4741 = vadd.f32 0.0, %v4740
      %v4742 = vpop.f32.mrb[0].mxu0
      %4743 = vmatprep.mubr.bf16.mxu0 %v4157
      %4744 = vmatmul.mubr.bf16.gmra.mrb[0].mxu0 %v4156
      %v4745 = vpop.f32.mrb[0].mxu0
      %v4746 = vadd.f32 0.0, %v4745
      %v4747 = vpop.f32.mrb[0].mxu0
      %v4748 = vpop.f32.mrb[0].mxu0
      %v4749 = vadd.f32 0.0, %v4748
      %v4750 = vpop.f32.mrb[0].mxu0
      %4751 = vmatprep.mubr.bf16.mxu0 %v4163
      %4752 = vmatmul.mubr.bf16.gmra.mrb[0].mxu0 %v4162
      %v4753 = vpop.f32.mrb[0].mxu0
      %v4754 = vadd.f32 0.0, %v4753
      %v4755 = vpop.f32.mrb[0].mxu0
      %v4756 = vpop.f32.mrb[0].mxu0
      %v4757 = vadd.f32 0.0, %v4756
      %v4758 = vpop.f32.mrb[0].mxu0
      %4759 = vmatprep.mubr.bf16.mxu0 %v4169
      %4760 = vmatmul.mubr.bf16.gmra.mrb[0].mxu0 %v4168
      %v4761 = vpop.f32.mrb[0].mxu0
      %v4762 = vadd.f32 0.0, %v4761
      %v4763 = vpop.f32.mrb[0].mxu0
      %v4764 = vpop.f32.mrb[0].mxu0
      %v4765 = vadd.f32 0.0, %v4764
      %v4766 = vpop.f32.mrb[0].mxu0
      %4767 = vmatprep.mubr.bf16.mxu0 %v4175
      %4768 = vmatmul.mubr.bf16.gmra.mrb[0].mxu0 %v4174
      %v4769 = vpop.f32.mrb[0].mxu0
      %v4770 = vadd.f32 0.0, %v4769
      %v4771 = vpop.f32.mrb[0].mxu0
      %v4772 = vpop.f32.mrb[0].mxu0
      %v4773 = vadd.f32 0.0, %v4772
      %v4774 = vpop.f32.mrb[0].mxu0
      %4775 = vmatprep.mubr.bf16.mxu0 %v4181
      %4776 = vmatmul.mubr.bf16.gmra.mrb[0].mxu0 %v4180
      %v4777 = vpop.f32.mrb[0].mxu0
      %v4778 = vadd.f32 0.0, %v4777
      %v4779 = vpop.f32.mrb[0].mxu0
      %v4780 = vpop.f32.mrb[0].mxu0
      %v4781 = vadd.f32 0.0, %v4780
      %v4782 = vpop.f32.mrb[0].mxu0
      %4783 = vmatprep.mubr.bf16.mxu0 %v4187
      %4784 = vmatmul.mubr.bf16.gmra.mrb[0].mxu0 %v4186
      %v4785 = vpop.f32.mrb[0].mxu0
      %v4786 = vadd.f32 0.0, %v4785
      %v4787 = vpop.f32.mrb[0].mxu0
      %v4788 = vpop.f32.mrb[0].mxu0
      %v4789 = vadd.f32 0.0, %v4788
      %v4790 = vpop.f32.mrb[0].mxu0
      %4791 = vmatprep.mubr.bf16.mxu0 %v4193
      %4792 = vmatmul.mubr.bf16.gmra.mrb[0].mxu0 %v4192
      %v4793 = vpop.f32.mrb[0].mxu0
      %v4794 = vadd.f32 0.0, %v4793
      %v4795 = vpop.f32.mrb[0].mxu0
      %v4796 = vpop.f32.mrb[0].mxu0
      %v4797 = vadd.f32 0.0, %v4796
      %v4798 = vpop.f32.mrb[0].mxu0
      %4799 = vmatprep.mubr.bf16.mxu0 %v4199
      %4800 = vmatmul.mubr.bf16.gmra.mrb[0].mxu0 %v4198
      %v4801 = vpop.f32.mrb[0].mxu0
      %v4802 = vadd.f32 0.0, %v4801
      %v4803 = vpop.f32.mrb[0].mxu0
      %v4804 = vpop.f32.mrb[0].mxu0
      %v4805 = vadd.f32 0.0, %v4804
      %v4806 = vpop.f32.mrb[0].mxu0
      %4807 = vmatprep.mubr.bf16.mxu0 %v4205
      %4808 = vmatmul.mubr.bf16.gmra.mrb[0].mxu0 %v4204
      %v4809 = vpop.f32.mrb[0].mxu0
      %v4810 = vadd.f32 0.0, %v4809
      %v4811 = vpop.f32.mrb[0].mxu0
      %v4812 = vpop.f32.mrb[0].mxu0
      %v4813 = vadd.f32 0.0, %v4812
      %v4814 = vpop.f32.mrb[0].mxu0
      %4815 = vmatprep.mubr.bf16.mxu0 %v4211
      %4816 = vmatmul.mubr.bf16.gmra.mrb[0].mxu0 %v4210
      %v4817 = vpop.f32.mrb[0].mxu0
      %v4818 = vadd.f32 0.0, %v4817
      %v4819 = vpop.f32.mrb[0].mxu0
      %v4820 = vpop.f32.mrb[0].mxu0
      %v4821 = vadd.f32 0.0, %v4820
      %v4822 = vpop.f32.mrb[0].mxu0
      %4823 = vmatprep.mubr.bf16.mxu0 %v4217
      %4824 = vmatmul.mubr.bf16.gmra.mrb[0].mxu0 %v4216
      %v4825 = vpop.f32.mrb[0].mxu0
      %v4826 = vadd.f32 0.0, %v4825
      %v4827 = vpop.f32.mrb[0].mxu0
      %v4828 = vpop.f32.mrb[0].mxu0
      %v4829 = vadd.f32 0.0, %v4828
      %v4830 = vpop.f32.mrb[0].mxu0
      %4831 = vdwg.mxu0
      %4832 = vmatprep.subr.bf16.mxu0 0
      %4833 = vmatpush1.bf16.msra.mxu0 %v3115
      %4834 = vmatprep.subr.bf16.mxu0 0
      %4835 = vmatpush1.bf16.msra.mxu0 %v3116
      %4836 = vmatprep.subr.bf16.mxu0 0
      %4837 = vmatpush1.bf16.msra.mxu0 %v3117
      %4838 = vmatprep.subr.bf16.mxu0 0
      %4839 = vmatpush1.bf16.msra.mxu0 %v3118
      %4840 = vmatprep.subr.bf16.mxu0 0
      %4841 = vmatpush1.bf16.msra.mxu0 %v3119
      %4842 = vmatprep.subr.bf16.mxu0 0
      %4843 = vmatpush1.bf16.msra.mxu0 %v3120
      %4844 = vmatprep.subr.bf16.mxu0 0
      %4845 = vmatpush1.bf16.msra.mxu0 %v3121
      %4846 = vmatprep.subr.bf16.mxu0 0
      %4847 = vmatpush1.bf16.msra.mxu0 %v3122
      %4848 = vmatprep.subr.bf16.mxu0 0
      %4849 = vmatpush1.bf16.msra.mxu0 %v3123
      %4850 = vmatprep.subr.bf16.mxu0 0
      %4851 = vmatpush1.bf16.msra.mxu0 %v3124
      %4852 = vmatprep.subr.bf16.mxu0 0
      %4853 = vmatpush1.bf16.msra.mxu0 %v3125
      %4854 = vmatprep.subr.bf16.mxu0 0
      %4855 = vmatpush1.bf16.msra.mxu0 %v3126
      %4856 = vmatprep.subr.bf16.mxu0 0
      %4857 = vmatpush1.bf16.msra.mxu0 %v3127
      %4858 = vmatprep.subr.bf16.mxu0 0
      %4859 = vmatpush1.bf16.msra.mxu0 %v3128
      %4860 = vmatprep.subr.bf16.mxu0 0
      %4861 = vmatpush1.bf16.msra.mxu0 %v3129
      %4862 = vmatprep.subr.bf16.mxu0 0
      %4863 = vmatpush1.bf16.msra.mxu0 %v3130
      %4864 = vmatprep.mubr.bf16.mxu0 %v4009
      %4865 = vmatmul.mubr.bf16.gmra.mrb[0].mxu0 %v4008
      %v4866 = vpop.f32.mrb[0].mxu0
      %v4867 = vadd.f32 %v4546, %v4866
      %v4868 = vpop.f32.mrb[0].mxu0
      %v4869 = vpop.f32.mrb[0].mxu0
      %v4870 = vadd.f32 %v4549, %v4869
      %v4871 = vpop.f32.mrb[0].mxu0
      %4872 = vmatprep.mubr.bf16.mxu0 %v4015
      %4873 = vmatmul.mubr.bf16.gmra.mrb[0].mxu0 %v4014
      %v4874 = vpop.f32.mrb[0].mxu0
      %v4875 = vadd.f32 %v4554, %v4874
      %v4876 = vpop.f32.mrb[0].mxu0
      %v4877 = vpop.f32.mrb[0].mxu0
      %v4878 = vadd.f32 %v4557, %v4877
      %v4879 = vpop.f32.mrb[0].mxu0
      %4880 = vmatprep.mubr.bf16.mxu0 %v4021
      %4881 = vmatmul.mubr.bf16.gmra.mrb[0].mxu0 %v4020
      %v4882 = vpop.f32.mrb[0].mxu0
      %v4883 = vadd.f32 %v4562, %v4882
      %v4884 = vpop.f32.mrb[0].mxu0
      %v4885 = vpop.f32.mrb[0].mxu0
      %v4886 = vadd.f32 %v4565, %v4885
      %v4887 = vpop.f32.mrb[0].mxu0
      %4888 = vmatprep.mubr.bf16.mxu0 %v4027
      %4889 = vmatmul.mubr.bf16.gmra.mrb[0].mxu0 %v4026
      %v4890 = vpop.f32.mrb[0].mxu0
      %v4891 = vadd.f32 %v4570, %v4890
      %v4892 = vpop.f32.mrb[0].mxu0
      %v4893 = vpop.f32.mrb[0].mxu0
      %v4894 = vadd.f32 %v4573, %v4893
      %v4895 = vpop.f32.mrb[0].mxu0
      %4896 = vmatprep.mubr.bf16.mxu0 %v4033
      %4897 = vmatmul.mubr.bf16.gmra.mrb[0].mxu0 %v4032
      %v4898 = vpop.f32.mrb[0].mxu0
      %v4899 = vadd.f32 %v4578, %v4898
      %v4900 = vpop.f32.mrb[0].mxu0
      %v4901 = vpop.f32.mrb[0].mxu0
      %v4902 = vadd.f32 %v4581, %v4901
      %v4903 = vpop.f32.mrb[0].mxu0
      %4904 = vmatprep.mubr.bf16.mxu0 %v4039
      %4905 = vmatmul.mubr.bf16.gmra.mrb[0].mxu0 %v4038
      %v4906 = vpop.f32.mrb[0].mxu0
      %v4907 = vadd.f32 %v4586, %v4906
      %v4908 = vpop.f32.mrb[0].mxu0
      %v4909 = vpop.f32.mrb[0].mxu0
      %v4910 = vadd.f32 %v4589, %v4909
      %v4911 = vpop.f32.mrb[0].mxu0
      %4912 = vmatprep.mubr.bf16.mxu0 %v4045
      %4913 = vmatmul.mubr.bf16.gmra.mrb[0].mxu0 %v4044
      %v4914 = vpop.f32.mrb[0].mxu0
      %v4915 = vadd.f32 %v4594, %v4914
      %v4916 = vpop.f32.mrb[0].mxu0
      %v4917 = vpop.f32.mrb[0].mxu0
      %v4918 = vadd.f32 %v4597, %v4917
      %v4919 = vpop.f32.mrb[0].mxu0
      %4920 = vmatprep.mubr.bf16.mxu0 %v4051
      %4921 = vmatmul.mubr.bf16.gmra.mrb[0].mxu0 %v4050
      %v4922 = vpop.f32.mrb[0].mxu0
      %v4923 = vadd.f32 %v4602, %v4922
      %v4924 = vpop.f32.mrb[0].mxu0
      %v4925 = vpop.f32.mrb[0].mxu0
      %v4926 = vadd.f32 %v4605, %v4925
      %v4927 = vpop.f32.mrb[0].mxu0
      %4928 = vmatprep.mubr.bf16.mxu0 %v4057
      %4929 = vmatmul.mubr.bf16.gmra.mrb[0].mxu0 %v4056
      %v4930 = vpop.f32.mrb[0].mxu0
      %v4931 = vadd.f32 %v4610, %v4930
      %v4932 = vpop.f32.mrb[0].mxu0
      %v4933 = vpop.f32.mrb[0].mxu0
      %v4934 = vadd.f32 %v4613, %v4933
      %v4935 = vpop.f32.mrb[0].mxu0
      %4936 = vmatprep.mubr.bf16.mxu0 %v4063
      %4937 = vmatmul.mubr.bf16.gmra.mrb[0].mxu0 %v4062
      %v4938 = vpop.f32.mrb[0].mxu0
      %v4939 = vadd.f32 %v4618, %v4938
      %v4940 = vpop.f32.mrb[0].mxu0
      %v4941 = vpop.f32.mrb[0].mxu0
      %v4942 = vadd.f32 %v4621, %v4941
      %v4943 = vpop.f32.mrb[0].mxu0
      %4944 = vmatprep.mubr.bf16.mxu0 %v4069
      %4945 = vmatmul.mubr.bf16.gmra.mrb[0].mxu0 %v4068
      %v4946 = vpop.f32.mrb[0].mxu0
      %v4947 = vadd.f32 %v4626, %v4946
      %v4948 = vpop.f32.mrb[0].mxu0
      %v4949 = vpop.f32.mrb[0].mxu0
      %v4950 = vadd.f32 %v4629, %v4949
      %v4951 = vpop.f32.mrb[0].mxu0
      %4952 = vmatprep.mubr.bf16.mxu0 %v4075
      %4953 = vmatmul.mubr.bf16.gmra.mrb[0].mxu0 %v4074
      %v4954 = vpop.f32.mrb[0].mxu0
      %v4955 = vadd.f32 %v4634, %v4954
      %v4956 = vpop.f32.mrb[0].mxu0
      %v4957 = vpop.f32.mrb[0].mxu0
      %v4958 = vadd.f32 %v4637, %v4957
      %v4959 = vpop.f32.mrb[0].mxu0
      %4960 = vmatprep.mubr.bf16.mxu0 %v4081
      %4961 = vmatmul.mubr.bf16.gmra.mrb[0].mxu0 %v4080
      %v4962 = vpop.f32.mrb[0].mxu0
      %v4963 = vadd.f32 %v4642, %v4962
      %v4964 = vpop.f32.mrb[0].mxu0
      %v4965 = vpop.f32.mrb[0].mxu0
      %v4966 = vadd.f32 %v4645, %v4965
      %v4967 = vpop.f32.mrb[0].mxu0
      %4968 = vmatprep.mubr.bf16.mxu0 %v4087
      %4969 = vmatmul.mubr.bf16.gmra.mrb[0].mxu0 %v4086
      %v4970 = vpop.f32.mrb[0].mxu0
      %v4971 = vadd.f32 %v4650, %v4970
      %v4972 = vpop.f32.mrb[0].mxu0
      %v4973 = vpop.f32.mrb[0].mxu0
      %v4974 = vadd.f32 %v4653, %v4973
      %v4975 = vpop.f32.mrb[0].mxu0
      %4976 = vmatprep.mubr.bf16.mxu0 %v4093
      %4977 = vmatmul.mubr.bf16.gmra.mrb[0].mxu0 %v4092
      %v4978 = vpop.f32.mrb[0].mxu0
      %v4979 = vadd.f32 %v4658, %v4978
      %v4980 = vpop.f32.mrb[0].mxu0
      %v4981 = vpop.f32.mrb[0].mxu0
      %v4982 = vadd.f32 %v4661, %v4981
      %v4983 = vpop.f32.mrb[0].mxu0
      %4984 = vmatprep.mubr.bf16.mxu0 %v4099
      %4985 = vmatmul.mubr.bf16.gmra.mrb[0].mxu0 %v4098
      %v4986 = vpop.f32.mrb[0].mxu0
      %v4987 = vadd.f32 %v4666, %v4986
      %v4988 = vpop.f32.mrb[0].mxu0
      %v4989 = vpop.f32.mrb[0].mxu0
      %v4990 = vadd.f32 %v4669, %v4989
      %v4991 = vpop.f32.mrb[0].mxu0
      %4992 = vmatprep.mubr.bf16.mxu0 %v4105
      %4993 = vmatmul.mubr.bf16.gmra.mrb[0].mxu0 %v4104
      %v4994 = vpop.f32.mrb[0].mxu0
      %v4995 = vadd.f32 %v4674, %v4994
      %v4996 = vpop.f32.mrb[0].mxu0
      %v4997 = vpop.f32.mrb[0].mxu0
      %v4998 = vadd.f32 %v4677, %v4997
      %v4999 = vpop.f32.mrb[0].mxu0
      %5000 = vmatprep.mubr.bf16.mxu0 %v4111
      %5001 = vmatmul.mubr.bf16.gmra.mrb[0].mxu0 %v4110
      %v5002 = vpop.f32.mrb[0].mxu0
      %v5003 = vadd.f32 %v4682, %v5002
      %v5004 = vpop.f32.mrb[0].mxu0
      %v5005 = vpop.f32.mrb[0].mxu0
      %v5006 = vadd.f32 %v4685, %v5005
      %v5007 = vpop.f32.mrb[0].mxu0
      %5008 = vmatprep.mubr.bf16.mxu0 %v4117
      %5009 = vmatmul.mubr.bf16.gmra.mrb[0].mxu0 %v4116
      %v5010 = vpop.f32.mrb[0].mxu0
      %v5011 = vadd.f32 %v4690, %v5010
      %v5012 = vpop.f32.mrb[0].mxu0
      %v5013 = vpop.f32.mrb[0].mxu0
      %v5014 = vadd.f32 %v4693, %v5013
      %v5015 = vpop.f32.mrb[0].mxu0
      %5016 = vmatprep.mubr.bf16.mxu0 %v4123
      %5017 = vmatmul.mubr.bf16.gmra.mrb[0].mxu0 %v4122
      %v5018 = vpop.f32.mrb[0].mxu0
      %v5019 = vadd.f32 %v4698, %v5018
      %v5020 = vpop.f32.mrb[0].mxu0
      %v5021 = vpop.f32.mrb[0].mxu0
      %v5022 = vadd.f32 %v4701, %v5021
      %v5023 = vpop.f32.mrb[0].mxu0
      %5024 = vmatprep.mubr.bf16.mxu0 %v4129
      %5025 = vmatmul.mubr.bf16.gmra.mrb[0].mxu0 %v4128
      %v5026 = vpop.f32.mrb[0].mxu0
      %v5027 = vadd.f32 %v4706, %v5026
      %v5028 = vpop.f32.mrb[0].mxu0
      %v5029 = vpop.f32.mrb[0].mxu0
      %v5030 = vadd.f32 %v4709, %v5029
      %v5031 = vpop.f32.mrb[0].mxu0
      %5032 = vmatprep.mubr.bf16.mxu0 %v4135
      %5033 = vmatmul.mubr.bf16.gmra.mrb[0].mxu0 %v4134
      %v5034 = vpop.f32.mrb[0].mxu0
      %v5035 = vadd.f32 %v4714, %v5034
      %v5036 = vpop.f32.mrb[0].mxu0
      %v5037 = vpop.f32.mrb[0].mxu0
      %v5038 = vadd.f32 %v4717, %v5037
      %v5039 = vpop.f32.mrb[0].mxu0
      %5040 = vmatprep.mubr.bf16.mxu0 %v4141
      %5041 = vmatmul.mubr.bf16.gmra.mrb[0].mxu0 %v4140
      %v5042 = vpop.f32.mrb[0].mxu0
      %v5043 = vadd.f32 %v4722, %v5042
      %v5044 = vpop.f32.mrb[0].mxu0
      %v5045 = vpop.f32.mrb[0].mxu0
      %v5046 = vadd.f32 %v4725, %v5045
      %v5047 = vpop.f32.mrb[0].mxu0
      %5048 = vmatprep.mubr.bf16.mxu0 %v4147
      %5049 = vmatmul.mubr.bf16.gmra.mrb[0].mxu0 %v4146
      %v5050 = vpop.f32.mrb[0].mxu0
      %v5051 = vadd.f32 %v4730, %v5050
      %v5052 = vpop.f32.mrb[0].mxu0
      %v5053 = vpop.f32.mrb[0].mxu0
      %v5054 = vadd.f32 %v4733, %v5053
      %v5055 = vpop.f32.mrb[0].mxu0
      %5056 = vmatprep.mubr.bf16.mxu0 %v4153
      %5057 = vmatmul.mubr.bf16.gmra.mrb[0].mxu0 %v4152
      %v5058 = vpop.f32.mrb[0].mxu0
      %v5059 = vadd.f32 %v4738, %v5058
      %v5060 = vpop.f32.mrb[0].mxu0
      %v5061 = vpop.f32.mrb[0].mxu0
      %v5062 = vadd.f32 %v4741, %v5061
      %v5063 = vpop.f32.mrb[0].mxu0
      %5064 = vmatprep.mubr.bf16.mxu0 %v4159
      %5065 = vmatmul.mubr.bf16.gmra.mrb[0].mxu0 %v4158
      %v5066 = vpop.f32.mrb[0].mxu0
      %v5067 = vadd.f32 %v4746, %v5066
      %v5068 = vpop.f32.mrb[0].mxu0
      %v5069 = vpop.f32.mrb[0].mxu0
      %v5070 = vadd.f32 %v4749, %v5069
      %v5071 = vpop.f32.mrb[0].mxu0
      %5072 = vmatprep.mubr.bf16.mxu0 %v4165
      %5073 = vmatmul.mubr.bf16.gmra.mrb[0].mxu0 %v4164
      %v5074 = vpop.f32.mrb[0].mxu0
      %v5075 = vadd.f32 %v4754, %v5074
      %v5076 = vpop.f32.mrb[0].mxu0
      %v5077 = vpop.f32.mrb[0].mxu0
      %v5078 = vadd.f32 %v4757, %v5077
      %v5079 = vpop.f32.mrb[0].mxu0
      %5080 = vmatprep.mubr.bf16.mxu0 %v4171
      %5081 = vmatmul.mubr.bf16.gmra.mrb[0].mxu0 %v4170
      %v5082 = vpop.f32.mrb[0].mxu0
      %v5083 = vadd.f32 %v4762, %v5082
      %v5084 = vpop.f32.mrb[0].mxu0
      %v5085 = vpop.f32.mrb[0].mxu0
      %v5086 = vadd.f32 %v4765, %v5085
      %v5087 = vpop.f32.mrb[0].mxu0
      %5088 = vmatprep.mubr.bf16.mxu0 %v4177
      %5089 = vmatmul.mubr.bf16.gmra.mrb[0].mxu0 %v4176
      %v5090 = vpop.f32.mrb[0].mxu0
      %v5091 = vadd.f32 %v4770, %v5090
      %v5092 = vpop.f32.mrb[0].mxu0
      %v5093 = vpop.f32.mrb[0].mxu0
      %v5094 = vadd.f32 %v4773, %v5093
      %v5095 = vpop.f32.mrb[0].mxu0
      %5096 = vmatprep.mubr.bf16.mxu0 %v4183
      %5097 = vmatmul.mubr.bf16.gmra.mrb[0].mxu0 %v4182
      %v5098 = vpop.f32.mrb[0].mxu0
      %v5099 = vadd.f32 %v4778, %v5098
      %v5100 = vpop.f32.mrb[0].mxu0
      %v5101 = vpop.f32.mrb[0].mxu0
      %v5102 = vadd.f32 %v4781, %v5101
      %v5103 = vpop.f32.mrb[0].mxu0
      %5104 = vmatprep.mubr.bf16.mxu0 %v4189
      %5105 = vmatmul.mubr.bf16.gmra.mrb[0].mxu0 %v4188
      %v5106 = vpop.f32.mrb[0].mxu0
      %v5107 = vadd.f32 %v4786, %v5106
      %v5108 = vpop.f32.mrb[0].mxu0
      %v5109 = vpop.f32.mrb[0].mxu0
      %v5110 = vadd.f32 %v4789, %v5109
      %v5111 = vpop.f32.mrb[0].mxu0
      %5112 = vmatprep.mubr.bf16.mxu0 %v4195
      %5113 = vmatmul.mubr.bf16.gmra.mrb[0].mxu0 %v4194
      %v5114 = vpop.f32.mrb[0].mxu0
      %v5115 = vadd.f32 %v4794, %v5114
      %v5116 = vpop.f32.mrb[0].mxu0
      %v5117 = vpop.f32.mrb[0].mxu0
      %v5118 = vadd.f32 %v4797, %v5117
      %v5119 = vpop.f32.mrb[0].mxu0
      %5120 = vmatprep.mubr.bf16.mxu0 %v4201
      %5121 = vmatmul.mubr.bf16.gmra.mrb[0].mxu0 %v4200
      %v5122 = vpop.f32.mrb[0].mxu0
      %v5123 = vadd.f32 %v4802, %v5122
      %v5124 = vpop.f32.mrb[0].mxu0
      %v5125 = vpop.f32.mrb[0].mxu0
      %v5126 = vadd.f32 %v4805, %v5125
      %v5127 = vpop.f32.mrb[0].mxu0
      %5128 = vmatprep.mubr.bf16.mxu0 %v4207
      %5129 = vmatmul.mubr.bf16.gmra.mrb[0].mxu0 %v4206
      %v5130 = vpop.f32.mrb[0].mxu0
      %v5131 = vadd.f32 %v4810, %v5130
      %v5132 = vpop.f32.mrb[0].mxu0
      %v5133 = vpop.f32.mrb[0].mxu0
      %v5134 = vadd.f32 %v4813, %v5133
      %v5135 = vpop.f32.mrb[0].mxu0
      %5136 = vmatprep.mubr.bf16.mxu0 %v4213
      %5137 = vmatmul.mubr.bf16.gmra.mrb[0].mxu0 %v4212
      %v5138 = vpop.f32.mrb[0].mxu0
      %v5139 = vadd.f32 %v4818, %v5138
      %v5140 = vpop.f32.mrb[0].mxu0
      %v5141 = vpop.f32.mrb[0].mxu0
      %v5142 = vadd.f32 %v4821, %v5141
      %v5143 = vpop.f32.mrb[0].mxu0
      %5144 = vmatprep.mubr.bf16.mxu0 %v4219
      %5145 = vmatmul.mubr.bf16.gmra.mrb[0].mxu0 %v4218
      %v5146 = vpop.f32.mrb[0].mxu0
      %v5147 = vadd.f32 %v4826, %v5146
      %v5148 = vpop.f32.mrb[0].mxu0
      %v5149 = vpop.f32.mrb[0].mxu0
      %v5150 = vadd.f32 %v4829, %v5149
      %v5151 = vpop.f32.mrb[0].mxu0
      %5152 = vdwg.mxu0
      %5153 = vmatprep.subr.bf16.mxu0 0
      %5154 = vmatpush1.bf16.msra.mxu0 %v3131
      %5155 = vmatprep.subr.bf16.mxu0 0
      %5156 = vmatpush1.bf16.msra.mxu0 %v3132
      %5157 = vmatprep.subr.bf16.mxu0 0
      %5158 = vmatpush1.bf16.msra.mxu0 %v3133
      %5159 = vmatprep.subr.bf16.mxu0 0
      %5160 = vmatpush1.bf16.msra.mxu0 %v3134
      %5161 = vmatprep.subr.bf16.mxu0 0
      %5162 = vmatpush1.bf16.msra.mxu0 %v3135
      %5163 = vmatprep.subr.bf16.mxu0 0
      %5164 = vmatpush1.bf16.msra.mxu0 %v3136
      %5165 = vmatprep.subr.bf16.mxu0 0
      %5166 = vmatpush1.bf16.msra.mxu0 %v3137
      %5167 = vmatprep.subr.bf16.mxu0 0
      %5168 = vmatpush1.bf16.msra.mxu0 %v3138
      %5169 = vmatprep.subr.bf16.mxu0 0
      %5170 = vmatpush1.bf16.msra.mxu0 %v3139
      %5171 = vmatprep.subr.bf16.mxu0 0
      %5172 = vmatpush1.bf16.msra.mxu0 %v3140
      %5173 = vmatprep.subr.bf16.mxu0 0
      %5174 = vmatpush1.bf16.msra.mxu0 %v3141
      %5175 = vmatprep.subr.bf16.mxu0 0
      %5176 = vmatpush1.bf16.msra.mxu0 0
      %5177 = vmatprep.subr.bf16.mxu0 0
      %5178 = vmatpush1.bf16.msra.mxu0 0
      %5179 = vmatprep.subr.bf16.mxu0 0
      %5180 = vmatpush1.bf16.msra.mxu0 0
      %5181 = vmatprep.subr.bf16.mxu0 0
      %5182 = vmatpush1.bf16.msra.mxu0 0
      %5183 = vmatprep.subr.bf16.mxu0 0
      %5184 = vmatpush1.bf16.msra.mxu0 0
      %5185 = vmatprep.mubr.bf16.mxu0 %v4404
      %5186 = vmatmul.mubr.bf16.gmra.mrb[0].mxu0 %v4010
      %v5187 = vpop.f32.mrb[0].mxu0
      %v5188 = vadd.f32 %v4867, %v5187
      %v5189 = vpop.f32.mrb[0].mxu0
      %v5190 = vpop.f32.mrb[0].mxu0
      %v5191 = vadd.f32 %v4870, %v5190
      %v5192 = vpop.f32.mrb[0].mxu0
      %5193 = vmatprep.mubr.bf16.mxu0 %v4407
      %5194 = vmatmul.mubr.bf16.gmra.mrb[0].mxu0 %v4016
      %v5195 = vpop.f32.mrb[0].mxu0
      %v5196 = vadd.f32 %v4875, %v5195
      %v5197 = vpop.f32.mrb[0].mxu0
      %v5198 = vpop.f32.mrb[0].mxu0
      %v5199 = vadd.f32 %v4878, %v5198
      %v5200 = vpop.f32.mrb[0].mxu0
      %5201 = vmatprep.mubr.bf16.mxu0 %v4410
      %5202 = vmatmul.mubr.bf16.gmra.mrb[0].mxu0 %v4022
      %v5203 = vpop.f32.mrb[0].mxu0
      %v5204 = vadd.f32 %v4883, %v5203
      %v5205 = vpop.f32.mrb[0].mxu0
      %v5206 = vpop.f32.mrb[0].mxu0
      %v5207 = vadd.f32 %v4886, %v5206
      %v5208 = vpop.f32.mrb[0].mxu0
      %5209 = vmatprep.mubr.bf16.mxu0 %v4413
      %5210 = vmatmul.mubr.bf16.gmra.mrb[0].mxu0 %v4028
      %v5211 = vpop.f32.mrb[0].mxu0
      %v5212 = vadd.f32 %v4891, %v5211
      %v5213 = vpop.f32.mrb[0].mxu0
      %v5214 = vpop.f32.mrb[0].mxu0
      %v5215 = vadd.f32 %v4894, %v5214
      %v5216 = vpop.f32.mrb[0].mxu0
      %5217 = vmatprep.mubr.bf16.mxu0 %v4416
      %5218 = vmatmul.mubr.bf16.gmra.mrb[0].mxu0 %v4034
      %v5219 = vpop.f32.mrb[0].mxu0
      %v5220 = vadd.f32 %v4899, %v5219
      %v5221 = vpop.f32.mrb[0].mxu0
      %v5222 = vpop.f32.mrb[0].mxu0
      %v5223 = vadd.f32 %v4902, %v5222
      %v5224 = vpop.f32.mrb[0].mxu0
      %5225 = vmatprep.mubr.bf16.mxu0 %v4419
      %5226 = vmatmul.mubr.bf16.gmra.mrb[0].mxu0 %v4040
      %v5227 = vpop.f32.mrb[0].mxu0
      %v5228 = vadd.f32 %v4907, %v5227
      %v5229 = vpop.f32.mrb[0].mxu0
      %v5230 = vpop.f32.mrb[0].mxu0
      %v5231 = vadd.f32 %v4910, %v5230
      %v5232 = vpop.f32.mrb[0].mxu0
      %5233 = vmatprep.mubr.bf16.mxu0 %v4422
      %5234 = vmatmul.mubr.bf16.gmra.mrb[0].mxu0 %v4046
      %v5235 = vpop.f32.mrb[0].mxu0
      %v5236 = vadd.f32 %v4915, %v5235
      %v5237 = vpop.f32.mrb[0].mxu0
      %v5238 = vpop.f32.mrb[0].mxu0
      %v5239 = vadd.f32 %v4918, %v5238
      %v5240 = vpop.f32.mrb[0].mxu0
      %5241 = vmatprep.mubr.bf16.mxu0 %v4425
      %5242 = vmatmul.mubr.bf16.gmra.mrb[0].mxu0 %v4052
      %v5243 = vpop.f32.mrb[0].mxu0
      %v5244 = vadd.f32 %v4923, %v5243
      %v5245 = vpop.f32.mrb[0].mxu0
      %v5246 = vpop.f32.mrb[0].mxu0
      %v5247 = vadd.f32 %v4926, %v5246
      %v5248 = vpop.f32.mrb[0].mxu0
      %5249 = vmatprep.mubr.bf16.mxu0 %v4428
      %5250 = vmatmul.mubr.bf16.gmra.mrb[0].mxu0 %v4058
      %v5251 = vpop.f32.mrb[0].mxu0
      %v5252 = vadd.f32 %v4931, %v5251
      %v5253 = vpop.f32.mrb[0].mxu0
      %v5254 = vpop.f32.mrb[0].mxu0
      %v5255 = vadd.f32 %v4934, %v5254
      %v5256 = vpop.f32.mrb[0].mxu0
      %5257 = vmatprep.mubr.bf16.mxu0 %v4431
      %5258 = vmatmul.mubr.bf16.gmra.mrb[0].mxu0 %v4064
      %v5259 = vpop.f32.mrb[0].mxu0
      %v5260 = vadd.f32 %v4939, %v5259
      %v5261 = vpop.f32.mrb[0].mxu0
      %v5262 = vpop.f32.mrb[0].mxu0
      %v5263 = vadd.f32 %v4942, %v5262
      %v5264 = vpop.f32.mrb[0].mxu0
      %5265 = vmatprep.mubr.bf16.mxu0 %v4434
      %5266 = vmatmul.mubr.bf16.gmra.mrb[0].mxu0 %v4070
      %v5267 = vpop.f32.mrb[0].mxu0
      %v5268 = vadd.f32 %v4947, %v5267
      %v5269 = vpop.f32.mrb[0].mxu0
      %v5270 = vpop.f32.mrb[0].mxu0
      %v5271 = vadd.f32 %v4950, %v5270
      %v5272 = vpop.f32.mrb[0].mxu0
      %5273 = vmatprep.mubr.bf16.mxu0 %v4437
      %5274 = vmatmul.mubr.bf16.gmra.mrb[0].mxu0 %v4076
      %v5275 = vpop.f32.mrb[0].mxu0
      %v5276 = vadd.f32 %v4955, %v5275
      %v5277 = vpop.f32.mrb[0].mxu0
      %v5278 = vpop.f32.mrb[0].mxu0
      %v5279 = vadd.f32 %v4958, %v5278
      %v5280 = vpop.f32.mrb[0].mxu0
      %5281 = vmatprep.mubr.bf16.mxu0 %v4440
      %5282 = vmatmul.mubr.bf16.gmra.mrb[0].mxu0 %v4082
      %v5283 = vpop.f32.mrb[0].mxu0
      %v5284 = vadd.f32 %v4963, %v5283
      %v5285 = vpop.f32.mrb[0].mxu0
      %v5286 = vpop.f32.mrb[0].mxu0
      %v5287 = vadd.f32 %v4966, %v5286
      %v5288 = vpop.f32.mrb[0].mxu0
      %5289 = vmatprep.mubr.bf16.mxu0 %v4443
      %5290 = vmatmul.mubr.bf16.gmra.mrb[0].mxu0 %v4088
      %v5291 = vpop.f32.mrb[0].mxu0
      %v5292 = vadd.f32 %v4971, %v5291
      %v5293 = vpop.f32.mrb[0].mxu0
      %v5294 = vpop.f32.mrb[0].mxu0
      %v5295 = vadd.f32 %v4974, %v5294
      %v5296 = vpop.f32.mrb[0].mxu0
      %5297 = vmatprep.mubr.bf16.mxu0 %v4446
      %5298 = vmatmul.mubr.bf16.gmra.mrb[0].mxu0 %v4094
      %v5299 = vpop.f32.mrb[0].mxu0
      %v5300 = vadd.f32 %v4979, %v5299
      %v5301 = vpop.f32.mrb[0].mxu0
      %v5302 = vpop.f32.mrb[0].mxu0
      %v5303 = vadd.f32 %v4982, %v5302
      %v5304 = vpop.f32.mrb[0].mxu0
      %5305 = vmatprep.mubr.bf16.mxu0 %v4449
      %5306 = vmatmul.mubr.bf16.gmra.mrb[0].mxu0 %v4100
      %v5307 = vpop.f32.mrb[0].mxu0
      %v5308 = vadd.f32 %v4987, %v5307
      %v5309 = vpop.f32.mrb[0].mxu0
      %v5310 = vpop.f32.mrb[0].mxu0
      %v5311 = vadd.f32 %v4990, %v5310
      %v5312 = vpop.f32.mrb[0].mxu0
      %5313 = vmatprep.mubr.bf16.mxu0 %v4452
      %5314 = vmatmul.mubr.bf16.gmra.mrb[0].mxu0 %v4106
      %v5315 = vpop.f32.mrb[0].mxu0
      %v5316 = vadd.f32 %v4995, %v5315
      %v5317 = vpop.f32.mrb[0].mxu0
      %v5318 = vpop.f32.mrb[0].mxu0
      %v5319 = vadd.f32 %v4998, %v5318
      %v5320 = vpop.f32.mrb[0].mxu0
      %5321 = vmatprep.mubr.bf16.mxu0 %v4455
      %5322 = vmatmul.mubr.bf16.gmra.mrb[0].mxu0 %v4112
      %v5323 = vpop.f32.mrb[0].mxu0
      %v5324 = vadd.f32 %v5003, %v5323
      %v5325 = vpop.f32.mrb[0].mxu0
      %v5326 = vpop.f32.mrb[0].mxu0
      %v5327 = vadd.f32 %v5006, %v5326
      %v5328 = vpop.f32.mrb[0].mxu0
      %5329 = vmatprep.mubr.bf16.mxu0 %v4458
      %5330 = vmatmul.mubr.bf16.gmra.mrb[0].mxu0 %v4118
      %v5331 = vpop.f32.mrb[0].mxu0
      %v5332 = vadd.f32 %v5011, %v5331
      %v5333 = vpop.f32.mrb[0].mxu0
      %v5334 = vpop.f32.mrb[0].mxu0
      %v5335 = vadd.f32 %v5014, %v5334
      %v5336 = vpop.f32.mrb[0].mxu0
      %5337 = vmatprep.mubr.bf16.mxu0 %v4461
      %5338 = vmatmul.mubr.bf16.gmra.mrb[0].mxu0 %v4124
      %v5339 = vpop.f32.mrb[0].mxu0
      %v5340 = vadd.f32 %v5019, %v5339
      %v5341 = vpop.f32.mrb[0].mxu0
      %v5342 = vpop.f32.mrb[0].mxu0
      %v5343 = vadd.f32 %v5022, %v5342
      %v5344 = vpop.f32.mrb[0].mxu0
      %5345 = vmatprep.mubr.bf16.mxu0 %v4464
      %5346 = vmatmul.mubr.bf16.gmra.mrb[0].mxu0 %v4130
      %v5347 = vpop.f32.mrb[0].mxu0
      %v5348 = vadd.f32 %v5027, %v5347
      %v5349 = vpop.f32.mrb[0].mxu0
      %v5350 = vpop.f32.mrb[0].mxu0
      %v5351 = vadd.f32 %v5030, %v5350
      %v5352 = vpop.f32.mrb[0].mxu0
      %5353 = vmatprep.mubr.bf16.mxu0 %v4467
      %5354 = vmatmul.mubr.bf16.gmra.mrb[0].mxu0 %v4136
      %v5355 = vpop.f32.mrb[0].mxu0
      %v5356 = vadd.f32 %v5035, %v5355
      %v5357 = vpop.f32.mrb[0].mxu0
      %v5358 = vpop.f32.mrb[0].mxu0
      %v5359 = vadd.f32 %v5038, %v5358
      %v5360 = vpop.f32.mrb[0].mxu0
      %5361 = vmatprep.mubr.bf16.mxu0 %v4470
      %5362 = vmatmul.mubr.bf16.gmra.mrb[0].mxu0 %v4142
      %v5363 = vpop.f32.mrb[0].mxu0
      %v5364 = vadd.f32 %v5043, %v5363
      %v5365 = vpop.f32.mrb[0].mxu0
      %v5366 = vpop.f32.mrb[0].mxu0
      %v5367 = vadd.f32 %v5046, %v5366
      %v5368 = vpop.f32.mrb[0].mxu0
      %5369 = vmatprep.mubr.bf16.mxu0 %v4473
      %5370 = vmatmul.mubr.bf16.gmra.mrb[0].mxu0 %v4148
      %v5371 = vpop.f32.mrb[0].mxu0
      %v5372 = vadd.f32 %v5051, %v5371
      %v5373 = vpop.f32.mrb[0].mxu0
      %v5374 = vpop.f32.mrb[0].mxu0
      %v5375 = vadd.f32 %v5054, %v5374
      %v5376 = vpop.f32.mrb[0].mxu0
      %5377 = vmatprep.mubr.bf16.mxu0 %v4476
      %5378 = vmatmul.mubr.bf16.gmra.mrb[0].mxu0 %v4154
      %v5379 = vpop.f32.mrb[0].mxu0
      %v5380 = vadd.f32 %v5059, %v5379
      %v5381 = vpop.f32.mrb[0].mxu0
      %v5382 = vpop.f32.mrb[0].mxu0
      %v5383 = vadd.f32 %v5062, %v5382
      %v5384 = vpop.f32.mrb[0].mxu0
      %5385 = vmatprep.mubr.bf16.mxu0 %v4479
      %5386 = vmatmul.mubr.bf16.gmra.mrb[0].mxu0 %v4160
      %v5387 = vpop.f32.mrb[0].mxu0
      %v5388 = vadd.f32 %v5067, %v5387
      %v5389 = vpop.f32.mrb[0].mxu0
      %v5390 = vpop.f32.mrb[0].mxu0
      %v5391 = vadd.f32 %v5070, %v5390
      %v5392 = vpop.f32.mrb[0].mxu0
      %5393 = vmatprep.mubr.bf16.mxu0 %v4482
      %5394 = vmatmul.mubr.bf16.gmra.mrb[0].mxu0 %v4166
      %v5395 = vpop.f32.mrb[0].mxu0
      %v5396 = vadd.f32 %v5075, %v5395
      %v5397 = vpop.f32.mrb[0].mxu0
      %v5398 = vpop.f32.mrb[0].mxu0
      %v5399 = vadd.f32 %v5078, %v5398
      %v5400 = vpop.f32.mrb[0].mxu0
      %5401 = vmatprep.mubr.bf16.mxu0 %v4485
      %5402 = vmatmul.mubr.bf16.gmra.mrb[0].mxu0 %v4172
      %v5403 = vpop.f32.mrb[0].mxu0
      %v5404 = vadd.f32 %v5083, %v5403
      %v5405 = vpop.f32.mrb[0].mxu0
      %v5406 = vpop.f32.mrb[0].mxu0
      %v5407 = vadd.f32 %v5086, %v5406
      %v5408 = vpop.f32.mrb[0].mxu0
      %5409 = vmatprep.mubr.bf16.mxu0 %v4488
      %5410 = vmatmul.mubr.bf16.gmra.mrb[0].mxu0 %v4178
      %v5411 = vpop.f32.mrb[0].mxu0
      %v5412 = vadd.f32 %v5091, %v5411
      %v5413 = vpop.f32.mrb[0].mxu0
      %v5414 = vpop.f32.mrb[0].mxu0
      %v5415 = vadd.f32 %v5094, %v5414
      %v5416 = vpop.f32.mrb[0].mxu0
      %5417 = vmatprep.mubr.bf16.mxu0 %v4491
      %5418 = vmatmul.mubr.bf16.gmra.mrb[0].mxu0 %v4184
      %v5419 = vpop.f32.mrb[0].mxu0
      %v5420 = vadd.f32 %v5099, %v5419
      %v5421 = vpop.f32.mrb[0].mxu0
      %v5422 = vpop.f32.mrb[0].mxu0
      %v5423 = vadd.f32 %v5102, %v5422
      %v5424 = vpop.f32.mrb[0].mxu0
      %5425 = vmatprep.mubr.bf16.mxu0 %v4494
      %5426 = vmatmul.mubr.bf16.gmra.mrb[0].mxu0 %v4190
      %v5427 = vpop.f32.mrb[0].mxu0
      %v5428 = vadd.f32 %v5107, %v5427
      %v5429 = vpop.f32.mrb[0].mxu0
      %v5430 = vpop.f32.mrb[0].mxu0
      %v5431 = vadd.f32 %v5110, %v5430
      %v5432 = vpop.f32.mrb[0].mxu0
      %5433 = vmatprep.mubr.bf16.mxu0 %v4497
      %5434 = vmatmul.mubr.bf16.gmra.mrb[0].mxu0 %v4196
      %v5435 = vpop.f32.mrb[0].mxu0
      %v5436 = vadd.f32 %v5115, %v5435
      %v5437 = vpop.f32.mrb[0].mxu0
      %v5438 = vpop.f32.mrb[0].mxu0
      %v5439 = vadd.f32 %v5118, %v5438
      %v5440 = vpop.f32.mrb[0].mxu0
      %5441 = vmatprep.mubr.bf16.mxu0 %v4500
      %5442 = vmatmul.mubr.bf16.gmra.mrb[0].mxu0 %v4202
      %v5443 = vpop.f32.mrb[0].mxu0
      %v5444 = vadd.f32 %v5123, %v5443
      %v5445 = vpop.f32.mrb[0].mxu0
      %v5446 = vpop.f32.mrb[0].mxu0
      %v5447 = vadd.f32 %v5126, %v5446
      %v5448 = vpop.f32.mrb[0].mxu0
      %5449 = vmatprep.mubr.bf16.mxu0 %v4503
      %5450 = vmatmul.mubr.bf16.gmra.mrb[0].mxu0 %v4208
      %v5451 = vpop.f32.mrb[0].mxu0
      %v5452 = vadd.f32 %v5131, %v5451
      %v5453 = vpop.f32.mrb[0].mxu0
      %v5454 = vpop.f32.mrb[0].mxu0
      %v5455 = vadd.f32 %v5134, %v5454
      %v5456 = vpop.f32.mrb[0].mxu0
      %5457 = vmatprep.mubr.bf16.mxu0 %v4506
      %5458 = vmatmul.mubr.bf16.gmra.mrb[0].mxu0 %v4214
      %v5459 = vpop.f32.mrb[0].mxu0
      %v5460 = vadd.f32 %v5139, %v5459
      %v5461 = vpop.f32.mrb[0].mxu0
      %v5462 = vpop.f32.mrb[0].mxu0
      %v5463 = vadd.f32 %v5142, %v5462
      %v5464 = vpop.f32.mrb[0].mxu0
      %5465 = vmatprep.mubr.bf16.mxu0 %v4509
      %5466 = vmatmul.mubr.bf16.gmra.mrb[0].mxu0 %v4220
      %v5467 = vpop.f32.mrb[0].mxu0
      %v5468 = vadd.f32 %v5147, %v5467
      %v5469 = vpop.f32.mrb[0].mxu0
      %v5470 = vpop.f32.mrb[0].mxu0
      %v5471 = vadd.f32 %v5150, %v5470
      %v5472 = vpop.f32.mrb[0].mxu0
      %5473 = vdwg.mxu0
      %v5474 = vmax.f32 %v5188, %v5260
      %v5475 = vmax.f32 %v5191, %v5263
      %v5476 = vmax.f32 %v5196, %v5268
      %v5477 = vmax.f32 %v5199, %v5271
      %v5478 = vmax.f32 %v5204, %v5276
      %v5479 = vmax.f32 %v5207, %v5279
      %v5480 = vmax.f32 %v5212, %v5284
      %v5481 = vmax.f32 %v5215, %v5287
      %v5482 = vmax.f32 %v5220, %v5292
      %v5483 = vmax.f32 %v5223, %v5295
      %v5484 = vmax.f32 %v5228, %v5300
      %v5485 = vmax.f32 %v5231, %v5303
      %v5486 = vmax.f32 %v5236, %v5308
      %v5487 = vmax.f32 %v5239, %v5311
      %v5488 = vmax.f32 %v5244, %v5316
      %v5489 = vmax.f32 %v5247, %v5319
      %v5490 = vmax.f32 %v5252, %v5324
      %v5491 = vmax.f32 %v5255, %v5327
      %v5492 = vmax.f32 %v5332, %v5404
      %v5493 = vmax.f32 %v5335, %v5407
      %v5494 = vmax.f32 %v5340, %v5412
      %v5495 = vmax.f32 %v5343, %v5415
      %v5496 = vmax.f32 %v5348, %v5420
      %v5497 = vmax.f32 %v5351, %v5423
      %v5498 = vmax.f32 %v5356, %v5428
      %v5499 = vmax.f32 %v5359, %v5431
      %v5500 = vmax.f32 %v5364, %v5436
      %v5501 = vmax.f32 %v5367, %v5439
      %v5502 = vmax.f32 %v5372, %v5444
      %v5503 = vmax.f32 %v5375, %v5447
      %v5504 = vmax.f32 %v5380, %v5452
      %v5505 = vmax.f32 %v5383, %v5455
      %v5506 = vmax.f32 %v5388, %v5460
      %v5507 = vmax.f32 %v5391, %v5463
      %v5508 = vmax.f32 %v5396, %v5468
      %v5509 = vmax.f32 %v5399, %v5471
      %v5510 = vmax.f32 %v5474, %v5492
      %v5511 = vmax.f32 %v5475, %v5493
      %v5512 = vmax.f32 %v5476, %v5494
      %v5513 = vmax.f32 %v5477, %v5495
      %v5514 = vmax.f32 %v5478, %v5496
      %v5515 = vmax.f32 %v5479, %v5497
      %v5516 = vmax.f32 %v5480, %v5498
      %v5517 = vmax.f32 %v5481, %v5499
      %v5518 = vmax.f32 %v5482, %v5500
      %v5519 = vmax.f32 %v5483, %v5501
      %v5520 = vmax.f32 %v5484, %v5502
      %v5521 = vmax.f32 %v5485, %v5503
      %v5522 = vmax.f32 %v5486, %v5504
      %v5523 = vmax.f32 %v5487, %v5505
      %v5524 = vmax.f32 %v5488, %v5506
      %v5525 = vmax.f32 %v5489, %v5507
      %v5526 = vmax.f32 %v5490, %v5508
      %v5527 = vmax.f32 %v5491, %v5509
      %v5528 = vpack.c.bf16 %v5511, %v5510
      %v5529 = vpack.c.bf16 %v5513, %v5512
      %v5530 = vpack.c.bf16 %v5515, %v5514
      %v5531 = vpack.c.bf16 %v5517, %v5516
      %v5532 = vpack.c.bf16 %v5519, %v5518
      %v5533 = vpack.c.bf16 %v5521, %v5520
      %v5534 = vpack.c.bf16 %v5523, %v5522
      %v5535 = vpack.c.bf16 %v5525, %v5524
      %v5536 = vpack.c.bf16 %v5527, %v5526
      %v5546 = vunpack.c.l.b16 %v5528
      %v5547 = vunpack.c.h.b16 %v5528
      %v5548 = vunpack.c.l.b16 %v5529
      %v5549 = vunpack.c.h.b16 %v5529
      %v5550 = vunpack.c.l.b16 %v5530
      %v5551 = vunpack.c.h.b16 %v5530
      %v5552 = vunpack.c.l.b16 %v5531
      %v5553 = vunpack.c.h.b16 %v5531
      %v5554 = vunpack.c.l.b16 %v5532
      %v5555 = vunpack.c.h.b16 %v5532
      %v5556 = vunpack.c.l.b16 %v5533
      %v5557 = vunpack.c.h.b16 %v5533
      %v5558 = vunpack.c.l.b16 %v5534
      %v5559 = vunpack.c.h.b16 %v5534
      %v5560 = vunpack.c.l.b16 %v5535
      %v5561 = vunpack.c.h.b16 %v5535
      %v5562 = vunpack.c.l.b16 %v5536
      %v5563 = vunpack.c.h.b16 %v5536
      %v5564 = vpack.c.b16 %v5546, %v5546
      %v5565 = vpack.c.b16 %v5547, %v5547
      %v5566 = vpack.c.b16 %v5548, %v5548
      %v5567 = vpack.c.b16 %v5549, %v5549
      %v5568 = vpack.c.b16 %v5550, %v5550
      %v5569 = vpack.c.b16 %v5551, %v5551
      %v5570 = vpack.c.b16 %v5552, %v5552
      %v5571 = vpack.c.b16 %v5553, %v5553
      %v5572 = vpack.c.b16 %v5554, %v5554
      %v5573 = vpack.c.b16 %v5555, %v5555
      %v5574 = vpack.c.b16 %v5556, %v5556
      %v5575 = vpack.c.b16 %v5557, %v5557
      %v5576 = vpack.c.b16 %v5558, %v5558
      %v5577 = vpack.c.b16 %v5559, %v5559
      %v5578 = vpack.c.b16 %v5560, %v5560
      %v5579 = vpack.c.b16 %v5561, %v5561
      %v5580 = vpack.c.b16 %v5562, %v5562
      %v5581 = vpack.c.b16 %v5563, %v5563
      %vm5600 = vcmask 519168
      %5601 = vst.msk [vmem:[%s251] sm:$0xf] %vm5600, %v5564
      %5602 = vst.msk [vmem:[%s251 + $0x4] sm:$0xf] %vm5600, %v5565
      %5603 = vst.msk [vmem:[%s251 + $0x8] sm:$0xf] %vm5600, %v5566
      %5604 = vst.msk [vmem:[%s251 + $0xc] sm:$0xf] %vm5600, %v5567
      %5605 = vst.msk [vmem:[%s251 + $0x10] sm:$0xf] %vm5600, %v5568
      %5606 = vst.msk [vmem:[%s251 + $0x14] sm:$0xf] %vm5600, %v5569
      %5607 = vst.msk [vmem:[%s251 + $0x18] sm:$0xf] %vm5600, %v5570
      %5608 = vst.msk [vmem:[%s251 + $0x1c] sm:$0xf] %vm5600, %v5571
      %5609 = vst.msk [vmem:[%s251 + $0x20] sm:$0xf] %vm5600, %v5572
      %5610 = vst.msk [vmem:[%s251 + $0x24] sm:$0xf] %vm5600, %v5573
      %5611 = vst.msk [vmem:[%s251 + $0x28] sm:$0xf] %vm5600, %v5574
      %5612 = vst.msk [vmem:[%s251 + $0x2c] sm:$0xf] %vm5600, %v5575
      %5613 = vst.msk [vmem:[%s251 + $0x30] sm:$0xf] %vm5600, %v5576
      %5614 = vst.msk [vmem:[%s251 + $0x34] sm:$0xf] %vm5600, %v5577
      %5615 = vst.msk [vmem:[%s251 + $0x38] sm:$0xf] %vm5600, %v5578
      %5616 = vst.msk [vmem:[%s251 + $0x3c] sm:$0xf] %vm5600, %v5579
      %5617 = vst.msk [vmem:[%s251 + $0x40] sm:$0xf] %vm5600, %v5580
      %5618 = vst.msk [vmem:[%s251 + $0x44] sm:$0xf] %vm5600, %v5581
      %p5619 = scmp.lt.s32.totalorder %s17, 1
      %s5620 = scalar_select %p5619, %s17, 1
      %s5621 = smul.addr %s5620, 18
      %s5622 = smul.addr %s5621, 4
      %s5623 = scalar_lea.vmem %s6, %s5622
      // Predicated region
      $region45: #{forward.2} parent=43 // pred_check
        %p5624 = pneg %p166
      $region46: #{forward.2} parent=43 // pred_check_branch
        %5626 = sbr.rel (%p5624) target = $region48
      $region47: #{forward.2} parent=43 // pred_region
        _
      $region48: #{forward.2} parent=43 // pred_fallthru
        _
    $region44: #{forward.2} parent=5 // pred_fallthru
      _
    %p5627 = scmp.le.s32.totalorder 2, %s12
    // Predicated region
    $region49: #{forward.2} parent=5 // pred_check
      %p5628 = pneg %p5627
    $region50: #{forward.2} parent=5 // pred_check_branch
      %5630 = sbr.rel (%p5628) target = $region52
    $region51: #{forward.2} parent=5 // pred_region
      %s5631 = ssub.s32 %s12, 2
      // Predicated region
      $region53: #{forward.2} parent=51 // pred_check
        %p5632 = pneg %p172
      $region54: #{forward.2} parent=51 // pred_check_branch
        %5634 = sbr.rel (%p5632) target = $region56
      $region55: #{forward.2} parent=51 // pred_region
        %p5635 = scmp.lt.s32.totalorder %s18, 1
        %s5636 = scalar_select %p5635, %s18, 1
        %s5637 = smul.addr %s5636, 18
        %s5638 = smul.addr %s5637, 4
        %s5639 = scalar_lea.vmem %s6, %s5638
      $region56: #{forward.2} parent=51 // pred_fallthru
        _
    $region52: #{forward.2} parent=5 // pred_fallthru
      _
  $region6: #{forward.2} parent=0 // loop_footer
    %s16 = sadd.s32 1, %s12
  $region7: #{forward.2} parent=0 // loop_footer_branch
    %11 = sbr.rel target = $region3
  $region8: #{forward.2} parent=0 // loop_exit
    _

// kernel: forward.3
$region0: #{forward.3}
  #allocation0 [shape = 'u32[]', space=smem, size = 0x4, offset = 0x4, fixed_abs, tag = 'smem constant byte address 0x4 - core index']
  #allocation1 [shape = 'u32[144,128]{1,0:T(1,128)}', space=vmem, size = 0x12000, scoped, tag = 'internal scratch']
  %s0 = inlined_call_operand.vmem [shape: bf16[8,9216], index: 0, kind: input, shape index: {}]
  %s1 = inlined_call_operand.vmem [shape: bf16[9216,128], index: 1, kind: input, shape index: {}]
  %s2 = inlined_call_operand.vmem [shape: f32[1,128], index: 2, kind: input, shape index: {}]
  %s3 = inlined_call_operand.vmem [shape: f32[128,10], index: 3, kind: input, shape index: {}]
  %s4 = inlined_call_operand.vmem [shape: f32[1,10], index: 4, kind: input, shape index: {}]
  %s5 = inlined_call_operand.vmem [shape: f32[8,10], index: 5, kind: output, shape index: {}]
  %s6 = sld [smem:[#allocation0]]
  $region30: #{forward.3} parent=0
    _
  %s8 = ssub.s32 1, %s6
  %s9 = scalar_select 0, %s8, %s6
  // Predicated region
  $region2: #{forward.3} parent=0 // pred_check
    _
  $region3: #{forward.3} parent=0 // pred_check_branch
    %11 = sbr.rel (0) target = $region5
  $region4: #{forward.3} parent=0 // pred_region
    _
  $region5: #{forward.3} parent=0 // pred_fallthru
    _
  // Predicated region
  $region6: #{forward.3} parent=0 // pred_check
    _
  $region7: #{forward.3} parent=0 // pred_check_branch
    %13 = sbr.rel (0) target = $region9
  $region8: #{forward.3} parent=0 // pred_region
    _
  $region9: #{forward.3} parent=0 // pred_fallthru
    _
  // Predicated region
  $region10: #{forward.3} parent=0 // pred_check
    _
  $region11: #{forward.3} parent=0 // pred_check_branch
    %15 = sbr.rel (0) target = $region13
  $region12: #{forward.3} parent=0 // pred_region
    _
  $region13: #{forward.3} parent=0 // pred_fallthru
    _
  // Predicated region
  $region14: #{forward.3} parent=0 // pred_check
    _
  $region15: #{forward.3} parent=0 // pred_check_branch
    %17 = sbr.rel (0) target = $region17
  $region16: #{forward.3} parent=0 // pred_region
    _
  $region17: #{forward.3} parent=0 // pred_fallthru
    _
  // Predicated region
  $region18: #{forward.3} parent=0 // pred_check
    _
  $region19: #{forward.3} parent=0 // pred_check_branch
    %19 = sbr.rel (0) target = $region21
  $region20: #{forward.3} parent=0 // pred_region
    _
  $region21: #{forward.3} parent=0 // pred_fallthru
    _
  %v21 = vld [vmem:[%s0] sm:$0xff]
  %v22 = vld [vmem:[%s0 + $0x8] sm:$0xff]
  %v23 = vld [vmem:[%s0 + $0x10] sm:$0xff]
  %v24 = vld [vmem:[%s0 + $0x18] sm:$0xff]
  %v25 = vld [vmem:[%s0 + $0x20] sm:$0xff]
  %v26 = vld [vmem:[%s0 + $0x28] sm:$0xff]
  %v27 = vld [vmem:[%s0 + $0x30] sm:$0xff]
  %v28 = vld [vmem:[%s0 + $0x38] sm:$0xff]
  %v29 = vld [vmem:[%s0 + $0x40] sm:$0xff]
  %v30 = vld [vmem:[%s0 + $0x48] sm:$0xff]
  %v31 = vld [vmem:[%s0 + $0x50] sm:$0xff]
  %v32 = vld [vmem:[%s0 + $0x58] sm:$0xff]
  %v33 = vld [vmem:[%s0 + $0x60] sm:$0xff]
  %v34 = vld [vmem:[%s0 + $0x68] sm:$0xff]
  %v35 = vld [vmem:[%s0 + $0x70] sm:$0xff]
  %v36 = vld [vmem:[%s0 + $0x78] sm:$0xff]
  %v37 = vld [vmem:[%s0 + $0x80] sm:$0xff]
  %v38 = vld [vmem:[%s0 + $0x88] sm:$0xff]
  %v39 = vld [vmem:[%s0 + $0x90] sm:$0xff]
  %v40 = vld [vmem:[%s0 + $0x98] sm:$0xff]
  %v41 = vld [vmem:[%s0 + $0xa0] sm:$0xff]
  %v42 = vld [vmem:[%s0 + $0xa8] sm:$0xff]
  %v43 = vld [vmem:[%s0 + $0xb0] sm:$0xff]
  %v44 = vld [vmem:[%s0 + $0xb8] sm:$0xff]
  %v45 = vld [vmem:[%s0 + $0xc0] sm:$0xff]
  %v46 = vld [vmem:[%s0 + $0xc8] sm:$0xff]
  %v47 = vld [vmem:[%s0 + $0xd0] sm:$0xff]
  %v48 = vld [vmem:[%s0 + $0xd8] sm:$0xff]
  %v49 = vld [vmem:[%s0 + $0xe0] sm:$0xff]
  %v50 = vld [vmem:[%s0 + $0xe8] sm:$0xff]
  %v51 = vld [vmem:[%s0 + $0xf0] sm:$0xff]
  %v52 = vld [vmem:[%s0 + $0xf8] sm:$0xff]
  %v53 = vld [vmem:[%s0 + $0x100] sm:$0xff]
  %v54 = vld [vmem:[%s0 + $0x108] sm:$0xff]
  %v55 = vld [vmem:[%s0 + $0x110] sm:$0xff]
  %v56 = vld [vmem:[%s0 + $0x118] sm:$0xff]
  %v57 = vld [vmem:[%s1] sm:$0xf]
  %v58 = vld [vmem:[%s1 + $0x4] sm:$0xf]
  %v59 = vld [vmem:[%s1 + $0x8] sm:$0xf]
  %v60 = vld [vmem:[%s1 + $0xc] sm:$0xf]
  %v61 = vld [vmem:[%s1 + $0x10] sm:$0xf]
  %v62 = vld [vmem:[%s1 + $0x14] sm:$0xf]
  %v63 = vld [vmem:[%s1 + $0x18] sm:$0xf]
  %v64 = vld [vmem:[%s1 + $0x1c] sm:$0xf]
  %v65 = vld [vmem:[%s1 + $0x20] sm:$0xf]
  %v66 = vld [vmem:[%s1 + $0x24] sm:$0xf]
  %v67 = vld [vmem:[%s1 + $0x28] sm:$0xf]
  %v68 = vld [vmem:[%s1 + $0x2c] sm:$0xf]
  %v69 = vld [vmem:[%s1 + $0x30] sm:$0xf]
  %v70 = vld [vmem:[%s1 + $0x34] sm:$0xf]
  %v71 = vld [vmem:[%s1 + $0x38] sm:$0xf]
  %v72 = vld [vmem:[%s1 + $0x3c] sm:$0xf]
  %v73 = vld [vmem:[%s1 + $0x40] sm:$0xf]
  %v74 = vld [vmem:[%s1 + $0x44] sm:$0xf]
  %v75 = vld [vmem:[%s1 + $0x48] sm:$0xf]
  %v76 = vld [vmem:[%s1 + $0x4c] sm:$0xf]
  %v77 = vld [vmem:[%s1 + $0x50] sm:$0xf]
  %v78 = vld [vmem:[%s1 + $0x54] sm:$0xf]
  %v79 = vld [vmem:[%s1 + $0x58] sm:$0xf]
  %v80 = vld [vmem:[%s1 + $0x5c] sm:$0xf]
  %v81 = vld [vmem:[%s1 + $0x60] sm:$0xf]
  %v82 = vld [vmem:[%s1 + $0x64] sm:$0xf]
  %v83 = vld [vmem:[%s1 + $0x68] sm:$0xf]
  %v84 = vld [vmem:[%s1 + $0x6c] sm:$0xf]
  %v85 = vld [vmem:[%s1 + $0x70] sm:$0xf]
  %v86 = vld [vmem:[%s1 + $0x74] sm:$0xf]
  %v87 = vld [vmem:[%s1 + $0x78] sm:$0xf]
  %v88 = vld [vmem:[%s1 + $0x7c] sm:$0xf]
  %v89 = vld [vmem:[%s1 + $0x80] sm:$0xf]
  %v90 = vld [vmem:[%s1 + $0x84] sm:$0xf]
  %v91 = vld [vmem:[%s1 + $0x88] sm:$0xf]
  %v92 = vld [vmem:[%s1 + $0x8c] sm:$0xf]
  %v93 = vld [vmem:[%s1 + $0x90] sm:$0xf]
  %v94 = vld [vmem:[%s1 + $0x94] sm:$0xf]
  %v95 = vld [vmem:[%s1 + $0x98] sm:$0xf]
  %v96 = vld [vmem:[%s1 + $0x9c] sm:$0xf]
  %v97 = vld [vmem:[%s1 + $0xa0] sm:$0xf]
  %v98 = vld [vmem:[%s1 + $0xa4] sm:$0xf]
  %v99 = vld [vmem:[%s1 + $0xa8] sm:$0xf]
  %v100 = vld [vmem:[%s1 + $0xac] sm:$0xf]
  %v101 = vld [vmem:[%s1 + $0xb0] sm:$0xf]
  %v102 = vld [vmem:[%s1 + $0xb4] sm:$0xf]
  %v103 = vld [vmem:[%s1 + $0xb8] sm:$0xf]
  %v104 = vld [vmem:[%s1 + $0xbc] sm:$0xf]
  %v105 = vld [vmem:[%s1 + $0xc0] sm:$0xf]
  %v106 = vld [vmem:[%s1 + $0xc4] sm:$0xf]
  %v107 = vld [vmem:[%s1 + $0xc8] sm:$0xf]
  %v108 = vld [vmem:[%s1 + $0xcc] sm:$0xf]
  %v109 = vld [vmem:[%s1 + $0xd0] sm:$0xf]
  %v110 = vld [vmem:[%s1 + $0xd4] sm:$0xf]
  %v111 = vld [vmem:[%s1 + $0xd8] sm:$0xf]
  %v112 = vld [vmem:[%s1 + $0xdc] sm:$0xf]
  %v113 = vld [vmem:[%s1 + $0xe0] sm:$0xf]
  %v114 = vld [vmem:[%s1 + $0xe4] sm:$0xf]
  %v115 = vld [vmem:[%s1 + $0xe8] sm:$0xf]
  %v116 = vld [vmem:[%s1 + $0xec] sm:$0xf]
  %v117 = vld [vmem:[%s1 + $0xf0] sm:$0xf]
  %v118 = vld [vmem:[%s1 + $0xf4] sm:$0xf]
  %v119 = vld [vmem:[%s1 + $0xf8] sm:$0xf]
  %v120 = vld [vmem:[%s1 + $0xfc] sm:$0xf]
  %v121 = vld [vmem:[%s1 + $0x100] sm:$0xf]
  %v122 = vld [vmem:[%s1 + $0x104] sm:$0xf]
  %v123 = vld [vmem:[%s1 + $0x108] sm:$0xf]
  %v124 = vld [vmem:[%s1 + $0x10c] sm:$0xf]
  %v125 = vld [vmem:[%s1 + $0x110] sm:$0xf]
  %v126 = vld [vmem:[%s1 + $0x114] sm:$0xf]
  %v127 = vld [vmem:[%s1 + $0x118] sm:$0xf]
  %v128 = vld [vmem:[%s1 + $0x11c] sm:$0xf]
  %v129 = vld [vmem:[%s1 + $0x120] sm:$0xf]
  %v130 = vld [vmem:[%s1 + $0x124] sm:$0xf]
  %v131 = vld [vmem:[%s1 + $0x128] sm:$0xf]
  %v132 = vld [vmem:[%s1 + $0x12c] sm:$0xf]
  %v133 = vld [vmem:[%s1 + $0x130] sm:$0xf]
  %v134 = vld [vmem:[%s1 + $0x134] sm:$0xf]
  %v135 = vld [vmem:[%s1 + $0x138] sm:$0xf]
  %v136 = vld [vmem:[%s1 + $0x13c] sm:$0xf]
  %v137 = vld [vmem:[%s1 + $0x140] sm:$0xf]
  %v138 = vld [vmem:[%s1 + $0x144] sm:$0xf]
  %v139 = vld [vmem:[%s1 + $0x148] sm:$0xf]
  %v140 = vld [vmem:[%s1 + $0x14c] sm:$0xf]
  %v141 = vld [vmem:[%s1 + $0x150] sm:$0xf]
  %v142 = vld [vmem:[%s1 + $0x154] sm:$0xf]
  %v143 = vld [vmem:[%s1 + $0x158] sm:$0xf]
  %v144 = vld [vmem:[%s1 + $0x15c] sm:$0xf]
  %v145 = vld [vmem:[%s1 + $0x160] sm:$0xf]
  %v146 = vld [vmem:[%s1 + $0x164] sm:$0xf]
  %v147 = vld [vmem:[%s1 + $0x168] sm:$0xf]
  %v148 = vld [vmem:[%s1 + $0x16c] sm:$0xf]
  %v149 = vld [vmem:[%s1 + $0x170] sm:$0xf]
  %v150 = vld [vmem:[%s1 + $0x174] sm:$0xf]
  %v151 = vld [vmem:[%s1 + $0x178] sm:$0xf]
  %v152 = vld [vmem:[%s1 + $0x17c] sm:$0xf]
  %v153 = vld [vmem:[%s1 + $0x180] sm:$0xf]
  %v154 = vld [vmem:[%s1 + $0x184] sm:$0xf]
  %v155 = vld [vmem:[%s1 + $0x188] sm:$0xf]
  %v156 = vld [vmem:[%s1 + $0x18c] sm:$0xf]
  %v157 = vld [vmem:[%s1 + $0x190] sm:$0xf]
  %v158 = vld [vmem:[%s1 + $0x194] sm:$0xf]
  %v159 = vld [vmem:[%s1 + $0x198] sm:$0xf]
  %v160 = vld [vmem:[%s1 + $0x19c] sm:$0xf]
  %v161 = vld [vmem:[%s1 + $0x1a0] sm:$0xf]
  %v162 = vld [vmem:[%s1 + $0x1a4] sm:$0xf]
  %v163 = vld [vmem:[%s1 + $0x1a8] sm:$0xf]
  %v164 = vld [vmem:[%s1 + $0x1ac] sm:$0xf]
  %v165 = vld [vmem:[%s1 + $0x1b0] sm:$0xf]
  %v166 = vld [vmem:[%s1 + $0x1b4] sm:$0xf]
  %v167 = vld [vmem:[%s1 + $0x1b8] sm:$0xf]
  %v168 = vld [vmem:[%s1 + $0x1bc] sm:$0xf]
  %v169 = vld [vmem:[%s1 + $0x1c0] sm:$0xf]
  %v170 = vld [vmem:[%s1 + $0x1c4] sm:$0xf]
  %v171 = vld [vmem:[%s1 + $0x1c8] sm:$0xf]
  %v172 = vld [vmem:[%s1 + $0x1cc] sm:$0xf]
  %v173 = vld [vmem:[%s1 + $0x1d0] sm:$0xf]
  %v174 = vld [vmem:[%s1 + $0x1d4] sm:$0xf]
  %v175 = vld [vmem:[%s1 + $0x1d8] sm:$0xf]
  %v176 = vld [vmem:[%s1 + $0x1dc] sm:$0xf]
  %v177 = vld [vmem:[%s1 + $0x1e0] sm:$0xf]
  %v178 = vld [vmem:[%s1 + $0x1e4] sm:$0xf]
  %v179 = vld [vmem:[%s1 + $0x1e8] sm:$0xf]
  %v180 = vld [vmem:[%s1 + $0x1ec] sm:$0xf]
  %v181 = vld [vmem:[%s1 + $0x1f0] sm:$0xf]
  %v182 = vld [vmem:[%s1 + $0x1f4] sm:$0xf]
  %v183 = vld [vmem:[%s1 + $0x1f8] sm:$0xf]
  %v184 = vld [vmem:[%s1 + $0x1fc] sm:$0xf]
  %v185 = vld [vmem:[%s1 + $0x200] sm:$0xf]
  %v186 = vld [vmem:[%s1 + $0x204] sm:$0xf]
  %v187 = vld [vmem:[%s1 + $0x208] sm:$0xf]
  %v188 = vld [vmem:[%s1 + $0x20c] sm:$0xf]
  %v189 = vld [vmem:[%s1 + $0x210] sm:$0xf]
  %v190 = vld [vmem:[%s1 + $0x214] sm:$0xf]
  %v191 = vld [vmem:[%s1 + $0x218] sm:$0xf]
  %v192 = vld [vmem:[%s1 + $0x21c] sm:$0xf]
  %v193 = vld [vmem:[%s1 + $0x220] sm:$0xf]
  %v194 = vld [vmem:[%s1 + $0x224] sm:$0xf]
  %v195 = vld [vmem:[%s1 + $0x228] sm:$0xf]
  %v196 = vld [vmem:[%s1 + $0x22c] sm:$0xf]
  %v197 = vld [vmem:[%s1 + $0x230] sm:$0xf]
  %v198 = vld [vmem:[%s1 + $0x234] sm:$0xf]
  %v199 = vld [vmem:[%s1 + $0x238] sm:$0xf]
  %v200 = vld [vmem:[%s1 + $0x23c] sm:$0xf]
  %v201 = vld [vmem:[%s1 + $0x240] sm:$0xf]
  %v202 = vld [vmem:[%s1 + $0x244] sm:$0xf]
  %v203 = vld [vmem:[%s1 + $0x248] sm:$0xf]
  %v204 = vld [vmem:[%s1 + $0x24c] sm:$0xf]
  %v205 = vld [vmem:[%s1 + $0x250] sm:$0xf]
  %v206 = vld [vmem:[%s1 + $0x254] sm:$0xf]
  %v207 = vld [vmem:[%s1 + $0x258] sm:$0xf]
  %v208 = vld [vmem:[%s1 + $0x25c] sm:$0xf]
  %v209 = vld [vmem:[%s1 + $0x260] sm:$0xf]
  %v210 = vld [vmem:[%s1 + $0x264] sm:$0xf]
  %v211 = vld [vmem:[%s1 + $0x268] sm:$0xf]
  %v212 = vld [vmem:[%s1 + $0x26c] sm:$0xf]
  %v213 = vld [vmem:[%s1 + $0x270] sm:$0xf]
  %v214 = vld [vmem:[%s1 + $0x274] sm:$0xf]
  %v215 = vld [vmem:[%s1 + $0x278] sm:$0xf]
  %v216 = vld [vmem:[%s1 + $0x27c] sm:$0xf]
  %v217 = vld [vmem:[%s1 + $0x280] sm:$0xf]
  %v218 = vld [vmem:[%s1 + $0x284] sm:$0xf]
  %v219 = vld [vmem:[%s1 + $0x288] sm:$0xf]
  %v220 = vld [vmem:[%s1 + $0x28c] sm:$0xf]
  %v221 = vld [vmem:[%s1 + $0x290] sm:$0xf]
  %v222 = vld [vmem:[%s1 + $0x294] sm:$0xf]
  %v223 = vld [vmem:[%s1 + $0x298] sm:$0xf]
  %v224 = vld [vmem:[%s1 + $0x29c] sm:$0xf]
  %v225 = vld [vmem:[%s1 + $0x2a0] sm:$0xf]
  %v226 = vld [vmem:[%s1 + $0x2a4] sm:$0xf]
  %v227 = vld [vmem:[%s1 + $0x2a8] sm:$0xf]
  %v228 = vld [vmem:[%s1 + $0x2ac] sm:$0xf]
  %v229 = vld [vmem:[%s1 + $0x2b0] sm:$0xf]
  %v230 = vld [vmem:[%s1 + $0x2b4] sm:$0xf]
  %v231 = vld [vmem:[%s1 + $0x2b8] sm:$0xf]
  %v232 = vld [vmem:[%s1 + $0x2bc] sm:$0xf]
  %v233 = vld [vmem:[%s1 + $0x2c0] sm:$0xf]
  %v234 = vld [vmem:[%s1 + $0x2c4] sm:$0xf]
  %v235 = vld [vmem:[%s1 + $0x2c8] sm:$0xf]
  %v236 = vld [vmem:[%s1 + $0x2cc] sm:$0xf]
  %v237 = vld [vmem:[%s1 + $0x2d0] sm:$0xf]
  %v238 = vld [vmem:[%s1 + $0x2d4] sm:$0xf]
  %v239 = vld [vmem:[%s1 + $0x2d8] sm:$0xf]
  %v240 = vld [vmem:[%s1 + $0x2dc] sm:$0xf]
  %v241 = vld [vmem:[%s1 + $0x2e0] sm:$0xf]
  %v242 = vld [vmem:[%s1 + $0x2e4] sm:$0xf]
  %v243 = vld [vmem:[%s1 + $0x2e8] sm:$0xf]
  %v244 = vld [vmem:[%s1 + $0x2ec] sm:$0xf]
  %v245 = vld [vmem:[%s1 + $0x2f0] sm:$0xf]
  %v246 = vld [vmem:[%s1 + $0x2f4] sm:$0xf]
  %v247 = vld [vmem:[%s1 + $0x2f8] sm:$0xf]
  %v248 = vld [vmem:[%s1 + $0x2fc] sm:$0xf]
  %v249 = vld [vmem:[%s1 + $0x300] sm:$0xf]
  %v250 = vld [vmem:[%s1 + $0x304] sm:$0xf]
  %v251 = vld [vmem:[%s1 + $0x308] sm:$0xf]
  %v252 = vld [vmem:[%s1 + $0x30c] sm:$0xf]
  %v253 = vld [vmem:[%s1 + $0x310] sm:$0xf]
  %v254 = vld [vmem:[%s1 + $0x314] sm:$0xf]
  %v255 = vld [vmem:[%s1 + $0x318] sm:$0xf]
  %v256 = vld [vmem:[%s1 + $0x31c] sm:$0xf]
  %v257 = vld [vmem:[%s1 + $0x320] sm:$0xf]
  %v258 = vld [vmem:[%s1 + $0x324] sm:$0xf]
  %v259 = vld [vmem:[%s1 + $0x328] sm:$0xf]
  %v260 = vld [vmem:[%s1 + $0x32c] sm:$0xf]
  %v261 = vld [vmem:[%s1 + $0x330] sm:$0xf]
  %v262 = vld [vmem:[%s1 + $0x334] sm:$0xf]
  %v263 = vld [vmem:[%s1 + $0x338] sm:$0xf]
  %v264 = vld [vmem:[%s1 + $0x33c] sm:$0xf]
  %v265 = vld [vmem:[%s1 + $0x340] sm:$0xf]
  %v266 = vld [vmem:[%s1 + $0x344] sm:$0xf]
  %v267 = vld [vmem:[%s1 + $0x348] sm:$0xf]
  %v268 = vld [vmem:[%s1 + $0x34c] sm:$0xf]
  %v269 = vld [vmem:[%s1 + $0x350] sm:$0xf]
  %v270 = vld [vmem:[%s1 + $0x354] sm:$0xf]
  %v271 = vld [vmem:[%s1 + $0x358] sm:$0xf]
  %v272 = vld [vmem:[%s1 + $0x35c] sm:$0xf]
  %v273 = vld [vmem:[%s1 + $0x360] sm:$0xf]
  %v274 = vld [vmem:[%s1 + $0x364] sm:$0xf]
  %v275 = vld [vmem:[%s1 + $0x368] sm:$0xf]
  %v276 = vld [vmem:[%s1 + $0x36c] sm:$0xf]
  %v277 = vld [vmem:[%s1 + $0x370] sm:$0xf]
  %v278 = vld [vmem:[%s1 + $0x374] sm:$0xf]
  %v279 = vld [vmem:[%s1 + $0x378] sm:$0xf]
  %v280 = vld [vmem:[%s1 + $0x37c] sm:$0xf]
  %v281 = vld [vmem:[%s1 + $0x380] sm:$0xf]
  %v282 = vld [vmem:[%s1 + $0x384] sm:$0xf]
  %v283 = vld [vmem:[%s1 + $0x388] sm:$0xf]
  %v284 = vld [vmem:[%s1 + $0x38c] sm:$0xf]
  %v285 = vld [vmem:[%s1 + $0x390] sm:$0xf]
  %v286 = vld [vmem:[%s1 + $0x394] sm:$0xf]
  %v287 = vld [vmem:[%s1 + $0x398] sm:$0xf]
  %v288 = vld [vmem:[%s1 + $0x39c] sm:$0xf]
  %v289 = vld [vmem:[%s1 + $0x3a0] sm:$0xf]
  %v290 = vld [vmem:[%s1 + $0x3a4] sm:$0xf]
  %v291 = vld [vmem:[%s1 + $0x3a8] sm:$0xf]
  %v292 = vld [vmem:[%s1 + $0x3ac] sm:$0xf]
  %v293 = vld [vmem:[%s1 + $0x3b0] sm:$0xf]
  %v294 = vld [vmem:[%s1 + $0x3b4] sm:$0xf]
  %v295 = vld [vmem:[%s1 + $0x3b8] sm:$0xf]
  %v296 = vld [vmem:[%s1 + $0x3bc] sm:$0xf]
  %v297 = vld [vmem:[%s1 + $0x3c0] sm:$0xf]
  %v298 = vld [vmem:[%s1 + $0x3c4] sm:$0xf]
  %v299 = vld [vmem:[%s1 + $0x3c8] sm:$0xf]
  %v300 = vld [vmem:[%s1 + $0x3cc] sm:$0xf]
  %v301 = vld [vmem:[%s1 + $0x3d0] sm:$0xf]
  %v302 = vld [vmem:[%s1 + $0x3d4] sm:$0xf]
  %v303 = vld [vmem:[%s1 + $0x3d8] sm:$0xf]
  %v304 = vld [vmem:[%s1 + $0x3dc] sm:$0xf]
  %v305 = vld [vmem:[%s1 + $0x3e0] sm:$0xf]
  %v306 = vld [vmem:[%s1 + $0x3e4] sm:$0xf]
  %v307 = vld [vmem:[%s1 + $0x3e8] sm:$0xf]
  %v308 = vld [vmem:[%s1 + $0x3ec] sm:$0xf]
  %v309 = vld [vmem:[%s1 + $0x3f0] sm:$0xf]
  %v310 = vld [vmem:[%s1 + $0x3f4] sm:$0xf]
  %v311 = vld [vmem:[%s1 + $0x3f8] sm:$0xf]
  %v312 = vld [vmem:[%s1 + $0x3fc] sm:$0xf]
  %v313 = vld [vmem:[%s1 + $0x400] sm:$0xf]
  %v314 = vld [vmem:[%s1 + $0x404] sm:$0xf]
  %v315 = vld [vmem:[%s1 + $0x408] sm:$0xf]
  %v316 = vld [vmem:[%s1 + $0x40c] sm:$0xf]
  %v317 = vld [vmem:[%s1 + $0x410] sm:$0xf]
  %v318 = vld [vmem:[%s1 + $0x414] sm:$0xf]
  %v319 = vld [vmem:[%s1 + $0x418] sm:$0xf]
  %v320 = vld [vmem:[%s1 + $0x41c] sm:$0xf]
  %v321 = vld [vmem:[%s1 + $0x420] sm:$0xf]
  %v322 = vld [vmem:[%s1 + $0x424] sm:$0xf]
  %v323 = vld [vmem:[%s1 + $0x428] sm:$0xf]
  %v324 = vld [vmem:[%s1 + $0x42c] sm:$0xf]
  %v325 = vld [vmem:[%s1 + $0x430] sm:$0xf]
  %v326 = vld [vmem:[%s1 + $0x434] sm:$0xf]
  %v327 = vld [vmem:[%s1 + $0x438] sm:$0xf]
  %v328 = vld [vmem:[%s1 + $0x43c] sm:$0xf]
  %v329 = vld [vmem:[%s1 + $0x440] sm:$0xf]
  %v330 = vld [vmem:[%s1 + $0x444] sm:$0xf]
  %v331 = vld [vmem:[%s1 + $0x448] sm:$0xf]
  %v332 = vld [vmem:[%s1 + $0x44c] sm:$0xf]
  %v333 = vld [vmem:[%s1 + $0x450] sm:$0xf]
  %v334 = vld [vmem:[%s1 + $0x454] sm:$0xf]
  %v335 = vld [vmem:[%s1 + $0x458] sm:$0xf]
  %v336 = vld [vmem:[%s1 + $0x45c] sm:$0xf]
  %v337 = vld [vmem:[%s1 + $0x460] sm:$0xf]
  %v338 = vld [vmem:[%s1 + $0x464] sm:$0xf]
  %v339 = vld [vmem:[%s1 + $0x468] sm:$0xf]
  %v340 = vld [vmem:[%s1 + $0x46c] sm:$0xf]
  %v341 = vld [vmem:[%s1 + $0x470] sm:$0xf]
  %v342 = vld [vmem:[%s1 + $0x474] sm:$0xf]
  %v343 = vld [vmem:[%s1 + $0x478] sm:$0xf]
  %v344 = vld [vmem:[%s1 + $0x47c] sm:$0xf]
  %v345 = vld [vmem:[%s1 + $0x480] sm:$0xf]
  %v346 = vld [vmem:[%s1 + $0x484] sm:$0xf]
  %v347 = vld [vmem:[%s1 + $0x488] sm:$0xf]
  %v348 = vld [vmem:[%s1 + $0x48c] sm:$0xf]
  %v349 = vld [vmem:[%s1 + $0x490] sm:$0xf]
  %v350 = vld [vmem:[%s1 + $0x494] sm:$0xf]
  %v351 = vld [vmem:[%s1 + $0x498] sm:$0xf]
  %v352 = vld [vmem:[%s1 + $0x49c] sm:$0xf]
  %v353 = vld [vmem:[%s1 + $0x4a0] sm:$0xf]
  %v354 = vld [vmem:[%s1 + $0x4a4] sm:$0xf]
  %v355 = vld [vmem:[%s1 + $0x4a8] sm:$0xf]
  %v356 = vld [vmem:[%s1 + $0x4ac] sm:$0xf]
  %v357 = vld [vmem:[%s1 + $0x4b0] sm:$0xf]
  %v358 = vld [vmem:[%s1 + $0x4b4] sm:$0xf]
  %v359 = vld [vmem:[%s1 + $0x4b8] sm:$0xf]
  %v360 = vld [vmem:[%s1 + $0x4bc] sm:$0xf]
  %v361 = vld [vmem:[%s1 + $0x4c0] sm:$0xf]
  %v362 = vld [vmem:[%s1 + $0x4c4] sm:$0xf]
  %v363 = vld [vmem:[%s1 + $0x4c8] sm:$0xf]
  %v364 = vld [vmem:[%s1 + $0x4cc] sm:$0xf]
  %v365 = vld [vmem:[%s1 + $0x4d0] sm:$0xf]
  %v366 = vld [vmem:[%s1 + $0x4d4] sm:$0xf]
  %v367 = vld [vmem:[%s1 + $0x4d8] sm:$0xf]
  %v368 = vld [vmem:[%s1 + $0x4dc] sm:$0xf]
  %v369 = vld [vmem:[%s1 + $0x4e0] sm:$0xf]
  %v370 = vld [vmem:[%s1 + $0x4e4] sm:$0xf]
  %v371 = vld [vmem:[%s1 + $0x4e8] sm:$0xf]
  %v372 = vld [vmem:[%s1 + $0x4ec] sm:$0xf]
  %v373 = vld [vmem:[%s1 + $0x4f0] sm:$0xf]
  %v374 = vld [vmem:[%s1 + $0x4f4] sm:$0xf]
  %v375 = vld [vmem:[%s1 + $0x4f8] sm:$0xf]
  %v376 = vld [vmem:[%s1 + $0x4fc] sm:$0xf]
  %v377 = vld [vmem:[%s1 + $0x500] sm:$0xf]
  %v378 = vld [vmem:[%s1 + $0x504] sm:$0xf]
  %v379 = vld [vmem:[%s1 + $0x508] sm:$0xf]
  %v380 = vld [vmem:[%s1 + $0x50c] sm:$0xf]
  %v381 = vld [vmem:[%s1 + $0x510] sm:$0xf]
  %v382 = vld [vmem:[%s1 + $0x514] sm:$0xf]
  %v383 = vld [vmem:[%s1 + $0x518] sm:$0xf]
  %v384 = vld [vmem:[%s1 + $0x51c] sm:$0xf]
  %v385 = vld [vmem:[%s1 + $0x520] sm:$0xf]
  %v386 = vld [vmem:[%s1 + $0x524] sm:$0xf]
  %v387 = vld [vmem:[%s1 + $0x528] sm:$0xf]
  %v388 = vld [vmem:[%s1 + $0x52c] sm:$0xf]
  %v389 = vld [vmem:[%s1 + $0x530] sm:$0xf]
  %v390 = vld [vmem:[%s1 + $0x534] sm:$0xf]
  %v391 = vld [vmem:[%s1 + $0x538] sm:$0xf]
  %v392 = vld [vmem:[%s1 + $0x53c] sm:$0xf]
  %v393 = vld [vmem:[%s1 + $0x540] sm:$0xf]
  %v394 = vld [vmem:[%s1 + $0x544] sm:$0xf]
  %v395 = vld [vmem:[%s1 + $0x548] sm:$0xf]
  %v396 = vld [vmem:[%s1 + $0x54c] sm:$0xf]
  %v397 = vld [vmem:[%s1 + $0x550] sm:$0xf]
  %v398 = vld [vmem:[%s1 + $0x554] sm:$0xf]
  %v399 = vld [vmem:[%s1 + $0x558] sm:$0xf]
  %v400 = vld [vmem:[%s1 + $0x55c] sm:$0xf]
  %v401 = vld [vmem:[%s1 + $0x560] sm:$0xf]
  %v402 = vld [vmem:[%s1 + $0x564] sm:$0xf]
  %v403 = vld [vmem:[%s1 + $0x568] sm:$0xf]
  %v404 = vld [vmem:[%s1 + $0x56c] sm:$0xf]
  %v405 = vld [vmem:[%s1 + $0x570] sm:$0xf]
  %v406 = vld [vmem:[%s1 + $0x574] sm:$0xf]
  %v407 = vld [vmem:[%s1 + $0x578] sm:$0xf]
  %v408 = vld [vmem:[%s1 + $0x57c] sm:$0xf]
  %v409 = vld [vmem:[%s1 + $0x580] sm:$0xf]
  %v410 = vld [vmem:[%s1 + $0x584] sm:$0xf]
  %v411 = vld [vmem:[%s1 + $0x588] sm:$0xf]
  %v412 = vld [vmem:[%s1 + $0x58c] sm:$0xf]
  %v413 = vld [vmem:[%s1 + $0x590] sm:$0xf]
  %v414 = vld [vmem:[%s1 + $0x594] sm:$0xf]
  %v415 = vld [vmem:[%s1 + $0x598] sm:$0xf]
  %v416 = vld [vmem:[%s1 + $0x59c] sm:$0xf]
  %v417 = vld [vmem:[%s1 + $0x5a0] sm:$0xf]
  %v418 = vld [vmem:[%s1 + $0x5a4] sm:$0xf]
  %v419 = vld [vmem:[%s1 + $0x5a8] sm:$0xf]
  %v420 = vld [vmem:[%s1 + $0x5ac] sm:$0xf]
  %v421 = vld [vmem:[%s1 + $0x5b0] sm:$0xf]
  %v422 = vld [vmem:[%s1 + $0x5b4] sm:$0xf]
  %v423 = vld [vmem:[%s1 + $0x5b8] sm:$0xf]
  %v424 = vld [vmem:[%s1 + $0x5bc] sm:$0xf]
  %v425 = vld [vmem:[%s1 + $0x5c0] sm:$0xf]
  %v426 = vld [vmem:[%s1 + $0x5c4] sm:$0xf]
  %v427 = vld [vmem:[%s1 + $0x5c8] sm:$0xf]
  %v428 = vld [vmem:[%s1 + $0x5cc] sm:$0xf]
  %v429 = vld [vmem:[%s1 + $0x5d0] sm:$0xf]
  %v430 = vld [vmem:[%s1 + $0x5d4] sm:$0xf]
  %v431 = vld [vmem:[%s1 + $0x5d8] sm:$0xf]
  %v432 = vld [vmem:[%s1 + $0x5dc] sm:$0xf]
  %v433 = vld [vmem:[%s1 + $0x5e0] sm:$0xf]
  %v434 = vld [vmem:[%s1 + $0x5e4] sm:$0xf]
  %v435 = vld [vmem:[%s1 + $0x5e8] sm:$0xf]
  %v436 = vld [vmem:[%s1 + $0x5ec] sm:$0xf]
  %v437 = vld [vmem:[%s1 + $0x5f0] sm:$0xf]
  %v438 = vld [vmem:[%s1 + $0x5f4] sm:$0xf]
  %v439 = vld [vmem:[%s1 + $0x5f8] sm:$0xf]
  %v440 = vld [vmem:[%s1 + $0x5fc] sm:$0xf]
  %v441 = vld [vmem:[%s1 + $0x600] sm:$0xf]
  %v442 = vld [vmem:[%s1 + $0x604] sm:$0xf]
  %v443 = vld [vmem:[%s1 + $0x608] sm:$0xf]
  %v444 = vld [vmem:[%s1 + $0x60c] sm:$0xf]
  %v445 = vld [vmem:[%s1 + $0x610] sm:$0xf]
  %v446 = vld [vmem:[%s1 + $0x614] sm:$0xf]
  %v447 = vld [vmem:[%s1 + $0x618] sm:$0xf]
  %v448 = vld [vmem:[%s1 + $0x61c] sm:$0xf]
  %v449 = vld [vmem:[%s1 + $0x620] sm:$0xf]
  %v450 = vld [vmem:[%s1 + $0x624] sm:$0xf]
  %v451 = vld [vmem:[%s1 + $0x628] sm:$0xf]
  %v452 = vld [vmem:[%s1 + $0x62c] sm:$0xf]
  %v453 = vld [vmem:[%s1 + $0x630] sm:$0xf]
  %v454 = vld [vmem:[%s1 + $0x634] sm:$0xf]
  %v455 = vld [vmem:[%s1 + $0x638] sm:$0xf]
  %v456 = vld [vmem:[%s1 + $0x63c] sm:$0xf]
  %v457 = vld [vmem:[%s1 + $0x640] sm:$0xf]
  %v458 = vld [vmem:[%s1 + $0x644] sm:$0xf]
  %v459 = vld [vmem:[%s1 + $0x648] sm:$0xf]
  %v460 = vld [vmem:[%s1 + $0x64c] sm:$0xf]
  %v461 = vld [vmem:[%s1 + $0x650] sm:$0xf]
  %v462 = vld [vmem:[%s1 + $0x654] sm:$0xf]
  %v463 = vld [vmem:[%s1 + $0x658] sm:$0xf]
  %v464 = vld [vmem:[%s1 + $0x65c] sm:$0xf]
  %v465 = vld [vmem:[%s1 + $0x660] sm:$0xf]
  %v466 = vld [vmem:[%s1 + $0x664] sm:$0xf]
  %v467 = vld [vmem:[%s1 + $0x668] sm:$0xf]
  %v468 = vld [vmem:[%s1 + $0x66c] sm:$0xf]
  %v469 = vld [vmem:[%s1 + $0x670] sm:$0xf]
  %v470 = vld [vmem:[%s1 + $0x674] sm:$0xf]
  %v471 = vld [vmem:[%s1 + $0x678] sm:$0xf]
  %v472 = vld [vmem:[%s1 + $0x67c] sm:$0xf]
  %v473 = vld [vmem:[%s1 + $0x680] sm:$0xf]
  %v474 = vld [vmem:[%s1 + $0x684] sm:$0xf]
  %v475 = vld [vmem:[%s1 + $0x688] sm:$0xf]
  %v476 = vld [vmem:[%s1 + $0x68c] sm:$0xf]
  %v477 = vld [vmem:[%s1 + $0x690] sm:$0xf]
  %v478 = vld [vmem:[%s1 + $0x694] sm:$0xf]
  %v479 = vld [vmem:[%s1 + $0x698] sm:$0xf]
  %v480 = vld [vmem:[%s1 + $0x69c] sm:$0xf]
  %v481 = vld [vmem:[%s1 + $0x6a0] sm:$0xf]
  %v482 = vld [vmem:[%s1 + $0x6a4] sm:$0xf]
  %v483 = vld [vmem:[%s1 + $0x6a8] sm:$0xf]
  %v484 = vld [vmem:[%s1 + $0x6ac] sm:$0xf]
  %v485 = vld [vmem:[%s1 + $0x6b0] sm:$0xf]
  %v486 = vld [vmem:[%s1 + $0x6b4] sm:$0xf]
  %v487 = vld [vmem:[%s1 + $0x6b8] sm:$0xf]
  %v488 = vld [vmem:[%s1 + $0x6bc] sm:$0xf]
  %v489 = vld [vmem:[%s1 + $0x6c0] sm:$0xf]
  %v490 = vld [vmem:[%s1 + $0x6c4] sm:$0xf]
  %v491 = vld [vmem:[%s1 + $0x6c8] sm:$0xf]
  %v492 = vld [vmem:[%s1 + $0x6cc] sm:$0xf]
  %v493 = vld [vmem:[%s1 + $0x6d0] sm:$0xf]
  %v494 = vld [vmem:[%s1 + $0x6d4] sm:$0xf]
  %v495 = vld [vmem:[%s1 + $0x6d8] sm:$0xf]
  %v496 = vld [vmem:[%s1 + $0x6dc] sm:$0xf]
  %v497 = vld [vmem:[%s1 + $0x6e0] sm:$0xf]
  %v498 = vld [vmem:[%s1 + $0x6e4] sm:$0xf]
  %v499 = vld [vmem:[%s1 + $0x6e8] sm:$0xf]
  %v500 = vld [vmem:[%s1 + $0x6ec] sm:$0xf]
  %v501 = vld [vmem:[%s1 + $0x6f0] sm:$0xf]
  %v502 = vld [vmem:[%s1 + $0x6f4] sm:$0xf]
  %v503 = vld [vmem:[%s1 + $0x6f8] sm:$0xf]
  %v504 = vld [vmem:[%s1 + $0x6fc] sm:$0xf]
  %v505 = vld [vmem:[%s1 + $0x700] sm:$0xf]
  %v506 = vld [vmem:[%s1 + $0x704] sm:$0xf]
  %v507 = vld [vmem:[%s1 + $0x708] sm:$0xf]
  %v508 = vld [vmem:[%s1 + $0x70c] sm:$0xf]
  %v509 = vld [vmem:[%s1 + $0x710] sm:$0xf]
  %v510 = vld [vmem:[%s1 + $0x714] sm:$0xf]
  %v511 = vld [vmem:[%s1 + $0x718] sm:$0xf]
  %v512 = vld [vmem:[%s1 + $0x71c] sm:$0xf]
  %v513 = vld [vmem:[%s1 + $0x720] sm:$0xf]
  %v514 = vld [vmem:[%s1 + $0x724] sm:$0xf]
  %v515 = vld [vmem:[%s1 + $0x728] sm:$0xf]
  %v516 = vld [vmem:[%s1 + $0x72c] sm:$0xf]
  %v517 = vld [vmem:[%s1 + $0x730] sm:$0xf]
  %v518 = vld [vmem:[%s1 + $0x734] sm:$0xf]
  %v519 = vld [vmem:[%s1 + $0x738] sm:$0xf]
  %v520 = vld [vmem:[%s1 + $0x73c] sm:$0xf]
  %v521 = vld [vmem:[%s1 + $0x740] sm:$0xf]
  %v522 = vld [vmem:[%s1 + $0x744] sm:$0xf]
  %v523 = vld [vmem:[%s1 + $0x748] sm:$0xf]
  %v524 = vld [vmem:[%s1 + $0x74c] sm:$0xf]
  %v525 = vld [vmem:[%s1 + $0x750] sm:$0xf]
  %v526 = vld [vmem:[%s1 + $0x754] sm:$0xf]
  %v527 = vld [vmem:[%s1 + $0x758] sm:$0xf]
  %v528 = vld [vmem:[%s1 + $0x75c] sm:$0xf]
  %v529 = vld [vmem:[%s1 + $0x760] sm:$0xf]
  %v530 = vld [vmem:[%s1 + $0x764] sm:$0xf]
  %v531 = vld [vmem:[%s1 + $0x768] sm:$0xf]
  %v532 = vld [vmem:[%s1 + $0x76c] sm:$0xf]
  %v533 = vld [vmem:[%s1 + $0x770] sm:$0xf]
  %v534 = vld [vmem:[%s1 + $0x774] sm:$0xf]
  %v535 = vld [vmem:[%s1 + $0x778] sm:$0xf]
  %v536 = vld [vmem:[%s1 + $0x77c] sm:$0xf]
  %v537 = vld [vmem:[%s1 + $0x780] sm:$0xf]
  %v538 = vld [vmem:[%s1 + $0x784] sm:$0xf]
  %v539 = vld [vmem:[%s1 + $0x788] sm:$0xf]
  %v540 = vld [vmem:[%s1 + $0x78c] sm:$0xf]
  %v541 = vld [vmem:[%s1 + $0x790] sm:$0xf]
  %v542 = vld [vmem:[%s1 + $0x794] sm:$0xf]
  %v543 = vld [vmem:[%s1 + $0x798] sm:$0xf]
  %v544 = vld [vmem:[%s1 + $0x79c] sm:$0xf]
  %v545 = vld [vmem:[%s1 + $0x7a0] sm:$0xf]
  %v546 = vld [vmem:[%s1 + $0x7a4] sm:$0xf]
  %v547 = vld [vmem:[%s1 + $0x7a8] sm:$0xf]
  %v548 = vld [vmem:[%s1 + $0x7ac] sm:$0xf]
  %v549 = vld [vmem:[%s1 + $0x7b0] sm:$0xf]
  %v550 = vld [vmem:[%s1 + $0x7b4] sm:$0xf]
  %v551 = vld [vmem:[%s1 + $0x7b8] sm:$0xf]
  %v552 = vld [vmem:[%s1 + $0x7bc] sm:$0xf]
  %v553 = vld [vmem:[%s1 + $0x7c0] sm:$0xf]
  %v554 = vld [vmem:[%s1 + $0x7c4] sm:$0xf]
  %v555 = vld [vmem:[%s1 + $0x7c8] sm:$0xf]
  %v556 = vld [vmem:[%s1 + $0x7cc] sm:$0xf]
  %v557 = vld [vmem:[%s1 + $0x7d0] sm:$0xf]
  %v558 = vld [vmem:[%s1 + $0x7d4] sm:$0xf]
  %v559 = vld [vmem:[%s1 + $0x7d8] sm:$0xf]
  %v560 = vld [vmem:[%s1 + $0x7dc] sm:$0xf]
  %v561 = vld [vmem:[%s1 + $0x7e0] sm:$0xf]
  %v562 = vld [vmem:[%s1 + $0x7e4] sm:$0xf]
  %v563 = vld [vmem:[%s1 + $0x7e8] sm:$0xf]
  %v564 = vld [vmem:[%s1 + $0x7ec] sm:$0xf]
  %v565 = vld [vmem:[%s1 + $0x7f0] sm:$0xf]
  %v566 = vld [vmem:[%s1 + $0x7f4] sm:$0xf]
  %v567 = vld [vmem:[%s1 + $0x7f8] sm:$0xf]
  %v568 = vld [vmem:[%s1 + $0x7fc] sm:$0xf]
  %v569 = vld [vmem:[%s1 + $0x800] sm:$0xf]
  %v570 = vld [vmem:[%s1 + $0x804] sm:$0xf]
  %v571 = vld [vmem:[%s1 + $0x808] sm:$0xf]
  %v572 = vld [vmem:[%s1 + $0x80c] sm:$0xf]
  %v573 = vld [vmem:[%s1 + $0x810] sm:$0xf]
  %v574 = vld [vmem:[%s1 + $0x814] sm:$0xf]
  %v575 = vld [vmem:[%s1 + $0x818] sm:$0xf]
  %v576 = vld [vmem:[%s1 + $0x81c] sm:$0xf]
  %v577 = vld [vmem:[%s1 + $0x820] sm:$0xf]
  %v578 = vld [vmem:[%s1 + $0x824] sm:$0xf]
  %v579 = vld [vmem:[%s1 + $0x828] sm:$0xf]
  %v580 = vld [vmem:[%s1 + $0x82c] sm:$0xf]
  %v581 = vld [vmem:[%s1 + $0x830] sm:$0xf]
  %v582 = vld [vmem:[%s1 + $0x834] sm:$0xf]
  %v583 = vld [vmem:[%s1 + $0x838] sm:$0xf]
  %v584 = vld [vmem:[%s1 + $0x83c] sm:$0xf]
  %v585 = vld [vmem:[%s1 + $0x840] sm:$0xf]
  %v586 = vld [vmem:[%s1 + $0x844] sm:$0xf]
  %v587 = vld [vmem:[%s1 + $0x848] sm:$0xf]
  %v588 = vld [vmem:[%s1 + $0x84c] sm:$0xf]
  %v589 = vld [vmem:[%s1 + $0x850] sm:$0xf]
  %v590 = vld [vmem:[%s1 + $0x854] sm:$0xf]
  %v591 = vld [vmem:[%s1 + $0x858] sm:$0xf]
  %v592 = vld [vmem:[%s1 + $0x85c] sm:$0xf]
  %v593 = vld [vmem:[%s1 + $0x860] sm:$0xf]
  %v594 = vld [vmem:[%s1 + $0x864] sm:$0xf]
  %v595 = vld [vmem:[%s1 + $0x868] sm:$0xf]
  %v596 = vld [vmem:[%s1 + $0x86c] sm:$0xf]
  %v597 = vld [vmem:[%s1 + $0x870] sm:$0xf]
  %v598 = vld [vmem:[%s1 + $0x874] sm:$0xf]
  %v599 = vld [vmem:[%s1 + $0x878] sm:$0xf]
  %v600 = vld [vmem:[%s1 + $0x87c] sm:$0xf]
  %v601 = vld [vmem:[%s1 + $0x880] sm:$0xf]
  %v602 = vld [vmem:[%s1 + $0x884] sm:$0xf]
  %v603 = vld [vmem:[%s1 + $0x888] sm:$0xf]
  %v604 = vld [vmem:[%s1 + $0x88c] sm:$0xf]
  %v605 = vld [vmem:[%s1 + $0x890] sm:$0xf]
  %v606 = vld [vmem:[%s1 + $0x894] sm:$0xf]
  %v607 = vld [vmem:[%s1 + $0x898] sm:$0xf]
  %v608 = vld [vmem:[%s1 + $0x89c] sm:$0xf]
  %v609 = vld [vmem:[%s1 + $0x8a0] sm:$0xf]
  %v610 = vld [vmem:[%s1 + $0x8a4] sm:$0xf]
  %v611 = vld [vmem:[%s1 + $0x8a8] sm:$0xf]
  %v612 = vld [vmem:[%s1 + $0x8ac] sm:$0xf]
  %v613 = vld [vmem:[%s1 + $0x8b0] sm:$0xf]
  %v614 = vld [vmem:[%s1 + $0x8b4] sm:$0xf]
  %v615 = vld [vmem:[%s1 + $0x8b8] sm:$0xf]
  %v616 = vld [vmem:[%s1 + $0x8bc] sm:$0xf]
  %v617 = vld [vmem:[%s1 + $0x8c0] sm:$0xf]
  %v618 = vld [vmem:[%s1 + $0x8c4] sm:$0xf]
  %v619 = vld [vmem:[%s1 + $0x8c8] sm:$0xf]
  %v620 = vld [vmem:[%s1 + $0x8cc] sm:$0xf]
  %v621 = vld [vmem:[%s1 + $0x8d0] sm:$0xf]
  %v622 = vld [vmem:[%s1 + $0x8d4] sm:$0xf]
  %v623 = vld [vmem:[%s1 + $0x8d8] sm:$0xf]
  %v624 = vld [vmem:[%s1 + $0x8dc] sm:$0xf]
  %v625 = vld [vmem:[%s1 + $0x8e0] sm:$0xf]
  %v626 = vld [vmem:[%s1 + $0x8e4] sm:$0xf]
  %v627 = vld [vmem:[%s1 + $0x8e8] sm:$0xf]
  %v628 = vld [vmem:[%s1 + $0x8ec] sm:$0xf]
  %v629 = vld [vmem:[%s1 + $0x8f0] sm:$0xf]
  %v630 = vld [vmem:[%s1 + $0x8f4] sm:$0xf]
  %v631 = vld [vmem:[%s1 + $0x8f8] sm:$0xf]
  %v632 = vld [vmem:[%s1 + $0x8fc] sm:$0xf]
  %v633 = vld [vmem:[%s1 + $0x900] sm:$0xf]
  %v634 = vld [vmem:[%s1 + $0x904] sm:$0xf]
  %v635 = vld [vmem:[%s1 + $0x908] sm:$0xf]
  %v636 = vld [vmem:[%s1 + $0x90c] sm:$0xf]
  %v637 = vld [vmem:[%s1 + $0x910] sm:$0xf]
  %v638 = vld [vmem:[%s1 + $0x914] sm:$0xf]
  %v639 = vld [vmem:[%s1 + $0x918] sm:$0xf]
  %v640 = vld [vmem:[%s1 + $0x91c] sm:$0xf]
  %v641 = vld [vmem:[%s1 + $0x920] sm:$0xf]
  %v642 = vld [vmem:[%s1 + $0x924] sm:$0xf]
  %v643 = vld [vmem:[%s1 + $0x928] sm:$0xf]
  %v644 = vld [vmem:[%s1 + $0x92c] sm:$0xf]
  %v645 = vld [vmem:[%s1 + $0x930] sm:$0xf]
  %v646 = vld [vmem:[%s1 + $0x934] sm:$0xf]
  %v647 = vld [vmem:[%s1 + $0x938] sm:$0xf]
  %v648 = vld [vmem:[%s1 + $0x93c] sm:$0xf]
  %v649 = vld [vmem:[%s1 + $0x940] sm:$0xf]
  %v650 = vld [vmem:[%s1 + $0x944] sm:$0xf]
  %v651 = vld [vmem:[%s1 + $0x948] sm:$0xf]
  %v652 = vld [vmem:[%s1 + $0x94c] sm:$0xf]
  %v653 = vld [vmem:[%s1 + $0x950] sm:$0xf]
  %v654 = vld [vmem:[%s1 + $0x954] sm:$0xf]
  %v655 = vld [vmem:[%s1 + $0x958] sm:$0xf]
  %v656 = vld [vmem:[%s1 + $0x95c] sm:$0xf]
  %v657 = vld [vmem:[%s1 + $0x960] sm:$0xf]
  %v658 = vld [vmem:[%s1 + $0x964] sm:$0xf]
  %v659 = vld [vmem:[%s1 + $0x968] sm:$0xf]
  %v660 = vld [vmem:[%s1 + $0x96c] sm:$0xf]
  %v661 = vld [vmem:[%s1 + $0x970] sm:$0xf]
  %v662 = vld [vmem:[%s1 + $0x974] sm:$0xf]
  %v663 = vld [vmem:[%s1 + $0x978] sm:$0xf]
  %v664 = vld [vmem:[%s1 + $0x97c] sm:$0xf]
  %v665 = vld [vmem:[%s1 + $0x980] sm:$0xf]
  %v666 = vld [vmem:[%s1 + $0x984] sm:$0xf]
  %v667 = vld [vmem:[%s1 + $0x988] sm:$0xf]
  %v668 = vld [vmem:[%s1 + $0x98c] sm:$0xf]
  %v669 = vld [vmem:[%s1 + $0x990] sm:$0xf]
  %v670 = vld [vmem:[%s1 + $0x994] sm:$0xf]
  %v671 = vld [vmem:[%s1 + $0x998] sm:$0xf]
  %v672 = vld [vmem:[%s1 + $0x99c] sm:$0xf]
  %v673 = vld [vmem:[%s1 + $0x9a0] sm:$0xf]
  %v674 = vld [vmem:[%s1 + $0x9a4] sm:$0xf]
  %v675 = vld [vmem:[%s1 + $0x9a8] sm:$0xf]
  %v676 = vld [vmem:[%s1 + $0x9ac] sm:$0xf]
  %v677 = vld [vmem:[%s1 + $0x9b0] sm:$0xf]
  %v678 = vld [vmem:[%s1 + $0x9b4] sm:$0xf]
  %v679 = vld [vmem:[%s1 + $0x9b8] sm:$0xf]
  %v680 = vld [vmem:[%s1 + $0x9bc] sm:$0xf]
  %v681 = vld [vmem:[%s1 + $0x9c0] sm:$0xf]
  %v682 = vld [vmem:[%s1 + $0x9c4] sm:$0xf]
  %v683 = vld [vmem:[%s1 + $0x9c8] sm:$0xf]
  %v684 = vld [vmem:[%s1 + $0x9cc] sm:$0xf]
  %v685 = vld [vmem:[%s1 + $0x9d0] sm:$0xf]
  %v686 = vld [vmem:[%s1 + $0x9d4] sm:$0xf]
  %v687 = vld [vmem:[%s1 + $0x9d8] sm:$0xf]
  %v688 = vld [vmem:[%s1 + $0x9dc] sm:$0xf]
  %v689 = vld [vmem:[%s1 + $0x9e0] sm:$0xf]
  %v690 = vld [vmem:[%s1 + $0x9e4] sm:$0xf]
  %v691 = vld [vmem:[%s1 + $0x9e8] sm:$0xf]
  %v692 = vld [vmem:[%s1 + $0x9ec] sm:$0xf]
  %v693 = vld [vmem:[%s1 + $0x9f0] sm:$0xf]
  %v694 = vld [vmem:[%s1 + $0x9f4] sm:$0xf]
  %v695 = vld [vmem:[%s1 + $0x9f8] sm:$0xf]
  %v696 = vld [vmem:[%s1 + $0x9fc] sm:$0xf]
  %v697 = vld [vmem:[%s1 + $0xa00] sm:$0xf]
  %v698 = vld [vmem:[%s1 + $0xa04] sm:$0xf]
  %v699 = vld [vmem:[%s1 + $0xa08] sm:$0xf]
  %v700 = vld [vmem:[%s1 + $0xa0c] sm:$0xf]
  %v701 = vld [vmem:[%s1 + $0xa10] sm:$0xf]
  %v702 = vld [vmem:[%s1 + $0xa14] sm:$0xf]
  %v703 = vld [vmem:[%s1 + $0xa18] sm:$0xf]
  %v704 = vld [vmem:[%s1 + $0xa1c] sm:$0xf]
  %v705 = vld [vmem:[%s1 + $0xa20] sm:$0xf]
  %v706 = vld [vmem:[%s1 + $0xa24] sm:$0xf]
  %v707 = vld [vmem:[%s1 + $0xa28] sm:$0xf]
  %v708 = vld [vmem:[%s1 + $0xa2c] sm:$0xf]
  %v709 = vld [vmem:[%s1 + $0xa30] sm:$0xf]
  %v710 = vld [vmem:[%s1 + $0xa34] sm:$0xf]
  %v711 = vld [vmem:[%s1 + $0xa38] sm:$0xf]
  %v712 = vld [vmem:[%s1 + $0xa3c] sm:$0xf]
  %v713 = vld [vmem:[%s1 + $0xa40] sm:$0xf]
  %v714 = vld [vmem:[%s1 + $0xa44] sm:$0xf]
  %v715 = vld [vmem:[%s1 + $0xa48] sm:$0xf]
  %v716 = vld [vmem:[%s1 + $0xa4c] sm:$0xf]
  %v717 = vld [vmem:[%s1 + $0xa50] sm:$0xf]
  %v718 = vld [vmem:[%s1 + $0xa54] sm:$0xf]
  %v719 = vld [vmem:[%s1 + $0xa58] sm:$0xf]
  %v720 = vld [vmem:[%s1 + $0xa5c] sm:$0xf]
  %v721 = vld [vmem:[%s1 + $0xa60] sm:$0xf]
  %v722 = vld [vmem:[%s1 + $0xa64] sm:$0xf]
  %v723 = vld [vmem:[%s1 + $0xa68] sm:$0xf]
  %v724 = vld [vmem:[%s1 + $0xa6c] sm:$0xf]
  %v725 = vld [vmem:[%s1 + $0xa70] sm:$0xf]
  %v726 = vld [vmem:[%s1 + $0xa74] sm:$0xf]
  %v727 = vld [vmem:[%s1 + $0xa78] sm:$0xf]
  %v728 = vld [vmem:[%s1 + $0xa7c] sm:$0xf]
  %v729 = vld [vmem:[%s1 + $0xa80] sm:$0xf]
  %v730 = vld [vmem:[%s1 + $0xa84] sm:$0xf]
  %v731 = vld [vmem:[%s1 + $0xa88] sm:$0xf]
  %v732 = vld [vmem:[%s1 + $0xa8c] sm:$0xf]
  %v733 = vld [vmem:[%s1 + $0xa90] sm:$0xf]
  %v734 = vld [vmem:[%s1 + $0xa94] sm:$0xf]
  %v735 = vld [vmem:[%s1 + $0xa98] sm:$0xf]
  %v736 = vld [vmem:[%s1 + $0xa9c] sm:$0xf]
  %v737 = vld [vmem:[%s1 + $0xaa0] sm:$0xf]
  %v738 = vld [vmem:[%s1 + $0xaa4] sm:$0xf]
  %v739 = vld [vmem:[%s1 + $0xaa8] sm:$0xf]
  %v740 = vld [vmem:[%s1 + $0xaac] sm:$0xf]
  %v741 = vld [vmem:[%s1 + $0xab0] sm:$0xf]
  %v742 = vld [vmem:[%s1 + $0xab4] sm:$0xf]
  %v743 = vld [vmem:[%s1 + $0xab8] sm:$0xf]
  %v744 = vld [vmem:[%s1 + $0xabc] sm:$0xf]
  %v745 = vld [vmem:[%s1 + $0xac0] sm:$0xf]
  %v746 = vld [vmem:[%s1 + $0xac4] sm:$0xf]
  %v747 = vld [vmem:[%s1 + $0xac8] sm:$0xf]
  %v748 = vld [vmem:[%s1 + $0xacc] sm:$0xf]
  %v749 = vld [vmem:[%s1 + $0xad0] sm:$0xf]
  %v750 = vld [vmem:[%s1 + $0xad4] sm:$0xf]
  %v751 = vld [vmem:[%s1 + $0xad8] sm:$0xf]
  %v752 = vld [vmem:[%s1 + $0xadc] sm:$0xf]
  %v753 = vld [vmem:[%s1 + $0xae0] sm:$0xf]
  %v754 = vld [vmem:[%s1 + $0xae4] sm:$0xf]
  %v755 = vld [vmem:[%s1 + $0xae8] sm:$0xf]
  %v756 = vld [vmem:[%s1 + $0xaec] sm:$0xf]
  %v757 = vld [vmem:[%s1 + $0xaf0] sm:$0xf]
  %v758 = vld [vmem:[%s1 + $0xaf4] sm:$0xf]
  %v759 = vld [vmem:[%s1 + $0xaf8] sm:$0xf]
  %v760 = vld [vmem:[%s1 + $0xafc] sm:$0xf]
  %v761 = vld [vmem:[%s1 + $0xb00] sm:$0xf]
  %v762 = vld [vmem:[%s1 + $0xb04] sm:$0xf]
  %v763 = vld [vmem:[%s1 + $0xb08] sm:$0xf]
  %v764 = vld [vmem:[%s1 + $0xb0c] sm:$0xf]
  %v765 = vld [vmem:[%s1 + $0xb10] sm:$0xf]
  %v766 = vld [vmem:[%s1 + $0xb14] sm:$0xf]
  %v767 = vld [vmem:[%s1 + $0xb18] sm:$0xf]
  %v768 = vld [vmem:[%s1 + $0xb1c] sm:$0xf]
  %v769 = vld [vmem:[%s1 + $0xb20] sm:$0xf]
  %v770 = vld [vmem:[%s1 + $0xb24] sm:$0xf]
  %v771 = vld [vmem:[%s1 + $0xb28] sm:$0xf]
  %v772 = vld [vmem:[%s1 + $0xb2c] sm:$0xf]
  %v773 = vld [vmem:[%s1 + $0xb30] sm:$0xf]
  %v774 = vld [vmem:[%s1 + $0xb34] sm:$0xf]
  %v775 = vld [vmem:[%s1 + $0xb38] sm:$0xf]
  %v776 = vld [vmem:[%s1 + $0xb3c] sm:$0xf]
  %v777 = vld [vmem:[%s1 + $0xb40] sm:$0xf]
  %v778 = vld [vmem:[%s1 + $0xb44] sm:$0xf]
  %v779 = vld [vmem:[%s1 + $0xb48] sm:$0xf]
  %v780 = vld [vmem:[%s1 + $0xb4c] sm:$0xf]
  %v781 = vld [vmem:[%s1 + $0xb50] sm:$0xf]
  %v782 = vld [vmem:[%s1 + $0xb54] sm:$0xf]
  %v783 = vld [vmem:[%s1 + $0xb58] sm:$0xf]
  %v784 = vld [vmem:[%s1 + $0xb5c] sm:$0xf]
  %v785 = vld [vmem:[%s1 + $0xb60] sm:$0xf]
  %v786 = vld [vmem:[%s1 + $0xb64] sm:$0xf]
  %v787 = vld [vmem:[%s1 + $0xb68] sm:$0xf]
  %v788 = vld [vmem:[%s1 + $0xb6c] sm:$0xf]
  %v789 = vld [vmem:[%s1 + $0xb70] sm:$0xf]
  %v790 = vld [vmem:[%s1 + $0xb74] sm:$0xf]
  %v791 = vld [vmem:[%s1 + $0xb78] sm:$0xf]
  %v792 = vld [vmem:[%s1 + $0xb7c] sm:$0xf]
  %v793 = vld [vmem:[%s1 + $0xb80] sm:$0xf]
  %v794 = vld [vmem:[%s1 + $0xb84] sm:$0xf]
  %v795 = vld [vmem:[%s1 + $0xb88] sm:$0xf]
  %v796 = vld [vmem:[%s1 + $0xb8c] sm:$0xf]
  %v797 = vld [vmem:[%s1 + $0xb90] sm:$0xf]
  %v798 = vld [vmem:[%s1 + $0xb94] sm:$0xf]
  %v799 = vld [vmem:[%s1 + $0xb98] sm:$0xf]
  %v800 = vld [vmem:[%s1 + $0xb9c] sm:$0xf]
  %v801 = vld [vmem:[%s1 + $0xba0] sm:$0xf]
  %v802 = vld [vmem:[%s1 + $0xba4] sm:$0xf]
  %v803 = vld [vmem:[%s1 + $0xba8] sm:$0xf]
  %v804 = vld [vmem:[%s1 + $0xbac] sm:$0xf]
  %v805 = vld [vmem:[%s1 + $0xbb0] sm:$0xf]
  %v806 = vld [vmem:[%s1 + $0xbb4] sm:$0xf]
  %v807 = vld [vmem:[%s1 + $0xbb8] sm:$0xf]
  %v808 = vld [vmem:[%s1 + $0xbbc] sm:$0xf]
  %v809 = vld [vmem:[%s1 + $0xbc0] sm:$0xf]
  %v810 = vld [vmem:[%s1 + $0xbc4] sm:$0xf]
  %v811 = vld [vmem:[%s1 + $0xbc8] sm:$0xf]
  %v812 = vld [vmem:[%s1 + $0xbcc] sm:$0xf]
  %v813 = vld [vmem:[%s1 + $0xbd0] sm:$0xf]
  %v814 = vld [vmem:[%s1 + $0xbd4] sm:$0xf]
  %v815 = vld [vmem:[%s1 + $0xbd8] sm:$0xf]
  %v816 = vld [vmem:[%s1 + $0xbdc] sm:$0xf]
  %v817 = vld [vmem:[%s1 + $0xbe0] sm:$0xf]
  %v818 = vld [vmem:[%s1 + $0xbe4] sm:$0xf]
  %v819 = vld [vmem:[%s1 + $0xbe8] sm:$0xf]
  %v820 = vld [vmem:[%s1 + $0xbec] sm:$0xf]
  %v821 = vld [vmem:[%s1 + $0xbf0] sm:$0xf]
  %v822 = vld [vmem:[%s1 + $0xbf4] sm:$0xf]
  %v823 = vld [vmem:[%s1 + $0xbf8] sm:$0xf]
  %v824 = vld [vmem:[%s1 + $0xbfc] sm:$0xf]
  %v825 = vld [vmem:[%s1 + $0xc00] sm:$0xf]
  %v826 = vld [vmem:[%s1 + $0xc04] sm:$0xf]
  %v827 = vld [vmem:[%s1 + $0xc08] sm:$0xf]
  %v828 = vld [vmem:[%s1 + $0xc0c] sm:$0xf]
  %v829 = vld [vmem:[%s1 + $0xc10] sm:$0xf]
  %v830 = vld [vmem:[%s1 + $0xc14] sm:$0xf]
  %v831 = vld [vmem:[%s1 + $0xc18] sm:$0xf]
  %v832 = vld [vmem:[%s1 + $0xc1c] sm:$0xf]
  %v833 = vld [vmem:[%s1 + $0xc20] sm:$0xf]
  %v834 = vld [vmem:[%s1 + $0xc24] sm:$0xf]
  %v835 = vld [vmem:[%s1 + $0xc28] sm:$0xf]
  %v836 = vld [vmem:[%s1 + $0xc2c] sm:$0xf]
  %v837 = vld [vmem:[%s1 + $0xc30] sm:$0xf]
  %v838 = vld [vmem:[%s1 + $0xc34] sm:$0xf]
  %v839 = vld [vmem:[%s1 + $0xc38] sm:$0xf]
  %v840 = vld [vmem:[%s1 + $0xc3c] sm:$0xf]
  %v841 = vld [vmem:[%s1 + $0xc40] sm:$0xf]
  %v842 = vld [vmem:[%s1 + $0xc44] sm:$0xf]
  %v843 = vld [vmem:[%s1 + $0xc48] sm:$0xf]
  %v844 = vld [vmem:[%s1 + $0xc4c] sm:$0xf]
  %v845 = vld [vmem:[%s1 + $0xc50] sm:$0xf]
  %v846 = vld [vmem:[%s1 + $0xc54] sm:$0xf]
  %v847 = vld [vmem:[%s1 + $0xc58] sm:$0xf]
  %v848 = vld [vmem:[%s1 + $0xc5c] sm:$0xf]
  %v849 = vld [vmem:[%s1 + $0xc60] sm:$0xf]
  %v850 = vld [vmem:[%s1 + $0xc64] sm:$0xf]
  %v851 = vld [vmem:[%s1 + $0xc68] sm:$0xf]
  %v852 = vld [vmem:[%s1 + $0xc6c] sm:$0xf]
  %v853 = vld [vmem:[%s1 + $0xc70] sm:$0xf]
  %v854 = vld [vmem:[%s1 + $0xc74] sm:$0xf]
  %v855 = vld [vmem:[%s1 + $0xc78] sm:$0xf]
  %v856 = vld [vmem:[%s1 + $0xc7c] sm:$0xf]
  %v857 = vld [vmem:[%s1 + $0xc80] sm:$0xf]
  %v858 = vld [vmem:[%s1 + $0xc84] sm:$0xf]
  %v859 = vld [vmem:[%s1 + $0xc88] sm:$0xf]
  %v860 = vld [vmem:[%s1 + $0xc8c] sm:$0xf]
  %v861 = vld [vmem:[%s1 + $0xc90] sm:$0xf]
  %v862 = vld [vmem:[%s1 + $0xc94] sm:$0xf]
  %v863 = vld [vmem:[%s1 + $0xc98] sm:$0xf]
  %v864 = vld [vmem:[%s1 + $0xc9c] sm:$0xf]
  %v865 = vld [vmem:[%s1 + $0xca0] sm:$0xf]
  %v866 = vld [vmem:[%s1 + $0xca4] sm:$0xf]
  %v867 = vld [vmem:[%s1 + $0xca8] sm:$0xf]
  %v868 = vld [vmem:[%s1 + $0xcac] sm:$0xf]
  %v869 = vld [vmem:[%s1 + $0xcb0] sm:$0xf]
  %v870 = vld [vmem:[%s1 + $0xcb4] sm:$0xf]
  %v871 = vld [vmem:[%s1 + $0xcb8] sm:$0xf]
  %v872 = vld [vmem:[%s1 + $0xcbc] sm:$0xf]
  %v873 = vld [vmem:[%s1 + $0xcc0] sm:$0xf]
  %v874 = vld [vmem:[%s1 + $0xcc4] sm:$0xf]
  %v875 = vld [vmem:[%s1 + $0xcc8] sm:$0xf]
  %v876 = vld [vmem:[%s1 + $0xccc] sm:$0xf]
  %v877 = vld [vmem:[%s1 + $0xcd0] sm:$0xf]
  %v878 = vld [vmem:[%s1 + $0xcd4] sm:$0xf]
  %v879 = vld [vmem:[%s1 + $0xcd8] sm:$0xf]
  %v880 = vld [vmem:[%s1 + $0xcdc] sm:$0xf]
  %v881 = vld [vmem:[%s1 + $0xce0] sm:$0xf]
  %v882 = vld [vmem:[%s1 + $0xce4] sm:$0xf]
  %v883 = vld [vmem:[%s1 + $0xce8] sm:$0xf]
  %v884 = vld [vmem:[%s1 + $0xcec] sm:$0xf]
  %v885 = vld [vmem:[%s1 + $0xcf0] sm:$0xf]
  %v886 = vld [vmem:[%s1 + $0xcf4] sm:$0xf]
  %v887 = vld [vmem:[%s1 + $0xcf8] sm:$0xf]
  %v888 = vld [vmem:[%s1 + $0xcfc] sm:$0xf]
  %v889 = vld [vmem:[%s1 + $0xd00] sm:$0xf]
  %v890 = vld [vmem:[%s1 + $0xd04] sm:$0xf]
  %v891 = vld [vmem:[%s1 + $0xd08] sm:$0xf]
  %v892 = vld [vmem:[%s1 + $0xd0c] sm:$0xf]
  %v893 = vld [vmem:[%s1 + $0xd10] sm:$0xf]
  %v894 = vld [vmem:[%s1 + $0xd14] sm:$0xf]
  %v895 = vld [vmem:[%s1 + $0xd18] sm:$0xf]
  %v896 = vld [vmem:[%s1 + $0xd1c] sm:$0xf]
  %v897 = vld [vmem:[%s1 + $0xd20] sm:$0xf]
  %v898 = vld [vmem:[%s1 + $0xd24] sm:$0xf]
  %v899 = vld [vmem:[%s1 + $0xd28] sm:$0xf]
  %v900 = vld [vmem:[%s1 + $0xd2c] sm:$0xf]
  %v901 = vld [vmem:[%s1 + $0xd30] sm:$0xf]
  %v902 = vld [vmem:[%s1 + $0xd34] sm:$0xf]
  %v903 = vld [vmem:[%s1 + $0xd38] sm:$0xf]
  %v904 = vld [vmem:[%s1 + $0xd3c] sm:$0xf]
  %v905 = vld [vmem:[%s1 + $0xd40] sm:$0xf]
  %v906 = vld [vmem:[%s1 + $0xd44] sm:$0xf]
  %v907 = vld [vmem:[%s1 + $0xd48] sm:$0xf]
  %v908 = vld [vmem:[%s1 + $0xd4c] sm:$0xf]
  %v909 = vld [vmem:[%s1 + $0xd50] sm:$0xf]
  %v910 = vld [vmem:[%s1 + $0xd54] sm:$0xf]
  %v911 = vld [vmem:[%s1 + $0xd58] sm:$0xf]
  %v912 = vld [vmem:[%s1 + $0xd5c] sm:$0xf]
  %v913 = vld [vmem:[%s1 + $0xd60] sm:$0xf]
  %v914 = vld [vmem:[%s1 + $0xd64] sm:$0xf]
  %v915 = vld [vmem:[%s1 + $0xd68] sm:$0xf]
  %v916 = vld [vmem:[%s1 + $0xd6c] sm:$0xf]
  %v917 = vld [vmem:[%s1 + $0xd70] sm:$0xf]
  %v918 = vld [vmem:[%s1 + $0xd74] sm:$0xf]
  %v919 = vld [vmem:[%s1 + $0xd78] sm:$0xf]
  %v920 = vld [vmem:[%s1 + $0xd7c] sm:$0xf]
  %v921 = vld [vmem:[%s1 + $0xd80] sm:$0xf]
  %v922 = vld [vmem:[%s1 + $0xd84] sm:$0xf]
  %v923 = vld [vmem:[%s1 + $0xd88] sm:$0xf]
  %v924 = vld [vmem:[%s1 + $0xd8c] sm:$0xf]
  %v925 = vld [vmem:[%s1 + $0xd90] sm:$0xf]
  %v926 = vld [vmem:[%s1 + $0xd94] sm:$0xf]
  %v927 = vld [vmem:[%s1 + $0xd98] sm:$0xf]
  %v928 = vld [vmem:[%s1 + $0xd9c] sm:$0xf]
  %v929 = vld [vmem:[%s1 + $0xda0] sm:$0xf]
  %v930 = vld [vmem:[%s1 + $0xda4] sm:$0xf]
  %v931 = vld [vmem:[%s1 + $0xda8] sm:$0xf]
  %v932 = vld [vmem:[%s1 + $0xdac] sm:$0xf]
  %v933 = vld [vmem:[%s1 + $0xdb0] sm:$0xf]
  %v934 = vld [vmem:[%s1 + $0xdb4] sm:$0xf]
  %v935 = vld [vmem:[%s1 + $0xdb8] sm:$0xf]
  %v936 = vld [vmem:[%s1 + $0xdbc] sm:$0xf]
  %v937 = vld [vmem:[%s1 + $0xdc0] sm:$0xf]
  %v938 = vld [vmem:[%s1 + $0xdc4] sm:$0xf]
  %v939 = vld [vmem:[%s1 + $0xdc8] sm:$0xf]
  %v940 = vld [vmem:[%s1 + $0xdcc] sm:$0xf]
  %v941 = vld [vmem:[%s1 + $0xdd0] sm:$0xf]
  %v942 = vld [vmem:[%s1 + $0xdd4] sm:$0xf]
  %v943 = vld [vmem:[%s1 + $0xdd8] sm:$0xf]
  %v944 = vld [vmem:[%s1 + $0xddc] sm:$0xf]
  %v945 = vld [vmem:[%s1 + $0xde0] sm:$0xf]
  %v946 = vld [vmem:[%s1 + $0xde4] sm:$0xf]
  %v947 = vld [vmem:[%s1 + $0xde8] sm:$0xf]
  %v948 = vld [vmem:[%s1 + $0xdec] sm:$0xf]
  %v949 = vld [vmem:[%s1 + $0xdf0] sm:$0xf]
  %v950 = vld [vmem:[%s1 + $0xdf4] sm:$0xf]
  %v951 = vld [vmem:[%s1 + $0xdf8] sm:$0xf]
  %v952 = vld [vmem:[%s1 + $0xdfc] sm:$0xf]
  %v953 = vld [vmem:[%s1 + $0xe00] sm:$0xf]
  %v954 = vld [vmem:[%s1 + $0xe04] sm:$0xf]
  %v955 = vld [vmem:[%s1 + $0xe08] sm:$0xf]
  %v956 = vld [vmem:[%s1 + $0xe0c] sm:$0xf]
  %v957 = vld [vmem:[%s1 + $0xe10] sm:$0xf]
  %v958 = vld [vmem:[%s1 + $0xe14] sm:$0xf]
  %v959 = vld [vmem:[%s1 + $0xe18] sm:$0xf]
  %v960 = vld [vmem:[%s1 + $0xe1c] sm:$0xf]
  %v961 = vld [vmem:[%s1 + $0xe20] sm:$0xf]
  %v962 = vld [vmem:[%s1 + $0xe24] sm:$0xf]
  %v963 = vld [vmem:[%s1 + $0xe28] sm:$0xf]
  %v964 = vld [vmem:[%s1 + $0xe2c] sm:$0xf]
  %v965 = vld [vmem:[%s1 + $0xe30] sm:$0xf]
  %v966 = vld [vmem:[%s1 + $0xe34] sm:$0xf]
  %v967 = vld [vmem:[%s1 + $0xe38] sm:$0xf]
  %v968 = vld [vmem:[%s1 + $0xe3c] sm:$0xf]
  %v969 = vld [vmem:[%s1 + $0xe40] sm:$0xf]
  %v970 = vld [vmem:[%s1 + $0xe44] sm:$0xf]
  %v971 = vld [vmem:[%s1 + $0xe48] sm:$0xf]
  %v972 = vld [vmem:[%s1 + $0xe4c] sm:$0xf]
  %v973 = vld [vmem:[%s1 + $0xe50] sm:$0xf]
  %v974 = vld [vmem:[%s1 + $0xe54] sm:$0xf]
  %v975 = vld [vmem:[%s1 + $0xe58] sm:$0xf]
  %v976 = vld [vmem:[%s1 + $0xe5c] sm:$0xf]
  %v977 = vld [vmem:[%s1 + $0xe60] sm:$0xf]
  %v978 = vld [vmem:[%s1 + $0xe64] sm:$0xf]
  %v979 = vld [vmem:[%s1 + $0xe68] sm:$0xf]
  %v980 = vld [vmem:[%s1 + $0xe6c] sm:$0xf]
  %v981 = vld [vmem:[%s1 + $0xe70] sm:$0xf]
  %v982 = vld [vmem:[%s1 + $0xe74] sm:$0xf]
  %v983 = vld [vmem:[%s1 + $0xe78] sm:$0xf]
  %v984 = vld [vmem:[%s1 + $0xe7c] sm:$0xf]
  %v985 = vld [vmem:[%s1 + $0xe80] sm:$0xf]
  %v986 = vld [vmem:[%s1 + $0xe84] sm:$0xf]
  %v987 = vld [vmem:[%s1 + $0xe88] sm:$0xf]
  %v988 = vld [vmem:[%s1 + $0xe8c] sm:$0xf]
  %v989 = vld [vmem:[%s1 + $0xe90] sm:$0xf]
  %v990 = vld [vmem:[%s1 + $0xe94] sm:$0xf]
  %v991 = vld [vmem:[%s1 + $0xe98] sm:$0xf]
  %v992 = vld [vmem:[%s1 + $0xe9c] sm:$0xf]
  %v993 = vld [vmem:[%s1 + $0xea0] sm:$0xf]
  %v994 = vld [vmem:[%s1 + $0xea4] sm:$0xf]
  %v995 = vld [vmem:[%s1 + $0xea8] sm:$0xf]
  %v996 = vld [vmem:[%s1 + $0xeac] sm:$0xf]
  %v997 = vld [vmem:[%s1 + $0xeb0] sm:$0xf]
  %v998 = vld [vmem:[%s1 + $0xeb4] sm:$0xf]
  %v999 = vld [vmem:[%s1 + $0xeb8] sm:$0xf]
  %v1000 = vld [vmem:[%s1 + $0xebc] sm:$0xf]
  %v1001 = vld [vmem:[%s1 + $0xec0] sm:$0xf]
  %v1002 = vld [vmem:[%s1 + $0xec4] sm:$0xf]
  %v1003 = vld [vmem:[%s1 + $0xec8] sm:$0xf]
  %v1004 = vld [vmem:[%s1 + $0xecc] sm:$0xf]
  %v1005 = vld [vmem:[%s1 + $0xed0] sm:$0xf]
  %v1006 = vld [vmem:[%s1 + $0xed4] sm:$0xf]
  %v1007 = vld [vmem:[%s1 + $0xed8] sm:$0xf]
  %v1008 = vld [vmem:[%s1 + $0xedc] sm:$0xf]
  %v1009 = vld [vmem:[%s1 + $0xee0] sm:$0xf]
  %v1010 = vld [vmem:[%s1 + $0xee4] sm:$0xf]
  %v1011 = vld [vmem:[%s1 + $0xee8] sm:$0xf]
  %v1012 = vld [vmem:[%s1 + $0xeec] sm:$0xf]
  %v1013 = vld [vmem:[%s1 + $0xef0] sm:$0xf]
  %v1014 = vld [vmem:[%s1 + $0xef4] sm:$0xf]
  %v1015 = vld [vmem:[%s1 + $0xef8] sm:$0xf]
  %v1016 = vld [vmem:[%s1 + $0xefc] sm:$0xf]
  %v1017 = vld [vmem:[%s1 + $0xf00] sm:$0xf]
  %v1018 = vld [vmem:[%s1 + $0xf04] sm:$0xf]
  %v1019 = vld [vmem:[%s1 + $0xf08] sm:$0xf]
  %v1020 = vld [vmem:[%s1 + $0xf0c] sm:$0xf]
  %v1021 = vld [vmem:[%s1 + $0xf10] sm:$0xf]
  %v1022 = vld [vmem:[%s1 + $0xf14] sm:$0xf]
  %v1023 = vld [vmem:[%s1 + $0xf18] sm:$0xf]
  %v1024 = vld [vmem:[%s1 + $0xf1c] sm:$0xf]
  %v1025 = vld [vmem:[%s1 + $0xf20] sm:$0xf]
  %v1026 = vld [vmem:[%s1 + $0xf24] sm:$0xf]
  %v1027 = vld [vmem:[%s1 + $0xf28] sm:$0xf]
  %v1028 = vld [vmem:[%s1 + $0xf2c] sm:$0xf]
  %v1029 = vld [vmem:[%s1 + $0xf30] sm:$0xf]
  %v1030 = vld [vmem:[%s1 + $0xf34] sm:$0xf]
  %v1031 = vld [vmem:[%s1 + $0xf38] sm:$0xf]
  %v1032 = vld [vmem:[%s1 + $0xf3c] sm:$0xf]
  %v1033 = vld [vmem:[%s1 + $0xf40] sm:$0xf]
  %v1034 = vld [vmem:[%s1 + $0xf44] sm:$0xf]
  %v1035 = vld [vmem:[%s1 + $0xf48] sm:$0xf]
  %v1036 = vld [vmem:[%s1 + $0xf4c] sm:$0xf]
  %v1037 = vld [vmem:[%s1 + $0xf50] sm:$0xf]
  %v1038 = vld [vmem:[%s1 + $0xf54] sm:$0xf]
  %v1039 = vld [vmem:[%s1 + $0xf58] sm:$0xf]
  %v1040 = vld [vmem:[%s1 + $0xf5c] sm:$0xf]
  %v1041 = vld [vmem:[%s1 + $0xf60] sm:$0xf]
  %v1042 = vld [vmem:[%s1 + $0xf64] sm:$0xf]
  %v1043 = vld [vmem:[%s1 + $0xf68] sm:$0xf]
  %v1044 = vld [vmem:[%s1 + $0xf6c] sm:$0xf]
  %v1045 = vld [vmem:[%s1 + $0xf70] sm:$0xf]
  %v1046 = vld [vmem:[%s1 + $0xf74] sm:$0xf]
  %v1047 = vld [vmem:[%s1 + $0xf78] sm:$0xf]
  %v1048 = vld [vmem:[%s1 + $0xf7c] sm:$0xf]
  %v1049 = vld [vmem:[%s1 + $0xf80] sm:$0xf]
  %v1050 = vld [vmem:[%s1 + $0xf84] sm:$0xf]
  %v1051 = vld [vmem:[%s1 + $0xf88] sm:$0xf]
  %v1052 = vld [vmem:[%s1 + $0xf8c] sm:$0xf]
  %v1053 = vld [vmem:[%s1 + $0xf90] sm:$0xf]
  %v1054 = vld [vmem:[%s1 + $0xf94] sm:$0xf]
  %v1055 = vld [vmem:[%s1 + $0xf98] sm:$0xf]
  %v1056 = vld [vmem:[%s1 + $0xf9c] sm:$0xf]
  %v1057 = vld [vmem:[%s1 + $0xfa0] sm:$0xf]
  %v1058 = vld [vmem:[%s1 + $0xfa4] sm:$0xf]
  %v1059 = vld [vmem:[%s1 + $0xfa8] sm:$0xf]
  %v1060 = vld [vmem:[%s1 + $0xfac] sm:$0xf]
  %v1061 = vld [vmem:[%s1 + $0xfb0] sm:$0xf]
  %v1062 = vld [vmem:[%s1 + $0xfb4] sm:$0xf]
  %v1063 = vld [vmem:[%s1 + $0xfb8] sm:$0xf]
  %v1064 = vld [vmem:[%s1 + $0xfbc] sm:$0xf]
  %v1065 = vld [vmem:[%s1 + $0xfc0] sm:$0xf]
  %v1066 = vld [vmem:[%s1 + $0xfc4] sm:$0xf]
  %v1067 = vld [vmem:[%s1 + $0xfc8] sm:$0xf]
  %v1068 = vld [vmem:[%s1 + $0xfcc] sm:$0xf]
  %v1069 = vld [vmem:[%s1 + $0xfd0] sm:$0xf]
  %v1070 = vld [vmem:[%s1 + $0xfd4] sm:$0xf]
  %v1071 = vld [vmem:[%s1 + $0xfd8] sm:$0xf]
  %v1072 = vld [vmem:[%s1 + $0xfdc] sm:$0xf]
  %v1073 = vld [vmem:[%s1 + $0xfe0] sm:$0xf]
  %v1074 = vld [vmem:[%s1 + $0xfe4] sm:$0xf]
  %v1075 = vld [vmem:[%s1 + $0xfe8] sm:$0xf]
  %v1076 = vld [vmem:[%s1 + $0xfec] sm:$0xf]
  %v1077 = vld [vmem:[%s1 + $0xff0] sm:$0xf]
  %v1078 = vld [vmem:[%s1 + $0xff4] sm:$0xf]
  %v1079 = vld [vmem:[%s1 + $0xff8] sm:$0xf]
  %v1080 = vld [vmem:[%s1 + $0xffc] sm:$0xf]
  %v1081 = vld [vmem:[%s1 + $0x1000] sm:$0xf]
  %v1082 = vld [vmem:[%s1 + $0x1004] sm:$0xf]
  %v1083 = vld [vmem:[%s1 + $0x1008] sm:$0xf]
  %v1084 = vld [vmem:[%s1 + $0x100c] sm:$0xf]
  %v1085 = vld [vmem:[%s1 + $0x1010] sm:$0xf]
  %v1086 = vld [vmem:[%s1 + $0x1014] sm:$0xf]
  %v1087 = vld [vmem:[%s1 + $0x1018] sm:$0xf]
  %v1088 = vld [vmem:[%s1 + $0x101c] sm:$0xf]
  %v1089 = vld [vmem:[%s1 + $0x1020] sm:$0xf]
  %v1090 = vld [vmem:[%s1 + $0x1024] sm:$0xf]
  %v1091 = vld [vmem:[%s1 + $0x1028] sm:$0xf]
  %v1092 = vld [vmem:[%s1 + $0x102c] sm:$0xf]
  %v1093 = vld [vmem:[%s1 + $0x1030] sm:$0xf]
  %v1094 = vld [vmem:[%s1 + $0x1034] sm:$0xf]
  %v1095 = vld [vmem:[%s1 + $0x1038] sm:$0xf]
  %v1096 = vld [vmem:[%s1 + $0x103c] sm:$0xf]
  %v1097 = vld [vmem:[%s1 + $0x1040] sm:$0xf]
  %v1098 = vld [vmem:[%s1 + $0x1044] sm:$0xf]
  %v1099 = vld [vmem:[%s1 + $0x1048] sm:$0xf]
  %v1100 = vld [vmem:[%s1 + $0x104c] sm:$0xf]
  %v1101 = vld [vmem:[%s1 + $0x1050] sm:$0xf]
  %v1102 = vld [vmem:[%s1 + $0x1054] sm:$0xf]
  %v1103 = vld [vmem:[%s1 + $0x1058] sm:$0xf]
  %v1104 = vld [vmem:[%s1 + $0x105c] sm:$0xf]
  %v1105 = vld [vmem:[%s1 + $0x1060] sm:$0xf]
  %v1106 = vld [vmem:[%s1 + $0x1064] sm:$0xf]
  %v1107 = vld [vmem:[%s1 + $0x1068] sm:$0xf]
  %v1108 = vld [vmem:[%s1 + $0x106c] sm:$0xf]
  %v1109 = vld [vmem:[%s1 + $0x1070] sm:$0xf]
  %v1110 = vld [vmem:[%s1 + $0x1074] sm:$0xf]
  %v1111 = vld [vmem:[%s1 + $0x1078] sm:$0xf]
  %v1112 = vld [vmem:[%s1 + $0x107c] sm:$0xf]
  %v1113 = vld [vmem:[%s1 + $0x1080] sm:$0xf]
  %v1114 = vld [vmem:[%s1 + $0x1084] sm:$0xf]
  %v1115 = vld [vmem:[%s1 + $0x1088] sm:$0xf]
  %v1116 = vld [vmem:[%s1 + $0x108c] sm:$0xf]
  %v1117 = vld [vmem:[%s1 + $0x1090] sm:$0xf]
  %v1118 = vld [vmem:[%s1 + $0x1094] sm:$0xf]
  %v1119 = vld [vmem:[%s1 + $0x1098] sm:$0xf]
  %v1120 = vld [vmem:[%s1 + $0x109c] sm:$0xf]
  %v1121 = vld [vmem:[%s1 + $0x10a0] sm:$0xf]
  %v1122 = vld [vmem:[%s1 + $0x10a4] sm:$0xf]
  %v1123 = vld [vmem:[%s1 + $0x10a8] sm:$0xf]
  %v1124 = vld [vmem:[%s1 + $0x10ac] sm:$0xf]
  %v1125 = vld [vmem:[%s1 + $0x10b0] sm:$0xf]
  %v1126 = vld [vmem:[%s1 + $0x10b4] sm:$0xf]
  %v1127 = vld [vmem:[%s1 + $0x10b8] sm:$0xf]
  %v1128 = vld [vmem:[%s1 + $0x10bc] sm:$0xf]
  %v1129 = vld [vmem:[%s1 + $0x10c0] sm:$0xf]
  %v1130 = vld [vmem:[%s1 + $0x10c4] sm:$0xf]
  %v1131 = vld [vmem:[%s1 + $0x10c8] sm:$0xf]
  %v1132 = vld [vmem:[%s1 + $0x10cc] sm:$0xf]
  %v1133 = vld [vmem:[%s1 + $0x10d0] sm:$0xf]
  %v1134 = vld [vmem:[%s1 + $0x10d4] sm:$0xf]
  %v1135 = vld [vmem:[%s1 + $0x10d8] sm:$0xf]
  %v1136 = vld [vmem:[%s1 + $0x10dc] sm:$0xf]
  %v1137 = vld [vmem:[%s1 + $0x10e0] sm:$0xf]
  %v1138 = vld [vmem:[%s1 + $0x10e4] sm:$0xf]
  %v1139 = vld [vmem:[%s1 + $0x10e8] sm:$0xf]
  %v1140 = vld [vmem:[%s1 + $0x10ec] sm:$0xf]
  %v1141 = vld [vmem:[%s1 + $0x10f0] sm:$0xf]
  %v1142 = vld [vmem:[%s1 + $0x10f4] sm:$0xf]
  %v1143 = vld [vmem:[%s1 + $0x10f8] sm:$0xf]
  %v1144 = vld [vmem:[%s1 + $0x10fc] sm:$0xf]
  %v1145 = vld [vmem:[%s1 + $0x1100] sm:$0xf]
  %v1146 = vld [vmem:[%s1 + $0x1104] sm:$0xf]
  %v1147 = vld [vmem:[%s1 + $0x1108] sm:$0xf]
  %v1148 = vld [vmem:[%s1 + $0x110c] sm:$0xf]
  %v1149 = vld [vmem:[%s1 + $0x1110] sm:$0xf]
  %v1150 = vld [vmem:[%s1 + $0x1114] sm:$0xf]
  %v1151 = vld [vmem:[%s1 + $0x1118] sm:$0xf]
  %v1152 = vld [vmem:[%s1 + $0x111c] sm:$0xf]
  %v1153 = vld [vmem:[%s1 + $0x1120] sm:$0xf]
  %v1154 = vld [vmem:[%s1 + $0x1124] sm:$0xf]
  %v1155 = vld [vmem:[%s1 + $0x1128] sm:$0xf]
  %v1156 = vld [vmem:[%s1 + $0x112c] sm:$0xf]
  %v1157 = vld [vmem:[%s1 + $0x1130] sm:$0xf]
  %v1158 = vld [vmem:[%s1 + $0x1134] sm:$0xf]
  %v1159 = vld [vmem:[%s1 + $0x1138] sm:$0xf]
  %v1160 = vld [vmem:[%s1 + $0x113c] sm:$0xf]
  %v1161 = vld [vmem:[%s1 + $0x1140] sm:$0xf]
  %v1162 = vld [vmem:[%s1 + $0x1144] sm:$0xf]
  %v1163 = vld [vmem:[%s1 + $0x1148] sm:$0xf]
  %v1164 = vld [vmem:[%s1 + $0x114c] sm:$0xf]
  %v1165 = vld [vmem:[%s1 + $0x1150] sm:$0xf]
  %v1166 = vld [vmem:[%s1 + $0x1154] sm:$0xf]
  %v1167 = vld [vmem:[%s1 + $0x1158] sm:$0xf]
  %v1168 = vld [vmem:[%s1 + $0x115c] sm:$0xf]
  %v1169 = vld [vmem:[%s1 + $0x1160] sm:$0xf]
  %v1170 = vld [vmem:[%s1 + $0x1164] sm:$0xf]
  %v1171 = vld [vmem:[%s1 + $0x1168] sm:$0xf]
  %v1172 = vld [vmem:[%s1 + $0x116c] sm:$0xf]
  %v1173 = vld [vmem:[%s1 + $0x1170] sm:$0xf]
  %v1174 = vld [vmem:[%s1 + $0x1174] sm:$0xf]
  %v1175 = vld [vmem:[%s1 + $0x1178] sm:$0xf]
  %v1176 = vld [vmem:[%s1 + $0x117c] sm:$0xf]
  %v1177 = vld [vmem:[%s1 + $0x1180] sm:$0xf]
  %v1178 = vld [vmem:[%s1 + $0x1184] sm:$0xf]
  %v1179 = vld [vmem:[%s1 + $0x1188] sm:$0xf]
  %v1180 = vld [vmem:[%s1 + $0x118c] sm:$0xf]
  %v1181 = vld [vmem:[%s1 + $0x1190] sm:$0xf]
  %v1182 = vld [vmem:[%s1 + $0x1194] sm:$0xf]
  %v1183 = vld [vmem:[%s1 + $0x1198] sm:$0xf]
  %v1184 = vld [vmem:[%s1 + $0x119c] sm:$0xf]
  %v1185 = vld [vmem:[%s1 + $0x11a0] sm:$0xf]
  %v1186 = vld [vmem:[%s1 + $0x11a4] sm:$0xf]
  %v1187 = vld [vmem:[%s1 + $0x11a8] sm:$0xf]
  %v1188 = vld [vmem:[%s1 + $0x11ac] sm:$0xf]
  %v1189 = vld [vmem:[%s1 + $0x11b0] sm:$0xf]
  %v1190 = vld [vmem:[%s1 + $0x11b4] sm:$0xf]
  %v1191 = vld [vmem:[%s1 + $0x11b8] sm:$0xf]
  %v1192 = vld [vmem:[%s1 + $0x11bc] sm:$0xf]
  %v1193 = vld [vmem:[%s1 + $0x11c0] sm:$0xf]
  %v1194 = vld [vmem:[%s1 + $0x11c4] sm:$0xf]
  %v1195 = vld [vmem:[%s1 + $0x11c8] sm:$0xf]
  %v1196 = vld [vmem:[%s1 + $0x11cc] sm:$0xf]
  %v1197 = vld [vmem:[%s1 + $0x11d0] sm:$0xf]
  %v1198 = vld [vmem:[%s1 + $0x11d4] sm:$0xf]
  %v1199 = vld [vmem:[%s1 + $0x11d8] sm:$0xf]
  %v1200 = vld [vmem:[%s1 + $0x11dc] sm:$0xf]
  %v1201 = vld [vmem:[%s1 + $0x11e0] sm:$0xf]
  %v1202 = vld [vmem:[%s1 + $0x11e4] sm:$0xf]
  %v1203 = vld [vmem:[%s1 + $0x11e8] sm:$0xf]
  %v1204 = vld [vmem:[%s1 + $0x11ec] sm:$0xf]
  %v1205 = vld [vmem:[%s1 + $0x11f0] sm:$0xf]
  %v1206 = vld [vmem:[%s1 + $0x11f4] sm:$0xf]
  %v1207 = vld [vmem:[%s1 + $0x11f8] sm:$0xf]
  %v1208 = vld [vmem:[%s1 + $0x11fc] sm:$0xf]
  %v1209 = vld [vmem:[%s2] sm:$0x1]
  %v1211 = vlaneseq
  %v1212 = vshrl.u32 %v1211, 7
  %v1213 = vsub.s32 0, %v1212
  %v1214 = vrot.slane %v1209, %v1213
  %v1252 = vunpack.c.l.b16 %v21
  %v1253 = vunpack.c.h.b16 %v21
  %v1254 = vunpack.c.l.b16 %v22
  %v1255 = vunpack.c.h.b16 %v22
  %v1256 = vunpack.c.l.b16 %v23
  %v1257 = vunpack.c.h.b16 %v23
  %v1258 = vunpack.c.l.b16 %v24
  %v1259 = vunpack.c.h.b16 %v24
  %v1260 = vunpack.c.l.b16 %v25
  %v1261 = vunpack.c.h.b16 %v25
  %v1262 = vunpack.c.l.b16 %v26
  %v1263 = vunpack.c.h.b16 %v26
  %v1264 = vunpack.c.l.b16 %v27
  %v1265 = vunpack.c.h.b16 %v27
  %v1266 = vunpack.c.l.b16 %v28
  %v1267 = vunpack.c.h.b16 %v28
  %v1268 = vunpack.c.l.b16 %v29
  %v1269 = vunpack.c.h.b16 %v29
  %v1270 = vunpack.c.l.b16 %v30
  %v1271 = vunpack.c.h.b16 %v30
  %v1272 = vunpack.c.l.b16 %v31
  %v1273 = vunpack.c.h.b16 %v31
  %v1274 = vunpack.c.l.b16 %v32
  %v1275 = vunpack.c.h.b16 %v32
  %v1276 = vunpack.c.l.b16 %v33
  %v1277 = vunpack.c.h.b16 %v33
  %v1278 = vunpack.c.l.b16 %v34
  %v1279 = vunpack.c.h.b16 %v34
  %v1280 = vunpack.c.l.b16 %v35
  %v1281 = vunpack.c.h.b16 %v35
  %v1282 = vunpack.c.l.b16 %v36
  %v1283 = vunpack.c.h.b16 %v36
  %v1284 = vunpack.c.l.b16 %v37
  %v1285 = vunpack.c.h.b16 %v37
  %v1286 = vunpack.c.l.b16 %v38
  %v1287 = vunpack.c.h.b16 %v38
  %v1288 = vunpack.c.l.b16 %v39
  %v1289 = vunpack.c.h.b16 %v39
  %v1290 = vunpack.c.l.b16 %v40
  %v1291 = vunpack.c.h.b16 %v40
  %v1292 = vunpack.c.l.b16 %v41
  %v1293 = vunpack.c.h.b16 %v41
  %v1294 = vunpack.c.l.b16 %v42
  %v1295 = vunpack.c.h.b16 %v42
  %v1296 = vunpack.c.l.b16 %v43
  %v1297 = vunpack.c.h.b16 %v43
  %v1298 = vunpack.c.l.b16 %v44
  %v1299 = vunpack.c.h.b16 %v44
  %v1300 = vunpack.c.l.b16 %v45
  %v1301 = vunpack.c.h.b16 %v45
  %v1302 = vunpack.c.l.b16 %v46
  %v1303 = vunpack.c.h.b16 %v46
  %v1304 = vunpack.c.l.b16 %v47
  %v1305 = vunpack.c.h.b16 %v47
  %v1306 = vunpack.c.l.b16 %v48
  %v1307 = vunpack.c.h.b16 %v48
  %v1308 = vunpack.c.l.b16 %v49
  %v1309 = vunpack.c.h.b16 %v49
  %v1310 = vunpack.c.l.b16 %v50
  %v1311 = vunpack.c.h.b16 %v50
  %v1312 = vunpack.c.l.b16 %v51
  %v1313 = vunpack.c.h.b16 %v51
  %v1314 = vunpack.c.l.b16 %v52
  %v1315 = vunpack.c.h.b16 %v52
  %v1316 = vunpack.c.l.b16 %v53
  %v1317 = vunpack.c.h.b16 %v53
  %v1318 = vunpack.c.l.b16 %v54
  %v1319 = vunpack.c.h.b16 %v54
  %v1320 = vunpack.c.l.b16 %v55
  %v1321 = vunpack.c.h.b16 %v55
  %v1322 = vunpack.c.l.b16 %v56
  %v1323 = vunpack.c.h.b16 %v56
  %v1324 = vpack.c.b16 %v1252, %v1252
  %v1325 = vpack.c.b16 %v1253, %v1253
  %v1326 = vpack.c.b16 %v1254, %v1254
  %v1327 = vpack.c.b16 %v1255, %v1255
  %v1328 = vpack.c.b16 %v1256, %v1256
  %v1329 = vpack.c.b16 %v1257, %v1257
  %v1330 = vpack.c.b16 %v1258, %v1258
  %v1331 = vpack.c.b16 %v1259, %v1259
  %v1332 = vpack.c.b16 %v1260, %v1260
  %v1333 = vpack.c.b16 %v1261, %v1261
  %v1334 = vpack.c.b16 %v1262, %v1262
  %v1335 = vpack.c.b16 %v1263, %v1263
  %v1336 = vpack.c.b16 %v1264, %v1264
  %v1337 = vpack.c.b16 %v1265, %v1265
  %v1338 = vpack.c.b16 %v1266, %v1266
  %v1339 = vpack.c.b16 %v1267, %v1267
  %v1340 = vpack.c.b16 %v1268, %v1268
  %v1341 = vpack.c.b16 %v1269, %v1269
  %v1342 = vpack.c.b16 %v1270, %v1270
  %v1343 = vpack.c.b16 %v1271, %v1271
  %v1344 = vpack.c.b16 %v1272, %v1272
  %v1345 = vpack.c.b16 %v1273, %v1273
  %v1346 = vpack.c.b16 %v1274, %v1274
  %v1347 = vpack.c.b16 %v1275, %v1275
  %v1348 = vpack.c.b16 %v1276, %v1276
  %v1349 = vpack.c.b16 %v1277, %v1277
  %v1350 = vpack.c.b16 %v1278, %v1278
  %v1351 = vpack.c.b16 %v1279, %v1279
  %v1352 = vpack.c.b16 %v1280, %v1280
  %v1353 = vpack.c.b16 %v1281, %v1281
  %v1354 = vpack.c.b16 %v1282, %v1282
  %v1355 = vpack.c.b16 %v1283, %v1283
  %v1356 = vpack.c.b16 %v1284, %v1284
  %v1357 = vpack.c.b16 %v1285, %v1285
  %v1358 = vpack.c.b16 %v1286, %v1286
  %v1359 = vpack.c.b16 %v1287, %v1287
  %v1360 = vpack.c.b16 %v1288, %v1288
  %v1361 = vpack.c.b16 %v1289, %v1289
  %v1362 = vpack.c.b16 %v1290, %v1290
  %v1363 = vpack.c.b16 %v1291, %v1291
  %v1364 = vpack.c.b16 %v1292, %v1292
  %v1365 = vpack.c.b16 %v1293, %v1293
  %v1366 = vpack.c.b16 %v1294, %v1294
  %v1367 = vpack.c.b16 %v1295, %v1295
  %v1368 = vpack.c.b16 %v1296, %v1296
  %v1369 = vpack.c.b16 %v1297, %v1297
  %v1370 = vpack.c.b16 %v1298, %v1298
  %v1371 = vpack.c.b16 %v1299, %v1299
  %v1372 = vpack.c.b16 %v1300, %v1300
  %v1373 = vpack.c.b16 %v1301, %v1301
  %v1374 = vpack.c.b16 %v1302, %v1302
  %v1375 = vpack.c.b16 %v1303, %v1303
  %v1376 = vpack.c.b16 %v1304, %v1304
  %v1377 = vpack.c.b16 %v1305, %v1305
  %v1378 = vpack.c.b16 %v1306, %v1306
  %v1379 = vpack.c.b16 %v1307, %v1307
  %v1380 = vpack.c.b16 %v1308, %v1308
  %v1381 = vpack.c.b16 %v1309, %v1309
  %v1382 = vpack.c.b16 %v1310, %v1310
  %v1383 = vpack.c.b16 %v1311, %v1311
  %v1384 = vpack.c.b16 %v1312, %v1312
  %v1385 = vpack.c.b16 %v1313, %v1313
  %v1386 = vpack.c.b16 %v1314, %v1314
  %v1387 = vpack.c.b16 %v1315, %v1315
  %v1388 = vpack.c.b16 %v1316, %v1316
  %v1389 = vpack.c.b16 %v1317, %v1317
  %v1390 = vpack.c.b16 %v1318, %v1318
  %v1391 = vpack.c.b16 %v1319, %v1319
  %v1392 = vpack.c.b16 %v1320, %v1320
  %v1393 = vpack.c.b16 %v1321, %v1321
  %v1394 = vpack.c.b16 %v1322, %v1322
  %v1395 = vpack.c.b16 %v1323, %v1323
  %v2620 = vunpack.c.l.b16 %v57
  %v2621 = vunpack.c.l.b16 %v58
  %v2622 = vunpack.c.l.b16 %v59
  %v2623 = vunpack.c.l.b16 %v60
  %v2624 = vunpack.c.l.b16 %v61
  %v2625 = vunpack.c.l.b16 %v62
  %v2626 = vunpack.c.l.b16 %v63
  %v2627 = vunpack.c.l.b16 %v64
  %v2628 = vunpack.c.l.b16 %v65
  %v2629 = vunpack.c.l.b16 %v66
  %v2630 = vunpack.c.l.b16 %v67
  %v2631 = vunpack.c.l.b16 %v68
  %v2632 = vunpack.c.l.b16 %v69
  %v2633 = vunpack.c.l.b16 %v70
  %v2634 = vunpack.c.l.b16 %v71
  %v2635 = vunpack.c.l.b16 %v72
  %v2636 = vunpack.c.l.b16 %v73
  %v2637 = vunpack.c.l.b16 %v74
  %v2638 = vunpack.c.l.b16 %v75
  %v2639 = vunpack.c.l.b16 %v76
  %v2640 = vunpack.c.l.b16 %v77
  %v2641 = vunpack.c.l.b16 %v78
  %v2642 = vunpack.c.l.b16 %v79
  %v2643 = vunpack.c.l.b16 %v80
  %v2644 = vunpack.c.l.b16 %v81
  %v2645 = vunpack.c.l.b16 %v82
  %v2646 = vunpack.c.l.b16 %v83
  %v2647 = vunpack.c.l.b16 %v84
  %v2648 = vunpack.c.l.b16 %v85
  %v2649 = vunpack.c.l.b16 %v86
  %v2650 = vunpack.c.l.b16 %v87
  %v2651 = vunpack.c.l.b16 %v88
  %v2652 = vunpack.c.l.b16 %v89
  %v2653 = vunpack.c.l.b16 %v90
  %v2654 = vunpack.c.l.b16 %v91
  %v2655 = vunpack.c.l.b16 %v92
  %v2656 = vunpack.c.l.b16 %v93
  %v2657 = vunpack.c.l.b16 %v94
  %v2658 = vunpack.c.l.b16 %v95
  %v2659 = vunpack.c.l.b16 %v96
  %v2660 = vunpack.c.l.b16 %v97
  %v2661 = vunpack.c.l.b16 %v98
  %v2662 = vunpack.c.l.b16 %v99
  %v2663 = vunpack.c.l.b16 %v100
  %v2664 = vunpack.c.l.b16 %v101
  %v2665 = vunpack.c.l.b16 %v102
  %v2666 = vunpack.c.l.b16 %v103
  %v2667 = vunpack.c.l.b16 %v104
  %v2668 = vunpack.c.l.b16 %v105
  %v2669 = vunpack.c.l.b16 %v106
  %v2670 = vunpack.c.l.b16 %v107
  %v2671 = vunpack.c.l.b16 %v108
  %v2672 = vunpack.c.l.b16 %v109
  %v2673 = vunpack.c.l.b16 %v110
  %v2674 = vunpack.c.l.b16 %v111
  %v2675 = vunpack.c.l.b16 %v112
  %v2676 = vunpack.c.l.b16 %v113
  %v2677 = vunpack.c.l.b16 %v114
  %v2678 = vunpack.c.l.b16 %v115
  %v2679 = vunpack.c.l.b16 %v116
  %v2680 = vunpack.c.l.b16 %v117
  %v2681 = vunpack.c.l.b16 %v118
  %v2682 = vunpack.c.l.b16 %v119
  %v2683 = vunpack.c.l.b16 %v120
  %v2684 = vunpack.c.l.b16 %v121
  %v2685 = vunpack.c.l.b16 %v122
  %v2686 = vunpack.c.l.b16 %v123
  %v2687 = vunpack.c.l.b16 %v124
  %v2688 = vunpack.c.l.b16 %v125
  %v2689 = vunpack.c.l.b16 %v126
  %v2690 = vunpack.c.l.b16 %v127
  %v2691 = vunpack.c.l.b16 %v128
  %v2692 = vunpack.c.l.b16 %v129
  %v2693 = vunpack.c.l.b16 %v130
  %v2694 = vunpack.c.l.b16 %v131
  %v2695 = vunpack.c.l.b16 %v132
  %v2696 = vunpack.c.l.b16 %v133
  %v2697 = vunpack.c.l.b16 %v134
  %v2698 = vunpack.c.l.b16 %v135
  %v2699 = vunpack.c.l.b16 %v136
  %v2700 = vunpack.c.l.b16 %v137
  %v2701 = vunpack.c.l.b16 %v138
  %v2702 = vunpack.c.l.b16 %v139
  %v2703 = vunpack.c.l.b16 %v140
  %v2704 = vunpack.c.l.b16 %v141
  %v2705 = vunpack.c.l.b16 %v142
  %v2706 = vunpack.c.l.b16 %v143
  %v2707 = vunpack.c.l.b16 %v144
  %v2708 = vunpack.c.l.b16 %v145
  %v2709 = vunpack.c.l.b16 %v146
  %v2710 = vunpack.c.l.b16 %v147
  %v2711 = vunpack.c.l.b16 %v148
  %v2712 = vunpack.c.l.b16 %v149
  %v2713 = vunpack.c.l.b16 %v150
  %v2714 = vunpack.c.l.b16 %v151
  %v2715 = vunpack.c.l.b16 %v152
  %v2716 = vunpack.c.l.b16 %v153
  %v2717 = vunpack.c.l.b16 %v154
  %v2718 = vunpack.c.l.b16 %v155
  %v2719 = vunpack.c.l.b16 %v156
  %v2720 = vunpack.c.l.b16 %v157
  %v2721 = vunpack.c.l.b16 %v158
  %v2722 = vunpack.c.l.b16 %v159
  %v2723 = vunpack.c.l.b16 %v160
  %v2724 = vunpack.c.l.b16 %v161
  %v2725 = vunpack.c.l.b16 %v162
  %v2726 = vunpack.c.l.b16 %v163
  %v2727 = vunpack.c.l.b16 %v164
  %v2728 = vunpack.c.l.b16 %v165
  %v2729 = vunpack.c.l.b16 %v166
  %v2730 = vunpack.c.l.b16 %v167
  %v2731 = vunpack.c.l.b16 %v168
  %v2732 = vunpack.c.l.b16 %v169
  %v2733 = vunpack.c.l.b16 %v170
  %v2734 = vunpack.c.l.b16 %v171
  %v2735 = vunpack.c.l.b16 %v172
  %v2736 = vunpack.c.l.b16 %v173
  %v2737 = vunpack.c.l.b16 %v174
  %v2738 = vunpack.c.l.b16 %v175
  %v2739 = vunpack.c.l.b16 %v176
  %v2740 = vunpack.c.l.b16 %v177
  %v2741 = vunpack.c.l.b16 %v178
  %v2742 = vunpack.c.l.b16 %v179
  %v2743 = vunpack.c.l.b16 %v180
  %v2744 = vunpack.c.l.b16 %v181
  %v2745 = vunpack.c.l.b16 %v182
  %v2746 = vunpack.c.l.b16 %v183
  %v2747 = vunpack.c.l.b16 %v184
  %v2748 = vunpack.c.l.b16 %v185
  %v2749 = vunpack.c.l.b16 %v186
  %v2750 = vunpack.c.l.b16 %v187
  %v2751 = vunpack.c.l.b16 %v188
  %v2752 = vunpack.c.l.b16 %v189
  %v2753 = vunpack.c.l.b16 %v190
  %v2754 = vunpack.c.l.b16 %v191
  %v2755 = vunpack.c.l.b16 %v192
  %v2756 = vunpack.c.l.b16 %v193
  %v2757 = vunpack.c.l.b16 %v194
  %v2758 = vunpack.c.l.b16 %v195
  %v2759 = vunpack.c.l.b16 %v196
  %v2760 = vunpack.c.l.b16 %v197
  %v2761 = vunpack.c.l.b16 %v198
  %v2762 = vunpack.c.l.b16 %v199
  %v2763 = vunpack.c.l.b16 %v200
  %v2764 = vunpack.c.l.b16 %v201
  %v2765 = vunpack.c.l.b16 %v202
  %v2766 = vunpack.c.l.b16 %v203
  %v2767 = vunpack.c.l.b16 %v204
  %v2768 = vunpack.c.l.b16 %v205
  %v2769 = vunpack.c.l.b16 %v206
  %v2770 = vunpack.c.l.b16 %v207
  %v2771 = vunpack.c.l.b16 %v208
  %v2772 = vunpack.c.l.b16 %v209
  %v2773 = vunpack.c.l.b16 %v210
  %v2774 = vunpack.c.l.b16 %v211
  %v2775 = vunpack.c.l.b16 %v212
  %v2776 = vunpack.c.l.b16 %v213
  %v2777 = vunpack.c.l.b16 %v214
  %v2778 = vunpack.c.l.b16 %v215
  %v2779 = vunpack.c.l.b16 %v216
  %v2780 = vunpack.c.l.b16 %v217
  %v2781 = vunpack.c.l.b16 %v218
  %v2782 = vunpack.c.l.b16 %v219
  %v2783 = vunpack.c.l.b16 %v220
  %v2784 = vunpack.c.l.b16 %v221
  %v2785 = vunpack.c.l.b16 %v222
  %v2786 = vunpack.c.l.b16 %v223
  %v2787 = vunpack.c.l.b16 %v224
  %v2788 = vunpack.c.l.b16 %v225
  %v2789 = vunpack.c.l.b16 %v226
  %v2790 = vunpack.c.l.b16 %v227
  %v2791 = vunpack.c.l.b16 %v228
  %v2792 = vunpack.c.l.b16 %v229
  %v2793 = vunpack.c.l.b16 %v230
  %v2794 = vunpack.c.l.b16 %v231
  %v2795 = vunpack.c.l.b16 %v232
  %v2796 = vunpack.c.l.b16 %v233
  %v2797 = vunpack.c.l.b16 %v234
  %v2798 = vunpack.c.l.b16 %v235
  %v2799 = vunpack.c.l.b16 %v236
  %v2800 = vunpack.c.l.b16 %v237
  %v2801 = vunpack.c.l.b16 %v238
  %v2802 = vunpack.c.l.b16 %v239
  %v2803 = vunpack.c.l.b16 %v240
  %v2804 = vunpack.c.l.b16 %v241
  %v2805 = vunpack.c.l.b16 %v242
  %v2806 = vunpack.c.l.b16 %v243
  %v2807 = vunpack.c.l.b16 %v244
  %v2808 = vunpack.c.l.b16 %v245
  %v2809 = vunpack.c.l.b16 %v246
  %v2810 = vunpack.c.l.b16 %v247
  %v2811 = vunpack.c.l.b16 %v248
  %v2812 = vunpack.c.l.b16 %v249
  %v2813 = vunpack.c.l.b16 %v250
  %v2814 = vunpack.c.l.b16 %v251
  %v2815 = vunpack.c.l.b16 %v252
  %v2816 = vunpack.c.l.b16 %v253
  %v2817 = vunpack.c.l.b16 %v254
  %v2818 = vunpack.c.l.b16 %v255
  %v2819 = vunpack.c.l.b16 %v256
  %v2820 = vunpack.c.l.b16 %v257
  %v2821 = vunpack.c.l.b16 %v258
  %v2822 = vunpack.c.l.b16 %v259
  %v2823 = vunpack.c.l.b16 %v260
  %v2824 = vunpack.c.l.b16 %v261
  %v2825 = vunpack.c.l.b16 %v262
  %v2826 = vunpack.c.l.b16 %v263
  %v2827 = vunpack.c.l.b16 %v264
  %v2828 = vunpack.c.l.b16 %v265
  %v2829 = vunpack.c.l.b16 %v266
  %v2830 = vunpack.c.l.b16 %v267
  %v2831 = vunpack.c.l.b16 %v268
  %v2832 = vunpack.c.l.b16 %v269
  %v2833 = vunpack.c.l.b16 %v270
  %v2834 = vunpack.c.l.b16 %v271
  %v2835 = vunpack.c.l.b16 %v272
  %v2836 = vunpack.c.l.b16 %v273
  %v2837 = vunpack.c.l.b16 %v274
  %v2838 = vunpack.c.l.b16 %v275
  %v2839 = vunpack.c.l.b16 %v276
  %v2840 = vunpack.c.l.b16 %v277
  %v2841 = vunpack.c.l.b16 %v278
  %v2842 = vunpack.c.l.b16 %v279
  %v2843 = vunpack.c.l.b16 %v280
  %v2844 = vunpack.c.l.b16 %v281
  %v2845 = vunpack.c.l.b16 %v282
  %v2846 = vunpack.c.l.b16 %v283
  %v2847 = vunpack.c.l.b16 %v284
  %v2848 = vunpack.c.l.b16 %v285
  %v2849 = vunpack.c.l.b16 %v286
  %v2850 = vunpack.c.l.b16 %v287
  %v2851 = vunpack.c.l.b16 %v288
  %v2852 = vunpack.c.l.b16 %v289
  %v2853 = vunpack.c.l.b16 %v290
  %v2854 = vunpack.c.l.b16 %v291
  %v2855 = vunpack.c.l.b16 %v292
  %v2856 = vunpack.c.l.b16 %v293
  %v2857 = vunpack.c.l.b16 %v294
  %v2858 = vunpack.c.l.b16 %v295
  %v2859 = vunpack.c.l.b16 %v296
  %v2860 = vunpack.c.l.b16 %v297
  %v2861 = vunpack.c.l.b16 %v298
  %v2862 = vunpack.c.l.b16 %v299
  %v2863 = vunpack.c.l.b16 %v300
  %v2864 = vunpack.c.l.b16 %v301
  %v2865 = vunpack.c.l.b16 %v302
  %v2866 = vunpack.c.l.b16 %v303
  %v2867 = vunpack.c.l.b16 %v304
  %v2868 = vunpack.c.l.b16 %v305
  %v2869 = vunpack.c.l.b16 %v306
  %v2870 = vunpack.c.l.b16 %v307
  %v2871 = vunpack.c.l.b16 %v308
  %v2872 = vunpack.c.l.b16 %v309
  %v2873 = vunpack.c.l.b16 %v310
  %v2874 = vunpack.c.l.b16 %v311
  %v2875 = vunpack.c.l.b16 %v312
  %v2876 = vunpack.c.l.b16 %v313
  %v2877 = vunpack.c.l.b16 %v314
  %v2878 = vunpack.c.l.b16 %v315
  %v2879 = vunpack.c.l.b16 %v316
  %v2880 = vunpack.c.l.b16 %v317
  %v2881 = vunpack.c.l.b16 %v318
  %v2882 = vunpack.c.l.b16 %v319
  %v2883 = vunpack.c.l.b16 %v320
  %v2884 = vunpack.c.l.b16 %v321
  %v2885 = vunpack.c.l.b16 %v322
  %v2886 = vunpack.c.l.b16 %v323
  %v2887 = vunpack.c.l.b16 %v324
  %v2888 = vunpack.c.l.b16 %v325
  %v2889 = vunpack.c.l.b16 %v326
  %v2890 = vunpack.c.l.b16 %v327
  %v2891 = vunpack.c.l.b16 %v328
  %v2892 = vunpack.c.l.b16 %v329
  %v2893 = vunpack.c.l.b16 %v330
  %v2894 = vunpack.c.l.b16 %v331
  %v2895 = vunpack.c.l.b16 %v332
  %v2896 = vunpack.c.l.b16 %v333
  %v2897 = vunpack.c.l.b16 %v334
  %v2898 = vunpack.c.l.b16 %v335
  %v2899 = vunpack.c.l.b16 %v336
  %v2900 = vunpack.c.l.b16 %v337
  %v2901 = vunpack.c.l.b16 %v338
  %v2902 = vunpack.c.l.b16 %v339
  %v2903 = vunpack.c.l.b16 %v340
  %v2904 = vunpack.c.l.b16 %v341
  %v2905 = vunpack.c.l.b16 %v342
  %v2906 = vunpack.c.l.b16 %v343
  %v2907 = vunpack.c.l.b16 %v344
  %v2908 = vunpack.c.l.b16 %v345
  %v2909 = vunpack.c.l.b16 %v346
  %v2910 = vunpack.c.l.b16 %v347
  %v2911 = vunpack.c.l.b16 %v348
  %v2912 = vunpack.c.l.b16 %v349
  %v2913 = vunpack.c.l.b16 %v350
  %v2914 = vunpack.c.l.b16 %v351
  %v2915 = vunpack.c.l.b16 %v352
  %v2916 = vunpack.c.l.b16 %v353
  %v2917 = vunpack.c.l.b16 %v354
  %v2918 = vunpack.c.l.b16 %v355
  %v2919 = vunpack.c.l.b16 %v356
  %v2920 = vunpack.c.l.b16 %v357
  %v2921 = vunpack.c.l.b16 %v358
  %v2922 = vunpack.c.l.b16 %v359
  %v2923 = vunpack.c.l.b16 %v360
  %v2924 = vunpack.c.l.b16 %v361
  %v2925 = vunpack.c.l.b16 %v362
  %v2926 = vunpack.c.l.b16 %v363
  %v2927 = vunpack.c.l.b16 %v364
  %v2928 = vunpack.c.l.b16 %v365
  %v2929 = vunpack.c.l.b16 %v366
  %v2930 = vunpack.c.l.b16 %v367
  %v2931 = vunpack.c.l.b16 %v368
  %v2932 = vunpack.c.l.b16 %v369
  %v2933 = vunpack.c.l.b16 %v370
  %v2934 = vunpack.c.l.b16 %v371
  %v2935 = vunpack.c.l.b16 %v372
  %v2936 = vunpack.c.l.b16 %v373
  %v2937 = vunpack.c.l.b16 %v374
  %v2938 = vunpack.c.l.b16 %v375
  %v2939 = vunpack.c.l.b16 %v376
  %v2940 = vunpack.c.l.b16 %v377
  %v2941 = vunpack.c.l.b16 %v378
  %v2942 = vunpack.c.l.b16 %v379
  %v2943 = vunpack.c.l.b16 %v380
  %v2944 = vunpack.c.l.b16 %v381
  %v2945 = vunpack.c.l.b16 %v382
  %v2946 = vunpack.c.l.b16 %v383
  %v2947 = vunpack.c.l.b16 %v384
  %v2948 = vunpack.c.l.b16 %v385
  %v2949 = vunpack.c.l.b16 %v386
  %v2950 = vunpack.c.l.b16 %v387
  %v2951 = vunpack.c.l.b16 %v388
  %v2952 = vunpack.c.l.b16 %v389
  %v2953 = vunpack.c.l.b16 %v390
  %v2954 = vunpack.c.l.b16 %v391
  %v2955 = vunpack.c.l.b16 %v392
  %v2956 = vunpack.c.l.b16 %v393
  %v2957 = vunpack.c.l.b16 %v394
  %v2958 = vunpack.c.l.b16 %v395
  %v2959 = vunpack.c.l.b16 %v396
  %v2960 = vunpack.c.l.b16 %v397
  %v2961 = vunpack.c.l.b16 %v398
  %v2962 = vunpack.c.l.b16 %v399
  %v2963 = vunpack.c.l.b16 %v400
  %v2964 = vunpack.c.l.b16 %v401
  %v2965 = vunpack.c.l.b16 %v402
  %v2966 = vunpack.c.l.b16 %v403
  %v2967 = vunpack.c.l.b16 %v404
  %v2968 = vunpack.c.l.b16 %v405
  %v2969 = vunpack.c.l.b16 %v406
  %v2970 = vunpack.c.l.b16 %v407
  %v2971 = vunpack.c.l.b16 %v408
  %v2972 = vunpack.c.l.b16 %v409
  %v2973 = vunpack.c.l.b16 %v410
  %v2974 = vunpack.c.l.b16 %v411
  %v2975 = vunpack.c.l.b16 %v412
  %v2976 = vunpack.c.l.b16 %v413
  %v2977 = vunpack.c.l.b16 %v414
  %v2978 = vunpack.c.l.b16 %v415
  %v2979 = vunpack.c.l.b16 %v416
  %v2980 = vunpack.c.l.b16 %v417
  %v2981 = vunpack.c.l.b16 %v418
  %v2982 = vunpack.c.l.b16 %v419
  %v2983 = vunpack.c.l.b16 %v420
  %v2984 = vunpack.c.l.b16 %v421
  %v2985 = vunpack.c.l.b16 %v422
  %v2986 = vunpack.c.l.b16 %v423
  %v2987 = vunpack.c.l.b16 %v424
  %v2988 = vunpack.c.l.b16 %v425
  %v2989 = vunpack.c.l.b16 %v426
  %v2990 = vunpack.c.l.b16 %v427
  %v2991 = vunpack.c.l.b16 %v428
  %v2992 = vunpack.c.l.b16 %v429
  %v2993 = vunpack.c.l.b16 %v430
  %v2994 = vunpack.c.l.b16 %v431
  %v2995 = vunpack.c.l.b16 %v432
  %v2996 = vunpack.c.l.b16 %v433
  %v2997 = vunpack.c.l.b16 %v434
  %v2998 = vunpack.c.l.b16 %v435
  %v2999 = vunpack.c.l.b16 %v436
  %v3000 = vunpack.c.l.b16 %v437
  %v3001 = vunpack.c.l.b16 %v438
  %v3002 = vunpack.c.l.b16 %v439
  %v3003 = vunpack.c.l.b16 %v440
  %v3004 = vunpack.c.l.b16 %v441
  %v3005 = vunpack.c.l.b16 %v442
  %v3006 = vunpack.c.l.b16 %v443
  %v3007 = vunpack.c.l.b16 %v444
  %v3008 = vunpack.c.l.b16 %v445
  %v3009 = vunpack.c.l.b16 %v446
  %v3010 = vunpack.c.l.b16 %v447
  %v3011 = vunpack.c.l.b16 %v448
  %v3012 = vunpack.c.l.b16 %v449
  %v3013 = vunpack.c.l.b16 %v450
  %v3014 = vunpack.c.l.b16 %v451
  %v3015 = vunpack.c.l.b16 %v452
  %v3016 = vunpack.c.l.b16 %v453
  %v3017 = vunpack.c.l.b16 %v454
  %v3018 = vunpack.c.l.b16 %v455
  %v3019 = vunpack.c.l.b16 %v456
  %v3020 = vunpack.c.l.b16 %v457
  %v3021 = vunpack.c.l.b16 %v458
  %v3022 = vunpack.c.l.b16 %v459
  %v3023 = vunpack.c.l.b16 %v460
  %v3024 = vunpack.c.l.b16 %v461
  %v3025 = vunpack.c.l.b16 %v462
  %v3026 = vunpack.c.l.b16 %v463
  %v3027 = vunpack.c.l.b16 %v464
  %v3028 = vunpack.c.l.b16 %v465
  %v3029 = vunpack.c.l.b16 %v466
  %v3030 = vunpack.c.l.b16 %v467
  %v3031 = vunpack.c.l.b16 %v468
  %v3032 = vunpack.c.l.b16 %v469
  %v3033 = vunpack.c.l.b16 %v470
  %v3034 = vunpack.c.l.b16 %v471
  %v3035 = vunpack.c.l.b16 %v472
  %v3036 = vunpack.c.l.b16 %v473
  %v3037 = vunpack.c.l.b16 %v474
  %v3038 = vunpack.c.l.b16 %v475
  %v3039 = vunpack.c.l.b16 %v476
  %v3040 = vunpack.c.l.b16 %v477
  %v3041 = vunpack.c.l.b16 %v478
  %v3042 = vunpack.c.l.b16 %v479
  %v3043 = vunpack.c.l.b16 %v480
  %v3044 = vunpack.c.l.b16 %v481
  %v3045 = vunpack.c.l.b16 %v482
  %v3046 = vunpack.c.l.b16 %v483
  %v3047 = vunpack.c.l.b16 %v484
  %v3048 = vunpack.c.l.b16 %v485
  %v3049 = vunpack.c.l.b16 %v486
  %v3050 = vunpack.c.l.b16 %v487
  %v3051 = vunpack.c.l.b16 %v488
  %v3052 = vunpack.c.l.b16 %v489
  %v3053 = vunpack.c.l.b16 %v490
  %v3054 = vunpack.c.l.b16 %v491
  %v3055 = vunpack.c.l.b16 %v492
  %v3056 = vunpack.c.l.b16 %v493
  %v3057 = vunpack.c.l.b16 %v494
  %v3058 = vunpack.c.l.b16 %v495
  %v3059 = vunpack.c.l.b16 %v496
  %v3060 = vunpack.c.l.b16 %v497
  %v3061 = vunpack.c.l.b16 %v498
  %v3062 = vunpack.c.l.b16 %v499
  %v3063 = vunpack.c.l.b16 %v500
  %v3064 = vunpack.c.l.b16 %v501
  %v3065 = vunpack.c.l.b16 %v502
  %v3066 = vunpack.c.l.b16 %v503
  %v3067 = vunpack.c.l.b16 %v504
  %v3068 = vunpack.c.l.b16 %v505
  %v3069 = vunpack.c.l.b16 %v506
  %v3070 = vunpack.c.l.b16 %v507
  %v3071 = vunpack.c.l.b16 %v508
  %v3072 = vunpack.c.l.b16 %v509
  %v3073 = vunpack.c.l.b16 %v510
  %v3074 = vunpack.c.l.b16 %v511
  %v3075 = vunpack.c.l.b16 %v512
  %v3076 = vunpack.c.l.b16 %v513
  %v3077 = vunpack.c.l.b16 %v514
  %v3078 = vunpack.c.l.b16 %v515
  %v3079 = vunpack.c.l.b16 %v516
  %v3080 = vunpack.c.l.b16 %v517
  %v3081 = vunpack.c.l.b16 %v518
  %v3082 = vunpack.c.l.b16 %v519
  %v3083 = vunpack.c.l.b16 %v520
  %v3084 = vunpack.c.l.b16 %v521
  %v3085 = vunpack.c.l.b16 %v522
  %v3086 = vunpack.c.l.b16 %v523
  %v3087 = vunpack.c.l.b16 %v524
  %v3088 = vunpack.c.l.b16 %v525
  %v3089 = vunpack.c.l.b16 %v526
  %v3090 = vunpack.c.l.b16 %v527
  %v3091 = vunpack.c.l.b16 %v528
  %v3092 = vunpack.c.l.b16 %v529
  %v3093 = vunpack.c.l.b16 %v530
  %v3094 = vunpack.c.l.b16 %v531
  %v3095 = vunpack.c.l.b16 %v532
  %v3096 = vunpack.c.l.b16 %v533
  %v3097 = vunpack.c.l.b16 %v534
  %v3098 = vunpack.c.l.b16 %v535
  %v3099 = vunpack.c.l.b16 %v536
  %v3100 = vunpack.c.l.b16 %v537
  %v3101 = vunpack.c.l.b16 %v538
  %v3102 = vunpack.c.l.b16 %v539
  %v3103 = vunpack.c.l.b16 %v540
  %v3104 = vunpack.c.l.b16 %v541
  %v3105 = vunpack.c.l.b16 %v542
  %v3106 = vunpack.c.l.b16 %v543
  %v3107 = vunpack.c.l.b16 %v544
  %v3108 = vunpack.c.l.b16 %v545
  %v3109 = vunpack.c.l.b16 %v546
  %v3110 = vunpack.c.l.b16 %v547
  %v3111 = vunpack.c.l.b16 %v548
  %v3112 = vunpack.c.l.b16 %v549
  %v3113 = vunpack.c.l.b16 %v550
  %v3114 = vunpack.c.l.b16 %v551
  %v3115 = vunpack.c.l.b16 %v552
  %v3116 = vunpack.c.l.b16 %v553
  %v3117 = vunpack.c.l.b16 %v554
  %v3118 = vunpack.c.l.b16 %v555
  %v3119 = vunpack.c.l.b16 %v556
  %v3120 = vunpack.c.l.b16 %v557
  %v3121 = vunpack.c.l.b16 %v558
  %v3122 = vunpack.c.l.b16 %v559
  %v3123 = vunpack.c.l.b16 %v560
  %v3124 = vunpack.c.l.b16 %v561
  %v3125 = vunpack.c.l.b16 %v562
  %v3126 = vunpack.c.l.b16 %v563
  %v3127 = vunpack.c.l.b16 %v564
  %v3128 = vunpack.c.l.b16 %v565
  %v3129 = vunpack.c.l.b16 %v566
  %v3130 = vunpack.c.l.b16 %v567
  %v3131 = vunpack.c.l.b16 %v568
  %v3132 = vunpack.c.l.b16 %v569
  %v3133 = vunpack.c.l.b16 %v570
  %v3134 = vunpack.c.l.b16 %v571
  %v3135 = vunpack.c.l.b16 %v572
  %v3136 = vunpack.c.l.b16 %v573
  %v3137 = vunpack.c.l.b16 %v574
  %v3138 = vunpack.c.l.b16 %v575
  %v3139 = vunpack.c.l.b16 %v576
  %v3140 = vunpack.c.l.b16 %v577
  %v3141 = vunpack.c.l.b16 %v578
  %v3142 = vunpack.c.l.b16 %v579
  %v3143 = vunpack.c.l.b16 %v580
  %v3144 = vunpack.c.l.b16 %v581
  %v3145 = vunpack.c.l.b16 %v582
  %v3146 = vunpack.c.l.b16 %v583
  %v3147 = vunpack.c.l.b16 %v584
  %v3148 = vunpack.c.l.b16 %v585
  %v3149 = vunpack.c.l.b16 %v586
  %v3150 = vunpack.c.l.b16 %v587
  %v3151 = vunpack.c.l.b16 %v588
  %v3152 = vunpack.c.l.b16 %v589
  %v3153 = vunpack.c.l.b16 %v590
  %v3154 = vunpack.c.l.b16 %v591
  %v3155 = vunpack.c.l.b16 %v592
  %v3156 = vunpack.c.l.b16 %v593
  %v3157 = vunpack.c.l.b16 %v594
  %v3158 = vunpack.c.l.b16 %v595
  %v3159 = vunpack.c.l.b16 %v596
  %v3160 = vunpack.c.l.b16 %v597
  %v3161 = vunpack.c.l.b16 %v598
  %v3162 = vunpack.c.l.b16 %v599
  %v3163 = vunpack.c.l.b16 %v600
  %v3164 = vunpack.c.l.b16 %v601
  %v3165 = vunpack.c.l.b16 %v602
  %v3166 = vunpack.c.l.b16 %v603
  %v3167 = vunpack.c.l.b16 %v604
  %v3168 = vunpack.c.l.b16 %v605
  %v3169 = vunpack.c.l.b16 %v606
  %v3170 = vunpack.c.l.b16 %v607
  %v3171 = vunpack.c.l.b16 %v608
  %v3172 = vunpack.c.l.b16 %v609
  %v3173 = vunpack.c.l.b16 %v610
  %v3174 = vunpack.c.l.b16 %v611
  %v3175 = vunpack.c.l.b16 %v612
  %v3176 = vunpack.c.l.b16 %v613
  %v3177 = vunpack.c.l.b16 %v614
  %v3178 = vunpack.c.l.b16 %v615
  %v3179 = vunpack.c.l.b16 %v616
  %v3180 = vunpack.c.l.b16 %v617
  %v3181 = vunpack.c.l.b16 %v618
  %v3182 = vunpack.c.l.b16 %v619
  %v3183 = vunpack.c.l.b16 %v620
  %v3184 = vunpack.c.l.b16 %v621
  %v3185 = vunpack.c.l.b16 %v622
  %v3186 = vunpack.c.l.b16 %v623
  %v3187 = vunpack.c.l.b16 %v624
  %v3188 = vunpack.c.l.b16 %v625
  %v3189 = vunpack.c.l.b16 %v626
  %v3190 = vunpack.c.l.b16 %v627
  %v3191 = vunpack.c.l.b16 %v628
  %v3192 = vunpack.c.l.b16 %v629
  %v3193 = vunpack.c.l.b16 %v630
  %v3194 = vunpack.c.l.b16 %v631
  %v3195 = vunpack.c.l.b16 %v632
  %v3196 = vunpack.c.l.b16 %v633
  %v3197 = vunpack.c.l.b16 %v634
  %v3198 = vunpack.c.l.b16 %v635
  %v3199 = vunpack.c.l.b16 %v636
  %v3200 = vunpack.c.l.b16 %v637
  %v3201 = vunpack.c.l.b16 %v638
  %v3202 = vunpack.c.l.b16 %v639
  %v3203 = vunpack.c.l.b16 %v640
  %v3204 = vunpack.c.l.b16 %v641
  %v3205 = vunpack.c.l.b16 %v642
  %v3206 = vunpack.c.l.b16 %v643
  %v3207 = vunpack.c.l.b16 %v644
  %v3208 = vunpack.c.l.b16 %v645
  %v3209 = vunpack.c.l.b16 %v646
  %v3210 = vunpack.c.l.b16 %v647
  %v3211 = vunpack.c.l.b16 %v648
  %v3212 = vunpack.c.l.b16 %v649
  %v3213 = vunpack.c.l.b16 %v650
  %v3214 = vunpack.c.l.b16 %v651
  %v3215 = vunpack.c.l.b16 %v652
  %v3216 = vunpack.c.l.b16 %v653
  %v3217 = vunpack.c.l.b16 %v654
  %v3218 = vunpack.c.l.b16 %v655
  %v3219 = vunpack.c.l.b16 %v656
  %v3220 = vunpack.c.l.b16 %v657
  %v3221 = vunpack.c.l.b16 %v658
  %v3222 = vunpack.c.l.b16 %v659
  %v3223 = vunpack.c.l.b16 %v660
  %v3224 = vunpack.c.l.b16 %v661
  %v3225 = vunpack.c.l.b16 %v662
  %v3226 = vunpack.c.l.b16 %v663
  %v3227 = vunpack.c.l.b16 %v664
  %v3228 = vunpack.c.l.b16 %v665
  %v3229 = vunpack.c.l.b16 %v666
  %v3230 = vunpack.c.l.b16 %v667
  %v3231 = vunpack.c.l.b16 %v668
  %v3232 = vunpack.c.l.b16 %v669
  %v3233 = vunpack.c.l.b16 %v670
  %v3234 = vunpack.c.l.b16 %v671
  %v3235 = vunpack.c.l.b16 %v672
  %v3236 = vunpack.c.l.b16 %v673
  %v3237 = vunpack.c.l.b16 %v674
  %v3238 = vunpack.c.l.b16 %v675
  %v3239 = vunpack.c.l.b16 %v676
  %v3240 = vunpack.c.l.b16 %v677
  %v3241 = vunpack.c.l.b16 %v678
  %v3242 = vunpack.c.l.b16 %v679
  %v3243 = vunpack.c.l.b16 %v680
  %v3244 = vunpack.c.l.b16 %v681
  %v3245 = vunpack.c.l.b16 %v682
  %v3246 = vunpack.c.l.b16 %v683
  %v3247 = vunpack.c.l.b16 %v684
  %v3248 = vunpack.c.l.b16 %v685
  %v3249 = vunpack.c.l.b16 %v686
  %v3250 = vunpack.c.l.b16 %v687
  %v3251 = vunpack.c.l.b16 %v688
  %v3252 = vunpack.c.l.b16 %v689
  %v3253 = vunpack.c.l.b16 %v690
  %v3254 = vunpack.c.l.b16 %v691
  %v3255 = vunpack.c.l.b16 %v692
  %v3256 = vunpack.c.l.b16 %v693
  %v3257 = vunpack.c.l.b16 %v694
  %v3258 = vunpack.c.l.b16 %v695
  %v3259 = vunpack.c.l.b16 %v696
  %v3260 = vunpack.c.l.b16 %v697
  %v3261 = vunpack.c.l.b16 %v698
  %v3262 = vunpack.c.l.b16 %v699
  %v3263 = vunpack.c.l.b16 %v700
  %v3264 = vunpack.c.l.b16 %v701
  %v3265 = vunpack.c.l.b16 %v702
  %v3266 = vunpack.c.l.b16 %v703
  %v3267 = vunpack.c.l.b16 %v704
  %v3268 = vunpack.c.l.b16 %v705
  %v3269 = vunpack.c.l.b16 %v706
  %v3270 = vunpack.c.l.b16 %v707
  %v3271 = vunpack.c.l.b16 %v708
  %v3272 = vunpack.c.l.b16 %v709
  %v3273 = vunpack.c.l.b16 %v710
  %v3274 = vunpack.c.l.b16 %v711
  %v3275 = vunpack.c.l.b16 %v712
  %v3276 = vunpack.c.l.b16 %v713
  %v3277 = vunpack.c.l.b16 %v714
  %v3278 = vunpack.c.l.b16 %v715
  %v3279 = vunpack.c.l.b16 %v716
  %v3280 = vunpack.c.l.b16 %v717
  %v3281 = vunpack.c.l.b16 %v718
  %v3282 = vunpack.c.l.b16 %v719
  %v3283 = vunpack.c.l.b16 %v720
  %v3284 = vunpack.c.l.b16 %v721
  %v3285 = vunpack.c.l.b16 %v722
  %v3286 = vunpack.c.l.b16 %v723
  %v3287 = vunpack.c.l.b16 %v724
  %v3288 = vunpack.c.l.b16 %v725
  %v3289 = vunpack.c.l.b16 %v726
  %v3290 = vunpack.c.l.b16 %v727
  %v3291 = vunpack.c.l.b16 %v728
  %v3292 = vunpack.c.l.b16 %v729
  %v3293 = vunpack.c.l.b16 %v730
  %v3294 = vunpack.c.l.b16 %v731
  %v3295 = vunpack.c.l.b16 %v732
  %v3296 = vunpack.c.l.b16 %v733
  %v3297 = vunpack.c.l.b16 %v734
  %v3298 = vunpack.c.l.b16 %v735
  %v3299 = vunpack.c.l.b16 %v736
  %v3300 = vunpack.c.l.b16 %v737
  %v3301 = vunpack.c.l.b16 %v738
  %v3302 = vunpack.c.l.b16 %v739
  %v3303 = vunpack.c.l.b16 %v740
  %v3304 = vunpack.c.l.b16 %v741
  %v3305 = vunpack.c.l.b16 %v742
  %v3306 = vunpack.c.l.b16 %v743
  %v3307 = vunpack.c.l.b16 %v744
  %v3308 = vunpack.c.l.b16 %v745
  %v3309 = vunpack.c.l.b16 %v746
  %v3310 = vunpack.c.l.b16 %v747
  %v3311 = vunpack.c.l.b16 %v748
  %v3312 = vunpack.c.l.b16 %v749
  %v3313 = vunpack.c.l.b16 %v750
  %v3314 = vunpack.c.l.b16 %v751
  %v3315 = vunpack.c.l.b16 %v752
  %v3316 = vunpack.c.l.b16 %v753
  %v3317 = vunpack.c.l.b16 %v754
  %v3318 = vunpack.c.l.b16 %v755
  %v3319 = vunpack.c.l.b16 %v756
  %v3320 = vunpack.c.l.b16 %v757
  %v3321 = vunpack.c.l.b16 %v758
  %v3322 = vunpack.c.l.b16 %v759
  %v3323 = vunpack.c.l.b16 %v760
  %v3324 = vunpack.c.l.b16 %v761
  %v3325 = vunpack.c.l.b16 %v762
  %v3326 = vunpack.c.l.b16 %v763
  %v3327 = vunpack.c.l.b16 %v764
  %v3328 = vunpack.c.l.b16 %v765
  %v3329 = vunpack.c.l.b16 %v766
  %v3330 = vunpack.c.l.b16 %v767
  %v3331 = vunpack.c.l.b16 %v768
  %v3332 = vunpack.c.l.b16 %v769
  %v3333 = vunpack.c.l.b16 %v770
  %v3334 = vunpack.c.l.b16 %v771
  %v3335 = vunpack.c.l.b16 %v772
  %v3336 = vunpack.c.l.b16 %v773
  %v3337 = vunpack.c.l.b16 %v774
  %v3338 = vunpack.c.l.b16 %v775
  %v3339 = vunpack.c.l.b16 %v776
  %v3340 = vunpack.c.l.b16 %v777
  %v3341 = vunpack.c.l.b16 %v778
  %v3342 = vunpack.c.l.b16 %v779
  %v3343 = vunpack.c.l.b16 %v780
  %v3344 = vunpack.c.l.b16 %v781
  %v3345 = vunpack.c.l.b16 %v782
  %v3346 = vunpack.c.l.b16 %v783
  %v3347 = vunpack.c.l.b16 %v784
  %v3348 = vunpack.c.l.b16 %v785
  %v3349 = vunpack.c.l.b16 %v786
  %v3350 = vunpack.c.l.b16 %v787
  %v3351 = vunpack.c.l.b16 %v788
  %v3352 = vunpack.c.l.b16 %v789
  %v3353 = vunpack.c.l.b16 %v790
  %v3354 = vunpack.c.l.b16 %v791
  %v3355 = vunpack.c.l.b16 %v792
  %v3356 = vunpack.c.l.b16 %v793
  %v3357 = vunpack.c.l.b16 %v794
  %v3358 = vunpack.c.l.b16 %v795
  %v3359 = vunpack.c.l.b16 %v796
  %v3360 = vunpack.c.l.b16 %v797
  %v3361 = vunpack.c.l.b16 %v798
  %v3362 = vunpack.c.l.b16 %v799
  %v3363 = vunpack.c.l.b16 %v800
  %v3364 = vunpack.c.l.b16 %v801
  %v3365 = vunpack.c.l.b16 %v802
  %v3366 = vunpack.c.l.b16 %v803
  %v3367 = vunpack.c.l.b16 %v804
  %v3368 = vunpack.c.l.b16 %v805
  %v3369 = vunpack.c.l.b16 %v806
  %v3370 = vunpack.c.l.b16 %v807
  %v3371 = vunpack.c.l.b16 %v808
  %v3372 = vunpack.c.l.b16 %v809
  %v3373 = vunpack.c.l.b16 %v810
  %v3374 = vunpack.c.l.b16 %v811
  %v3375 = vunpack.c.l.b16 %v812
  %v3376 = vunpack.c.l.b16 %v813
  %v3377 = vunpack.c.l.b16 %v814
  %v3378 = vunpack.c.l.b16 %v815
  %v3379 = vunpack.c.l.b16 %v816
  %v3380 = vunpack.c.l.b16 %v817
  %v3381 = vunpack.c.l.b16 %v818
  %v3382 = vunpack.c.l.b16 %v819
  %v3383 = vunpack.c.l.b16 %v820
  %v3384 = vunpack.c.l.b16 %v821
  %v3385 = vunpack.c.l.b16 %v822
  %v3386 = vunpack.c.l.b16 %v823
  %v3387 = vunpack.c.l.b16 %v824
  %v3388 = vunpack.c.l.b16 %v825
  %v3389 = vunpack.c.l.b16 %v826
  %v3390 = vunpack.c.l.b16 %v827
  %v3391 = vunpack.c.l.b16 %v828
  %v3392 = vunpack.c.l.b16 %v829
  %v3393 = vunpack.c.l.b16 %v830
  %v3394 = vunpack.c.l.b16 %v831
  %v3395 = vunpack.c.l.b16 %v832
  %v3396 = vunpack.c.l.b16 %v833
  %v3397 = vunpack.c.l.b16 %v834
  %v3398 = vunpack.c.l.b16 %v835
  %v3399 = vunpack.c.l.b16 %v836
  %v3400 = vunpack.c.l.b16 %v837
  %v3401 = vunpack.c.l.b16 %v838
  %v3402 = vunpack.c.l.b16 %v839
  %v3403 = vunpack.c.l.b16 %v840
  %v3404 = vunpack.c.l.b16 %v841
  %v3405 = vunpack.c.l.b16 %v842
  %v3406 = vunpack.c.l.b16 %v843
  %v3407 = vunpack.c.l.b16 %v844
  %v3408 = vunpack.c.l.b16 %v845
  %v3409 = vunpack.c.l.b16 %v846
  %v3410 = vunpack.c.l.b16 %v847
  %v3411 = vunpack.c.l.b16 %v848
  %v3412 = vunpack.c.l.b16 %v849
  %v3413 = vunpack.c.l.b16 %v850
  %v3414 = vunpack.c.l.b16 %v851
  %v3415 = vunpack.c.l.b16 %v852
  %v3416 = vunpack.c.l.b16 %v853
  %v3417 = vunpack.c.l.b16 %v854
  %v3418 = vunpack.c.l.b16 %v855
  %v3419 = vunpack.c.l.b16 %v856
  %v3420 = vunpack.c.l.b16 %v857
  %v3421 = vunpack.c.l.b16 %v858
  %v3422 = vunpack.c.l.b16 %v859
  %v3423 = vunpack.c.l.b16 %v860
  %v3424 = vunpack.c.l.b16 %v861
  %v3425 = vunpack.c.l.b16 %v862
  %v3426 = vunpack.c.l.b16 %v863
  %v3427 = vunpack.c.l.b16 %v864
  %v3428 = vunpack.c.l.b16 %v865
  %v3429 = vunpack.c.l.b16 %v866
  %v3430 = vunpack.c.l.b16 %v867
  %v3431 = vunpack.c.l.b16 %v868
  %v3432 = vunpack.c.l.b16 %v869
  %v3433 = vunpack.c.l.b16 %v870
  %v3434 = vunpack.c.l.b16 %v871
  %v3435 = vunpack.c.l.b16 %v872
  %v3436 = vunpack.c.l.b16 %v873
  %v3437 = vunpack.c.l.b16 %v874
  %v3438 = vunpack.c.l.b16 %v875
  %v3439 = vunpack.c.l.b16 %v876
  %v3440 = vunpack.c.l.b16 %v877
  %v3441 = vunpack.c.l.b16 %v878
  %v3442 = vunpack.c.l.b16 %v879
  %v3443 = vunpack.c.l.b16 %v880
  %v3444 = vunpack.c.l.b16 %v881
  %v3445 = vunpack.c.l.b16 %v882
  %v3446 = vunpack.c.l.b16 %v883
  %v3447 = vunpack.c.l.b16 %v884
  %v3448 = vunpack.c.l.b16 %v885
  %v3449 = vunpack.c.l.b16 %v886
  %v3450 = vunpack.c.l.b16 %v887
  %v3451 = vunpack.c.l.b16 %v888
  %v3452 = vunpack.c.l.b16 %v889
  %v3453 = vunpack.c.l.b16 %v890
  %v3454 = vunpack.c.l.b16 %v891
  %v3455 = vunpack.c.l.b16 %v892
  %v3456 = vunpack.c.l.b16 %v893
  %v3457 = vunpack.c.l.b16 %v894
  %v3458 = vunpack.c.l.b16 %v895
  %v3459 = vunpack.c.l.b16 %v896
  %v3460 = vunpack.c.l.b16 %v897
  %v3461 = vunpack.c.l.b16 %v898
  %v3462 = vunpack.c.l.b16 %v899
  %v3463 = vunpack.c.l.b16 %v900
  %v3464 = vunpack.c.l.b16 %v901
  %v3465 = vunpack.c.l.b16 %v902
  %v3466 = vunpack.c.l.b16 %v903
  %v3467 = vunpack.c.l.b16 %v904
  %v3468 = vunpack.c.l.b16 %v905
  %v3469 = vunpack.c.l.b16 %v906
  %v3470 = vunpack.c.l.b16 %v907
  %v3471 = vunpack.c.l.b16 %v908
  %v3472 = vunpack.c.l.b16 %v909
  %v3473 = vunpack.c.l.b16 %v910
  %v3474 = vunpack.c.l.b16 %v911
  %v3475 = vunpack.c.l.b16 %v912
  %v3476 = vunpack.c.l.b16 %v913
  %v3477 = vunpack.c.l.b16 %v914
  %v3478 = vunpack.c.l.b16 %v915
  %v3479 = vunpack.c.l.b16 %v916
  %v3480 = vunpack.c.l.b16 %v917
  %v3481 = vunpack.c.l.b16 %v918
  %v3482 = vunpack.c.l.b16 %v919
  %v3483 = vunpack.c.l.b16 %v920
  %v3484 = vunpack.c.l.b16 %v921
  %v3485 = vunpack.c.l.b16 %v922
  %v3486 = vunpack.c.l.b16 %v923
  %v3487 = vunpack.c.l.b16 %v924
  %v3488 = vunpack.c.l.b16 %v925
  %v3489 = vunpack.c.l.b16 %v926
  %v3490 = vunpack.c.l.b16 %v927
  %v3491 = vunpack.c.l.b16 %v928
  %v3492 = vunpack.c.l.b16 %v929
  %v3493 = vunpack.c.l.b16 %v930
  %v3494 = vunpack.c.l.b16 %v931
  %v3495 = vunpack.c.l.b16 %v932
  %v3496 = vunpack.c.l.b16 %v933
  %v3497 = vunpack.c.l.b16 %v934
  %v3498 = vunpack.c.l.b16 %v935
  %v3499 = vunpack.c.l.b16 %v936
  %v3500 = vunpack.c.l.b16 %v937
  %v3501 = vunpack.c.l.b16 %v938
  %v3502 = vunpack.c.l.b16 %v939
  %v3503 = vunpack.c.l.b16 %v940
  %v3504 = vunpack.c.l.b16 %v941
  %v3505 = vunpack.c.l.b16 %v942
  %v3506 = vunpack.c.l.b16 %v943
  %v3507 = vunpack.c.l.b16 %v944
  %v3508 = vunpack.c.l.b16 %v945
  %v3509 = vunpack.c.l.b16 %v946
  %v3510 = vunpack.c.l.b16 %v947
  %v3511 = vunpack.c.l.b16 %v948
  %v3512 = vunpack.c.l.b16 %v949
  %v3513 = vunpack.c.l.b16 %v950
  %v3514 = vunpack.c.l.b16 %v951
  %v3515 = vunpack.c.l.b16 %v952
  %v3516 = vunpack.c.l.b16 %v953
  %v3517 = vunpack.c.l.b16 %v954
  %v3518 = vunpack.c.l.b16 %v955
  %v3519 = vunpack.c.l.b16 %v956
  %v3520 = vunpack.c.l.b16 %v957
  %v3521 = vunpack.c.l.b16 %v958
  %v3522 = vunpack.c.l.b16 %v959
  %v3523 = vunpack.c.l.b16 %v960
  %v3524 = vunpack.c.l.b16 %v961
  %v3525 = vunpack.c.l.b16 %v962
  %v3526 = vunpack.c.l.b16 %v963
  %v3527 = vunpack.c.l.b16 %v964
  %v3528 = vunpack.c.l.b16 %v965
  %v3529 = vunpack.c.l.b16 %v966
  %v3530 = vunpack.c.l.b16 %v967
  %v3531 = vunpack.c.l.b16 %v968
  %v3532 = vunpack.c.l.b16 %v969
  %v3533 = vunpack.c.l.b16 %v970
  %v3534 = vunpack.c.l.b16 %v971
  %v3535 = vunpack.c.l.b16 %v972
  %v3536 = vunpack.c.l.b16 %v973
  %v3537 = vunpack.c.l.b16 %v974
  %v3538 = vunpack.c.l.b16 %v975
  %v3539 = vunpack.c.l.b16 %v976
  %v3540 = vunpack.c.l.b16 %v977
  %v3541 = vunpack.c.l.b16 %v978
  %v3542 = vunpack.c.l.b16 %v979
  %v3543 = vunpack.c.l.b16 %v980
  %v3544 = vunpack.c.l.b16 %v981
  %v3545 = vunpack.c.l.b16 %v982
  %v3546 = vunpack.c.l.b16 %v983
  %v3547 = vunpack.c.l.b16 %v984
  %v3548 = vunpack.c.l.b16 %v985
  %v3549 = vunpack.c.l.b16 %v986
  %v3550 = vunpack.c.l.b16 %v987
  %v3551 = vunpack.c.l.b16 %v988
  %v3552 = vunpack.c.l.b16 %v989
  %v3553 = vunpack.c.l.b16 %v990
  %v3554 = vunpack.c.l.b16 %v991
  %v3555 = vunpack.c.l.b16 %v992
  %v3556 = vunpack.c.l.b16 %v993
  %v3557 = vunpack.c.l.b16 %v994
  %v3558 = vunpack.c.l.b16 %v995
  %v3559 = vunpack.c.l.b16 %v996
  %v3560 = vunpack.c.l.b16 %v997
  %v3561 = vunpack.c.l.b16 %v998
  %v3562 = vunpack.c.l.b16 %v999
  %v3563 = vunpack.c.l.b16 %v1000
  %v3564 = vunpack.c.l.b16 %v1001
  %v3565 = vunpack.c.l.b16 %v1002
  %v3566 = vunpack.c.l.b16 %v1003
  %v3567 = vunpack.c.l.b16 %v1004
  %v3568 = vunpack.c.l.b16 %v1005
  %v3569 = vunpack.c.l.b16 %v1006
  %v3570 = vunpack.c.l.b16 %v1007
  %v3571 = vunpack.c.l.b16 %v1008
  %v3572 = vunpack.c.l.b16 %v1009
  %v3573 = vunpack.c.l.b16 %v1010
  %v3574 = vunpack.c.l.b16 %v1011
  %v3575 = vunpack.c.l.b16 %v1012
  %v3576 = vunpack.c.l.b16 %v1013
  %v3577 = vunpack.c.l.b16 %v1014
  %v3578 = vunpack.c.l.b16 %v1015
  %v3579 = vunpack.c.l.b16 %v1016
  %v3580 = vunpack.c.l.b16 %v1017
  %v3581 = vunpack.c.l.b16 %v1018
  %v3582 = vunpack.c.l.b16 %v1019
  %v3583 = vunpack.c.l.b16 %v1020
  %v3584 = vunpack.c.l.b16 %v1021
  %v3585 = vunpack.c.l.b16 %v1022
  %v3586 = vunpack.c.l.b16 %v1023
  %v3587 = vunpack.c.l.b16 %v1024
  %v3588 = vunpack.c.l.b16 %v1025
  %v3589 = vunpack.c.l.b16 %v1026
  %v3590 = vunpack.c.l.b16 %v1027
  %v3591 = vunpack.c.l.b16 %v1028
  %v3592 = vunpack.c.l.b16 %v1029
  %v3593 = vunpack.c.l.b16 %v1030
  %v3594 = vunpack.c.l.b16 %v1031
  %v3595 = vunpack.c.l.b16 %v1032
  %v3596 = vunpack.c.l.b16 %v1033
  %v3597 = vunpack.c.l.b16 %v1034
  %v3598 = vunpack.c.l.b16 %v1035
  %v3599 = vunpack.c.l.b16 %v1036
  %v3600 = vunpack.c.l.b16 %v1037
  %v3601 = vunpack.c.l.b16 %v1038
  %v3602 = vunpack.c.l.b16 %v1039
  %v3603 = vunpack.c.l.b16 %v1040
  %v3604 = vunpack.c.l.b16 %v1041
  %v3605 = vunpack.c.l.b16 %v1042
  %v3606 = vunpack.c.l.b16 %v1043
  %v3607 = vunpack.c.l.b16 %v1044
  %v3608 = vunpack.c.l.b16 %v1045
  %v3609 = vunpack.c.l.b16 %v1046
  %v3610 = vunpack.c.l.b16 %v1047
  %v3611 = vunpack.c.l.b16 %v1048
  %v3612 = vunpack.c.l.b16 %v1049
  %v3613 = vunpack.c.l.b16 %v1050
  %v3614 = vunpack.c.l.b16 %v1051
  %v3615 = vunpack.c.l.b16 %v1052
  %v3616 = vunpack.c.l.b16 %v1053
  %v3617 = vunpack.c.l.b16 %v1054
  %v3618 = vunpack.c.l.b16 %v1055
  %v3619 = vunpack.c.l.b16 %v1056
  %v3620 = vunpack.c.l.b16 %v1057
  %v3621 = vunpack.c.l.b16 %v1058
  %v3622 = vunpack.c.l.b16 %v1059
  %v3623 = vunpack.c.l.b16 %v1060
  %v3624 = vunpack.c.l.b16 %v1061
  %v3625 = vunpack.c.l.b16 %v1062
  %v3626 = vunpack.c.l.b16 %v1063
  %v3627 = vunpack.c.l.b16 %v1064
  %v3628 = vunpack.c.l.b16 %v1065
  %v3629 = vunpack.c.l.b16 %v1066
  %v3630 = vunpack.c.l.b16 %v1067
  %v3631 = vunpack.c.l.b16 %v1068
  %v3632 = vunpack.c.l.b16 %v1069
  %v3633 = vunpack.c.l.b16 %v1070
  %v3634 = vunpack.c.l.b16 %v1071
  %v3635 = vunpack.c.l.b16 %v1072
  %v3636 = vunpack.c.l.b16 %v1073
  %v3637 = vunpack.c.l.b16 %v1074
  %v3638 = vunpack.c.l.b16 %v1075
  %v3639 = vunpack.c.l.b16 %v1076
  %v3640 = vunpack.c.l.b16 %v1077
  %v3641 = vunpack.c.l.b16 %v1078
  %v3642 = vunpack.c.l.b16 %v1079
  %v3643 = vunpack.c.l.b16 %v1080
  %v3644 = vunpack.c.l.b16 %v1081
  %v3645 = vunpack.c.l.b16 %v1082
  %v3646 = vunpack.c.l.b16 %v1083
  %v3647 = vunpack.c.l.b16 %v1084
  %v3648 = vunpack.c.l.b16 %v1085
  %v3649 = vunpack.c.l.b16 %v1086
  %v3650 = vunpack.c.l.b16 %v1087
  %v3651 = vunpack.c.l.b16 %v1088
  %v3652 = vunpack.c.l.b16 %v1089
  %v3653 = vunpack.c.l.b16 %v1090
  %v3654 = vunpack.c.l.b16 %v1091
  %v3655 = vunpack.c.l.b16 %v1092
  %v3656 = vunpack.c.l.b16 %v1093
  %v3657 = vunpack.c.l.b16 %v1094
  %v3658 = vunpack.c.l.b16 %v1095
  %v3659 = vunpack.c.l.b16 %v1096
  %v3660 = vunpack.c.l.b16 %v1097
  %v3661 = vunpack.c.l.b16 %v1098
  %v3662 = vunpack.c.l.b16 %v1099
  %v3663 = vunpack.c.l.b16 %v1100
  %v3664 = vunpack.c.l.b16 %v1101
  %v3665 = vunpack.c.l.b16 %v1102
  %v3666 = vunpack.c.l.b16 %v1103
  %v3667 = vunpack.c.l.b16 %v1104
  %v3668 = vunpack.c.l.b16 %v1105
  %v3669 = vunpack.c.l.b16 %v1106
  %v3670 = vunpack.c.l.b16 %v1107
  %v3671 = vunpack.c.l.b16 %v1108
  %v3672 = vunpack.c.l.b16 %v1109
  %v3673 = vunpack.c.l.b16 %v1110
  %v3674 = vunpack.c.l.b16 %v1111
  %v3675 = vunpack.c.l.b16 %v1112
  %v3676 = vunpack.c.l.b16 %v1113
  %v3677 = vunpack.c.l.b16 %v1114
  %v3678 = vunpack.c.l.b16 %v1115
  %v3679 = vunpack.c.l.b16 %v1116
  %v3680 = vunpack.c.l.b16 %v1117
  %v3681 = vunpack.c.l.b16 %v1118
  %v3682 = vunpack.c.l.b16 %v1119
  %v3683 = vunpack.c.l.b16 %v1120
  %v3684 = vunpack.c.l.b16 %v1121
  %v3685 = vunpack.c.l.b16 %v1122
  %v3686 = vunpack.c.l.b16 %v1123
  %v3687 = vunpack.c.l.b16 %v1124
  %v3688 = vunpack.c.l.b16 %v1125
  %v3689 = vunpack.c.l.b16 %v1126
  %v3690 = vunpack.c.l.b16 %v1127
  %v3691 = vunpack.c.l.b16 %v1128
  %v3692 = vunpack.c.l.b16 %v1129
  %v3693 = vunpack.c.l.b16 %v1130
  %v3694 = vunpack.c.l.b16 %v1131
  %v3695 = vunpack.c.l.b16 %v1132
  %v3696 = vunpack.c.l.b16 %v1133
  %v3697 = vunpack.c.l.b16 %v1134
  %v3698 = vunpack.c.l.b16 %v1135
  %v3699 = vunpack.c.l.b16 %v1136
  %v3700 = vunpack.c.l.b16 %v1137
  %v3701 = vunpack.c.l.b16 %v1138
  %v3702 = vunpack.c.l.b16 %v1139
  %v3703 = vunpack.c.l.b16 %v1140
  %v3704 = vunpack.c.l.b16 %v1141
  %v3705 = vunpack.c.l.b16 %v1142
  %v3706 = vunpack.c.l.b16 %v1143
  %v3707 = vunpack.c.l.b16 %v1144
  %v3708 = vunpack.c.l.b16 %v1145
  %v3709 = vunpack.c.l.b16 %v1146
  %v3710 = vunpack.c.l.b16 %v1147
  %v3711 = vunpack.c.l.b16 %v1148
  %v3712 = vunpack.c.l.b16 %v1149
  %v3713 = vunpack.c.l.b16 %v1150
  %v3714 = vunpack.c.l.b16 %v1151
  %v3715 = vunpack.c.l.b16 %v1152
  %v3716 = vunpack.c.l.b16 %v1153
  %v3717 = vunpack.c.l.b16 %v1154
  %v3718 = vunpack.c.l.b16 %v1155
  %v3719 = vunpack.c.l.b16 %v1156
  %v3720 = vunpack.c.l.b16 %v1157
  %v3721 = vunpack.c.l.b16 %v1158
  %v3722 = vunpack.c.l.b16 %v1159
  %v3723 = vunpack.c.l.b16 %v1160
  %v3724 = vunpack.c.l.b16 %v1161
  %v3725 = vunpack.c.l.b16 %v1162
  %v3726 = vunpack.c.l.b16 %v1163
  %v3727 = vunpack.c.l.b16 %v1164
  %v3728 = vunpack.c.l.b16 %v1165
  %v3729 = vunpack.c.l.b16 %v1166
  %v3730 = vunpack.c.l.b16 %v1167
  %v3731 = vunpack.c.l.b16 %v1168
  %v3732 = vunpack.c.l.b16 %v1169
  %v3733 = vunpack.c.l.b16 %v1170
  %v3734 = vunpack.c.l.b16 %v1171
  %v3735 = vunpack.c.l.b16 %v1172
  %v3736 = vunpack.c.l.b16 %v1173
  %v3737 = vunpack.c.l.b16 %v1174
  %v3738 = vunpack.c.l.b16 %v1175
  %v3739 = vunpack.c.l.b16 %v1176
  %v3740 = vunpack.c.l.b16 %v1177
  %v3741 = vunpack.c.l.b16 %v1178
  %v3742 = vunpack.c.l.b16 %v1179
  %v3743 = vunpack.c.l.b16 %v1180
  %v3744 = vunpack.c.l.b16 %v1181
  %v3745 = vunpack.c.l.b16 %v1182
  %v3746 = vunpack.c.l.b16 %v1183
  %v3747 = vunpack.c.l.b16 %v1184
  %v3748 = vunpack.c.l.b16 %v1185
  %v3749 = vunpack.c.l.b16 %v1186
  %v3750 = vunpack.c.l.b16 %v1187
  %v3751 = vunpack.c.l.b16 %v1188
  %v3752 = vunpack.c.l.b16 %v1189
  %v3753 = vunpack.c.l.b16 %v1190
  %v3754 = vunpack.c.l.b16 %v1191
  %v3755 = vunpack.c.l.b16 %v1192
  %v3756 = vunpack.c.l.b16 %v1193
  %v3757 = vunpack.c.l.b16 %v1194
  %v3758 = vunpack.c.l.b16 %v1195
  %v3759 = vunpack.c.l.b16 %v1196
  %v3760 = vunpack.c.l.b16 %v1197
  %v3761 = vunpack.c.l.b16 %v1198
  %v3762 = vunpack.c.l.b16 %v1199
  %v3763 = vunpack.c.l.b16 %v1200
  %v3764 = vunpack.c.l.b16 %v1201
  %v3765 = vunpack.c.l.b16 %v1202
  %v3766 = vunpack.c.l.b16 %v1203
  %v3767 = vunpack.c.l.b16 %v1204
  %v3768 = vunpack.c.l.b16 %v1205
  %v3769 = vunpack.c.l.b16 %v1206
  %v3770 = vunpack.c.l.b16 %v1207
  %v3771 = vunpack.c.l.b16 %v1208
  %v3772 = vpack.c.b16 %v2621, %v2620
  %v3773 = vpack.c.b16 %v2623, %v2622
  %v3774 = vpack.c.b16 %v2625, %v2624
  %v3775 = vpack.c.b16 %v2627, %v2626
  %v3776 = vpack.c.b16 %v2629, %v2628
  %v3777 = vpack.c.b16 %v2631, %v2630
  %v3778 = vpack.c.b16 %v2633, %v2632
  %v3779 = vpack.c.b16 %v2635, %v2634
  %v3780 = vpack.c.b16 %v2637, %v2636
  %v3781 = vpack.c.b16 %v2639, %v2638
  %v3782 = vpack.c.b16 %v2641, %v2640
  %v3783 = vpack.c.b16 %v2643, %v2642
  %v3784 = vpack.c.b16 %v2645, %v2644
  %v3785 = vpack.c.b16 %v2647, %v2646
  %v3786 = vpack.c.b16 %v2649, %v2648
  %v3787 = vpack.c.b16 %v2651, %v2650
  %v3788 = vpack.c.b16 %v2653, %v2652
  %v3789 = vpack.c.b16 %v2655, %v2654
  %v3790 = vpack.c.b16 %v2657, %v2656
  %v3791 = vpack.c.b16 %v2659, %v2658
  %v3792 = vpack.c.b16 %v2661, %v2660
  %v3793 = vpack.c.b16 %v2663, %v2662
  %v3794 = vpack.c.b16 %v2665, %v2664
  %v3795 = vpack.c.b16 %v2667, %v2666
  %v3796 = vpack.c.b16 %v2669, %v2668
  %v3797 = vpack.c.b16 %v2671, %v2670
  %v3798 = vpack.c.b16 %v2673, %v2672
  %v3799 = vpack.c.b16 %v2675, %v2674
  %v3800 = vpack.c.b16 %v2677, %v2676
  %v3801 = vpack.c.b16 %v2679, %v2678
  %v3802 = vpack.c.b16 %v2681, %v2680
  %v3803 = vpack.c.b16 %v2683, %v2682
  %v3804 = vpack.c.b16 %v2685, %v2684
  %v3805 = vpack.c.b16 %v2687, %v2686
  %v3806 = vpack.c.b16 %v2689, %v2688
  %v3807 = vpack.c.b16 %v2691, %v2690
  %v3808 = vpack.c.b16 %v2693, %v2692
  %v3809 = vpack.c.b16 %v2695, %v2694
  %v3810 = vpack.c.b16 %v2697, %v2696
  %v3811 = vpack.c.b16 %v2699, %v2698
  %v3812 = vpack.c.b16 %v2701, %v2700
  %v3813 = vpack.c.b16 %v2703, %v2702
  %v3814 = vpack.c.b16 %v2705, %v2704
  %v3815 = vpack.c.b16 %v2707, %v2706
  %v3816 = vpack.c.b16 %v2709, %v2708
  %v3817 = vpack.c.b16 %v2711, %v2710
  %v3818 = vpack.c.b16 %v2713, %v2712
  %v3819 = vpack.c.b16 %v2715, %v2714
  %v3820 = vpack.c.b16 %v2717, %v2716
  %v3821 = vpack.c.b16 %v2719, %v2718
  %v3822 = vpack.c.b16 %v2721, %v2720
  %v3823 = vpack.c.b16 %v2723, %v2722
  %v3824 = vpack.c.b16 %v2725, %v2724
  %v3825 = vpack.c.b16 %v2727, %v2726
  %v3826 = vpack.c.b16 %v2729, %v2728
  %v3827 = vpack.c.b16 %v2731, %v2730
  %v3828 = vpack.c.b16 %v2733, %v2732
  %v3829 = vpack.c.b16 %v2735, %v2734
  %v3830 = vpack.c.b16 %v2737, %v2736
  %v3831 = vpack.c.b16 %v2739, %v2738
  %v3832 = vpack.c.b16 %v2741, %v2740
  %v3833 = vpack.c.b16 %v2743, %v2742
  %v3834 = vpack.c.b16 %v2745, %v2744
  %v3835 = vpack.c.b16 %v2747, %v2746
  %v3836 = vpack.c.b16 %v2749, %v2748
  %v3837 = vpack.c.b16 %v2751, %v2750
  %v3838 = vpack.c.b16 %v2753, %v2752
  %v3839 = vpack.c.b16 %v2755, %v2754
  %v3840 = vpack.c.b16 %v2757, %v2756
  %v3841 = vpack.c.b16 %v2759, %v2758
  %v3842 = vpack.c.b16 %v2761, %v2760
  %v3843 = vpack.c.b16 %v2763, %v2762
  %v3844 = vpack.c.b16 %v2765, %v2764
  %v3845 = vpack.c.b16 %v2767, %v2766
  %v3846 = vpack.c.b16 %v2769, %v2768
  %v3847 = vpack.c.b16 %v2771, %v2770
  %v3848 = vpack.c.b16 %v2773, %v2772
  %v3849 = vpack.c.b16 %v2775, %v2774
  %v3850 = vpack.c.b16 %v2777, %v2776
  %v3851 = vpack.c.b16 %v2779, %v2778
  %v3852 = vpack.c.b16 %v2781, %v2780
  %v3853 = vpack.c.b16 %v2783, %v2782
  %v3854 = vpack.c.b16 %v2785, %v2784
  %v3855 = vpack.c.b16 %v2787, %v2786
  %v3856 = vpack.c.b16 %v2789, %v2788
  %v3857 = vpack.c.b16 %v2791, %v2790
  %v3858 = vpack.c.b16 %v2793, %v2792
  %v3859 = vpack.c.b16 %v2795, %v2794
  %v3860 = vpack.c.b16 %v2797, %v2796
  %v3861 = vpack.c.b16 %v2799, %v2798
  %v3862 = vpack.c.b16 %v2801, %v2800
  %v3863 = vpack.c.b16 %v2803, %v2802
  %v3864 = vpack.c.b16 %v2805, %v2804
  %v3865 = vpack.c.b16 %v2807, %v2806
  %v3866 = vpack.c.b16 %v2809, %v2808
  %v3867 = vpack.c.b16 %v2811, %v2810
  %v3868 = vpack.c.b16 %v2813, %v2812
  %v3869 = vpack.c.b16 %v2815, %v2814
  %v3870 = vpack.c.b16 %v2817, %v2816
  %v3871 = vpack.c.b16 %v2819, %v2818
  %v3872 = vpack.c.b16 %v2821, %v2820
  %v3873 = vpack.c.b16 %v2823, %v2822
  %v3874 = vpack.c.b16 %v2825, %v2824
  %v3875 = vpack.c.b16 %v2827, %v2826
  %v3876 = vpack.c.b16 %v2829, %v2828
  %v3877 = vpack.c.b16 %v2831, %v2830
  %v3878 = vpack.c.b16 %v2833, %v2832
  %v3879 = vpack.c.b16 %v2835, %v2834
  %v3880 = vpack.c.b16 %v2837, %v2836
  %v3881 = vpack.c.b16 %v2839, %v2838
  %v3882 = vpack.c.b16 %v2841, %v2840
  %v3883 = vpack.c.b16 %v2843, %v2842
  %v3884 = vpack.c.b16 %v2845, %v2844
  %v3885 = vpack.c.b16 %v2847, %v2846
  %v3886 = vpack.c.b16 %v2849, %v2848
  %v3887 = vpack.c.b16 %v2851, %v2850
  %v3888 = vpack.c.b16 %v2853, %v2852
  %v3889 = vpack.c.b16 %v2855, %v2854
  %v3890 = vpack.c.b16 %v2857, %v2856
  %v3891 = vpack.c.b16 %v2859, %v2858
  %v3892 = vpack.c.b16 %v2861, %v2860
  %v3893 = vpack.c.b16 %v2863, %v2862
  %v3894 = vpack.c.b16 %v2865, %v2864
  %v3895 = vpack.c.b16 %v2867, %v2866
  %v3896 = vpack.c.b16 %v2869, %v2868
  %v3897 = vpack.c.b16 %v2871, %v2870
  %v3898 = vpack.c.b16 %v2873, %v2872
  %v3899 = vpack.c.b16 %v2875, %v2874
  %v3900 = vpack.c.b16 %v2877, %v2876
  %v3901 = vpack.c.b16 %v2879, %v2878
  %v3902 = vpack.c.b16 %v2881, %v2880
  %v3903 = vpack.c.b16 %v2883, %v2882
  %v3904 = vpack.c.b16 %v2885, %v2884
  %v3905 = vpack.c.b16 %v2887, %v2886
  %v3906 = vpack.c.b16 %v2889, %v2888
  %v3907 = vpack.c.b16 %v2891, %v2890
  %v3908 = vpack.c.b16 %v2893, %v2892
  %v3909 = vpack.c.b16 %v2895, %v2894
  %v3910 = vpack.c.b16 %v2897, %v2896
  %v3911 = vpack.c.b16 %v2899, %v2898
  %v3912 = vpack.c.b16 %v2901, %v2900
  %v3913 = vpack.c.b16 %v2903, %v2902
  %v3914 = vpack.c.b16 %v2905, %v2904
  %v3915 = vpack.c.b16 %v2907, %v2906
  %v3916 = vpack.c.b16 %v2909, %v2908
  %v3917 = vpack.c.b16 %v2911, %v2910
  %v3918 = vpack.c.b16 %v2913, %v2912
  %v3919 = vpack.c.b16 %v2915, %v2914
  %v3920 = vpack.c.b16 %v2917, %v2916
  %v3921 = vpack.c.b16 %v2919, %v2918
  %v3922 = vpack.c.b16 %v2921, %v2920
  %v3923 = vpack.c.b16 %v2923, %v2922
  %v3924 = vpack.c.b16 %v2925, %v2924
  %v3925 = vpack.c.b16 %v2927, %v2926
  %v3926 = vpack.c.b16 %v2929, %v2928
  %v3927 = vpack.c.b16 %v2931, %v2930
  %v3928 = vpack.c.b16 %v2933, %v2932
  %v3929 = vpack.c.b16 %v2935, %v2934
  %v3930 = vpack.c.b16 %v2937, %v2936
  %v3931 = vpack.c.b16 %v2939, %v2938
  %v3932 = vpack.c.b16 %v2941, %v2940
  %v3933 = vpack.c.b16 %v2943, %v2942
  %v3934 = vpack.c.b16 %v2945, %v2944
  %v3935 = vpack.c.b16 %v2947, %v2946
  %v3936 = vpack.c.b16 %v2949, %v2948
  %v3937 = vpack.c.b16 %v2951, %v2950
  %v3938 = vpack.c.b16 %v2953, %v2952
  %v3939 = vpack.c.b16 %v2955, %v2954
  %v3940 = vpack.c.b16 %v2957, %v2956
  %v3941 = vpack.c.b16 %v2959, %v2958
  %v3942 = vpack.c.b16 %v2961, %v2960
  %v3943 = vpack.c.b16 %v2963, %v2962
  %v3944 = vpack.c.b16 %v2965, %v2964
  %v3945 = vpack.c.b16 %v2967, %v2966
  %v3946 = vpack.c.b16 %v2969, %v2968
  %v3947 = vpack.c.b16 %v2971, %v2970
  %v3948 = vpack.c.b16 %v2973, %v2972
  %v3949 = vpack.c.b16 %v2975, %v2974
  %v3950 = vpack.c.b16 %v2977, %v2976
  %v3951 = vpack.c.b16 %v2979, %v2978
  %v3952 = vpack.c.b16 %v2981, %v2980
  %v3953 = vpack.c.b16 %v2983, %v2982
  %v3954 = vpack.c.b16 %v2985, %v2984
  %v3955 = vpack.c.b16 %v2987, %v2986
  %v3956 = vpack.c.b16 %v2989, %v2988
  %v3957 = vpack.c.b16 %v2991, %v2990
  %v3958 = vpack.c.b16 %v2993, %v2992
  %v3959 = vpack.c.b16 %v2995, %v2994
  %v3960 = vpack.c.b16 %v2997, %v2996
  %v3961 = vpack.c.b16 %v2999, %v2998
  %v3962 = vpack.c.b16 %v3001, %v3000
  %v3963 = vpack.c.b16 %v3003, %v3002
  %v3964 = vpack.c.b16 %v3005, %v3004
  %v3965 = vpack.c.b16 %v3007, %v3006
  %v3966 = vpack.c.b16 %v3009, %v3008
  %v3967 = vpack.c.b16 %v3011, %v3010
  %v3968 = vpack.c.b16 %v3013, %v3012
  %v3969 = vpack.c.b16 %v3015, %v3014
  %v3970 = vpack.c.b16 %v3017, %v3016
  %v3971 = vpack.c.b16 %v3019, %v3018
  %v3972 = vpack.c.b16 %v3021, %v3020
  %v3973 = vpack.c.b16 %v3023, %v3022
  %v3974 = vpack.c.b16 %v3025, %v3024
  %v3975 = vpack.c.b16 %v3027, %v3026
  %v3976 = vpack.c.b16 %v3029, %v3028
  %v3977 = vpack.c.b16 %v3031, %v3030
  %v3978 = vpack.c.b16 %v3033, %v3032
  %v3979 = vpack.c.b16 %v3035, %v3034
  %v3980 = vpack.c.b16 %v3037, %v3036
  %v3981 = vpack.c.b16 %v3039, %v3038
  %v3982 = vpack.c.b16 %v3041, %v3040
  %v3983 = vpack.c.b16 %v3043, %v3042
  %v3984 = vpack.c.b16 %v3045, %v3044
  %v3985 = vpack.c.b16 %v3047, %v3046
  %v3986 = vpack.c.b16 %v3049, %v3048
  %v3987 = vpack.c.b16 %v3051, %v3050
  %v3988 = vpack.c.b16 %v3053, %v3052
  %v3989 = vpack.c.b16 %v3055, %v3054
  %v3990 = vpack.c.b16 %v3057, %v3056
  %v3991 = vpack.c.b16 %v3059, %v3058
  %v3992 = vpack.c.b16 %v3061, %v3060
  %v3993 = vpack.c.b16 %v3063, %v3062
  %v3994 = vpack.c.b16 %v3065, %v3064
  %v3995 = vpack.c.b16 %v3067, %v3066
  %v3996 = vpack.c.b16 %v3069, %v3068
  %v3997 = vpack.c.b16 %v3071, %v3070
  %v3998 = vpack.c.b16 %v3073, %v3072
  %v3999 = vpack.c.b16 %v3075, %v3074
  %v4000 = vpack.c.b16 %v3077, %v3076
  %v4001 = vpack.c.b16 %v3079, %v3078
  %v4002 = vpack.c.b16 %v3081, %v3080
  %v4003 = vpack.c.b16 %v3083, %v3082
  %v4004 = vpack.c.b16 %v3085, %v3084
  %v4005 = vpack.c.b16 %v3087, %v3086
  %v4006 = vpack.c.b16 %v3089, %v3088
  %v4007 = vpack.c.b16 %v3091, %v3090
  %v4008 = vpack.c.b16 %v3093, %v3092
  %v4009 = vpack.c.b16 %v3095, %v3094
  %v4010 = vpack.c.b16 %v3097, %v3096
  %v4011 = vpack.c.b16 %v3099, %v3098
  %v4012 = vpack.c.b16 %v3101, %v3100
  %v4013 = vpack.c.b16 %v3103, %v3102
  %v4014 = vpack.c.b16 %v3105, %v3104
  %v4015 = vpack.c.b16 %v3107, %v3106
  %v4016 = vpack.c.b16 %v3109, %v3108
  %v4017 = vpack.c.b16 %v3111, %v3110
  %v4018 = vpack.c.b16 %v3113, %v3112
  %v4019 = vpack.c.b16 %v3115, %v3114
  %v4020 = vpack.c.b16 %v3117, %v3116
  %v4021 = vpack.c.b16 %v3119, %v3118
  %v4022 = vpack.c.b16 %v3121, %v3120
  %v4023 = vpack.c.b16 %v3123, %v3122
  %v4024 = vpack.c.b16 %v3125, %v3124
  %v4025 = vpack.c.b16 %v3127, %v3126
  %v4026 = vpack.c.b16 %v3129, %v3128
  %v4027 = vpack.c.b16 %v3131, %v3130
  %v4028 = vpack.c.b16 %v3133, %v3132
  %v4029 = vpack.c.b16 %v3135, %v3134
  %v4030 = vpack.c.b16 %v3137, %v3136
  %v4031 = vpack.c.b16 %v3139, %v3138
  %v4032 = vpack.c.b16 %v3141, %v3140
  %v4033 = vpack.c.b16 %v3143, %v3142
  %v4034 = vpack.c.b16 %v3145, %v3144
  %v4035 = vpack.c.b16 %v3147, %v3146
  %v4036 = vpack.c.b16 %v3149, %v3148
  %v4037 = vpack.c.b16 %v3151, %v3150
  %v4038 = vpack.c.b16 %v3153, %v3152
  %v4039 = vpack.c.b16 %v3155, %v3154
  %v4040 = vpack.c.b16 %v3157, %v3156
  %v4041 = vpack.c.b16 %v3159, %v3158
  %v4042 = vpack.c.b16 %v3161, %v3160
  %v4043 = vpack.c.b16 %v3163, %v3162
  %v4044 = vpack.c.b16 %v3165, %v3164
  %v4045 = vpack.c.b16 %v3167, %v3166
  %v4046 = vpack.c.b16 %v3169, %v3168
  %v4047 = vpack.c.b16 %v3171, %v3170
  %v4048 = vpack.c.b16 %v3173, %v3172
  %v4049 = vpack.c.b16 %v3175, %v3174
  %v4050 = vpack.c.b16 %v3177, %v3176
  %v4051 = vpack.c.b16 %v3179, %v3178
  %v4052 = vpack.c.b16 %v3181, %v3180
  %v4053 = vpack.c.b16 %v3183, %v3182
  %v4054 = vpack.c.b16 %v3185, %v3184
  %v4055 = vpack.c.b16 %v3187, %v3186
  %v4056 = vpack.c.b16 %v3189, %v3188
  %v4057 = vpack.c.b16 %v3191, %v3190
  %v4058 = vpack.c.b16 %v3193, %v3192
  %v4059 = vpack.c.b16 %v3195, %v3194
  %v4060 = vpack.c.b16 %v3197, %v3196
  %v4061 = vpack.c.b16 %v3199, %v3198
  %v4062 = vpack.c.b16 %v3201, %v3200
  %v4063 = vpack.c.b16 %v3203, %v3202
  %v4064 = vpack.c.b16 %v3205, %v3204
  %v4065 = vpack.c.b16 %v3207, %v3206
  %v4066 = vpack.c.b16 %v3209, %v3208
  %v4067 = vpack.c.b16 %v3211, %v3210
  %v4068 = vpack.c.b16 %v3213, %v3212
  %v4069 = vpack.c.b16 %v3215, %v3214
  %v4070 = vpack.c.b16 %v3217, %v3216
  %v4071 = vpack.c.b16 %v3219, %v3218
  %v4072 = vpack.c.b16 %v3221, %v3220
  %v4073 = vpack.c.b16 %v3223, %v3222
  %v4074 = vpack.c.b16 %v3225, %v3224
  %v4075 = vpack.c.b16 %v3227, %v3226
  %v4076 = vpack.c.b16 %v3229, %v3228
  %v4077 = vpack.c.b16 %v3231, %v3230
  %v4078 = vpack.c.b16 %v3233, %v3232
  %v4079 = vpack.c.b16 %v3235, %v3234
  %v4080 = vpack.c.b16 %v3237, %v3236
  %v4081 = vpack.c.b16 %v3239, %v3238
  %v4082 = vpack.c.b16 %v3241, %v3240
  %v4083 = vpack.c.b16 %v3243, %v3242
  %v4084 = vpack.c.b16 %v3245, %v3244
  %v4085 = vpack.c.b16 %v3247, %v3246
  %v4086 = vpack.c.b16 %v3249, %v3248
  %v4087 = vpack.c.b16 %v3251, %v3250
  %v4088 = vpack.c.b16 %v3253, %v3252
  %v4089 = vpack.c.b16 %v3255, %v3254
  %v4090 = vpack.c.b16 %v3257, %v3256
  %v4091 = vpack.c.b16 %v3259, %v3258
  %v4092 = vpack.c.b16 %v3261, %v3260
  %v4093 = vpack.c.b16 %v3263, %v3262
  %v4094 = vpack.c.b16 %v3265, %v3264
  %v4095 = vpack.c.b16 %v3267, %v3266
  %v4096 = vpack.c.b16 %v3269, %v3268
  %v4097 = vpack.c.b16 %v3271, %v3270
  %v4098 = vpack.c.b16 %v3273, %v3272
  %v4099 = vpack.c.b16 %v3275, %v3274
  %v4100 = vpack.c.b16 %v3277, %v3276
  %v4101 = vpack.c.b16 %v3279, %v3278
  %v4102 = vpack.c.b16 %v3281, %v3280
  %v4103 = vpack.c.b16 %v3283, %v3282
  %v4104 = vpack.c.b16 %v3285, %v3284
  %v4105 = vpack.c.b16 %v3287, %v3286
  %v4106 = vpack.c.b16 %v3289, %v3288
  %v4107 = vpack.c.b16 %v3291, %v3290
  %v4108 = vpack.c.b16 %v3293, %v3292
  %v4109 = vpack.c.b16 %v3295, %v3294
  %v4110 = vpack.c.b16 %v3297, %v3296
  %v4111 = vpack.c.b16 %v3299, %v3298
  %v4112 = vpack.c.b16 %v3301, %v3300
  %v4113 = vpack.c.b16 %v3303, %v3302
  %v4114 = vpack.c.b16 %v3305, %v3304
  %v4115 = vpack.c.b16 %v3307, %v3306
  %v4116 = vpack.c.b16 %v3309, %v3308
  %v4117 = vpack.c.b16 %v3311, %v3310
  %v4118 = vpack.c.b16 %v3313, %v3312
  %v4119 = vpack.c.b16 %v3315, %v3314
  %v4120 = vpack.c.b16 %v3317, %v3316
  %v4121 = vpack.c.b16 %v3319, %v3318
  %v4122 = vpack.c.b16 %v3321, %v3320
  %v4123 = vpack.c.b16 %v3323, %v3322
  %v4124 = vpack.c.b16 %v3325, %v3324
  %v4125 = vpack.c.b16 %v3327, %v3326
  %v4126 = vpack.c.b16 %v3329, %v3328
  %v4127 = vpack.c.b16 %v3331, %v3330
  %v4128 = vpack.c.b16 %v3333, %v3332
  %v4129 = vpack.c.b16 %v3335, %v3334
  %v4130 = vpack.c.b16 %v3337, %v3336
  %v4131 = vpack.c.b16 %v3339, %v3338
  %v4132 = vpack.c.b16 %v3341, %v3340
  %v4133 = vpack.c.b16 %v3343, %v3342
  %v4134 = vpack.c.b16 %v3345, %v3344
  %v4135 = vpack.c.b16 %v3347, %v3346
  %v4136 = vpack.c.b16 %v3349, %v3348
  %v4137 = vpack.c.b16 %v3351, %v3350
  %v4138 = vpack.c.b16 %v3353, %v3352
  %v4139 = vpack.c.b16 %v3355, %v3354
  %v4140 = vpack.c.b16 %v3357, %v3356
  %v4141 = vpack.c.b16 %v3359, %v3358
  %v4142 = vpack.c.b16 %v3361, %v3360
  %v4143 = vpack.c.b16 %v3363, %v3362
  %v4144 = vpack.c.b16 %v3365, %v3364
  %v4145 = vpack.c.b16 %v3367, %v3366
  %v4146 = vpack.c.b16 %v3369, %v3368
  %v4147 = vpack.c.b16 %v3371, %v3370
  %v4148 = vpack.c.b16 %v3373, %v3372
  %v4149 = vpack.c.b16 %v3375, %v3374
  %v4150 = vpack.c.b16 %v3377, %v3376
  %v4151 = vpack.c.b16 %v3379, %v3378
  %v4152 = vpack.c.b16 %v3381, %v3380
  %v4153 = vpack.c.b16 %v3383, %v3382
  %v4154 = vpack.c.b16 %v3385, %v3384
  %v4155 = vpack.c.b16 %v3387, %v3386
  %v4156 = vpack.c.b16 %v3389, %v3388
  %v4157 = vpack.c.b16 %v3391, %v3390
  %v4158 = vpack.c.b16 %v3393, %v3392
  %v4159 = vpack.c.b16 %v3395, %v3394
  %v4160 = vpack.c.b16 %v3397, %v3396
  %v4161 = vpack.c.b16 %v3399, %v3398
  %v4162 = vpack.c.b16 %v3401, %v3400
  %v4163 = vpack.c.b16 %v3403, %v3402
  %v4164 = vpack.c.b16 %v3405, %v3404
  %v4165 = vpack.c.b16 %v3407, %v3406
  %v4166 = vpack.c.b16 %v3409, %v3408
  %v4167 = vpack.c.b16 %v3411, %v3410
  %v4168 = vpack.c.b16 %v3413, %v3412
  %v4169 = vpack.c.b16 %v3415, %v3414
  %v4170 = vpack.c.b16 %v3417, %v3416
  %v4171 = vpack.c.b16 %v3419, %v3418
  %v4172 = vpack.c.b16 %v3421, %v3420
  %v4173 = vpack.c.b16 %v3423, %v3422
  %v4174 = vpack.c.b16 %v3425, %v3424
  %v4175 = vpack.c.b16 %v3427, %v3426
  %v4176 = vpack.c.b16 %v3429, %v3428
  %v4177 = vpack.c.b16 %v3431, %v3430
  %v4178 = vpack.c.b16 %v3433, %v3432
  %v4179 = vpack.c.b16 %v3435, %v3434
  %v4180 = vpack.c.b16 %v3437, %v3436
  %v4181 = vpack.c.b16 %v3439, %v3438
  %v4182 = vpack.c.b16 %v3441, %v3440
  %v4183 = vpack.c.b16 %v3443, %v3442
  %v4184 = vpack.c.b16 %v3445, %v3444
  %v4185 = vpack.c.b16 %v3447, %v3446
  %v4186 = vpack.c.b16 %v3449, %v3448
  %v4187 = vpack.c.b16 %v3451, %v3450
  %v4188 = vpack.c.b16 %v3453, %v3452
  %v4189 = vpack.c.b16 %v3455, %v3454
  %v4190 = vpack.c.b16 %v3457, %v3456
  %v4191 = vpack.c.b16 %v3459, %v3458
  %v4192 = vpack.c.b16 %v3461, %v3460
  %v4193 = vpack.c.b16 %v3463, %v3462
  %v4194 = vpack.c.b16 %v3465, %v3464
  %v4195 = vpack.c.b16 %v3467, %v3466
  %v4196 = vpack.c.b16 %v3469, %v3468
  %v4197 = vpack.c.b16 %v3471, %v3470
  %v4198 = vpack.c.b16 %v3473, %v3472
  %v4199 = vpack.c.b16 %v3475, %v3474
  %v4200 = vpack.c.b16 %v3477, %v3476
  %v4201 = vpack.c.b16 %v3479, %v3478
  %v4202 = vpack.c.b16 %v3481, %v3480
  %v4203 = vpack.c.b16 %v3483, %v3482
  %v4204 = vpack.c.b16 %v3485, %v3484
  %v4205 = vpack.c.b16 %v3487, %v3486
  %v4206 = vpack.c.b16 %v3489, %v3488
  %v4207 = vpack.c.b16 %v3491, %v3490
  %v4208 = vpack.c.b16 %v3493, %v3492
  %v4209 = vpack.c.b16 %v3495, %v3494
  %v4210 = vpack.c.b16 %v3497, %v3496
  %v4211 = vpack.c.b16 %v3499, %v3498
  %v4212 = vpack.c.b16 %v3501, %v3500
  %v4213 = vpack.c.b16 %v3503, %v3502
  %v4214 = vpack.c.b16 %v3505, %v3504
  %v4215 = vpack.c.b16 %v3507, %v3506
  %v4216 = vpack.c.b16 %v3509, %v3508
  %v4217 = vpack.c.b16 %v3511, %v3510
  %v4218 = vpack.c.b16 %v3513, %v3512
  %v4219 = vpack.c.b16 %v3515, %v3514
  %v4220 = vpack.c.b16 %v3517, %v3516
  %v4221 = vpack.c.b16 %v3519, %v3518
  %v4222 = vpack.c.b16 %v3521, %v3520
  %v4223 = vpack.c.b16 %v3523, %v3522
  %v4224 = vpack.c.b16 %v3525, %v3524
  %v4225 = vpack.c.b16 %v3527, %v3526
  %v4226 = vpack.c.b16 %v3529, %v3528
  %v4227 = vpack.c.b16 %v3531, %v3530
  %v4228 = vpack.c.b16 %v3533, %v3532
  %v4229 = vpack.c.b16 %v3535, %v3534
  %v4230 = vpack.c.b16 %v3537, %v3536
  %v4231 = vpack.c.b16 %v3539, %v3538
  %v4232 = vpack.c.b16 %v3541, %v3540
  %v4233 = vpack.c.b16 %v3543, %v3542
  %v4234 = vpack.c.b16 %v3545, %v3544
  %v4235 = vpack.c.b16 %v3547, %v3546
  %v4236 = vpack.c.b16 %v3549, %v3548
  %v4237 = vpack.c.b16 %v3551, %v3550
  %v4238 = vpack.c.b16 %v3553, %v3552
  %v4239 = vpack.c.b16 %v3555, %v3554
  %v4240 = vpack.c.b16 %v3557, %v3556
  %v4241 = vpack.c.b16 %v3559, %v3558
  %v4242 = vpack.c.b16 %v3561, %v3560
  %v4243 = vpack.c.b16 %v3563, %v3562
  %v4244 = vpack.c.b16 %v3565, %v3564
  %v4245 = vpack.c.b16 %v3567, %v3566
  %v4246 = vpack.c.b16 %v3569, %v3568
  %v4247 = vpack.c.b16 %v3571, %v3570
  %v4248 = vpack.c.b16 %v3573, %v3572
  %v4249 = vpack.c.b16 %v3575, %v3574
  %v4250 = vpack.c.b16 %v3577, %v3576
  %v4251 = vpack.c.b16 %v3579, %v3578
  %v4252 = vpack.c.b16 %v3581, %v3580
  %v4253 = vpack.c.b16 %v3583, %v3582
  %v4254 = vpack.c.b16 %v3585, %v3584
  %v4255 = vpack.c.b16 %v3587, %v3586
  %v4256 = vpack.c.b16 %v3589, %v3588
  %v4257 = vpack.c.b16 %v3591, %v3590
  %v4258 = vpack.c.b16 %v3593, %v3592
  %v4259 = vpack.c.b16 %v3595, %v3594
  %v4260 = vpack.c.b16 %v3597, %v3596
  %v4261 = vpack.c.b16 %v3599, %v3598
  %v4262 = vpack.c.b16 %v3601, %v3600
  %v4263 = vpack.c.b16 %v3603, %v3602
  %v4264 = vpack.c.b16 %v3605, %v3604
  %v4265 = vpack.c.b16 %v3607, %v3606
  %v4266 = vpack.c.b16 %v3609, %v3608
  %v4267 = vpack.c.b16 %v3611, %v3610
  %v4268 = vpack.c.b16 %v3613, %v3612
  %v4269 = vpack.c.b16 %v3615, %v3614
  %v4270 = vpack.c.b16 %v3617, %v3616
  %v4271 = vpack.c.b16 %v3619, %v3618
  %v4272 = vpack.c.b16 %v3621, %v3620
  %v4273 = vpack.c.b16 %v3623, %v3622
  %v4274 = vpack.c.b16 %v3625, %v3624
  %v4275 = vpack.c.b16 %v3627, %v3626
  %v4276 = vpack.c.b16 %v3629, %v3628
  %v4277 = vpack.c.b16 %v3631, %v3630
  %v4278 = vpack.c.b16 %v3633, %v3632
  %v4279 = vpack.c.b16 %v3635, %v3634
  %v4280 = vpack.c.b16 %v3637, %v3636
  %v4281 = vpack.c.b16 %v3639, %v3638
  %v4282 = vpack.c.b16 %v3641, %v3640
  %v4283 = vpack.c.b16 %v3643, %v3642
  %v4284 = vpack.c.b16 %v3645, %v3644
  %v4285 = vpack.c.b16 %v3647, %v3646
  %v4286 = vpack.c.b16 %v3649, %v3648
  %v4287 = vpack.c.b16 %v3651, %v3650
  %v4288 = vpack.c.b16 %v3653, %v3652
  %v4289 = vpack.c.b16 %v3655, %v3654
  %v4290 = vpack.c.b16 %v3657, %v3656
  %v4291 = vpack.c.b16 %v3659, %v3658
  %v4292 = vpack.c.b16 %v3661, %v3660
  %v4293 = vpack.c.b16 %v3663, %v3662
  %v4294 = vpack.c.b16 %v3665, %v3664
  %v4295 = vpack.c.b16 %v3667, %v3666
  %v4296 = vpack.c.b16 %v3669, %v3668
  %v4297 = vpack.c.b16 %v3671, %v3670
  %v4298 = vpack.c.b16 %v3673, %v3672
  %v4299 = vpack.c.b16 %v3675, %v3674
  %v4300 = vpack.c.b16 %v3677, %v3676
  %v4301 = vpack.c.b16 %v3679, %v3678
  %v4302 = vpack.c.b16 %v3681, %v3680
  %v4303 = vpack.c.b16 %v3683, %v3682
  %v4304 = vpack.c.b16 %v3685, %v3684
  %v4305 = vpack.c.b16 %v3687, %v3686
  %v4306 = vpack.c.b16 %v3689, %v3688
  %v4307 = vpack.c.b16 %v3691, %v3690
  %v4308 = vpack.c.b16 %v3693, %v3692
  %v4309 = vpack.c.b16 %v3695, %v3694
  %v4310 = vpack.c.b16 %v3697, %v3696
  %v4311 = vpack.c.b16 %v3699, %v3698
  %v4312 = vpack.c.b16 %v3701, %v3700
  %v4313 = vpack.c.b16 %v3703, %v3702
  %v4314 = vpack.c.b16 %v3705, %v3704
  %v4315 = vpack.c.b16 %v3707, %v3706
  %v4316 = vpack.c.b16 %v3709, %v3708
  %v4317 = vpack.c.b16 %v3711, %v3710
  %v4318 = vpack.c.b16 %v3713, %v3712
  %v4319 = vpack.c.b16 %v3715, %v3714
  %v4320 = vpack.c.b16 %v3717, %v3716
  %v4321 = vpack.c.b16 %v3719, %v3718
  %v4322 = vpack.c.b16 %v3721, %v3720
  %v4323 = vpack.c.b16 %v3723, %v3722
  %v4324 = vpack.c.b16 %v3725, %v3724
  %v4325 = vpack.c.b16 %v3727, %v3726
  %v4326 = vpack.c.b16 %v3729, %v3728
  %v4327 = vpack.c.b16 %v3731, %v3730
  %v4328 = vpack.c.b16 %v3733, %v3732
  %v4329 = vpack.c.b16 %v3735, %v3734
  %v4330 = vpack.c.b16 %v3737, %v3736
  %v4331 = vpack.c.b16 %v3739, %v3738
  %v4332 = vpack.c.b16 %v3741, %v3740
  %v4333 = vpack.c.b16 %v3743, %v3742
  %v4334 = vpack.c.b16 %v3745, %v3744
  %v4335 = vpack.c.b16 %v3747, %v3746
  %v4336 = vpack.c.b16 %v3749, %v3748
  %v4337 = vpack.c.b16 %v3751, %v3750
  %v4338 = vpack.c.b16 %v3753, %v3752
  %v4339 = vpack.c.b16 %v3755, %v3754
  %v4340 = vpack.c.b16 %v3757, %v3756
  %v4341 = vpack.c.b16 %v3759, %v3758
  %v4342 = vpack.c.b16 %v3761, %v3760
  %v4343 = vpack.c.b16 %v3763, %v3762
  %v4344 = vpack.c.b16 %v3765, %v3764
  %v4345 = vpack.c.b16 %v3767, %v3766
  %v4346 = vpack.c.b16 %v3769, %v3768
  %v4347 = vpack.c.b16 %v3771, %v3770
  %4924 = vmatprep.subr.bf16.mxu0 0
  %4925 = vmatpush1.bf16.msra.mxu0 %v3772
  %4926 = vmatprep.subr.bf16.mxu0 0
  %4927 = vmatpush1.bf16.msra.mxu0 %v3773
  %4928 = vmatprep.subr.bf16.mxu0 0
  %4929 = vmatpush1.bf16.msra.mxu0 %v3774
  %4930 = vmatprep.subr.bf16.mxu0 0
  %4931 = vmatpush1.bf16.msra.mxu0 %v3775
  %4932 = vmatprep.subr.bf16.mxu0 0
  %4933 = vmatpush1.bf16.msra.mxu0 %v3776
  %4934 = vmatprep.subr.bf16.mxu0 0
  %4935 = vmatpush1.bf16.msra.mxu0 %v3777
  %4936 = vmatprep.subr.bf16.mxu0 0
  %4937 = vmatpush1.bf16.msra.mxu0 %v3778
  %4938 = vmatprep.subr.bf16.mxu0 0
  %4939 = vmatpush1.bf16.msra.mxu0 %v3779
  %4940 = vmatprep.subr.bf16.mxu0 0
  %4941 = vmatpush1.bf16.msra.mxu0 %v3780
  %4942 = vmatprep.subr.bf16.mxu0 0
  %4943 = vmatpush1.bf16.msra.mxu0 %v3781
  %4944 = vmatprep.subr.bf16.mxu0 0
  %4945 = vmatpush1.bf16.msra.mxu0 %v3782
  %4946 = vmatprep.subr.bf16.mxu0 0
  %4947 = vmatpush1.bf16.msra.mxu0 %v3783
  %4948 = vmatprep.subr.bf16.mxu0 0
  %4949 = vmatpush1.bf16.msra.mxu0 %v3784
  %4950 = vmatprep.subr.bf16.mxu0 0
  %4951 = vmatpush1.bf16.msra.mxu0 %v3785
  %4952 = vmatprep.subr.bf16.mxu0 0
  %4953 = vmatpush1.bf16.msra.mxu0 %v3786
  %4954 = vmatprep.subr.bf16.mxu0 0
  %4955 = vmatpush1.bf16.msra.mxu0 %v3787
  %4956 = vmatprep.mubr.bf16.mxu0 %v1325
  %4957 = vmatmul.mubr.bf16.gmra.mrb[0].mxu0 %v1324
  %v4958 = vpop.f32.mrb[0].mxu0
  %v4959 = vadd.f32 %v1214, %v4958
  %v4960 = vpop.f32.mrb[0].mxu0
  %v4961 = vpop.f32.mrb[0].mxu0
  %v4962 = vpop.f32.mrb[0].mxu0
  %4963 = vdwg.mxu0
  %4964 = vmatprep.subr.bf16.mxu0 0
  %4965 = vmatpush1.bf16.msra.mxu0 %v3788
  %4966 = vmatprep.subr.bf16.mxu0 0
  %4967 = vmatpush1.bf16.msra.mxu0 %v3789
  %4968 = vmatprep.subr.bf16.mxu0 0
  %4969 = vmatpush1.bf16.msra.mxu0 %v3790
  %4970 = vmatprep.subr.bf16.mxu0 0
  %4971 = vmatpush1.bf16.msra.mxu0 %v3791
  %4972 = vmatprep.subr.bf16.mxu0 0
  %4973 = vmatpush1.bf16.msra.mxu0 %v3792
  %4974 = vmatprep.subr.bf16.mxu0 0
  %4975 = vmatpush1.bf16.msra.mxu0 %v3793
  %4976 = vmatprep.subr.bf16.mxu0 0
  %4977 = vmatpush1.bf16.msra.mxu0 %v3794
  %4978 = vmatprep.subr.bf16.mxu0 0
  %4979 = vmatpush1.bf16.msra.mxu0 %v3795
  %4980 = vmatprep.subr.bf16.mxu0 0
  %4981 = vmatpush1.bf16.msra.mxu0 %v3796
  %4982 = vmatprep.subr.bf16.mxu0 0
  %4983 = vmatpush1.bf16.msra.mxu0 %v3797
  %4984 = vmatprep.subr.bf16.mxu0 0
  %4985 = vmatpush1.bf16.msra.mxu0 %v3798
  %4986 = vmatprep.subr.bf16.mxu0 0
  %4987 = vmatpush1.bf16.msra.mxu0 %v3799
  %4988 = vmatprep.subr.bf16.mxu0 0
  %4989 = vmatpush1.bf16.msra.mxu0 %v3800
  %4990 = vmatprep.subr.bf16.mxu0 0
  %4991 = vmatpush1.bf16.msra.mxu0 %v3801
  %4992 = vmatprep.subr.bf16.mxu0 0
  %4993 = vmatpush1.bf16.msra.mxu0 %v3802
  %4994 = vmatprep.subr.bf16.mxu0 0
  %4995 = vmatpush1.bf16.msra.mxu0 %v3803
  %4996 = vmatprep.mubr.bf16.mxu0 %v1327
  %4997 = vmatmul.mubr.bf16.gmra.mrb[0].mxu0 %v1326
  %v4998 = vpop.f32.mrb[0].mxu0
  %v4999 = vadd.f32 %v4959, %v4998
  %v5000 = vpop.f32.mrb[0].mxu0
  %v5001 = vpop.f32.mrb[0].mxu0
  %v5002 = vpop.f32.mrb[0].mxu0
  %5003 = vdwg.mxu0
  %5004 = vmatprep.subr.bf16.mxu0 0
  %5005 = vmatpush1.bf16.msra.mxu0 %v3804
  %5006 = vmatprep.subr.bf16.mxu0 0
  %5007 = vmatpush1.bf16.msra.mxu0 %v3805
  %5008 = vmatprep.subr.bf16.mxu0 0
  %5009 = vmatpush1.bf16.msra.mxu0 %v3806
  %5010 = vmatprep.subr.bf16.mxu0 0
  %5011 = vmatpush1.bf16.msra.mxu0 %v3807
  %5012 = vmatprep.subr.bf16.mxu0 0
  %5013 = vmatpush1.bf16.msra.mxu0 %v3808
  %5014 = vmatprep.subr.bf16.mxu0 0
  %5015 = vmatpush1.bf16.msra.mxu0 %v3809
  %5016 = vmatprep.subr.bf16.mxu0 0
  %5017 = vmatpush1.bf16.msra.mxu0 %v3810
  %5018 = vmatprep.subr.bf16.mxu0 0
  %5019 = vmatpush1.bf16.msra.mxu0 %v3811
  %5020 = vmatprep.subr.bf16.mxu0 0
  %5021 = vmatpush1.bf16.msra.mxu0 %v3812
  %5022 = vmatprep.subr.bf16.mxu0 0
  %5023 = vmatpush1.bf16.msra.mxu0 %v3813
  %5024 = vmatprep.subr.bf16.mxu0 0
  %5025 = vmatpush1.bf16.msra.mxu0 %v3814
  %5026 = vmatprep.subr.bf16.mxu0 0
  %5027 = vmatpush1.bf16.msra.mxu0 %v3815
  %5028 = vmatprep.subr.bf16.mxu0 0
  %5029 = vmatpush1.bf16.msra.mxu0 %v3816
  %5030 = vmatprep.subr.bf16.mxu0 0
  %5031 = vmatpush1.bf16.msra.mxu0 %v3817
  %5032 = vmatprep.subr.bf16.mxu0 0
  %5033 = vmatpush1.bf16.msra.mxu0 %v3818
  %5034 = vmatprep.subr.bf16.mxu0 0
  %5035 = vmatpush1.bf16.msra.mxu0 %v3819
  %5036 = vmatprep.mubr.bf16.mxu0 %v1329
  %5037 = vmatmul.mubr.bf16.gmra.mrb[0].mxu0 %v1328
  %v5038 = vpop.f32.mrb[0].mxu0
  %v5039 = vadd.f32 %v4999, %v5038
  %v5040 = vpop.f32.mrb[0].mxu0
  %v5041 = vpop.f32.mrb[0].mxu0
  %v5042 = vpop.f32.mrb[0].mxu0
  %5043 = vdwg.mxu0
  %5044 = vmatprep.subr.bf16.mxu0 0
  %5045 = vmatpush1.bf16.msra.mxu0 %v3820
  %5046 = vmatprep.subr.bf16.mxu0 0
  %5047 = vmatpush1.bf16.msra.mxu0 %v3821
  %5048 = vmatprep.subr.bf16.mxu0 0
  %5049 = vmatpush1.bf16.msra.mxu0 %v3822
  %5050 = vmatprep.subr.bf16.mxu0 0
  %5051 = vmatpush1.bf16.msra.mxu0 %v3823
  %5052 = vmatprep.subr.bf16.mxu0 0
  %5053 = vmatpush1.bf16.msra.mxu0 %v3824
  %5054 = vmatprep.subr.bf16.mxu0 0
  %5055 = vmatpush1.bf16.msra.mxu0 %v3825
  %5056 = vmatprep.subr.bf16.mxu0 0
  %5057 = vmatpush1.bf16.msra.mxu0 %v3826
  %5058 = vmatprep.subr.bf16.mxu0 0
  %5059 = vmatpush1.bf16.msra.mxu0 %v3827
  %5060 = vmatprep.subr.bf16.mxu0 0
  %5061 = vmatpush1.bf16.msra.mxu0 %v3828
  %5062 = vmatprep.subr.bf16.mxu0 0
  %5063 = vmatpush1.bf16.msra.mxu0 %v3829
  %5064 = vmatprep.subr.bf16.mxu0 0
  %5065 = vmatpush1.bf16.msra.mxu0 %v3830
  %5066 = vmatprep.subr.bf16.mxu0 0
  %5067 = vmatpush1.bf16.msra.mxu0 %v3831
  %5068 = vmatprep.subr.bf16.mxu0 0
  %5069 = vmatpush1.bf16.msra.mxu0 %v3832
  %5070 = vmatprep.subr.bf16.mxu0 0
  %5071 = vmatpush1.bf16.msra.mxu0 %v3833
  %5072 = vmatprep.subr.bf16.mxu0 0
  %5073 = vmatpush1.bf16.msra.mxu0 %v3834
  %5074 = vmatprep.subr.bf16.mxu0 0
  %5075 = vmatpush1.bf16.msra.mxu0 %v3835
  %5076 = vmatprep.mubr.bf16.mxu0 %v1331
  %5077 = vmatmul.mubr.bf16.gmra.mrb[0].mxu0 %v1330
  %v5078 = vpop.f32.mrb[0].mxu0
  %v5079 = vadd.f32 %v5039, %v5078
  %v5080 = vpop.f32.mrb[0].mxu0
  %v5081 = vpop.f32.mrb[0].mxu0
  %v5082 = vpop.f32.mrb[0].mxu0
  %5083 = vdwg.mxu0
  %5084 = vmatprep.subr.bf16.mxu0 0
  %5085 = vmatpush1.bf16.msra.mxu0 %v3836
  %5086 = vmatprep.subr.bf16.mxu0 0
  %5087 = vmatpush1.bf16.msra.mxu0 %v3837
  %5088 = vmatprep.subr.bf16.mxu0 0
  %5089 = vmatpush1.bf16.msra.mxu0 %v3838
  %5090 = vmatprep.subr.bf16.mxu0 0
  %5091 = vmatpush1.bf16.msra.mxu0 %v3839
  %5092 = vmatprep.subr.bf16.mxu0 0
  %5093 = vmatpush1.bf16.msra.mxu0 %v3840
  %5094 = vmatprep.subr.bf16.mxu0 0
  %5095 = vmatpush1.bf16.msra.mxu0 %v3841
  %5096 = vmatprep.subr.bf16.mxu0 0
  %5097 = vmatpush1.bf16.msra.mxu0 %v3842
  %5098 = vmatprep.subr.bf16.mxu0 0
  %5099 = vmatpush1.bf16.msra.mxu0 %v3843
  %5100 = vmatprep.subr.bf16.mxu0 0
  %5101 = vmatpush1.bf16.msra.mxu0 %v3844
  %5102 = vmatprep.subr.bf16.mxu0 0
  %5103 = vmatpush1.bf16.msra.mxu0 %v3845
  %5104 = vmatprep.subr.bf16.mxu0 0
  %5105 = vmatpush1.bf16.msra.mxu0 %v3846
  %5106 = vmatprep.subr.bf16.mxu0 0
  %5107 = vmatpush1.bf16.msra.mxu0 %v3847
  %5108 = vmatprep.subr.bf16.mxu0 0
  %5109 = vmatpush1.bf16.msra.mxu0 %v3848
  %5110 = vmatprep.subr.bf16.mxu0 0
  %5111 = vmatpush1.bf16.msra.mxu0 %v3849
  %5112 = vmatprep.subr.bf16.mxu0 0
  %5113 = vmatpush1.bf16.msra.mxu0 %v3850
  %5114 = vmatprep.subr.bf16.mxu0 0
  %5115 = vmatpush1.bf16.msra.mxu0 %v3851
  %5116 = vmatprep.mubr.bf16.mxu0 %v1333
  %5117 = vmatmul.mubr.bf16.gmra.mrb[0].mxu0 %v1332
  %v5118 = vpop.f32.mrb[0].mxu0
  %v5119 = vadd.f32 %v5079, %v5118
  %v5120 = vpop.f32.mrb[0].mxu0
  %v5121 = vpop.f32.mrb[0].mxu0
  %v5122 = vpop.f32.mrb[0].mxu0
  %5123 = vdwg.mxu0
  %5124 = vmatprep.subr.bf16.mxu0 0
  %5125 = vmatpush1.bf16.msra.mxu0 %v3852
  %5126 = vmatprep.subr.bf16.mxu0 0
  %5127 = vmatpush1.bf16.msra.mxu0 %v3853
  %5128 = vmatprep.subr.bf16.mxu0 0
  %5129 = vmatpush1.bf16.msra.mxu0 %v3854
  %5130 = vmatprep.subr.bf16.mxu0 0
  %5131 = vmatpush1.bf16.msra.mxu0 %v3855
  %5132 = vmatprep.subr.bf16.mxu0 0
  %5133 = vmatpush1.bf16.msra.mxu0 %v3856
  %5134 = vmatprep.subr.bf16.mxu0 0
  %5135 = vmatpush1.bf16.msra.mxu0 %v3857
  %5136 = vmatprep.subr.bf16.mxu0 0
  %5137 = vmatpush1.bf16.msra.mxu0 %v3858
  %5138 = vmatprep.subr.bf16.mxu0 0
  %5139 = vmatpush1.bf16.msra.mxu0 %v3859
  %5140 = vmatprep.subr.bf16.mxu0 0
  %5141 = vmatpush1.bf16.msra.mxu0 %v3860
  %5142 = vmatprep.subr.bf16.mxu0 0
  %5143 = vmatpush1.bf16.msra.mxu0 %v3861
  %5144 = vmatprep.subr.bf16.mxu0 0
  %5145 = vmatpush1.bf16.msra.mxu0 %v3862
  %5146 = vmatprep.subr.bf16.mxu0 0
  %5147 = vmatpush1.bf16.msra.mxu0 %v3863
  %5148 = vmatprep.subr.bf16.mxu0 0
  %5149 = vmatpush1.bf16.msra.mxu0 %v3864
  %5150 = vmatprep.subr.bf16.mxu0 0
  %5151 = vmatpush1.bf16.msra.mxu0 %v3865
  %5152 = vmatprep.subr.bf16.mxu0 0
  %5153 = vmatpush1.bf16.msra.mxu0 %v3866
  %5154 = vmatprep.subr.bf16.mxu0 0
  %5155 = vmatpush1.bf16.msra.mxu0 %v3867
  %5156 = vmatprep.mubr.bf16.mxu0 %v1335
  %5157 = vmatmul.mubr.bf16.gmra.mrb[0].mxu0 %v1334
  %v5158 = vpop.f32.mrb[0].mxu0
  %v5159 = vadd.f32 %v5119, %v5158
  %v5160 = vpop.f32.mrb[0].mxu0
  %v5161 = vpop.f32.mrb[0].mxu0
  %v5162 = vpop.f32.mrb[0].mxu0
  %5163 = vdwg.mxu0
  %5164 = vmatprep.subr.bf16.mxu0 0
  %5165 = vmatpush1.bf16.msra.mxu0 %v3868
  %5166 = vmatprep.subr.bf16.mxu0 0
  %5167 = vmatpush1.bf16.msra.mxu0 %v3869
  %5168 = vmatprep.subr.bf16.mxu0 0
  %5169 = vmatpush1.bf16.msra.mxu0 %v3870
  %5170 = vmatprep.subr.bf16.mxu0 0
  %5171 = vmatpush1.bf16.msra.mxu0 %v3871
  %5172 = vmatprep.subr.bf16.mxu0 0
  %5173 = vmatpush1.bf16.msra.mxu0 %v3872
  %5174 = vmatprep.subr.bf16.mxu0 0
  %5175 = vmatpush1.bf16.msra.mxu0 %v3873
  %5176 = vmatprep.subr.bf16.mxu0 0
  %5177 = vmatpush1.bf16.msra.mxu0 %v3874
  %5178 = vmatprep.subr.bf16.mxu0 0
  %5179 = vmatpush1.bf16.msra.mxu0 %v3875
  %5180 = vmatprep.subr.bf16.mxu0 0
  %5181 = vmatpush1.bf16.msra.mxu0 %v3876
  %5182 = vmatprep.subr.bf16.mxu0 0
  %5183 = vmatpush1.bf16.msra.mxu0 %v3877
  %5184 = vmatprep.subr.bf16.mxu0 0
  %5185 = vmatpush1.bf16.msra.mxu0 %v3878
  %5186 = vmatprep.subr.bf16.mxu0 0
  %5187 = vmatpush1.bf16.msra.mxu0 %v3879
  %5188 = vmatprep.subr.bf16.mxu0 0
  %5189 = vmatpush1.bf16.msra.mxu0 %v3880
  %5190 = vmatprep.subr.bf16.mxu0 0
  %5191 = vmatpush1.bf16.msra.mxu0 %v3881
  %5192 = vmatprep.subr.bf16.mxu0 0
  %5193 = vmatpush1.bf16.msra.mxu0 %v3882
  %5194 = vmatprep.subr.bf16.mxu0 0
  %5195 = vmatpush1.bf16.msra.mxu0 %v3883
  %5196 = vmatprep.mubr.bf16.mxu0 %v1337
  %5197 = vmatmul.mubr.bf16.gmra.mrb[0].mxu0 %v1336
  %v5198 = vpop.f32.mrb[0].mxu0
  %v5199 = vadd.f32 %v5159, %v5198
  %v5200 = vpop.f32.mrb[0].mxu0
  %v5201 = vpop.f32.mrb[0].mxu0
  %v5202 = vpop.f32.mrb[0].mxu0
  %5203 = vdwg.mxu0
  %5204 = vmatprep.subr.bf16.mxu0 0
  %5205 = vmatpush1.bf16.msra.mxu0 %v3884
  %5206 = vmatprep.subr.bf16.mxu0 0
  %5207 = vmatpush1.bf16.msra.mxu0 %v3885
  %5208 = vmatprep.subr.bf16.mxu0 0
  %5209 = vmatpush1.bf16.msra.mxu0 %v3886
  %5210 = vmatprep.subr.bf16.mxu0 0
  %5211 = vmatpush1.bf16.msra.mxu0 %v3887
  %5212 = vmatprep.subr.bf16.mxu0 0
  %5213 = vmatpush1.bf16.msra.mxu0 %v3888
  %5214 = vmatprep.subr.bf16.mxu0 0
  %5215 = vmatpush1.bf16.msra.mxu0 %v3889
  %5216 = vmatprep.subr.bf16.mxu0 0
  %5217 = vmatpush1.bf16.msra.mxu0 %v3890
  %5218 = vmatprep.subr.bf16.mxu0 0
  %5219 = vmatpush1.bf16.msra.mxu0 %v3891
  %5220 = vmatprep.subr.bf16.mxu0 0
  %5221 = vmatpush1.bf16.msra.mxu0 %v3892
  %5222 = vmatprep.subr.bf16.mxu0 0
  %5223 = vmatpush1.bf16.msra.mxu0 %v3893
  %5224 = vmatprep.subr.bf16.mxu0 0
  %5225 = vmatpush1.bf16.msra.mxu0 %v3894
  %5226 = vmatprep.subr.bf16.mxu0 0
  %5227 = vmatpush1.bf16.msra.mxu0 %v3895
  %5228 = vmatprep.subr.bf16.mxu0 0
  %5229 = vmatpush1.bf16.msra.mxu0 %v3896
  %5230 = vmatprep.subr.bf16.mxu0 0
  %5231 = vmatpush1.bf16.msra.mxu0 %v3897
  %5232 = vmatprep.subr.bf16.mxu0 0
  %5233 = vmatpush1.bf16.msra.mxu0 %v3898
  %5234 = vmatprep.subr.bf16.mxu0 0
  %5235 = vmatpush1.bf16.msra.mxu0 %v3899
  %5236 = vmatprep.mubr.bf16.mxu0 %v1339
  %5237 = vmatmul.mubr.bf16.gmra.mrb[0].mxu0 %v1338
  %v5238 = vpop.f32.mrb[0].mxu0
  %v5239 = vadd.f32 %v5199, %v5238
  %v5240 = vpop.f32.mrb[0].mxu0
  %v5241 = vpop.f32.mrb[0].mxu0
  %v5242 = vpop.f32.mrb[0].mxu0
  %5243 = vdwg.mxu0
  %5244 = vmatprep.subr.bf16.mxu0 0
  %5245 = vmatpush1.bf16.msra.mxu0 %v3900
  %5246 = vmatprep.subr.bf16.mxu0 0
  %5247 = vmatpush1.bf16.msra.mxu0 %v3901
  %5248 = vmatprep.subr.bf16.mxu0 0
  %5249 = vmatpush1.bf16.msra.mxu0 %v3902
  %5250 = vmatprep.subr.bf16.mxu0 0
  %5251 = vmatpush1.bf16.msra.mxu0 %v3903
  %5252 = vmatprep.subr.bf16.mxu0 0
  %5253 = vmatpush1.bf16.msra.mxu0 %v3904
  %5254 = vmatprep.subr.bf16.mxu0 0
  %5255 = vmatpush1.bf16.msra.mxu0 %v3905
  %5256 = vmatprep.subr.bf16.mxu0 0
  %5257 = vmatpush1.bf16.msra.mxu0 %v3906
  %5258 = vmatprep.subr.bf16.mxu0 0
  %5259 = vmatpush1.bf16.msra.mxu0 %v3907
  %5260 = vmatprep.subr.bf16.mxu0 0
  %5261 = vmatpush1.bf16.msra.mxu0 %v3908
  %5262 = vmatprep.subr.bf16.mxu0 0
  %5263 = vmatpush1.bf16.msra.mxu0 %v3909
  %5264 = vmatprep.subr.bf16.mxu0 0
  %5265 = vmatpush1.bf16.msra.mxu0 %v3910
  %5266 = vmatprep.subr.bf16.mxu0 0
  %5267 = vmatpush1.bf16.msra.mxu0 %v3911
  %5268 = vmatprep.subr.bf16.mxu0 0
  %5269 = vmatpush1.bf16.msra.mxu0 %v3912
  %5270 = vmatprep.subr.bf16.mxu0 0
  %5271 = vmatpush1.bf16.msra.mxu0 %v3913
  %5272 = vmatprep.subr.bf16.mxu0 0
  %5273 = vmatpush1.bf16.msra.mxu0 %v3914
  %5274 = vmatprep.subr.bf16.mxu0 0
  %5275 = vmatpush1.bf16.msra.mxu0 %v3915
  %5276 = vmatprep.mubr.bf16.mxu0 %v1341
  %5277 = vmatmul.mubr.bf16.gmra.mrb[0].mxu0 %v1340
  %v5278 = vpop.f32.mrb[0].mxu0
  %v5279 = vadd.f32 %v5239, %v5278
  %v5280 = vpop.f32.mrb[0].mxu0
  %v5281 = vpop.f32.mrb[0].mxu0
  %v5282 = vpop.f32.mrb[0].mxu0
  %5283 = vdwg.mxu0
  %5284 = vmatprep.subr.bf16.mxu0 0
  %5285 = vmatpush1.bf16.msra.mxu0 %v3916
  %5286 = vmatprep.subr.bf16.mxu0 0
  %5287 = vmatpush1.bf16.msra.mxu0 %v3917
  %5288 = vmatprep.subr.bf16.mxu0 0
  %5289 = vmatpush1.bf16.msra.mxu0 %v3918
  %5290 = vmatprep.subr.bf16.mxu0 0
  %5291 = vmatpush1.bf16.msra.mxu0 %v3919
  %5292 = vmatprep.subr.bf16.mxu0 0
  %5293 = vmatpush1.bf16.msra.mxu0 %v3920
  %5294 = vmatprep.subr.bf16.mxu0 0
  %5295 = vmatpush1.bf16.msra.mxu0 %v3921
  %5296 = vmatprep.subr.bf16.mxu0 0
  %5297 = vmatpush1.bf16.msra.mxu0 %v3922
  %5298 = vmatprep.subr.bf16.mxu0 0
  %5299 = vmatpush1.bf16.msra.mxu0 %v3923
  %5300 = vmatprep.subr.bf16.mxu0 0
  %5301 = vmatpush1.bf16.msra.mxu0 %v3924
  %5302 = vmatprep.subr.bf16.mxu0 0
  %5303 = vmatpush1.bf16.msra.mxu0 %v3925
  %5304 = vmatprep.subr.bf16.mxu0 0
  %5305 = vmatpush1.bf16.msra.mxu0 %v3926
  %5306 = vmatprep.subr.bf16.mxu0 0
  %5307 = vmatpush1.bf16.msra.mxu0 %v3927
  %5308 = vmatprep.subr.bf16.mxu0 0
  %5309 = vmatpush1.bf16.msra.mxu0 %v3928
  %5310 = vmatprep.subr.bf16.mxu0 0
  %5311 = vmatpush1.bf16.msra.mxu0 %v3929
  %5312 = vmatprep.subr.bf16.mxu0 0
  %5313 = vmatpush1.bf16.msra.mxu0 %v3930
  %5314 = vmatprep.subr.bf16.mxu0 0
  %5315 = vmatpush1.bf16.msra.mxu0 %v3931
  %5316 = vmatprep.mubr.bf16.mxu0 %v1343
  %5317 = vmatmul.mubr.bf16.gmra.mrb[0].mxu0 %v1342
  %v5318 = vpop.f32.mrb[0].mxu0
  %v5319 = vadd.f32 %v5279, %v5318
  %v5320 = vpop.f32.mrb[0].mxu0
  %v5321 = vpop.f32.mrb[0].mxu0
  %v5322 = vpop.f32.mrb[0].mxu0
  %5323 = vdwg.mxu0
  %5324 = vmatprep.subr.bf16.mxu0 0
  %5325 = vmatpush1.bf16.msra.mxu0 %v3932
  %5326 = vmatprep.subr.bf16.mxu0 0
  %5327 = vmatpush1.bf16.msra.mxu0 %v3933
  %5328 = vmatprep.subr.bf16.mxu0 0
  %5329 = vmatpush1.bf16.msra.mxu0 %v3934
  %5330 = vmatprep.subr.bf16.mxu0 0
  %5331 = vmatpush1.bf16.msra.mxu0 %v3935
  %5332 = vmatprep.subr.bf16.mxu0 0
  %5333 = vmatpush1.bf16.msra.mxu0 %v3936
  %5334 = vmatprep.subr.bf16.mxu0 0
  %5335 = vmatpush1.bf16.msra.mxu0 %v3937
  %5336 = vmatprep.subr.bf16.mxu0 0
  %5337 = vmatpush1.bf16.msra.mxu0 %v3938
  %5338 = vmatprep.subr.bf16.mxu0 0
  %5339 = vmatpush1.bf16.msra.mxu0 %v3939
  %5340 = vmatprep.subr.bf16.mxu0 0
  %5341 = vmatpush1.bf16.msra.mxu0 %v3940
  %5342 = vmatprep.subr.bf16.mxu0 0
  %5343 = vmatpush1.bf16.msra.mxu0 %v3941
  %5344 = vmatprep.subr.bf16.mxu0 0
  %5345 = vmatpush1.bf16.msra.mxu0 %v3942
  %5346 = vmatprep.subr.bf16.mxu0 0
  %5347 = vmatpush1.bf16.msra.mxu0 %v3943
  %5348 = vmatprep.subr.bf16.mxu0 0
  %5349 = vmatpush1.bf16.msra.mxu0 %v3944
  %5350 = vmatprep.subr.bf16.mxu0 0
  %5351 = vmatpush1.bf16.msra.mxu0 %v3945
  %5352 = vmatprep.subr.bf16.mxu0 0
  %5353 = vmatpush1.bf16.msra.mxu0 %v3946
  %5354 = vmatprep.subr.bf16.mxu0 0
  %5355 = vmatpush1.bf16.msra.mxu0 %v3947
  %5356 = vmatprep.mubr.bf16.mxu0 %v1345
  %5357 = vmatmul.mubr.bf16.gmra.mrb[0].mxu0 %v1344
  %v5358 = vpop.f32.mrb[0].mxu0
  %v5359 = vadd.f32 %v5319, %v5358
  %v5360 = vpop.f32.mrb[0].mxu0
  %v5361 = vpop.f32.mrb[0].mxu0
  %v5362 = vpop.f32.mrb[0].mxu0
  %5363 = vdwg.mxu0
  %5364 = vmatprep.subr.bf16.mxu0 0
  %5365 = vmatpush1.bf16.msra.mxu0 %v3948
  %5366 = vmatprep.subr.bf16.mxu0 0
  %5367 = vmatpush1.bf16.msra.mxu0 %v3949
  %5368 = vmatprep.subr.bf16.mxu0 0
  %5369 = vmatpush1.bf16.msra.mxu0 %v3950
  %5370 = vmatprep.subr.bf16.mxu0 0
  %5371 = vmatpush1.bf16.msra.mxu0 %v3951
  %5372 = vmatprep.subr.bf16.mxu0 0
  %5373 = vmatpush1.bf16.msra.mxu0 %v3952
  %5374 = vmatprep.subr.bf16.mxu0 0
  %5375 = vmatpush1.bf16.msra.mxu0 %v3953
  %5376 = vmatprep.subr.bf16.mxu0 0
  %5377 = vmatpush1.bf16.msra.mxu0 %v3954
  %5378 = vmatprep.subr.bf16.mxu0 0
  %5379 = vmatpush1.bf16.msra.mxu0 %v3955
  %5380 = vmatprep.subr.bf16.mxu0 0
  %5381 = vmatpush1.bf16.msra.mxu0 %v3956
  %5382 = vmatprep.subr.bf16.mxu0 0
  %5383 = vmatpush1.bf16.msra.mxu0 %v3957
  %5384 = vmatprep.subr.bf16.mxu0 0
  %5385 = vmatpush1.bf16.msra.mxu0 %v3958
  %5386 = vmatprep.subr.bf16.mxu0 0
  %5387 = vmatpush1.bf16.msra.mxu0 %v3959
  %5388 = vmatprep.subr.bf16.mxu0 0
  %5389 = vmatpush1.bf16.msra.mxu0 %v3960
  %5390 = vmatprep.subr.bf16.mxu0 0
  %5391 = vmatpush1.bf16.msra.mxu0 %v3961
  %5392 = vmatprep.subr.bf16.mxu0 0
  %5393 = vmatpush1.bf16.msra.mxu0 %v3962
  %5394 = vmatprep.subr.bf16.mxu0 0
  %5395 = vmatpush1.bf16.msra.mxu0 %v3963
  %5396 = vmatprep.mubr.bf16.mxu0 %v1347
  %5397 = vmatmul.mubr.bf16.gmra.mrb[0].mxu0 %v1346
  %v5398 = vpop.f32.mrb[0].mxu0
  %v5399 = vadd.f32 %v5359, %v5398
  %v5400 = vpop.f32.mrb[0].mxu0
  %v5401 = vpop.f32.mrb[0].mxu0
  %v5402 = vpop.f32.mrb[0].mxu0
  %5403 = vdwg.mxu0
  %5404 = vmatprep.subr.bf16.mxu0 0
  %5405 = vmatpush1.bf16.msra.mxu0 %v3964
  %5406 = vmatprep.subr.bf16.mxu0 0
  %5407 = vmatpush1.bf16.msra.mxu0 %v3965
  %5408 = vmatprep.subr.bf16.mxu0 0
  %5409 = vmatpush1.bf16.msra.mxu0 %v3966
  %5410 = vmatprep.subr.bf16.mxu0 0
  %5411 = vmatpush1.bf16.msra.mxu0 %v3967
  %5412 = vmatprep.subr.bf16.mxu0 0
  %5413 = vmatpush1.bf16.msra.mxu0 %v3968
  %5414 = vmatprep.subr.bf16.mxu0 0
  %5415 = vmatpush1.bf16.msra.mxu0 %v3969
  %5416 = vmatprep.subr.bf16.mxu0 0
  %5417 = vmatpush1.bf16.msra.mxu0 %v3970
  %5418 = vmatprep.subr.bf16.mxu0 0
  %5419 = vmatpush1.bf16.msra.mxu0 %v3971
  %5420 = vmatprep.subr.bf16.mxu0 0
  %5421 = vmatpush1.bf16.msra.mxu0 %v3972
  %5422 = vmatprep.subr.bf16.mxu0 0
  %5423 = vmatpush1.bf16.msra.mxu0 %v3973
  %5424 = vmatprep.subr.bf16.mxu0 0
  %5425 = vmatpush1.bf16.msra.mxu0 %v3974
  %5426 = vmatprep.subr.bf16.mxu0 0
  %5427 = vmatpush1.bf16.msra.mxu0 %v3975
  %5428 = vmatprep.subr.bf16.mxu0 0
  %5429 = vmatpush1.bf16.msra.mxu0 %v3976
  %5430 = vmatprep.subr.bf16.mxu0 0
  %5431 = vmatpush1.bf16.msra.mxu0 %v3977
  %5432 = vmatprep.subr.bf16.mxu0 0
  %5433 = vmatpush1.bf16.msra.mxu0 %v3978
  %5434 = vmatprep.subr.bf16.mxu0 0
  %5435 = vmatpush1.bf16.msra.mxu0 %v3979
  %5436 = vmatprep.mubr.bf16.mxu0 %v1349
  %5437 = vmatmul.mubr.bf16.gmra.mrb[0].mxu0 %v1348
  %v5438 = vpop.f32.mrb[0].mxu0
  %v5439 = vadd.f32 %v5399, %v5438
  %v5440 = vpop.f32.mrb[0].mxu0
  %v5441 = vpop.f32.mrb[0].mxu0
  %v5442 = vpop.f32.mrb[0].mxu0
  %5443 = vdwg.mxu0
  %5444 = vmatprep.subr.bf16.mxu0 0
  %5445 = vmatpush1.bf16.msra.mxu0 %v3980
  %5446 = vmatprep.subr.bf16.mxu0 0
  %5447 = vmatpush1.bf16.msra.mxu0 %v3981
  %5448 = vmatprep.subr.bf16.mxu0 0
  %5449 = vmatpush1.bf16.msra.mxu0 %v3982
  %5450 = vmatprep.subr.bf16.mxu0 0
  %5451 = vmatpush1.bf16.msra.mxu0 %v3983
  %5452 = vmatprep.subr.bf16.mxu0 0
  %5453 = vmatpush1.bf16.msra.mxu0 %v3984
  %5454 = vmatprep.subr.bf16.mxu0 0
  %5455 = vmatpush1.bf16.msra.mxu0 %v3985
  %5456 = vmatprep.subr.bf16.mxu0 0
  %5457 = vmatpush1.bf16.msra.mxu0 %v3986
  %5458 = vmatprep.subr.bf16.mxu0 0
  %5459 = vmatpush1.bf16.msra.mxu0 %v3987
  %5460 = vmatprep.subr.bf16.mxu0 0
  %5461 = vmatpush1.bf16.msra.mxu0 %v3988
  %5462 = vmatprep.subr.bf16.mxu0 0
  %5463 = vmatpush1.bf16.msra.mxu0 %v3989
  %5464 = vmatprep.subr.bf16.mxu0 0
  %5465 = vmatpush1.bf16.msra.mxu0 %v3990
  %5466 = vmatprep.subr.bf16.mxu0 0
  %5467 = vmatpush1.bf16.msra.mxu0 %v3991
  %5468 = vmatprep.subr.bf16.mxu0 0
  %5469 = vmatpush1.bf16.msra.mxu0 %v3992
  %5470 = vmatprep.subr.bf16.mxu0 0
  %5471 = vmatpush1.bf16.msra.mxu0 %v3993
  %5472 = vmatprep.subr.bf16.mxu0 0
  %5473 = vmatpush1.bf16.msra.mxu0 %v3994
  %5474 = vmatprep.subr.bf16.mxu0 0
  %5475 = vmatpush1.bf16.msra.mxu0 %v3995
  %5476 = vmatprep.mubr.bf16.mxu0 %v1351
  %5477 = vmatmul.mubr.bf16.gmra.mrb[0].mxu0 %v1350
  %v5478 = vpop.f32.mrb[0].mxu0
  %v5479 = vadd.f32 %v5439, %v5478
  %v5480 = vpop.f32.mrb[0].mxu0
  %v5481 = vpop.f32.mrb[0].mxu0
  %v5482 = vpop.f32.mrb[0].mxu0
  %5483 = vdwg.mxu0
  %5484 = vmatprep.subr.bf16.mxu0 0
  %5485 = vmatpush1.bf16.msra.mxu0 %v3996
  %5486 = vmatprep.subr.bf16.mxu0 0
  %5487 = vmatpush1.bf16.msra.mxu0 %v3997
  %5488 = vmatprep.subr.bf16.mxu0 0
  %5489 = vmatpush1.bf16.msra.mxu0 %v3998
  %5490 = vmatprep.subr.bf16.mxu0 0
  %5491 = vmatpush1.bf16.msra.mxu0 %v3999
  %5492 = vmatprep.subr.bf16.mxu0 0
  %5493 = vmatpush1.bf16.msra.mxu0 %v4000
  %5494 = vmatprep.subr.bf16.mxu0 0
  %5495 = vmatpush1.bf16.msra.mxu0 %v4001
  %5496 = vmatprep.subr.bf16.mxu0 0
  %5497 = vmatpush1.bf16.msra.mxu0 %v4002
  %5498 = vmatprep.subr.bf16.mxu0 0
  %5499 = vmatpush1.bf16.msra.mxu0 %v4003
  %5500 = vmatprep.subr.bf16.mxu0 0
  %5501 = vmatpush1.bf16.msra.mxu0 %v4004
  %5502 = vmatprep.subr.bf16.mxu0 0
  %5503 = vmatpush1.bf16.msra.mxu0 %v4005
  %5504 = vmatprep.subr.bf16.mxu0 0
  %5505 = vmatpush1.bf16.msra.mxu0 %v4006
  %5506 = vmatprep.subr.bf16.mxu0 0
  %5507 = vmatpush1.bf16.msra.mxu0 %v4007
  %5508 = vmatprep.subr.bf16.mxu0 0
  %5509 = vmatpush1.bf16.msra.mxu0 %v4008
  %5510 = vmatprep.subr.bf16.mxu0 0
  %5511 = vmatpush1.bf16.msra.mxu0 %v4009
  %5512 = vmatprep.subr.bf16.mxu0 0
  %5513 = vmatpush1.bf16.msra.mxu0 %v4010
  %5514 = vmatprep.subr.bf16.mxu0 0
  %5515 = vmatpush1.bf16.msra.mxu0 %v4011
  %5516 = vmatprep.mubr.bf16.mxu0 %v1353
  %5517 = vmatmul.mubr.bf16.gmra.mrb[0].mxu0 %v1352
  %v5518 = vpop.f32.mrb[0].mxu0
  %v5519 = vadd.f32 %v5479, %v5518
  %v5520 = vpop.f32.mrb[0].mxu0
  %v5521 = vpop.f32.mrb[0].mxu0
  %v5522 = vpop.f32.mrb[0].mxu0
  %5523 = vdwg.mxu0
  %5524 = vmatprep.subr.bf16.mxu0 0
  %5525 = vmatpush1.bf16.msra.mxu0 %v4012
  %5526 = vmatprep.subr.bf16.mxu0 0
  %5527 = vmatpush1.bf16.msra.mxu0 %v4013
  %5528 = vmatprep.subr.bf16.mxu0 0
  %5529 = vmatpush1.bf16.msra.mxu0 %v4014
  %5530 = vmatprep.subr.bf16.mxu0 0
  %5531 = vmatpush1.bf16.msra.mxu0 %v4015
  %5532 = vmatprep.subr.bf16.mxu0 0
  %5533 = vmatpush1.bf16.msra.mxu0 %v4016
  %5534 = vmatprep.subr.bf16.mxu0 0
  %5535 = vmatpush1.bf16.msra.mxu0 %v4017
  %5536 = vmatprep.subr.bf16.mxu0 0
  %5537 = vmatpush1.bf16.msra.mxu0 %v4018
  %5538 = vmatprep.subr.bf16.mxu0 0
  %5539 = vmatpush1.bf16.msra.mxu0 %v4019
  %5540 = vmatprep.subr.bf16.mxu0 0
  %5541 = vmatpush1.bf16.msra.mxu0 %v4020
  %5542 = vmatprep.subr.bf16.mxu0 0
  %5543 = vmatpush1.bf16.msra.mxu0 %v4021
  %5544 = vmatprep.subr.bf16.mxu0 0
  %5545 = vmatpush1.bf16.msra.mxu0 %v4022
  %5546 = vmatprep.subr.bf16.mxu0 0
  %5547 = vmatpush1.bf16.msra.mxu0 %v4023
  %5548 = vmatprep.subr.bf16.mxu0 0
  %5549 = vmatpush1.bf16.msra.mxu0 %v4024
  %5550 = vmatprep.subr.bf16.mxu0 0
  %5551 = vmatpush1.bf16.msra.mxu0 %v4025
  %5552 = vmatprep.subr.bf16.mxu0 0
  %5553 = vmatpush1.bf16.msra.mxu0 %v4026
  %5554 = vmatprep.subr.bf16.mxu0 0
  %5555 = vmatpush1.bf16.msra.mxu0 %v4027
  %5556 = vmatprep.mubr.bf16.mxu0 %v1355
  %5557 = vmatmul.mubr.bf16.gmra.mrb[0].mxu0 %v1354
  %v5558 = vpop.f32.mrb[0].mxu0
  %v5559 = vadd.f32 %v5519, %v5558
  %v5560 = vpop.f32.mrb[0].mxu0
  %v5561 = vpop.f32.mrb[0].mxu0
  %v5562 = vpop.f32.mrb[0].mxu0
  %5563 = vdwg.mxu0
  %5564 = vmatprep.subr.bf16.mxu0 0
  %5565 = vmatpush1.bf16.msra.mxu0 %v4028
  %5566 = vmatprep.subr.bf16.mxu0 0
  %5567 = vmatpush1.bf16.msra.mxu0 %v4029
  %5568 = vmatprep.subr.bf16.mxu0 0
  %5569 = vmatpush1.bf16.msra.mxu0 %v4030
  %5570 = vmatprep.subr.bf16.mxu0 0
  %5571 = vmatpush1.bf16.msra.mxu0 %v4031
  %5572 = vmatprep.subr.bf16.mxu0 0
  %5573 = vmatpush1.bf16.msra.mxu0 %v4032
  %5574 = vmatprep.subr.bf16.mxu0 0
  %5575 = vmatpush1.bf16.msra.mxu0 %v4033
  %5576 = vmatprep.subr.bf16.mxu0 0
  %5577 = vmatpush1.bf16.msra.mxu0 %v4034
  %5578 = vmatprep.subr.bf16.mxu0 0
  %5579 = vmatpush1.bf16.msra.mxu0 %v4035
  %5580 = vmatprep.subr.bf16.mxu0 0
  %5581 = vmatpush1.bf16.msra.mxu0 %v4036
  %5582 = vmatprep.subr.bf16.mxu0 0
  %5583 = vmatpush1.bf16.msra.mxu0 %v4037
  %5584 = vmatprep.subr.bf16.mxu0 0
  %5585 = vmatpush1.bf16.msra.mxu0 %v4038
  %5586 = vmatprep.subr.bf16.mxu0 0
  %5587 = vmatpush1.bf16.msra.mxu0 %v4039
  %5588 = vmatprep.subr.bf16.mxu0 0
  %5589 = vmatpush1.bf16.msra.mxu0 %v4040
  %5590 = vmatprep.subr.bf16.mxu0 0
  %5591 = vmatpush1.bf16.msra.mxu0 %v4041
  %5592 = vmatprep.subr.bf16.mxu0 0
  %5593 = vmatpush1.bf16.msra.mxu0 %v4042
  %5594 = vmatprep.subr.bf16.mxu0 0
  %5595 = vmatpush1.bf16.msra.mxu0 %v4043
  %5596 = vmatprep.mubr.bf16.mxu0 %v1357
  %5597 = vmatmul.mubr.bf16.gmra.mrb[0].mxu0 %v1356
  %v5598 = vpop.f32.mrb[0].mxu0
  %v5599 = vadd.f32 %v5559, %v5598
  %v5600 = vpop.f32.mrb[0].mxu0
  %v5601 = vpop.f32.mrb[0].mxu0
  %v5602 = vpop.f32.mrb[0].mxu0
  %5603 = vdwg.mxu0
  %5604 = vmatprep.subr.bf16.mxu0 0
  %5605 = vmatpush1.bf16.msra.mxu0 %v4044
  %5606 = vmatprep.subr.bf16.mxu0 0
  %5607 = vmatpush1.bf16.msra.mxu0 %v4045
  %5608 = vmatprep.subr.bf16.mxu0 0
  %5609 = vmatpush1.bf16.msra.mxu0 %v4046
  %5610 = vmatprep.subr.bf16.mxu0 0
  %5611 = vmatpush1.bf16.msra.mxu0 %v4047
  %5612 = vmatprep.subr.bf16.mxu0 0
  %5613 = vmatpush1.bf16.msra.mxu0 %v4048
  %5614 = vmatprep.subr.bf16.mxu0 0
  %5615 = vmatpush1.bf16.msra.mxu0 %v4049
  %5616 = vmatprep.subr.bf16.mxu0 0
  %5617 = vmatpush1.bf16.msra.mxu0 %v4050
  %5618 = vmatprep.subr.bf16.mxu0 0
  %5619 = vmatpush1.bf16.msra.mxu0 %v4051
  %5620 = vmatprep.subr.bf16.mxu0 0
  %5621 = vmatpush1.bf16.msra.mxu0 %v4052
  %5622 = vmatprep.subr.bf16.mxu0 0
  %5623 = vmatpush1.bf16.msra.mxu0 %v4053
  %5624 = vmatprep.subr.bf16.mxu0 0
  %5625 = vmatpush1.bf16.msra.mxu0 %v4054
  %5626 = vmatprep.subr.bf16.mxu0 0
  %5627 = vmatpush1.bf16.msra.mxu0 %v4055
  %5628 = vmatprep.subr.bf16.mxu0 0
  %5629 = vmatpush1.bf16.msra.mxu0 %v4056
  %5630 = vmatprep.subr.bf16.mxu0 0
  %5631 = vmatpush1.bf16.msra.mxu0 %v4057
  %5632 = vmatprep.subr.bf16.mxu0 0
  %5633 = vmatpush1.bf16.msra.mxu0 %v4058
  %5634 = vmatprep.subr.bf16.mxu0 0
  %5635 = vmatpush1.bf16.msra.mxu0 %v4059
  %5636 = vmatprep.mubr.bf16.mxu0 %v1359
  %5637 = vmatmul.mubr.bf16.gmra.mrb[0].mxu0 %v1358
  %v5638 = vpop.f32.mrb[0].mxu0
  %v5639 = vadd.f32 %v5599, %v5638
  %v5640 = vpop.f32.mrb[0].mxu0
  %v5641 = vpop.f32.mrb[0].mxu0
  %v5642 = vpop.f32.mrb[0].mxu0
  %5643 = vdwg.mxu0
  %5644 = vmatprep.subr.bf16.mxu0 0
  %5645 = vmatpush1.bf16.msra.mxu0 %v4060
  %5646 = vmatprep.subr.bf16.mxu0 0
  %5647 = vmatpush1.bf16.msra.mxu0 %v4061
  %5648 = vmatprep.subr.bf16.mxu0 0
  %5649 = vmatpush1.bf16.msra.mxu0 %v4062
  %5650 = vmatprep.subr.bf16.mxu0 0
  %5651 = vmatpush1.bf16.msra.mxu0 %v4063
  %5652 = vmatprep.subr.bf16.mxu0 0
  %5653 = vmatpush1.bf16.msra.mxu0 %v4064
  %5654 = vmatprep.subr.bf16.mxu0 0
  %5655 = vmatpush1.bf16.msra.mxu0 %v4065
  %5656 = vmatprep.subr.bf16.mxu0 0
  %5657 = vmatpush1.bf16.msra.mxu0 %v4066
  %5658 = vmatprep.subr.bf16.mxu0 0
  %5659 = vmatpush1.bf16.msra.mxu0 %v4067
  %5660 = vmatprep.subr.bf16.mxu0 0
  %5661 = vmatpush1.bf16.msra.mxu0 %v4068
  %5662 = vmatprep.subr.bf16.mxu0 0
  %5663 = vmatpush1.bf16.msra.mxu0 %v4069
  %5664 = vmatprep.subr.bf16.mxu0 0
  %5665 = vmatpush1.bf16.msra.mxu0 %v4070
  %5666 = vmatprep.subr.bf16.mxu0 0
  %5667 = vmatpush1.bf16.msra.mxu0 %v4071
  %5668 = vmatprep.subr.bf16.mxu0 0
  %5669 = vmatpush1.bf16.msra.mxu0 %v4072
  %5670 = vmatprep.subr.bf16.mxu0 0
  %5671 = vmatpush1.bf16.msra.mxu0 %v4073
  %5672 = vmatprep.subr.bf16.mxu0 0
  %5673 = vmatpush1.bf16.msra.mxu0 %v4074
  %5674 = vmatprep.subr.bf16.mxu0 0
  %5675 = vmatpush1.bf16.msra.mxu0 %v4075
  %5676 = vmatprep.mubr.bf16.mxu0 %v1361
  %5677 = vmatmul.mubr.bf16.gmra.mrb[0].mxu0 %v1360
  %v5678 = vpop.f32.mrb[0].mxu0
  %v5679 = vadd.f32 %v5639, %v5678
  %v5680 = vpop.f32.mrb[0].mxu0
  %v5681 = vpop.f32.mrb[0].mxu0
  %v5682 = vpop.f32.mrb[0].mxu0
  %5683 = vdwg.mxu0
  %5684 = vmatprep.subr.bf16.mxu0 0
  %5685 = vmatpush1.bf16.msra.mxu0 %v4076
  %5686 = vmatprep.subr.bf16.mxu0 0
  %5687 = vmatpush1.bf16.msra.mxu0 %v4077
  %5688 = vmatprep.subr.bf16.mxu0 0
  %5689 = vmatpush1.bf16.msra.mxu0 %v4078
  %5690 = vmatprep.subr.bf16.mxu0 0
  %5691 = vmatpush1.bf16.msra.mxu0 %v4079
  %5692 = vmatprep.subr.bf16.mxu0 0
  %5693 = vmatpush1.bf16.msra.mxu0 %v4080
  %5694 = vmatprep.subr.bf16.mxu0 0
  %5695 = vmatpush1.bf16.msra.mxu0 %v4081
  %5696 = vmatprep.subr.bf16.mxu0 0
  %5697 = vmatpush1.bf16.msra.mxu0 %v4082
  %5698 = vmatprep.subr.bf16.mxu0 0
  %5699 = vmatpush1.bf16.msra.mxu0 %v4083
  %5700 = vmatprep.subr.bf16.mxu0 0
  %5701 = vmatpush1.bf16.msra.mxu0 %v4084
  %5702 = vmatprep.subr.bf16.mxu0 0
  %5703 = vmatpush1.bf16.msra.mxu0 %v4085
  %5704 = vmatprep.subr.bf16.mxu0 0
  %5705 = vmatpush1.bf16.msra.mxu0 %v4086
  %5706 = vmatprep.subr.bf16.mxu0 0
  %5707 = vmatpush1.bf16.msra.mxu0 %v4087
  %5708 = vmatprep.subr.bf16.mxu0 0
  %5709 = vmatpush1.bf16.msra.mxu0 %v4088
  %5710 = vmatprep.subr.bf16.mxu0 0
  %5711 = vmatpush1.bf16.msra.mxu0 %v4089
  %5712 = vmatprep.subr.bf16.mxu0 0
  %5713 = vmatpush1.bf16.msra.mxu0 %v4090
  %5714 = vmatprep.subr.bf16.mxu0 0
  %5715 = vmatpush1.bf16.msra.mxu0 %v4091
  %5716 = vmatprep.mubr.bf16.mxu0 %v1363
  %5717 = vmatmul.mubr.bf16.gmra.mrb[0].mxu0 %v1362
  %v5718 = vpop.f32.mrb[0].mxu0
  %v5719 = vadd.f32 %v5679, %v5718
  %v5720 = vpop.f32.mrb[0].mxu0
  %v5721 = vpop.f32.mrb[0].mxu0
  %v5722 = vpop.f32.mrb[0].mxu0
  %5723 = vdwg.mxu0
  %5724 = vmatprep.subr.bf16.mxu0 0
  %5725 = vmatpush1.bf16.msra.mxu0 %v4092
  %5726 = vmatprep.subr.bf16.mxu0 0
  %5727 = vmatpush1.bf16.msra.mxu0 %v4093
  %5728 = vmatprep.subr.bf16.mxu0 0
  %5729 = vmatpush1.bf16.msra.mxu0 %v4094
  %5730 = vmatprep.subr.bf16.mxu0 0
  %5731 = vmatpush1.bf16.msra.mxu0 %v4095
  %5732 = vmatprep.subr.bf16.mxu0 0
  %5733 = vmatpush1.bf16.msra.mxu0 %v4096
  %5734 = vmatprep.subr.bf16.mxu0 0
  %5735 = vmatpush1.bf16.msra.mxu0 %v4097
  %5736 = vmatprep.subr.bf16.mxu0 0
  %5737 = vmatpush1.bf16.msra.mxu0 %v4098
  %5738 = vmatprep.subr.bf16.mxu0 0
  %5739 = vmatpush1.bf16.msra.mxu0 %v4099
  %5740 = vmatprep.subr.bf16.mxu0 0
  %5741 = vmatpush1.bf16.msra.mxu0 %v4100
  %5742 = vmatprep.subr.bf16.mxu0 0
  %5743 = vmatpush1.bf16.msra.mxu0 %v4101
  %5744 = vmatprep.subr.bf16.mxu0 0
  %5745 = vmatpush1.bf16.msra.mxu0 %v4102
  %5746 = vmatprep.subr.bf16.mxu0 0
  %5747 = vmatpush1.bf16.msra.mxu0 %v4103
  %5748 = vmatprep.subr.bf16.mxu0 0
  %5749 = vmatpush1.bf16.msra.mxu0 %v4104
  %5750 = vmatprep.subr.bf16.mxu0 0
  %5751 = vmatpush1.bf16.msra.mxu0 %v4105
  %5752 = vmatprep.subr.bf16.mxu0 0
  %5753 = vmatpush1.bf16.msra.mxu0 %v4106
  %5754 = vmatprep.subr.bf16.mxu0 0
  %5755 = vmatpush1.bf16.msra.mxu0 %v4107
  %5756 = vmatprep.mubr.bf16.mxu0 %v1365
  %5757 = vmatmul.mubr.bf16.gmra.mrb[0].mxu0 %v1364
  %v5758 = vpop.f32.mrb[0].mxu0
  %v5759 = vadd.f32 %v5719, %v5758
  %v5760 = vpop.f32.mrb[0].mxu0
  %v5761 = vpop.f32.mrb[0].mxu0
  %v5762 = vpop.f32.mrb[0].mxu0
  %5763 = vdwg.mxu0
  %5764 = vmatprep.subr.bf16.mxu0 0
  %5765 = vmatpush1.bf16.msra.mxu0 %v4108
  %5766 = vmatprep.subr.bf16.mxu0 0
  %5767 = vmatpush1.bf16.msra.mxu0 %v4109
  %5768 = vmatprep.subr.bf16.mxu0 0
  %5769 = vmatpush1.bf16.msra.mxu0 %v4110
  %5770 = vmatprep.subr.bf16.mxu0 0
  %5771 = vmatpush1.bf16.msra.mxu0 %v4111
  %5772 = vmatprep.subr.bf16.mxu0 0
  %5773 = vmatpush1.bf16.msra.mxu0 %v4112
  %5774 = vmatprep.subr.bf16.mxu0 0
  %5775 = vmatpush1.bf16.msra.mxu0 %v4113
  %5776 = vmatprep.subr.bf16.mxu0 0
  %5777 = vmatpush1.bf16.msra.mxu0 %v4114
  %5778 = vmatprep.subr.bf16.mxu0 0
  %5779 = vmatpush1.bf16.msra.mxu0 %v4115
  %5780 = vmatprep.subr.bf16.mxu0 0
  %5781 = vmatpush1.bf16.msra.mxu0 %v4116
  %5782 = vmatprep.subr.bf16.mxu0 0
  %5783 = vmatpush1.bf16.msra.mxu0 %v4117
  %5784 = vmatprep.subr.bf16.mxu0 0
  %5785 = vmatpush1.bf16.msra.mxu0 %v4118
  %5786 = vmatprep.subr.bf16.mxu0 0
  %5787 = vmatpush1.bf16.msra.mxu0 %v4119
  %5788 = vmatprep.subr.bf16.mxu0 0
  %5789 = vmatpush1.bf16.msra.mxu0 %v4120
  %5790 = vmatprep.subr.bf16.mxu0 0
  %5791 = vmatpush1.bf16.msra.mxu0 %v4121
  %5792 = vmatprep.subr.bf16.mxu0 0
  %5793 = vmatpush1.bf16.msra.mxu0 %v4122
  %5794 = vmatprep.subr.bf16.mxu0 0
  %5795 = vmatpush1.bf16.msra.mxu0 %v4123
  %5796 = vmatprep.mubr.bf16.mxu0 %v1367
  %5797 = vmatmul.mubr.bf16.gmra.mrb[0].mxu0 %v1366
  %v5798 = vpop.f32.mrb[0].mxu0
  %v5799 = vadd.f32 %v5759, %v5798
  %v5800 = vpop.f32.mrb[0].mxu0
  %v5801 = vpop.f32.mrb[0].mxu0
  %v5802 = vpop.f32.mrb[0].mxu0
  %5803 = vdwg.mxu0
  %5804 = vmatprep.subr.bf16.mxu0 0
  %5805 = vmatpush1.bf16.msra.mxu0 %v4124
  %5806 = vmatprep.subr.bf16.mxu0 0
  %5807 = vmatpush1.bf16.msra.mxu0 %v4125
  %5808 = vmatprep.subr.bf16.mxu0 0
  %5809 = vmatpush1.bf16.msra.mxu0 %v4126
  %5810 = vmatprep.subr.bf16.mxu0 0
  %5811 = vmatpush1.bf16.msra.mxu0 %v4127
  %5812 = vmatprep.subr.bf16.mxu0 0
  %5813 = vmatpush1.bf16.msra.mxu0 %v4128
  %5814 = vmatprep.subr.bf16.mxu0 0
  %5815 = vmatpush1.bf16.msra.mxu0 %v4129
  %5816 = vmatprep.subr.bf16.mxu0 0
  %5817 = vmatpush1.bf16.msra.mxu0 %v4130
  %5818 = vmatprep.subr.bf16.mxu0 0
  %5819 = vmatpush1.bf16.msra.mxu0 %v4131
  %5820 = vmatprep.subr.bf16.mxu0 0
  %5821 = vmatpush1.bf16.msra.mxu0 %v4132
  %5822 = vmatprep.subr.bf16.mxu0 0
  %5823 = vmatpush1.bf16.msra.mxu0 %v4133
  %5824 = vmatprep.subr.bf16.mxu0 0
  %5825 = vmatpush1.bf16.msra.mxu0 %v4134
  %5826 = vmatprep.subr.bf16.mxu0 0
  %5827 = vmatpush1.bf16.msra.mxu0 %v4135
  %5828 = vmatprep.subr.bf16.mxu0 0
  %5829 = vmatpush1.bf16.msra.mxu0 %v4136
  %5830 = vmatprep.subr.bf16.mxu0 0
  %5831 = vmatpush1.bf16.msra.mxu0 %v4137
  %5832 = vmatprep.subr.bf16.mxu0 0
  %5833 = vmatpush1.bf16.msra.mxu0 %v4138
  %5834 = vmatprep.subr.bf16.mxu0 0
  %5835 = vmatpush1.bf16.msra.mxu0 %v4139
  %5836 = vmatprep.mubr.bf16.mxu0 %v1369
  %5837 = vmatmul.mubr.bf16.gmra.mrb[0].mxu0 %v1368
  %v5838 = vpop.f32.mrb[0].mxu0
  %v5839 = vadd.f32 %v5799, %v5838
  %v5840 = vpop.f32.mrb[0].mxu0
  %v5841 = vpop.f32.mrb[0].mxu0
  %v5842 = vpop.f32.mrb[0].mxu0
  %5843 = vdwg.mxu0
  %5844 = vmatprep.subr.bf16.mxu0 0
  %5845 = vmatpush1.bf16.msra.mxu0 %v4140
  %5846 = vmatprep.subr.bf16.mxu0 0
  %5847 = vmatpush1.bf16.msra.mxu0 %v4141
  %5848 = vmatprep.subr.bf16.mxu0 0
  %5849 = vmatpush1.bf16.msra.mxu0 %v4142
  %5850 = vmatprep.subr.bf16.mxu0 0
  %5851 = vmatpush1.bf16.msra.mxu0 %v4143
  %5852 = vmatprep.subr.bf16.mxu0 0
  %5853 = vmatpush1.bf16.msra.mxu0 %v4144
  %5854 = vmatprep.subr.bf16.mxu0 0
  %5855 = vmatpush1.bf16.msra.mxu0 %v4145
  %5856 = vmatprep.subr.bf16.mxu0 0
  %5857 = vmatpush1.bf16.msra.mxu0 %v4146
  %5858 = vmatprep.subr.bf16.mxu0 0
  %5859 = vmatpush1.bf16.msra.mxu0 %v4147
  %5860 = vmatprep.subr.bf16.mxu0 0
  %5861 = vmatpush1.bf16.msra.mxu0 %v4148
  %5862 = vmatprep.subr.bf16.mxu0 0
  %5863 = vmatpush1.bf16.msra.mxu0 %v4149
  %5864 = vmatprep.subr.bf16.mxu0 0
  %5865 = vmatpush1.bf16.msra.mxu0 %v4150
  %5866 = vmatprep.subr.bf16.mxu0 0
  %5867 = vmatpush1.bf16.msra.mxu0 %v4151
  %5868 = vmatprep.subr.bf16.mxu0 0
  %5869 = vmatpush1.bf16.msra.mxu0 %v4152
  %5870 = vmatprep.subr.bf16.mxu0 0
  %5871 = vmatpush1.bf16.msra.mxu0 %v4153
  %5872 = vmatprep.subr.bf16.mxu0 0
  %5873 = vmatpush1.bf16.msra.mxu0 %v4154
  %5874 = vmatprep.subr.bf16.mxu0 0
  %5875 = vmatpush1.bf16.msra.mxu0 %v4155
  %5876 = vmatprep.mubr.bf16.mxu0 %v1371
  %5877 = vmatmul.mubr.bf16.gmra.mrb[0].mxu0 %v1370
  %v5878 = vpop.f32.mrb[0].mxu0
  %v5879 = vadd.f32 %v5839, %v5878
  %v5880 = vpop.f32.mrb[0].mxu0
  %v5881 = vpop.f32.mrb[0].mxu0
  %v5882 = vpop.f32.mrb[0].mxu0
  %5883 = vdwg.mxu0
  %5884 = vmatprep.subr.bf16.mxu0 0
  %5885 = vmatpush1.bf16.msra.mxu0 %v4156
  %5886 = vmatprep.subr.bf16.mxu0 0
  %5887 = vmatpush1.bf16.msra.mxu0 %v4157
  %5888 = vmatprep.subr.bf16.mxu0 0
  %5889 = vmatpush1.bf16.msra.mxu0 %v4158
  %5890 = vmatprep.subr.bf16.mxu0 0
  %5891 = vmatpush1.bf16.msra.mxu0 %v4159
  %5892 = vmatprep.subr.bf16.mxu0 0
  %5893 = vmatpush1.bf16.msra.mxu0 %v4160
  %5894 = vmatprep.subr.bf16.mxu0 0
  %5895 = vmatpush1.bf16.msra.mxu0 %v4161
  %5896 = vmatprep.subr.bf16.mxu0 0
  %5897 = vmatpush1.bf16.msra.mxu0 %v4162
  %5898 = vmatprep.subr.bf16.mxu0 0
  %5899 = vmatpush1.bf16.msra.mxu0 %v4163
  %5900 = vmatprep.subr.bf16.mxu0 0
  %5901 = vmatpush1.bf16.msra.mxu0 %v4164
  %5902 = vmatprep.subr.bf16.mxu0 0
  %5903 = vmatpush1.bf16.msra.mxu0 %v4165
  %5904 = vmatprep.subr.bf16.mxu0 0
  %5905 = vmatpush1.bf16.msra.mxu0 %v4166
  %5906 = vmatprep.subr.bf16.mxu0 0
  %5907 = vmatpush1.bf16.msra.mxu0 %v4167
  %5908 = vmatprep.subr.bf16.mxu0 0
  %5909 = vmatpush1.bf16.msra.mxu0 %v4168
  %5910 = vmatprep.subr.bf16.mxu0 0
  %5911 = vmatpush1.bf16.msra.mxu0 %v4169
  %5912 = vmatprep.subr.bf16.mxu0 0
  %5913 = vmatpush1.bf16.msra.mxu0 %v4170
  %5914 = vmatprep.subr.bf16.mxu0 0
  %5915 = vmatpush1.bf16.msra.mxu0 %v4171
  %5916 = vmatprep.mubr.bf16.mxu0 %v1373
  %5917 = vmatmul.mubr.bf16.gmra.mrb[0].mxu0 %v1372
  %v5918 = vpop.f32.mrb[0].mxu0
  %v5919 = vadd.f32 %v5879, %v5918
  %v5920 = vpop.f32.mrb[0].mxu0
  %v5921 = vpop.f32.mrb[0].mxu0
  %v5922 = vpop.f32.mrb[0].mxu0
  %5923 = vdwg.mxu0
  %5924 = vmatprep.subr.bf16.mxu0 0
  %5925 = vmatpush1.bf16.msra.mxu0 %v4172
  %5926 = vmatprep.subr.bf16.mxu0 0
  %5927 = vmatpush1.bf16.msra.mxu0 %v4173
  %5928 = vmatprep.subr.bf16.mxu0 0
  %5929 = vmatpush1.bf16.msra.mxu0 %v4174
  %5930 = vmatprep.subr.bf16.mxu0 0
  %5931 = vmatpush1.bf16.msra.mxu0 %v4175
  %5932 = vmatprep.subr.bf16.mxu0 0
  %5933 = vmatpush1.bf16.msra.mxu0 %v4176
  %5934 = vmatprep.subr.bf16.mxu0 0
  %5935 = vmatpush1.bf16.msra.mxu0 %v4177
  %5936 = vmatprep.subr.bf16.mxu0 0
  %5937 = vmatpush1.bf16.msra.mxu0 %v4178
  %5938 = vmatprep.subr.bf16.mxu0 0
  %5939 = vmatpush1.bf16.msra.mxu0 %v4179
  %5940 = vmatprep.subr.bf16.mxu0 0
  %5941 = vmatpush1.bf16.msra.mxu0 %v4180
  %5942 = vmatprep.subr.bf16.mxu0 0
  %5943 = vmatpush1.bf16.msra.mxu0 %v4181
  %5944 = vmatprep.subr.bf16.mxu0 0
  %5945 = vmatpush1.bf16.msra.mxu0 %v4182
  %5946 = vmatprep.subr.bf16.mxu0 0
  %5947 = vmatpush1.bf16.msra.mxu0 %v4183
  %5948 = vmatprep.subr.bf16.mxu0 0
  %5949 = vmatpush1.bf16.msra.mxu0 %v4184
  %5950 = vmatprep.subr.bf16.mxu0 0
  %5951 = vmatpush1.bf16.msra.mxu0 %v4185
  %5952 = vmatprep.subr.bf16.mxu0 0
  %5953 = vmatpush1.bf16.msra.mxu0 %v4186
  %5954 = vmatprep.subr.bf16.mxu0 0
  %5955 = vmatpush1.bf16.msra.mxu0 %v4187
  %5956 = vmatprep.mubr.bf16.mxu0 %v1375
  %5957 = vmatmul.mubr.bf16.gmra.mrb[0].mxu0 %v1374
  %v5958 = vpop.f32.mrb[0].mxu0
  %v5959 = vadd.f32 %v5919, %v5958
  %v5960 = vpop.f32.mrb[0].mxu0
  %v5961 = vpop.f32.mrb[0].mxu0
  %v5962 = vpop.f32.mrb[0].mxu0
  %5963 = vdwg.mxu0
  %5964 = vmatprep.subr.bf16.mxu0 0
  %5965 = vmatpush1.bf16.msra.mxu0 %v4188
  %5966 = vmatprep.subr.bf16.mxu0 0
  %5967 = vmatpush1.bf16.msra.mxu0 %v4189
  %5968 = vmatprep.subr.bf16.mxu0 0
  %5969 = vmatpush1.bf16.msra.mxu0 %v4190
  %5970 = vmatprep.subr.bf16.mxu0 0
  %5971 = vmatpush1.bf16.msra.mxu0 %v4191
  %5972 = vmatprep.subr.bf16.mxu0 0
  %5973 = vmatpush1.bf16.msra.mxu0 %v4192
  %5974 = vmatprep.subr.bf16.mxu0 0
  %5975 = vmatpush1.bf16.msra.mxu0 %v4193
  %5976 = vmatprep.subr.bf16.mxu0 0
  %5977 = vmatpush1.bf16.msra.mxu0 %v4194
  %5978 = vmatprep.subr.bf16.mxu0 0
  %5979 = vmatpush1.bf16.msra.mxu0 %v4195
  %5980 = vmatprep.subr.bf16.mxu0 0
  %5981 = vmatpush1.bf16.msra.mxu0 %v4196
  %5982 = vmatprep.subr.bf16.mxu0 0
  %5983 = vmatpush1.bf16.msra.mxu0 %v4197
  %5984 = vmatprep.subr.bf16.mxu0 0
  %5985 = vmatpush1.bf16.msra.mxu0 %v4198
  %5986 = vmatprep.subr.bf16.mxu0 0
  %5987 = vmatpush1.bf16.msra.mxu0 %v4199
  %5988 = vmatprep.subr.bf16.mxu0 0
  %5989 = vmatpush1.bf16.msra.mxu0 %v4200
  %5990 = vmatprep.subr.bf16.mxu0 0
  %5991 = vmatpush1.bf16.msra.mxu0 %v4201
  %5992 = vmatprep.subr.bf16.mxu0 0
  %5993 = vmatpush1.bf16.msra.mxu0 %v4202
  %5994 = vmatprep.subr.bf16.mxu0 0
  %5995 = vmatpush1.bf16.msra.mxu0 %v4203
  %5996 = vmatprep.mubr.bf16.mxu0 %v1377
  %5997 = vmatmul.mubr.bf16.gmra.mrb[0].mxu0 %v1376
  %v5998 = vpop.f32.mrb[0].mxu0
  %v5999 = vadd.f32 %v5959, %v5998
  %v6000 = vpop.f32.mrb[0].mxu0
  %v6001 = vpop.f32.mrb[0].mxu0
  %v6002 = vpop.f32.mrb[0].mxu0
  %6003 = vdwg.mxu0
  %6004 = vmatprep.subr.bf16.mxu0 0
  %6005 = vmatpush1.bf16.msra.mxu0 %v4204
  %6006 = vmatprep.subr.bf16.mxu0 0
  %6007 = vmatpush1.bf16.msra.mxu0 %v4205
  %6008 = vmatprep.subr.bf16.mxu0 0
  %6009 = vmatpush1.bf16.msra.mxu0 %v4206
  %6010 = vmatprep.subr.bf16.mxu0 0
  %6011 = vmatpush1.bf16.msra.mxu0 %v4207
  %6012 = vmatprep.subr.bf16.mxu0 0
  %6013 = vmatpush1.bf16.msra.mxu0 %v4208
  %6014 = vmatprep.subr.bf16.mxu0 0
  %6015 = vmatpush1.bf16.msra.mxu0 %v4209
  %6016 = vmatprep.subr.bf16.mxu0 0
  %6017 = vmatpush1.bf16.msra.mxu0 %v4210
  %6018 = vmatprep.subr.bf16.mxu0 0
  %6019 = vmatpush1.bf16.msra.mxu0 %v4211
  %6020 = vmatprep.subr.bf16.mxu0 0
  %6021 = vmatpush1.bf16.msra.mxu0 %v4212
  %6022 = vmatprep.subr.bf16.mxu0 0
  %6023 = vmatpush1.bf16.msra.mxu0 %v4213
  %6024 = vmatprep.subr.bf16.mxu0 0
  %6025 = vmatpush1.bf16.msra.mxu0 %v4214
  %6026 = vmatprep.subr.bf16.mxu0 0
  %6027 = vmatpush1.bf16.msra.mxu0 %v4215
  %6028 = vmatprep.subr.bf16.mxu0 0
  %6029 = vmatpush1.bf16.msra.mxu0 %v4216
  %6030 = vmatprep.subr.bf16.mxu0 0
  %6031 = vmatpush1.bf16.msra.mxu0 %v4217
  %6032 = vmatprep.subr.bf16.mxu0 0
  %6033 = vmatpush1.bf16.msra.mxu0 %v4218
  %6034 = vmatprep.subr.bf16.mxu0 0
  %6035 = vmatpush1.bf16.msra.mxu0 %v4219
  %6036 = vmatprep.mubr.bf16.mxu0 %v1379
  %6037 = vmatmul.mubr.bf16.gmra.mrb[0].mxu0 %v1378
  %v6038 = vpop.f32.mrb[0].mxu0
  %v6039 = vadd.f32 %v5999, %v6038
  %v6040 = vpop.f32.mrb[0].mxu0
  %v6041 = vpop.f32.mrb[0].mxu0
  %v6042 = vpop.f32.mrb[0].mxu0
  %6043 = vdwg.mxu0
  %6044 = vmatprep.subr.bf16.mxu0 0
  %6045 = vmatpush1.bf16.msra.mxu0 %v4220
  %6046 = vmatprep.subr.bf16.mxu0 0
  %6047 = vmatpush1.bf16.msra.mxu0 %v4221
  %6048 = vmatprep.subr.bf16.mxu0 0
  %6049 = vmatpush1.bf16.msra.mxu0 %v4222
  %6050 = vmatprep.subr.bf16.mxu0 0
  %6051 = vmatpush1.bf16.msra.mxu0 %v4223
  %6052 = vmatprep.subr.bf16.mxu0 0
  %6053 = vmatpush1.bf16.msra.mxu0 %v4224
  %6054 = vmatprep.subr.bf16.mxu0 0
  %6055 = vmatpush1.bf16.msra.mxu0 %v4225
  %6056 = vmatprep.subr.bf16.mxu0 0
  %6057 = vmatpush1.bf16.msra.mxu0 %v4226
  %6058 = vmatprep.subr.bf16.mxu0 0
  %6059 = vmatpush1.bf16.msra.mxu0 %v4227
  %6060 = vmatprep.subr.bf16.mxu0 0
  %6061 = vmatpush1.bf16.msra.mxu0 %v4228
  %6062 = vmatprep.subr.bf16.mxu0 0
  %6063 = vmatpush1.bf16.msra.mxu0 %v4229
  %6064 = vmatprep.subr.bf16.mxu0 0
  %6065 = vmatpush1.bf16.msra.mxu0 %v4230
  %6066 = vmatprep.subr.bf16.mxu0 0
  %6067 = vmatpush1.bf16.msra.mxu0 %v4231
  %6068 = vmatprep.subr.bf16.mxu0 0
  %6069 = vmatpush1.bf16.msra.mxu0 %v4232
  %6070 = vmatprep.subr.bf16.mxu0 0
  %6071 = vmatpush1.bf16.msra.mxu0 %v4233
  %6072 = vmatprep.subr.bf16.mxu0 0
  %6073 = vmatpush1.bf16.msra.mxu0 %v4234
  %6074 = vmatprep.subr.bf16.mxu0 0
  %6075 = vmatpush1.bf16.msra.mxu0 %v4235
  %6076 = vmatprep.mubr.bf16.mxu0 %v1381
  %6077 = vmatmul.mubr.bf16.gmra.mrb[0].mxu0 %v1380
  %v6078 = vpop.f32.mrb[0].mxu0
  %v6079 = vadd.f32 %v6039, %v6078
  %v6080 = vpop.f32.mrb[0].mxu0
  %v6081 = vpop.f32.mrb[0].mxu0
  %v6082 = vpop.f32.mrb[0].mxu0
  %6083 = vdwg.mxu0
  %6084 = vmatprep.subr.bf16.mxu0 0
  %6085 = vmatpush1.bf16.msra.mxu0 %v4236
  %6086 = vmatprep.subr.bf16.mxu0 0
  %6087 = vmatpush1.bf16.msra.mxu0 %v4237
  %6088 = vmatprep.subr.bf16.mxu0 0
  %6089 = vmatpush1.bf16.msra.mxu0 %v4238
  %6090 = vmatprep.subr.bf16.mxu0 0
  %6091 = vmatpush1.bf16.msra.mxu0 %v4239
  %6092 = vmatprep.subr.bf16.mxu0 0
  %6093 = vmatpush1.bf16.msra.mxu0 %v4240
  %6094 = vmatprep.subr.bf16.mxu0 0
  %6095 = vmatpush1.bf16.msra.mxu0 %v4241
  %6096 = vmatprep.subr.bf16.mxu0 0
  %6097 = vmatpush1.bf16.msra.mxu0 %v4242
  %6098 = vmatprep.subr.bf16.mxu0 0
  %6099 = vmatpush1.bf16.msra.mxu0 %v4243
  %6100 = vmatprep.subr.bf16.mxu0 0
  %6101 = vmatpush1.bf16.msra.mxu0 %v4244
  %6102 = vmatprep.subr.bf16.mxu0 0
  %6103 = vmatpush1.bf16.msra.mxu0 %v4245
  %6104 = vmatprep.subr.bf16.mxu0 0
  %6105 = vmatpush1.bf16.msra.mxu0 %v4246
  %6106 = vmatprep.subr.bf16.mxu0 0
  %6107 = vmatpush1.bf16.msra.mxu0 %v4247
  %6108 = vmatprep.subr.bf16.mxu0 0
  %6109 = vmatpush1.bf16.msra.mxu0 %v4248
  %6110 = vmatprep.subr.bf16.mxu0 0
  %6111 = vmatpush1.bf16.msra.mxu0 %v4249
  %6112 = vmatprep.subr.bf16.mxu0 0
  %6113 = vmatpush1.bf16.msra.mxu0 %v4250
  %6114 = vmatprep.subr.bf16.mxu0 0
  %6115 = vmatpush1.bf16.msra.mxu0 %v4251
  %6116 = vmatprep.mubr.bf16.mxu0 %v1383
  %6117 = vmatmul.mubr.bf16.gmra.mrb[0].mxu0 %v1382
  %v6118 = vpop.f32.mrb[0].mxu0
  %v6119 = vadd.f32 %v6079, %v6118
  %v6120 = vpop.f32.mrb[0].mxu0
  %v6121 = vpop.f32.mrb[0].mxu0
  %v6122 = vpop.f32.mrb[0].mxu0
  %6123 = vdwg.mxu0
  %6124 = vmatprep.subr.bf16.mxu0 0
  %6125 = vmatpush1.bf16.msra.mxu0 %v4252
  %6126 = vmatprep.subr.bf16.mxu0 0
  %6127 = vmatpush1.bf16.msra.mxu0 %v4253
  %6128 = vmatprep.subr.bf16.mxu0 0
  %6129 = vmatpush1.bf16.msra.mxu0 %v4254
  %6130 = vmatprep.subr.bf16.mxu0 0
  %6131 = vmatpush1.bf16.msra.mxu0 %v4255
  %6132 = vmatprep.subr.bf16.mxu0 0
  %6133 = vmatpush1.bf16.msra.mxu0 %v4256
  %6134 = vmatprep.subr.bf16.mxu0 0
  %6135 = vmatpush1.bf16.msra.mxu0 %v4257
  %6136 = vmatprep.subr.bf16.mxu0 0
  %6137 = vmatpush1.bf16.msra.mxu0 %v4258
  %6138 = vmatprep.subr.bf16.mxu0 0
  %6139 = vmatpush1.bf16.msra.mxu0 %v4259
  %6140 = vmatprep.subr.bf16.mxu0 0
  %6141 = vmatpush1.bf16.msra.mxu0 %v4260
  %6142 = vmatprep.subr.bf16.mxu0 0
  %6143 = vmatpush1.bf16.msra.mxu0 %v4261
  %6144 = vmatprep.subr.bf16.mxu0 0
  %6145 = vmatpush1.bf16.msra.mxu0 %v4262
  %6146 = vmatprep.subr.bf16.mxu0 0
  %6147 = vmatpush1.bf16.msra.mxu0 %v4263
  %6148 = vmatprep.subr.bf16.mxu0 0
  %6149 = vmatpush1.bf16.msra.mxu0 %v4264
  %6150 = vmatprep.subr.bf16.mxu0 0
  %6151 = vmatpush1.bf16.msra.mxu0 %v4265
  %6152 = vmatprep.subr.bf16.mxu0 0
  %6153 = vmatpush1.bf16.msra.mxu0 %v4266
  %6154 = vmatprep.subr.bf16.mxu0 0
  %6155 = vmatpush1.bf16.msra.mxu0 %v4267
  %6156 = vmatprep.mubr.bf16.mxu0 %v1385
  %6157 = vmatmul.mubr.bf16.gmra.mrb[0].mxu0 %v1384
  %v6158 = vpop.f32.mrb[0].mxu0
  %v6159 = vadd.f32 %v6119, %v6158
  %v6160 = vpop.f32.mrb[0].mxu0
  %v6161 = vpop.f32.mrb[0].mxu0
  %v6162 = vpop.f32.mrb[0].mxu0
  %6163 = vdwg.mxu0
  %6164 = vmatprep.subr.bf16.mxu0 0
  %6165 = vmatpush1.bf16.msra.mxu0 %v4268
  %6166 = vmatprep.subr.bf16.mxu0 0
  %6167 = vmatpush1.bf16.msra.mxu0 %v4269
  %6168 = vmatprep.subr.bf16.mxu0 0
  %6169 = vmatpush1.bf16.msra.mxu0 %v4270
  %6170 = vmatprep.subr.bf16.mxu0 0
  %6171 = vmatpush1.bf16.msra.mxu0 %v4271
  %6172 = vmatprep.subr.bf16.mxu0 0
  %6173 = vmatpush1.bf16.msra.mxu0 %v4272
  %6174 = vmatprep.subr.bf16.mxu0 0
  %6175 = vmatpush1.bf16.msra.mxu0 %v4273
  %6176 = vmatprep.subr.bf16.mxu0 0
  %6177 = vmatpush1.bf16.msra.mxu0 %v4274
  %6178 = vmatprep.subr.bf16.mxu0 0
  %6179 = vmatpush1.bf16.msra.mxu0 %v4275
  %6180 = vmatprep.subr.bf16.mxu0 0
  %6181 = vmatpush1.bf16.msra.mxu0 %v4276
  %6182 = vmatprep.subr.bf16.mxu0 0
  %6183 = vmatpush1.bf16.msra.mxu0 %v4277
  %6184 = vmatprep.subr.bf16.mxu0 0
  %6185 = vmatpush1.bf16.msra.mxu0 %v4278
  %6186 = vmatprep.subr.bf16.mxu0 0
  %6187 = vmatpush1.bf16.msra.mxu0 %v4279
  %6188 = vmatprep.subr.bf16.mxu0 0
  %6189 = vmatpush1.bf16.msra.mxu0 %v4280
  %6190 = vmatprep.subr.bf16.mxu0 0
  %6191 = vmatpush1.bf16.msra.mxu0 %v4281
  %6192 = vmatprep.subr.bf16.mxu0 0
  %6193 = vmatpush1.bf16.msra.mxu0 %v4282
  %6194 = vmatprep.subr.bf16.mxu0 0
  %6195 = vmatpush1.bf16.msra.mxu0 %v4283
  %6196 = vmatprep.mubr.bf16.mxu0 %v1387
  %6197 = vmatmul.mubr.bf16.gmra.mrb[0].mxu0 %v1386
  %v6198 = vpop.f32.mrb[0].mxu0
  %v6199 = vadd.f32 %v6159, %v6198
  %v6200 = vpop.f32.mrb[0].mxu0
  %v6201 = vpop.f32.mrb[0].mxu0
  %v6202 = vpop.f32.mrb[0].mxu0
  %6203 = vdwg.mxu0
  %6204 = vmatprep.subr.bf16.mxu0 0
  %6205 = vmatpush1.bf16.msra.mxu0 %v4284
  %6206 = vmatprep.subr.bf16.mxu0 0
  %6207 = vmatpush1.bf16.msra.mxu0 %v4285
  %6208 = vmatprep.subr.bf16.mxu0 0
  %6209 = vmatpush1.bf16.msra.mxu0 %v4286
  %6210 = vmatprep.subr.bf16.mxu0 0
  %6211 = vmatpush1.bf16.msra.mxu0 %v4287
  %6212 = vmatprep.subr.bf16.mxu0 0
  %6213 = vmatpush1.bf16.msra.mxu0 %v4288
  %6214 = vmatprep.subr.bf16.mxu0 0
  %6215 = vmatpush1.bf16.msra.mxu0 %v4289
  %6216 = vmatprep.subr.bf16.mxu0 0
  %6217 = vmatpush1.bf16.msra.mxu0 %v4290
  %6218 = vmatprep.subr.bf16.mxu0 0
  %6219 = vmatpush1.bf16.msra.mxu0 %v4291
  %6220 = vmatprep.subr.bf16.mxu0 0
  %6221 = vmatpush1.bf16.msra.mxu0 %v4292
  %6222 = vmatprep.subr.bf16.mxu0 0
  %6223 = vmatpush1.bf16.msra.mxu0 %v4293
  %6224 = vmatprep.subr.bf16.mxu0 0
  %6225 = vmatpush1.bf16.msra.mxu0 %v4294
  %6226 = vmatprep.subr.bf16.mxu0 0
  %6227 = vmatpush1.bf16.msra.mxu0 %v4295
  %6228 = vmatprep.subr.bf16.mxu0 0
  %6229 = vmatpush1.bf16.msra.mxu0 %v4296
  %6230 = vmatprep.subr.bf16.mxu0 0
  %6231 = vmatpush1.bf16.msra.mxu0 %v4297
  %6232 = vmatprep.subr.bf16.mxu0 0
  %6233 = vmatpush1.bf16.msra.mxu0 %v4298
  %6234 = vmatprep.subr.bf16.mxu0 0
  %6235 = vmatpush1.bf16.msra.mxu0 %v4299
  %6236 = vmatprep.mubr.bf16.mxu0 %v1389
  %6237 = vmatmul.mubr.bf16.gmra.mrb[0].mxu0 %v1388
  %v6238 = vpop.f32.mrb[0].mxu0
  %v6239 = vadd.f32 %v6199, %v6238
  %v6240 = vpop.f32.mrb[0].mxu0
  %v6241 = vpop.f32.mrb[0].mxu0
  %v6242 = vpop.f32.mrb[0].mxu0
  %6243 = vdwg.mxu0
  %6244 = vmatprep.subr.bf16.mxu0 0
  %6245 = vmatpush1.bf16.msra.mxu0 %v4300
  %6246 = vmatprep.subr.bf16.mxu0 0
  %6247 = vmatpush1.bf16.msra.mxu0 %v4301
  %6248 = vmatprep.subr.bf16.mxu0 0
  %6249 = vmatpush1.bf16.msra.mxu0 %v4302
  %6250 = vmatprep.subr.bf16.mxu0 0
  %6251 = vmatpush1.bf16.msra.mxu0 %v4303
  %6252 = vmatprep.subr.bf16.mxu0 0
  %6253 = vmatpush1.bf16.msra.mxu0 %v4304
  %6254 = vmatprep.subr.bf16.mxu0 0
  %6255 = vmatpush1.bf16.msra.mxu0 %v4305
  %6256 = vmatprep.subr.bf16.mxu0 0
  %6257 = vmatpush1.bf16.msra.mxu0 %v4306
  %6258 = vmatprep.subr.bf16.mxu0 0
  %6259 = vmatpush1.bf16.msra.mxu0 %v4307
  %6260 = vmatprep.subr.bf16.mxu0 0
  %6261 = vmatpush1.bf16.msra.mxu0 %v4308
  %6262 = vmatprep.subr.bf16.mxu0 0
  %6263 = vmatpush1.bf16.msra.mxu0 %v4309
  %6264 = vmatprep.subr.bf16.mxu0 0
  %6265 = vmatpush1.bf16.msra.mxu0 %v4310
  %6266 = vmatprep.subr.bf16.mxu0 0
  %6267 = vmatpush1.bf16.msra.mxu0 %v4311
  %6268 = vmatprep.subr.bf16.mxu0 0
  %6269 = vmatpush1.bf16.msra.mxu0 %v4312
  %6270 = vmatprep.subr.bf16.mxu0 0
  %6271 = vmatpush1.bf16.msra.mxu0 %v4313
  %6272 = vmatprep.subr.bf16.mxu0 0
  %6273 = vmatpush1.bf16.msra.mxu0 %v4314
  %6274 = vmatprep.subr.bf16.mxu0 0
  %6275 = vmatpush1.bf16.msra.mxu0 %v4315
  %6276 = vmatprep.mubr.bf16.mxu0 %v1391
  %6277 = vmatmul.mubr.bf16.gmra.mrb[0].mxu0 %v1390
  %v6278 = vpop.f32.mrb[0].mxu0
  %v6279 = vadd.f32 %v6239, %v6278
  %v6280 = vpop.f32.mrb[0].mxu0
  %v6281 = vpop.f32.mrb[0].mxu0
  %v6282 = vpop.f32.mrb[0].mxu0
  %6283 = vdwg.mxu0
  %6284 = vmatprep.subr.bf16.mxu0 0
  %6285 = vmatpush1.bf16.msra.mxu0 %v4316
  %6286 = vmatprep.subr.bf16.mxu0 0
  %6287 = vmatpush1.bf16.msra.mxu0 %v4317
  %6288 = vmatprep.subr.bf16.mxu0 0
  %6289 = vmatpush1.bf16.msra.mxu0 %v4318
  %6290 = vmatprep.subr.bf16.mxu0 0
  %6291 = vmatpush1.bf16.msra.mxu0 %v4319
  %6292 = vmatprep.subr.bf16.mxu0 0
  %6293 = vmatpush1.bf16.msra.mxu0 %v4320
  %6294 = vmatprep.subr.bf16.mxu0 0
  %6295 = vmatpush1.bf16.msra.mxu0 %v4321
  %6296 = vmatprep.subr.bf16.mxu0 0
  %6297 = vmatpush1.bf16.msra.mxu0 %v4322
  %6298 = vmatprep.subr.bf16.mxu0 0
  %6299 = vmatpush1.bf16.msra.mxu0 %v4323
  %6300 = vmatprep.subr.bf16.mxu0 0
  %6301 = vmatpush1.bf16.msra.mxu0 %v4324
  %6302 = vmatprep.subr.bf16.mxu0 0
  %6303 = vmatpush1.bf16.msra.mxu0 %v4325
  %6304 = vmatprep.subr.bf16.mxu0 0
  %6305 = vmatpush1.bf16.msra.mxu0 %v4326
  %6306 = vmatprep.subr.bf16.mxu0 0
  %6307 = vmatpush1.bf16.msra.mxu0 %v4327
  %6308 = vmatprep.subr.bf16.mxu0 0
  %6309 = vmatpush1.bf16.msra.mxu0 %v4328
  %6310 = vmatprep.subr.bf16.mxu0 0
  %6311 = vmatpush1.bf16.msra.mxu0 %v4329
  %6312 = vmatprep.subr.bf16.mxu0 0
  %6313 = vmatpush1.bf16.msra.mxu0 %v4330
  %6314 = vmatprep.subr.bf16.mxu0 0
  %6315 = vmatpush1.bf16.msra.mxu0 %v4331
  %6316 = vmatprep.mubr.bf16.mxu0 %v1393
  %6317 = vmatmul.mubr.bf16.gmra.mrb[0].mxu0 %v1392
  %v6318 = vpop.f32.mrb[0].mxu0
  %v6319 = vadd.f32 %v6279, %v6318
  %v6320 = vpop.f32.mrb[0].mxu0
  %v6321 = vpop.f32.mrb[0].mxu0
  %v6322 = vpop.f32.mrb[0].mxu0
  %6323 = vdwg.mxu0
  %6324 = vmatprep.subr.bf16.mxu0 0
  %6325 = vmatpush1.bf16.msra.mxu0 %v4332
  %6326 = vmatprep.subr.bf16.mxu0 0
  %6327 = vmatpush1.bf16.msra.mxu0 %v4333
  %6328 = vmatprep.subr.bf16.mxu0 0
  %6329 = vmatpush1.bf16.msra.mxu0 %v4334
  %6330 = vmatprep.subr.bf16.mxu0 0
  %6331 = vmatpush1.bf16.msra.mxu0 %v4335
  %6332 = vmatprep.subr.bf16.mxu0 0
  %6333 = vmatpush1.bf16.msra.mxu0 %v4336
  %6334 = vmatprep.subr.bf16.mxu0 0
  %6335 = vmatpush1.bf16.msra.mxu0 %v4337
  %6336 = vmatprep.subr.bf16.mxu0 0
  %6337 = vmatpush1.bf16.msra.mxu0 %v4338
  %6338 = vmatprep.subr.bf16.mxu0 0
  %6339 = vmatpush1.bf16.msra.mxu0 %v4339
  %6340 = vmatprep.subr.bf16.mxu0 0
  %6341 = vmatpush1.bf16.msra.mxu0 %v4340
  %6342 = vmatprep.subr.bf16.mxu0 0
  %6343 = vmatpush1.bf16.msra.mxu0 %v4341
  %6344 = vmatprep.subr.bf16.mxu0 0
  %6345 = vmatpush1.bf16.msra.mxu0 %v4342
  %6346 = vmatprep.subr.bf16.mxu0 0
  %6347 = vmatpush1.bf16.msra.mxu0 %v4343
  %6348 = vmatprep.subr.bf16.mxu0 0
  %6349 = vmatpush1.bf16.msra.mxu0 %v4344
  %6350 = vmatprep.subr.bf16.mxu0 0
  %6351 = vmatpush1.bf16.msra.mxu0 %v4345
  %6352 = vmatprep.subr.bf16.mxu0 0
  %6353 = vmatpush1.bf16.msra.mxu0 %v4346
  %6354 = vmatprep.subr.bf16.mxu0 0
  %6355 = vmatpush1.bf16.msra.mxu0 %v4347
  %6356 = vmatprep.mubr.bf16.mxu0 %v1395
  %6357 = vmatmul.mubr.bf16.gmra.mrb[0].mxu0 %v1394
  %v6358 = vpop.f32.mrb[0].mxu0
  %v6359 = vadd.f32 %v6319, %v6358
  %v6360 = vpop.f32.mrb[0].mxu0
  %v6361 = vpop.f32.mrb[0].mxu0
  %v6362 = vpop.f32.mrb[0].mxu0
  %6363 = vdwg.mxu0
  %v6364 = vmax.f32 %v6359, 0.0
  %v6365 = vld [vmem:[%s3] sm:$0xff]
  %v6366 = vld [vmem:[%s3 + $0x8] sm:$0xff]
  %v6367 = vld [vmem:[%s3 + $0x10] sm:$0xff]
  %v6368 = vld [vmem:[%s3 + $0x18] sm:$0xff]
  %v6369 = vld [vmem:[%s3 + $0x20] sm:$0xff]
  %v6370 = vld [vmem:[%s3 + $0x28] sm:$0xff]
  %v6371 = vld [vmem:[%s3 + $0x30] sm:$0xff]
  %v6372 = vld [vmem:[%s3 + $0x38] sm:$0xff]
  %v6373 = vld [vmem:[%s3 + $0x40] sm:$0xff]
  %v6374 = vld [vmem:[%s3 + $0x48] sm:$0xff]
  %v6375 = vld [vmem:[%s3 + $0x50] sm:$0xff]
  %v6376 = vld [vmem:[%s3 + $0x58] sm:$0xff]
  %v6377 = vld [vmem:[%s3 + $0x60] sm:$0xff]
  %v6378 = vld [vmem:[%s3 + $0x68] sm:$0xff]
  %v6379 = vld [vmem:[%s3 + $0x70] sm:$0xff]
  %v6380 = vld [vmem:[%s3 + $0x78] sm:$0xff]
  %v6381 = vld [vmem:[%s4] sm:$0x1]
  %v6383 = vlaneseq
  %v6384 = vshrl.u32 %v6383, 7
  %v6385 = vsub.s32 0, %v6384
  %v6386 = vrot.slane %v6381, %v6385
  %6388 = vmatprep.subr.mxu0 0.0
  %6389 = vmatpush1.msra.mxu0 %v6365
  %6390 = vmatprep.subr.mxu0 0.0
  %6391 = vmatpush1.msra.mxu0 %v6366
  %6392 = vmatprep.subr.mxu0 0.0
  %6393 = vmatpush1.msra.mxu0 %v6367
  %6394 = vmatprep.subr.mxu0 0.0
  %6395 = vmatpush1.msra.mxu0 %v6368
  %6396 = vmatprep.subr.mxu0 0.0
  %6397 = vmatpush1.msra.mxu0 %v6369
  %6398 = vmatprep.subr.mxu0 0.0
  %6399 = vmatpush1.msra.mxu0 %v6370
  %6400 = vmatprep.subr.mxu0 0.0
  %6401 = vmatpush1.msra.mxu0 %v6371
  %6402 = vmatprep.subr.mxu0 0.0
  %6403 = vmatpush1.msra.mxu0 %v6372
  %6404 = vmatprep.subr.mxu0 0.0
  %6405 = vmatpush1.msra.mxu0 %v6373
  %6406 = vmatprep.subr.mxu0 0.0
  %6407 = vmatpush1.msra.mxu0 %v6374
  %6408 = vmatprep.subr.mxu0 0.0
  %6409 = vmatpush1.msra.mxu0 %v6375
  %6410 = vmatprep.subr.mxu0 0.0
  %6411 = vmatpush1.msra.mxu0 %v6376
  %6412 = vmatprep.subr.mxu0 0.0
  %6413 = vmatpush1.msra.mxu0 %v6377
  %6414 = vmatprep.subr.mxu0 0.0
  %6415 = vmatpush1.msra.mxu0 %v6378
  %6416 = vmatprep.subr.mxu0 0.0
  %6417 = vmatpush1.msra.mxu0 %v6379
  %6418 = vmatprep.subr.mxu0 0.0
  %6419 = vmatpush1.msra.mxu0 %v6380
  %6420 = vmatprep.subr.mxu0 0.0
  %6421 = vmatpush1.msra.mxu0 0.0
  %6422 = vmatprep.subr.mxu0 0.0
  %6423 = vmatpush1.msra.mxu0 0.0
  %6424 = vmatprep.subr.mxu0 0.0
  %6425 = vmatpush1.msra.mxu0 0.0
  %6426 = vmatprep.subr.mxu0 0.0
  %6427 = vmatpush1.msra.mxu0 0.0
  %6428 = vmatprep.subr.mxu0 0.0
  %6429 = vmatpush1.msra.mxu0 0.0
  %6430 = vmatprep.subr.mxu0 0.0
  %6431 = vmatpush1.msra.mxu0 0.0
  %6432 = vmatprep.subr.mxu0 0.0
  %6433 = vmatpush1.msra.mxu0 0.0
  %6434 = vmatprep.subr.mxu0 0.0
  %6435 = vmatpush1.msra.mxu0 0.0
  %6436 = vmatprep.subr.mxu0 0.0
  %6437 = vmatpush1.msra.mxu0 0.0
  %6438 = vmatprep.subr.mxu0 0.0
  %6439 = vmatpush1.msra.mxu0 0.0
  %6440 = vmatprep.subr.mxu0 0.0
  %6441 = vmatpush1.msra.mxu0 0.0
  %6442 = vmatprep.subr.mxu0 0.0
  %6443 = vmatpush1.msra.mxu0 0.0
  %6444 = vmatprep.subr.mxu0 0.0
  %6445 = vmatpush1.msra.mxu0 0.0
  %6446 = vmatprep.subr.mxu0 0.0
  %6447 = vmatpush1.msra.mxu0 0.0
  %6448 = vmatprep.subr.mxu0 0.0
  %6449 = vmatpush1.msra.mxu0 0.0
  %6450 = vmatprep.subr.mxu0 0.0
  %6451 = vmatpush1.msra.mxu0 0.0
  %6452 = vmatprep.mubr.f32.mxu0 0.0
  %6453 = vmatmul.mubr.f32.gmra.mrb[0].mxu0 %v6364
  %v6454 = vpop.f32.mrb[0].mxu0
  %v6455 = vadd.f32 %v6386, %v6454
  %v6456 = vpop.f32.mrb[0].mxu0
  %6457 = vdwg.mxu0
  %vm6458 = vcmask 80896
  %v6459 = vsel %vm6458, %v6455, -inf
  %6460 = vmax.xlane.f32.xlu0 %v6459
  %v6461 = vpop.xlane.xlu0 %6460
  %v6462 = vsub.f32 %v6455, %v6461
  %v6463 = vmul.f32 %v6462, 1.442695
  %v6464 = vpow.pop %v6463
  %v6465 = vsel %vm6458, %v6464, 0.0
  %6466 = vadd.xlane.f32.xlu0 %v6465
  %v6467 = vpop.xlane.xlu0 %6466
  %v6468 = vlog2.pop %v6467
  %v6469 = vmul.f32 %v6468, 0.6931472
  %v6470 = vsub.f32 %v6462, %v6469
  %6471 = vst.msk [vmem:[%s5] sm:$0xff] %vm6458, %v6470
  // Predicated region
  $region22: #{forward.3} parent=0 // pred_check
    _
  $region23: #{forward.3} parent=0 // pred_check_branch
    %6473 = sbr.rel (0) target = $region25
  $region24: #{forward.3} parent=0 // pred_region
    _
  $region25: #{forward.3} parent=0 // pred_fallthru
    _
  // Predicated region
  $region26: #{forward.3} parent=0 // pred_check
    _
  $region27: #{forward.3} parent=0 // pred_check_branch
    %6475 = sbr.rel (0) target = $region29
  $region28: #{forward.3} parent=0 // pred_region
    _
  $region29: #{forward.3} parent=0 // pred_fallthru
    _

</llo_original>
